<compile_context>
chip_gen: v5e
topology: v5e:2x2
jax: 0.10.0
libtpu: 0.0.40
codegen_flags: <defaults>
</compile_context>

<pallas_src>
import jax
import jax.numpy as jnp
from jax.experimental import pallas as pl
from jax.experimental.pallas import tpu as pltpu

_LANE = 128  # output lane padding for the final layer


def _mlp_fused_kernel(x_ref,
                      w1_ref, s1_ref, b1_ref,
                      w2_ref, s2_ref, b2_ref,
                      w3_ref, s3_ref, b3_ref,
                      w4_ref, b4_ref,
                      o_ref):
    """Whole MLP forward in VMEM. Activations never leave the chip."""

    def dequant(w_ref):
        # int8 -> f32 -> bf16 (exact; int8 magnitudes fit bf16's mantissa).
        return w_ref[...].astype(jnp.float32).astype(jnp.bfloat16)

    def layer(h_bf16, w_bf16, scale, bias, relu):
        # bf16 MXU inputs, f32 accumulation; scale/bias/ReLU in f32 (v5e-safe).
        y = jnp.dot(h_bf16, w_bf16, preferred_element_type=jnp.float32)
        y = y * scale + bias
        if relu:
            y = jnp.maximum(y, 0.0)
        return y.astype(jnp.bfloat16)

    h = x_ref[...]                                   # already bf16
    h = layer(h, dequant(w1_ref), s1_ref[...], b1_ref[...], relu=True)

    w2 = dequant(w2_ref)                             # dequant ONCE, use twice
    s2 = s2_ref[...]
    b2 = b2_ref[...]
    h = layer(h, w2, s2, b2, relu=True)
    h = layer(h, w2, s2, b2, relu=True)              # layer2 applied again

    h = layer(h, dequant(w3_ref), s3_ref[...], b3_ref[...], relu=True)

    # Final layer: bf16 weights, lane-padded to 128 outputs (sliced in wrapper).
    y = jnp.dot(h, w4_ref[...], preferred_element_type=jnp.float32) + b4_ref[...]
    o_ref[...] = y


def mlp_forward(params, x, *, output_dim=10):
    """params: output of prepare_params(). x: [B, 784] f32 -> [B, output_dim] f32."""
    B = x.shape[0]
    x_bf16 = x.astype(jnp.bfloat16)

    inputs = [
        x_bf16,
        params["w1_q"], params["s1"], params["b1"],
        params["w2_q"], params["s2"], params["b2"],
        params["w3_q"], params["s3"], params["b3"],
        params["w4"], params["b4"],
    ]
    # Every operand is 2-D and small: one full-extent VMEM block each.
    in_specs = [pl.BlockSpec(a.shape, lambda i: (0, 0)) for a in inputs]

    out_padded = pl.pallas_call(
        _mlp_fused_kernel,
        out_shape=jax.ShapeDtypeStruct((B, _LANE), jnp.float32),
        grid_spec=pl.GridSpec(
            grid=(1,),
            in_specs=in_specs,
            out_specs=pl.BlockSpec((B, _LANE), lambda i: (0, 0)),
        ),
        compiler_params=pltpu.CompilerParams(
            dimension_semantics=("arbitrary",),
            vmem_limit_bytes=32 << 20,   # ~8 MiB actually needed; v7x-safe
        ),
    )(*inputs)
    return out_padded[:, :output_dim]


def init_params(key, output_dim=10):
    """f32 master params matching nn.Linear shapes (weights stored [in, out])."""
    dims = [(28 * 28, 1024), (1024, 1024), (1024, 512), (512, output_dim)]
    params = {}
    for idx, (d_in, d_out) in enumerate(dims, start=1):
        key, kw, kb = jax.random.split(key, 3)
        bound = 1.0 / jnp.sqrt(d_in)   # nn.Linear default uniform bound
        params[f"w{idx}"] = jax.random.uniform(
            kw, (d_in, d_out), jnp.float32, -bound, bound)
        params[f"b{idx}"] = jax.random.uniform(
            kb, (d_out,), jnp.float32, -bound, bound)
    return params


def prepare_params(params_f32):
    """Quantize w1/w2/w3 to int8 (per-output-channel), lane-pad layer 4."""
    p = {}
    for idx in (1, 2, 3):
        w = params_f32[f"w{idx}"]
        scale = jnp.max(jnp.abs(w), axis=0, keepdims=True) / 127.0     # (1, N)
        scale = jnp.maximum(scale, 1e-12)
        w_q = jnp.clip(jnp.round(w / scale), -127, 127).astype(jnp.int8)
        p[f"w{idx}_q"] = w_q
        p[f"s{idx}"] = scale.astype(jnp.float32)
        p[f"b{idx}"] = params_f32[f"b{idx}"].reshape(1, -1).astype(jnp.float32)
    # Layer 4: tiny -> keep bf16, zero-pad outputs to 128 lanes.
    w4 = params_f32["w4"]
    b4 = params_f32["b4"]
    pad = _LANE - w4.shape[1]
    p["w4"] = jnp.pad(w4, ((0, 0), (0, pad))).astype(jnp.bfloat16)
    p["b4"] = jnp.pad(b4, (0, pad)).reshape(1, -1).astype(jnp.float32)
    return p


if __name__ == "__main__":
    key = jax.random.PRNGKey(0)
    key, kx = jax.random.split(key)

    B, OUT = 8, 10
    x = jax.random.normal(kx, (B, 28 * 28), jnp.float32)
    params = prepare_params(init_params(key, output_dim=OUT))

    fwd = jax.jit(mlp_forward, static_argnames=("output_dim",))
    out = jax.block_until_ready(fwd(params, x, output_dim=OUT))

    # Pure-JAX reference using the SAME quantized weights / identical dtype
    # path (bf16 MXU inputs, f32 accumulation), so tolerances stay tight.
    def ref(p, x):
        def lyr(h, wq, s, b, relu):
            w = wq.astype(jnp.float32).astype(jnp.bfloat16)
            y = jnp.dot(h, w, preferred_element_type=jnp.float32) * s + b
            if relu:
                y = jnp.maximum(y, 0.0)
            return y.astype(jnp.bfloat16)

        h = x.astype(jnp.bfloat16)
        h = lyr(h, p["w1_q"], p["s1"], p["b1"], True)
        h = lyr(h, p["w2_q"], p["s2"], p["b2"], True)
        h = lyr(h, p["w2_q"], p["s2"], p["b2"], True)   # layer2 reused
        h = lyr(h, p["w3_q"], p["s3"], p["b3"], True)
        y = jnp.dot(h, p["w4"], preferred_element_type=jnp.float32) + p["b4"]
        return y[:, :OUT]

    expected = ref(params, x)
    assert out.shape == (B, OUT), out.shape
    assert jnp.allclose(out, expected, atol=2e-2, rtol=2e-2), (
        float(jnp.max(jnp.abs(out - expected))))

    print("KERNEL_OK")
</pallas_src>

<mosaic_0001>
module attributes {stable_mosaic.version = 11 : i64} {
  func.func @_mlp_fused_kernel(%arg0: i32, %arg1: memref<8x784xbf16, #tpu.memory_space<vmem>>, %arg2: memref<784x1024xi8, #tpu.memory_space<vmem>>, %arg3: memref<1x1024xf32, #tpu.memory_space<vmem>>, %arg4: memref<1x1024xf32, #tpu.memory_space<vmem>>, %arg5: memref<1024x1024xi8, #tpu.memory_space<vmem>>, %arg6: memref<1x1024xf32, #tpu.memory_space<vmem>>, %arg7: memref<1x1024xf32, #tpu.memory_space<vmem>>, %arg8: memref<1024x512xi8, #tpu.memory_space<vmem>>, %arg9: memref<1x512xf32, #tpu.memory_space<vmem>>, %arg10: memref<1x512xf32, #tpu.memory_space<vmem>>, %arg11: memref<512x128xbf16, #tpu.memory_space<vmem>>, %arg12: memref<1x128xf32, #tpu.memory_space<vmem>>, %arg13: memref<8x128xf32, #tpu.memory_space<vmem>>) attributes {dimension_semantics = [#tpu.dimension_semantics<arbitrary>], iteration_bounds = array<i64: 1>, scalar_prefetch = 0 : i64, scratch_operands = 0 : i64, tpu.core_type = #tpu.core_type<tc>, window_params = [{pipeline_mode = #tpu.pipeline_mode<synchronous>, transform_indices = @transform_0, window_bounds = array<i64: 8, 784>}, {pipeline_mode = #tpu.pipeline_mode<synchronous>, transform_indices = @transform_1, window_bounds = array<i64: 784, 1024>}, {pipeline_mode = #tpu.pipeline_mode<synchronous>, transform_indices = @transform_2, window_bounds = array<i64: 1, 1024>}, {pipeline_mode = #tpu.pipeline_mode<synchronous>, transform_indices = @transform_3, window_bounds = array<i64: 1, 1024>}, {pipeline_mode = #tpu.pipeline_mode<synchronous>, transform_indices = @transform_4, window_bounds = array<i64: 1024, 1024>}, {pipeline_mode = #tpu.pipeline_mode<synchronous>, transform_indices = @transform_5, window_bounds = array<i64: 1, 1024>}, {pipeline_mode = #tpu.pipeline_mode<synchronous>, transform_indices = @transform_6, window_bounds = array<i64: 1, 1024>}, {pipeline_mode = #tpu.pipeline_mode<synchronous>, transform_indices = @transform_7, window_bounds = array<i64: 1024, 512>}, {pipeline_mode = #tpu.pipeline_mode<synchronous>, transform_indices = @transform_8, window_bounds = array<i64: 1, 512>}, {pipeline_mode = #tpu.pipeline_mode<synchronous>, transform_indices = @transform_9, window_bounds = array<i64: 1, 512>}, {pipeline_mode = #tpu.pipeline_mode<synchronous>, transform_indices = @transform_10, window_bounds = array<i64: 512, 128>}, {pipeline_mode = #tpu.pipeline_mode<synchronous>, transform_indices = @transform_11, window_bounds = array<i64: 1, 128>}, {pipeline_mode = #tpu.pipeline_mode<synchronous>, transform_indices = @transform_12, window_bounds = array<i64: 8, 128>}]} {
    %c0 = arith.constant 0 : index
    %c0_0 = arith.constant 0 : index
    %0 = vector.load %arg1[%c0, %c0_0] : memref<8x784xbf16, #tpu.memory_space<vmem>>, vector<8x784xbf16>
    %c0_1 = arith.constant 0 : index
    %c0_2 = arith.constant 0 : index
    %1 = vector.load %arg2[%c0_1, %c0_2] : memref<784x1024xi8, #tpu.memory_space<vmem>>, vector<784x1024xi8>
    %2 = arith.sitofp %1 : vector<784x1024xi8> to vector<784x1024xf32>
    %3 = arith.truncf %2 : vector<784x1024xf32> to vector<784x1024xbf16>
    %c0_3 = arith.constant 0 : index
    %c0_4 = arith.constant 0 : index
    %4 = vector.load %arg3[%c0_3, %c0_4] : memref<1x1024xf32, #tpu.memory_space<vmem>>, vector<1x1024xf32>
    %c0_5 = arith.constant 0 : index
    %c0_6 = arith.constant 0 : index
    %5 = vector.load %arg4[%c0_5, %c0_6] : memref<1x1024xf32, #tpu.memory_space<vmem>>, vector<1x1024xf32>
    %cst = arith.constant dense<0.000000e+00> : vector<8x1024xf32>
    %6 = tpu.matmul %0, %3, %cst {dimension_numbers = #tpu.dot_dimension_numbers<[1], [0], [0], [1], [0, 0, 1, 1], [], []>} : vector<8x784xbf16>, vector<784x1024xbf16>, vector<8x1024xf32> -> vector<8x1024xf32>
    %7 = vector.broadcast %4 : vector<1x1024xf32> to vector<8x1024xf32>
    %8 = arith.mulf %6, %7 : vector<8x1024xf32>
    %9 = vector.broadcast %5 : vector<1x1024xf32> to vector<8x1024xf32>
    %10 = arith.addf %8, %9 : vector<8x1024xf32>
    %cst_7 = arith.constant 0.000000e+00 : f32
    %11 = vector.broadcast %cst_7 : f32 to vector<8x1024xf32>
    %12 = arith.maximumf %10, %11 : vector<8x1024xf32>
    %13 = arith.truncf %12 : vector<8x1024xf32> to vector<8x1024xbf16>
    %c0_8 = arith.constant 0 : index
    %c0_9 = arith.constant 0 : index
    %14 = vector.load %arg5[%c0_8, %c0_9] : memref<1024x1024xi8, #tpu.memory_space<vmem>>, vector<1024x1024xi8>
    %15 = arith.sitofp %14 : vector<1024x1024xi8> to vector<1024x1024xf32>
    %16 = arith.truncf %15 : vector<1024x1024xf32> to vector<1024x1024xbf16>
    %c0_10 = arith.constant 0 : index
    %c0_11 = arith.constant 0 : index
    %17 = vector.load %arg6[%c0_10, %c0_11] : memref<1x1024xf32, #tpu.memory_space<vmem>>, vector<1x1024xf32>
    %c0_12 = arith.constant 0 : index
    %c0_13 = arith.constant 0 : index
    %18 = vector.load %arg7[%c0_12, %c0_13] : memref<1x1024xf32, #tpu.memory_space<vmem>>, vector<1x1024xf32>
    %cst_14 = arith.constant dense<0.000000e+00> : vector<8x1024xf32>
    %19 = tpu.matmul %13, %16, %cst_14 {dimension_numbers = #tpu.dot_dimension_numbers<[1], [0], [0], [1], [0, 0, 1, 1], [], []>} : vector<8x1024xbf16>, vector<1024x1024xbf16>, vector<8x1024xf32> -> vector<8x1024xf32>
    %20 = vector.broadcast %17 : vector<1x1024xf32> to vector<8x1024xf32>
    %21 = arith.mulf %19, %20 : vector<8x1024xf32>
    %22 = vector.broadcast %18 : vector<1x1024xf32> to vector<8x1024xf32>
    %23 = arith.addf %21, %22 : vector<8x1024xf32>
    %cst_15 = arith.constant 0.000000e+00 : f32
    %24 = vector.broadcast %cst_15 : f32 to vector<8x1024xf32>
    %25 = arith.maximumf %23, %24 : vector<8x1024xf32>
    %26 = arith.truncf %25 : vector<8x1024xf32> to vector<8x1024xbf16>
    %cst_16 = arith.constant dense<0.000000e+00> : vector<8x1024xf32>
    %27 = tpu.matmul %26, %16, %cst_16 {dimension_numbers = #tpu.dot_dimension_numbers<[1], [0], [0], [1], [0, 0, 1, 1], [], []>} : vector<8x1024xbf16>, vector<1024x1024xbf16>, vector<8x1024xf32> -> vector<8x1024xf32>
    %28 = vector.broadcast %17 : vector<1x1024xf32> to vector<8x1024xf32>
    %29 = arith.mulf %27, %28 : vector<8x1024xf32>
    %30 = vector.broadcast %18 : vector<1x1024xf32> to vector<8x1024xf32>
    %31 = arith.addf %29, %30 : vector<8x1024xf32>
    %cst_17 = arith.constant 0.000000e+00 : f32
    %32 = vector.broadcast %cst_17 : f32 to vector<8x1024xf32>
    %33 = arith.maximumf %31, %32 : vector<8x1024xf32>
    %34 = arith.truncf %33 : vector<8x1024xf32> to vector<8x1024xbf16>
    %c0_18 = arith.constant 0 : index
    %c0_19 = arith.constant 0 : index
    %35 = vector.load %arg8[%c0_18, %c0_19] : memref<1024x512xi8, #tpu.memory_space<vmem>>, vector<1024x512xi8>
    %36 = arith.sitofp %35 : vector<1024x512xi8> to vector<1024x512xf32>
    %37 = arith.truncf %36 : vector<1024x512xf32> to vector<1024x512xbf16>
    %c0_20 = arith.constant 0 : index
    %c0_21 = arith.constant 0 : index
    %38 = vector.load %arg9[%c0_20, %c0_21] : memref<1x512xf32, #tpu.memory_space<vmem>>, vector<1x512xf32>
    %c0_22 = arith.constant 0 : index
    %c0_23 = arith.constant 0 : index
    %39 = vector.load %arg10[%c0_22, %c0_23] : memref<1x512xf32, #tpu.memory_space<vmem>>, vector<1x512xf32>
    %cst_24 = arith.constant dense<0.000000e+00> : vector<8x512xf32>
    %40 = tpu.matmul %34, %37, %cst_24 {dimension_numbers = #tpu.dot_dimension_numbers<[1], [0], [0], [1], [0, 0, 1, 1], [], []>} : vector<8x1024xbf16>, vector<1024x512xbf16>, vector<8x512xf32> -> vector<8x512xf32>
    %41 = vector.broadcast %38 : vector<1x512xf32> to vector<8x512xf32>
    %42 = arith.mulf %40, %41 : vector<8x512xf32>
    %43 = vector.broadcast %39 : vector<1x512xf32> to vector<8x512xf32>
    %44 = arith.addf %42, %43 : vector<8x512xf32>
    %cst_25 = arith.constant 0.000000e+00 : f32
    %45 = vector.broadcast %cst_25 : f32 to vector<8x512xf32>
    %46 = arith.maximumf %44, %45 : vector<8x512xf32>
    %47 = arith.truncf %46 : vector<8x512xf32> to vector<8x512xbf16>
    %c0_26 = arith.constant 0 : index
    %c0_27 = arith.constant 0 : index
    %48 = vector.load %arg11[%c0_26, %c0_27] : memref<512x128xbf16, #tpu.memory_space<vmem>>, vector<512x128xbf16>
    %cst_28 = arith.constant dense<0.000000e+00> : vector<8x128xf32>
    %49 = tpu.matmul %47, %48, %cst_28 {dimension_numbers = #tpu.dot_dimension_numbers<[1], [0], [0], [1], [0, 0, 1, 1], [], []>} : vector<8x512xbf16>, vector<512x128xbf16>, vector<8x128xf32> -> vector<8x128xf32>
    %c0_29 = arith.constant 0 : index
    %c0_30 = arith.constant 0 : index
    %50 = vector.load %arg12[%c0_29, %c0_30] : memref<1x128xf32, #tpu.memory_space<vmem>>, vector<1x128xf32>
    %51 = vector.broadcast %50 : vector<1x128xf32> to vector<8x128xf32>
    %52 = arith.addf %49, %51 : vector<8x128xf32>
    %c0_31 = arith.constant 0 : index
    %c0_32 = arith.constant 0 : index
    %53 = vector.load %arg13[%c0_31, %c0_32] : memref<8x128xf32, #tpu.memory_space<vmem>>, vector<8x128xf32>
    tpu.vector_store %arg13[%c0_31, %c0_32], %52 {strides = array<i32>} : memref<8x128xf32, #tpu.memory_space<vmem>>, vector<8x128xf32>,
    return
  }
  func.func @transform_0(%arg0: i32) -> (i32, i32) {
    %c0_i32 = arith.constant 0 : i32
    %c0_i32_0 = arith.constant 0 : i32
    %c0_i32_1 = arith.constant 0 : i32
    return %c0_i32, %c0_i32_0 : i32, i32
  }
  func.func @transform_1(%arg0: i32) -> (i32, i32) {
    %c0_i32 = arith.constant 0 : i32
    %c0_i32_0 = arith.constant 0 : i32
    %c0_i32_1 = arith.constant 0 : i32
    return %c0_i32, %c0_i32_0 : i32, i32
  }
  func.func @transform_2(%arg0: i32) -> (i32, i32) {
    %c0_i32 = arith.constant 0 : i32
    %c0_i32_0 = arith.constant 0 : i32
    %c0_i32_1 = arith.constant 0 : i32
    return %c0_i32, %c0_i32_0 : i32, i32
  }
  func.func @transform_3(%arg0: i32) -> (i32, i32) {
    %c0_i32 = arith.constant 0 : i32
    %c0_i32_0 = arith.constant 0 : i32
    %c0_i32_1 = arith.constant 0 : i32
    return %c0_i32, %c0_i32_0 : i32, i32
  }
  func.func @transform_4(%arg0: i32) -> (i32, i32) {
    %c0_i32 = arith.constant 0 : i32
    %c0_i32_0 = arith.constant 0 : i32
    %c0_i32_1 = arith.constant 0 : i32
    return %c0_i32, %c0_i32_0 : i32, i32
  }
  func.func @transform_5(%arg0: i32) -> (i32, i32) {
    %c0_i32 = arith.constant 0 : i32
    %c0_i32_0 = arith.constant 0 : i32
    %c0_i32_1 = arith.constant 0 : i32
    return %c0_i32, %c0_i32_0 : i32, i32
  }
  func.func @transform_6(%arg0: i32) -> (i32, i32) {
    %c0_i32 = arith.constant 0 : i32
    %c0_i32_0 = arith.constant 0 : i32
    %c0_i32_1 = arith.constant 0 : i32
    return %c0_i32, %c0_i32_0 : i32, i32
  }
  func.func @transform_7(%arg0: i32) -> (i32, i32) {
    %c0_i32 = arith.constant 0 : i32
    %c0_i32_0 = arith.constant 0 : i32
    %c0_i32_1 = arith.constant 0 : i32
    return %c0_i32, %c0_i32_0 : i32, i32
  }
  func.func @transform_8(%arg0: i32) -> (i32, i32) {
    %c0_i32 = arith.constant 0 : i32
    %c0_i32_0 = arith.constant 0 : i32
    %c0_i32_1 = arith.constant 0 : i32
    return %c0_i32, %c0_i32_0 : i32, i32
  }
  func.func @transform_9(%arg0: i32) -> (i32, i32) {
    %c0_i32 = arith.constant 0 : i32
    %c0_i32_0 = arith.constant 0 : i32
    %c0_i32_1 = arith.constant 0 : i32
    return %c0_i32, %c0_i32_0 : i32, i32
  }
  func.func @transform_10(%arg0: i32) -> (i32, i32) {
    %c0_i32 = arith.constant 0 : i32
    %c0_i32_0 = arith.constant 0 : i32
    %c0_i32_1 = arith.constant 0 : i32
    return %c0_i32, %c0_i32_0 : i32, i32
  }
  func.func @transform_11(%arg0: i32) -> (i32, i32) {
    %c0_i32 = arith.constant 0 : i32
    %c0_i32_0 = arith.constant 0 : i32
    %c0_i32_1 = arith.constant 0 : i32
    return %c0_i32, %c0_i32_0 : i32, i32
  }
  func.func @transform_12(%arg0: i32) -> (i32, i32) {
    %c0_i32 = arith.constant 0 : i32
    %c0_i32_0 = arith.constant 0 : i32
    %c0_i32_1 = arith.constant 0 : i32
    return %c0_i32, %c0_i32_0 : i32, i32
  }
}

</mosaic_0001>

<llo_original>
// kernel: mlp_forward.1
$region0: #{mlp_forward.1}
  #allocation0 [shape = 'u32[]', space=smem, size = 0x4, offset = 0x4, fixed_abs, tag = 'smem constant byte address 0x4 - core index']
  #allocation1 [shape = 'u32[72,128]{1,0:T(1,128)}', space=vmem, size = 0x9000, scoped, tag = 'internal scratch']
  %s0 = inlined_call_operand.vmem [shape: bf16[8,784], index: 0, kind: input, shape index: {}]
  %s1 = inlined_call_operand.hbm [shape: s8[784,1024], index: 1, kind: input, shape index: {}]
  %s2 = inlined_call_operand.vmem [shape: f32[1,1024], index: 2, kind: input, shape index: {}]
  %s3 = inlined_call_operand.vmem [shape: f32[1,1024], index: 3, kind: input, shape index: {}]
  %s4 = inlined_call_operand.hbm [shape: s8[1024,1024], index: 4, kind: input, shape index: {}]
  %s5 = inlined_call_operand.vmem [shape: f32[1,1024], index: 5, kind: input, shape index: {}]
  %s6 = inlined_call_operand.vmem [shape: f32[1,1024], index: 6, kind: input, shape index: {}]
  %s7 = inlined_call_operand.hbm [shape: s8[1024,512], index: 7, kind: input, shape index: {}]
  %s8 = inlined_call_operand.vmem [shape: f32[1,512], index: 8, kind: input, shape index: {}]
  %s9 = inlined_call_operand.vmem [shape: f32[1,512], index: 9, kind: input, shape index: {}]
  %s10 = inlined_call_operand.hbm [shape: bf16[512,128], index: 10, kind: input, shape index: {}]
  %s11 = inlined_call_operand.vmem [shape: f32[1,128], index: 11, kind: input, shape index: {}]
  %s12 = inlined_call_operand.hbm [shape: f32[8,128], index: 12, kind: output, shape index: {}]
  %s13 = sld [smem:[#allocation0]]
  $region74: #{mlp_forward.1} parent=0
    _
  %s15 = ssub.s32 1, %s13
  %s16 = scalar_select 0, %s15, %s13
  $region1: #{mlp_forward.1} parent=0
    #allocation2 [shape = 'u8[802816]{0}', space=vmem, size = 0xc4000, scoped, tag = 'input window, operand 1, single buffered']
    #allocation3 [shape = 's32[1]{0}', space=sflag, size = 0x4, scoped, tag = 'scoped memory for mlp_forward.1']
    #allocation4 [shape = 's32[1]{0}', space=sflag, size = 0x4, scoped, tag = 'scoped memory for mlp_forward.1']
    #allocation5 [shape = 'u8[1048576]{0}', space=vmem, size = 0x100000, scoped, tag = 'input window, operand 4, single buffered']
    #allocation6 [shape = 's32[1]{0}', space=sflag, size = 0x4, scoped, tag = 'scoped memory for mlp_forward.1']
    #allocation7 [shape = 'u8[524288]{0}', space=vmem, size = 0x80000, scoped, tag = 'input window, operand 7, single buffered']
    #allocation8 [shape = 'u8[131072]{0}', space=vmem, size = 0x20000, scoped, tag = 'input window, operand 10, single buffered']
    #allocation9 [shape = 's32[1]{0}', space=sflag, size = 0x4, scoped, tag = 'scoped memory for mlp_forward.1']
    #allocation10 [shape = 'u8[4096]{0}', space=vmem, size = 0x1000, scoped, tag = 'output window, operand 0, single buffered']
    %17 = vsyncpa [#allocation3], 0
    %18 = vsyncpa [#allocation6], 0
    %19 = vsyncpa [#allocation9], 0
    %20 = vsyncpa [#allocation4], 0
    // Predicated region
    $region2: #{mlp_forward.1} parent=1 // pred_check
      _
    $region3: #{mlp_forward.1} parent=1 // pred_check_branch
      %22 = sbr.rel (0) target = $region5
    $region4: #{mlp_forward.1} parent=1 // pred_region
      _
    $region5: #{mlp_forward.1} parent=1 // pred_fallthru
      _
    // Predicated region
    $region6: #{mlp_forward.1} parent=1 // pred_check
      _
    $region7: #{mlp_forward.1} parent=1 // pred_check_branch
      %24 = sbr.rel (0) target = $region9
    $region8: #{mlp_forward.1} parent=1 // pred_region
      %26 = vsyncadd [#allocation3], 0
      %s27 = sshll.u32 %s1, 4
      %s28 = int_to_ptr.hbm [resolvable:$true] %s27
      %s29 = sshll.u32 [#allocation2], 4
      %s30 = int_to_ptr.vmem [resolvable:$true] %s29
      %35 = dma.hbm_to_vmem [thread:$0]  %s28, 25088, %s30, [#allocation3], 256, 256, 16
    $region9: #{mlp_forward.1} parent=1 // pred_fallthru
      _
    // Predicated region
    $region10: #{mlp_forward.1} parent=1 // pred_check
      _
    $region11: #{mlp_forward.1} parent=1 // pred_check_branch
      %37 = sbr.rel (0) target = $region13
    $region12: #{mlp_forward.1} parent=1 // pred_region
      _
    $region13: #{mlp_forward.1} parent=1 // pred_fallthru
      _
    // Predicated region
    $region14: #{mlp_forward.1} parent=1 // pred_check
      _
    $region15: #{mlp_forward.1} parent=1 // pred_check_branch
      %39 = sbr.rel (0) target = $region17
    $region16: #{mlp_forward.1} parent=1 // pred_region
      _
    $region17: #{mlp_forward.1} parent=1 // pred_fallthru
      _
    // Predicated region
    $region18: #{mlp_forward.1} parent=1 // pred_check
      _
    $region19: #{mlp_forward.1} parent=1 // pred_check_branch
      %41 = sbr.rel (0) target = $region21
    $region20: #{mlp_forward.1} parent=1 // pred_region
      %43 = vsyncadd [#allocation6], 0
      %s44 = sshll.u32 %s4, 4
      %s45 = int_to_ptr.hbm [resolvable:$true] %s44
      %s46 = sshll.u32 [#allocation5], 4
      %s47 = int_to_ptr.vmem [resolvable:$true] %s46
      %52 = dma.hbm_to_vmem [thread:$0]  %s45, 32768, %s47, [#allocation6], 1024, 1024, 64
    $region21: #{mlp_forward.1} parent=1 // pred_fallthru
      _
    // Predicated region
    $region22: #{mlp_forward.1} parent=1 // pred_check
      _
    $region23: #{mlp_forward.1} parent=1 // pred_check_branch
      %54 = sbr.rel (0) target = $region25
    $region24: #{mlp_forward.1} parent=1 // pred_region
      _
    $region25: #{mlp_forward.1} parent=1 // pred_fallthru
      _
    // Predicated region
    $region26: #{mlp_forward.1} parent=1 // pred_check
      _
    $region27: #{mlp_forward.1} parent=1 // pred_check_branch
      %56 = sbr.rel (0) target = $region29
    $region28: #{mlp_forward.1} parent=1 // pred_region
      _
    $region29: #{mlp_forward.1} parent=1 // pred_fallthru
      _
    // Predicated region
    $region30: #{mlp_forward.1} parent=1 // pred_check
      _
    $region31: #{mlp_forward.1} parent=1 // pred_check_branch
      %58 = sbr.rel (0) target = $region33
    $region32: #{mlp_forward.1} parent=1 // pred_region
      %60 = vsyncadd [#allocation6], 0
      %s61 = sshll.u32 %s7, 4
      %s62 = int_to_ptr.hbm [resolvable:$true] %s61
      %s63 = sshll.u32 [#allocation7], 4
      %s64 = int_to_ptr.vmem [resolvable:$true] %s63
      %69 = dma.hbm_to_vmem [thread:$0]  %s62, 16384, %s64, [#allocation6], 512, 512, 32
    $region33: #{mlp_forward.1} parent=1 // pred_fallthru
      _
    // Predicated region
    $region34: #{mlp_forward.1} parent=1 // pred_check
      _
    $region35: #{mlp_forward.1} parent=1 // pred_check_branch
      %71 = sbr.rel (0) target = $region37
    $region36: #{mlp_forward.1} parent=1 // pred_region
      _
    $region37: #{mlp_forward.1} parent=1 // pred_fallthru
      _
    // Predicated region
    $region38: #{mlp_forward.1} parent=1 // pred_check
      _
    $region39: #{mlp_forward.1} parent=1 // pred_check_branch
      %73 = sbr.rel (0) target = $region41
    $region40: #{mlp_forward.1} parent=1 // pred_region
      _
    $region41: #{mlp_forward.1} parent=1 // pred_fallthru
      _
    // Predicated region
    $region42: #{mlp_forward.1} parent=1 // pred_check
      _
    $region43: #{mlp_forward.1} parent=1 // pred_check_branch
      %75 = sbr.rel (0) target = $region45
    $region44: #{mlp_forward.1} parent=1 // pred_region
      %77 = vsyncadd [#allocation9], 0
      %s78 = sshll.u32 %s10, 4
      %s79 = int_to_ptr.hbm [resolvable:$true] %s78
      %s80 = sshll.u32 [#allocation8], 4
      %s81 = int_to_ptr.vmem [resolvable:$true] %s80
      %86 = dma.hbm_to_vmem [thread:$0]  %s79, 4096, %s81, [#allocation9], 64, 64, 4
    $region45: #{mlp_forward.1} parent=1 // pred_fallthru
      _
    // Predicated region
    $region46: #{mlp_forward.1} parent=1 // pred_check
      _
    $region47: #{mlp_forward.1} parent=1 // pred_check_branch
      %88 = sbr.rel (0) target = $region49
    $region48: #{mlp_forward.1} parent=1 // pred_region
      _
    $region49: #{mlp_forward.1} parent=1 // pred_fallthru
      _
    // Predicated region
    $region50: #{mlp_forward.1} parent=1 // pred_check
      _
    $region51: #{mlp_forward.1} parent=1 // pred_check_branch
      %90 = sbr.rel (0) target = $region53
    $region52: #{mlp_forward.1} parent=1 // pred_region
      %92 = dma.done [#allocation3], 25088
    $region53: #{mlp_forward.1} parent=1 // pred_fallthru
      _
    // Predicated region
    $region54: #{mlp_forward.1} parent=1 // pred_check
      _
    $region55: #{mlp_forward.1} parent=1 // pred_check_branch
      %94 = sbr.rel (0) target = $region57
    $region56: #{mlp_forward.1} parent=1 // pred_region
      %96 = dma.done [#allocation6], 32768
    $region57: #{mlp_forward.1} parent=1 // pred_fallthru
      _
    // Predicated region
    $region58: #{mlp_forward.1} parent=1 // pred_check
      _
    $region59: #{mlp_forward.1} parent=1 // pred_check_branch
      %98 = sbr.rel (0) target = $region61
    $region60: #{mlp_forward.1} parent=1 // pred_region
      %100 = dma.done [#allocation6], 16384
    $region61: #{mlp_forward.1} parent=1 // pred_fallthru
      _
    // Predicated region
    $region62: #{mlp_forward.1} parent=1 // pred_check
      _
    $region63: #{mlp_forward.1} parent=1 // pred_check_branch
      %102 = sbr.rel (0) target = $region65
    $region64: #{mlp_forward.1} parent=1 // pred_region
      %104 = dma.done [#allocation9], 4096
    $region65: #{mlp_forward.1} parent=1 // pred_fallthru
      _
    %v106 = vld [vmem:[%s0] sm:$0xff]
    %v107 = vld [vmem:[%s0 + $0x8] sm:$0xff]
    %v108 = vld [vmem:[%s0 + $0x10] sm:$0xff]
    %v109 = vld [vmem:[%s0 + $0x18] sm:$0xf]
    %v110 = vld [vmem:[#allocation2] sm:$0xff]
    %v111 = vld [vmem:[#allocation2 + $0x8] sm:$0xff]
    %v112 = vld [vmem:[#allocation2 + $0x10] sm:$0xff]
    %v113 = vld [vmem:[#allocation2 + $0x18] sm:$0xff]
    %v114 = vld [vmem:[#allocation2 + $0x20] sm:$0xff]
    %v115 = vld [vmem:[#allocation2 + $0x28] sm:$0xff]
    %v116 = vld [vmem:[#allocation2 + $0x30] sm:$0xff]
    %v117 = vld [vmem:[#allocation2 + $0x38] sm:$0xff]
    %v118 = vld [vmem:[#allocation2 + $0x40] sm:$0xff]
    %v119 = vld [vmem:[#allocation2 + $0x48] sm:$0xff]
    %v120 = vld [vmem:[#allocation2 + $0x50] sm:$0xff]
    %v121 = vld [vmem:[#allocation2 + $0x58] sm:$0xff]
    %v122 = vld [vmem:[#allocation2 + $0x60] sm:$0xff]
    %v123 = vld [vmem:[#allocation2 + $0x68] sm:$0xff]
    %v124 = vld [vmem:[#allocation2 + $0x70] sm:$0xff]
    %v125 = vld [vmem:[#allocation2 + $0x78] sm:$0xff]
    %v126 = vld [vmem:[#allocation2 + $0x80] sm:$0xff]
    %v127 = vld [vmem:[#allocation2 + $0x88] sm:$0xff]
    %v128 = vld [vmem:[#allocation2 + $0x90] sm:$0xff]
    %v129 = vld [vmem:[#allocation2 + $0x98] sm:$0xff]
    %v130 = vld [vmem:[#allocation2 + $0xa0] sm:$0xff]
    %v131 = vld [vmem:[#allocation2 + $0xa8] sm:$0xff]
    %v132 = vld [vmem:[#allocation2 + $0xb0] sm:$0xff]
    %v133 = vld [vmem:[#allocation2 + $0xb8] sm:$0xff]
    %v134 = vld [vmem:[#allocation2 + $0xc0] sm:$0xff]
    %v135 = vld [vmem:[#allocation2 + $0xc8] sm:$0xff]
    %v136 = vld [vmem:[#allocation2 + $0xd0] sm:$0xff]
    %v137 = vld [vmem:[#allocation2 + $0xd8] sm:$0xff]
    %v138 = vld [vmem:[#allocation2 + $0xe0] sm:$0xff]
    %v139 = vld [vmem:[#allocation2 + $0xe8] sm:$0xff]
    %v140 = vld [vmem:[#allocation2 + $0xf0] sm:$0xff]
    %v141 = vld [vmem:[#allocation2 + $0xf8] sm:$0xff]
    %v142 = vld [vmem:[#allocation2 + $0x100] sm:$0xff]
    %v143 = vld [vmem:[#allocation2 + $0x108] sm:$0xff]
    %v144 = vld [vmem:[#allocation2 + $0x110] sm:$0xff]
    %v145 = vld [vmem:[#allocation2 + $0x118] sm:$0xff]
    %v146 = vld [vmem:[#allocation2 + $0x120] sm:$0xff]
    %v147 = vld [vmem:[#allocation2 + $0x128] sm:$0xff]
    %v148 = vld [vmem:[#allocation2 + $0x130] sm:$0xff]
    %v149 = vld [vmem:[#allocation2 + $0x138] sm:$0xff]
    %v150 = vld [vmem:[#allocation2 + $0x140] sm:$0xff]
    %v151 = vld [vmem:[#allocation2 + $0x148] sm:$0xff]
    %v152 = vld [vmem:[#allocation2 + $0x150] sm:$0xff]
    %v153 = vld [vmem:[#allocation2 + $0x158] sm:$0xff]
    %v154 = vld [vmem:[#allocation2 + $0x160] sm:$0xff]
    %v155 = vld [vmem:[#allocation2 + $0x168] sm:$0xff]
    %v156 = vld [vmem:[#allocation2 + $0x170] sm:$0xff]
    %v157 = vld [vmem:[#allocation2 + $0x178] sm:$0xff]
    %v158 = vld [vmem:[#allocation2 + $0x180] sm:$0xff]
    %v159 = vld [vmem:[#allocation2 + $0x188] sm:$0xff]
    %v160 = vld [vmem:[#allocation2 + $0x190] sm:$0xff]
    %v161 = vld [vmem:[#allocation2 + $0x198] sm:$0xff]
    %v162 = vld [vmem:[#allocation2 + $0x1a0] sm:$0xff]
    %v163 = vld [vmem:[#allocation2 + $0x1a8] sm:$0xff]
    %v164 = vld [vmem:[#allocation2 + $0x1b0] sm:$0xff]
    %v165 = vld [vmem:[#allocation2 + $0x1b8] sm:$0xff]
    %v166 = vld [vmem:[#allocation2 + $0x1c0] sm:$0xff]
    %v167 = vld [vmem:[#allocation2 + $0x1c8] sm:$0xff]
    %v168 = vld [vmem:[#allocation2 + $0x1d0] sm:$0xff]
    %v169 = vld [vmem:[#allocation2 + $0x1d8] sm:$0xff]
    %v170 = vld [vmem:[#allocation2 + $0x1e0] sm:$0xff]
    %v171 = vld [vmem:[#allocation2 + $0x1e8] sm:$0xff]
    %v172 = vld [vmem:[#allocation2 + $0x1f0] sm:$0xff]
    %v173 = vld [vmem:[#allocation2 + $0x1f8] sm:$0xff]
    %v174 = vld [vmem:[#allocation2 + $0x200] sm:$0xff]
    %v175 = vld [vmem:[#allocation2 + $0x208] sm:$0xff]
    %v176 = vld [vmem:[#allocation2 + $0x210] sm:$0xff]
    %v177 = vld [vmem:[#allocation2 + $0x218] sm:$0xff]
    %v178 = vld [vmem:[#allocation2 + $0x220] sm:$0xff]
    %v179 = vld [vmem:[#allocation2 + $0x228] sm:$0xff]
    %v180 = vld [vmem:[#allocation2 + $0x230] sm:$0xff]
    %v181 = vld [vmem:[#allocation2 + $0x238] sm:$0xff]
    %v182 = vld [vmem:[#allocation2 + $0x240] sm:$0xff]
    %v183 = vld [vmem:[#allocation2 + $0x248] sm:$0xff]
    %v184 = vld [vmem:[#allocation2 + $0x250] sm:$0xff]
    %v185 = vld [vmem:[#allocation2 + $0x258] sm:$0xff]
    %v186 = vld [vmem:[#allocation2 + $0x260] sm:$0xff]
    %v187 = vld [vmem:[#allocation2 + $0x268] sm:$0xff]
    %v188 = vld [vmem:[#allocation2 + $0x270] sm:$0xff]
    %v189 = vld [vmem:[#allocation2 + $0x278] sm:$0xff]
    %v190 = vld [vmem:[#allocation2 + $0x280] sm:$0xff]
    %v191 = vld [vmem:[#allocation2 + $0x288] sm:$0xff]
    %v192 = vld [vmem:[#allocation2 + $0x290] sm:$0xff]
    %v193 = vld [vmem:[#allocation2 + $0x298] sm:$0xff]
    %v194 = vld [vmem:[#allocation2 + $0x2a0] sm:$0xff]
    %v195 = vld [vmem:[#allocation2 + $0x2a8] sm:$0xff]
    %v196 = vld [vmem:[#allocation2 + $0x2b0] sm:$0xff]
    %v197 = vld [vmem:[#allocation2 + $0x2b8] sm:$0xff]
    %v198 = vld [vmem:[#allocation2 + $0x2c0] sm:$0xff]
    %v199 = vld [vmem:[#allocation2 + $0x2c8] sm:$0xff]
    %v200 = vld [vmem:[#allocation2 + $0x2d0] sm:$0xff]
    %v201 = vld [vmem:[#allocation2 + $0x2d8] sm:$0xff]
    %v202 = vld [vmem:[#allocation2 + $0x2e0] sm:$0xff]
    %v203 = vld [vmem:[#allocation2 + $0x2e8] sm:$0xff]
    %v204 = vld [vmem:[#allocation2 + $0x2f0] sm:$0xff]
    %v205 = vld [vmem:[#allocation2 + $0x2f8] sm:$0xff]
    %v206 = vld [vmem:[#allocation2 + $0x300] sm:$0xff]
    %v207 = vld [vmem:[#allocation2 + $0x308] sm:$0xff]
    %v208 = vld [vmem:[#allocation2 + $0x310] sm:$0xff]
    %v209 = vld [vmem:[#allocation2 + $0x318] sm:$0xff]
    %v210 = vld [vmem:[#allocation2 + $0x320] sm:$0xff]
    %v211 = vld [vmem:[#allocation2 + $0x328] sm:$0xff]
    %v212 = vld [vmem:[#allocation2 + $0x330] sm:$0xff]
    %v213 = vld [vmem:[#allocation2 + $0x338] sm:$0xff]
    %v214 = vld [vmem:[#allocation2 + $0x340] sm:$0xff]
    %v215 = vld [vmem:[#allocation2 + $0x348] sm:$0xff]
    %v216 = vld [vmem:[#allocation2 + $0x350] sm:$0xff]
    %v217 = vld [vmem:[#allocation2 + $0x358] sm:$0xff]
    %v218 = vld [vmem:[#allocation2 + $0x360] sm:$0xff]
    %v219 = vld [vmem:[#allocation2 + $0x368] sm:$0xff]
    %v220 = vld [vmem:[#allocation2 + $0x370] sm:$0xff]
    %v221 = vld [vmem:[#allocation2 + $0x378] sm:$0xff]
    %v222 = vld [vmem:[#allocation2 + $0x380] sm:$0xff]
    %v223 = vld [vmem:[#allocation2 + $0x388] sm:$0xff]
    %v224 = vld [vmem:[#allocation2 + $0x390] sm:$0xff]
    %v225 = vld [vmem:[#allocation2 + $0x398] sm:$0xff]
    %v226 = vld [vmem:[#allocation2 + $0x3a0] sm:$0xff]
    %v227 = vld [vmem:[#allocation2 + $0x3a8] sm:$0xff]
    %v228 = vld [vmem:[#allocation2 + $0x3b0] sm:$0xff]
    %v229 = vld [vmem:[#allocation2 + $0x3b8] sm:$0xff]
    %v230 = vld [vmem:[#allocation2 + $0x3c0] sm:$0xff]
    %v231 = vld [vmem:[#allocation2 + $0x3c8] sm:$0xff]
    %v232 = vld [vmem:[#allocation2 + $0x3d0] sm:$0xff]
    %v233 = vld [vmem:[#allocation2 + $0x3d8] sm:$0xff]
    %v234 = vld [vmem:[#allocation2 + $0x3e0] sm:$0xff]
    %v235 = vld [vmem:[#allocation2 + $0x3e8] sm:$0xff]
    %v236 = vld [vmem:[#allocation2 + $0x3f0] sm:$0xff]
    %v237 = vld [vmem:[#allocation2 + $0x3f8] sm:$0xff]
    %v238 = vld [vmem:[#allocation2 + $0x400] sm:$0xff]
    %v239 = vld [vmem:[#allocation2 + $0x408] sm:$0xff]
    %v240 = vld [vmem:[#allocation2 + $0x410] sm:$0xff]
    %v241 = vld [vmem:[#allocation2 + $0x418] sm:$0xff]
    %v242 = vld [vmem:[#allocation2 + $0x420] sm:$0xff]
    %v243 = vld [vmem:[#allocation2 + $0x428] sm:$0xff]
    %v244 = vld [vmem:[#allocation2 + $0x430] sm:$0xff]
    %v245 = vld [vmem:[#allocation2 + $0x438] sm:$0xff]
    %v246 = vld [vmem:[#allocation2 + $0x440] sm:$0xff]
    %v247 = vld [vmem:[#allocation2 + $0x448] sm:$0xff]
    %v248 = vld [vmem:[#allocation2 + $0x450] sm:$0xff]
    %v249 = vld [vmem:[#allocation2 + $0x458] sm:$0xff]
    %v250 = vld [vmem:[#allocation2 + $0x460] sm:$0xff]
    %v251 = vld [vmem:[#allocation2 + $0x468] sm:$0xff]
    %v252 = vld [vmem:[#allocation2 + $0x470] sm:$0xff]
    %v253 = vld [vmem:[#allocation2 + $0x478] sm:$0xff]
    %v254 = vld [vmem:[#allocation2 + $0x480] sm:$0xff]
    %v255 = vld [vmem:[#allocation2 + $0x488] sm:$0xff]
    %v256 = vld [vmem:[#allocation2 + $0x490] sm:$0xff]
    %v257 = vld [vmem:[#allocation2 + $0x498] sm:$0xff]
    %v258 = vld [vmem:[#allocation2 + $0x4a0] sm:$0xff]
    %v259 = vld [vmem:[#allocation2 + $0x4a8] sm:$0xff]
    %v260 = vld [vmem:[#allocation2 + $0x4b0] sm:$0xff]
    %v261 = vld [vmem:[#allocation2 + $0x4b8] sm:$0xff]
    %v262 = vld [vmem:[#allocation2 + $0x4c0] sm:$0xff]
    %v263 = vld [vmem:[#allocation2 + $0x4c8] sm:$0xff]
    %v264 = vld [vmem:[#allocation2 + $0x4d0] sm:$0xff]
    %v265 = vld [vmem:[#allocation2 + $0x4d8] sm:$0xff]
    %v266 = vld [vmem:[#allocation2 + $0x4e0] sm:$0xff]
    %v267 = vld [vmem:[#allocation2 + $0x4e8] sm:$0xff]
    %v268 = vld [vmem:[#allocation2 + $0x4f0] sm:$0xff]
    %v269 = vld [vmem:[#allocation2 + $0x4f8] sm:$0xff]
    %v270 = vld [vmem:[#allocation2 + $0x500] sm:$0xff]
    %v271 = vld [vmem:[#allocation2 + $0x508] sm:$0xff]
    %v272 = vld [vmem:[#allocation2 + $0x510] sm:$0xff]
    %v273 = vld [vmem:[#allocation2 + $0x518] sm:$0xff]
    %v274 = vld [vmem:[#allocation2 + $0x520] sm:$0xff]
    %v275 = vld [vmem:[#allocation2 + $0x528] sm:$0xff]
    %v276 = vld [vmem:[#allocation2 + $0x530] sm:$0xff]
    %v277 = vld [vmem:[#allocation2 + $0x538] sm:$0xff]
    %v278 = vld [vmem:[#allocation2 + $0x540] sm:$0xff]
    %v279 = vld [vmem:[#allocation2 + $0x548] sm:$0xff]
    %v280 = vld [vmem:[#allocation2 + $0x550] sm:$0xff]
    %v281 = vld [vmem:[#allocation2 + $0x558] sm:$0xff]
    %v282 = vld [vmem:[#allocation2 + $0x560] sm:$0xff]
    %v283 = vld [vmem:[#allocation2 + $0x568] sm:$0xff]
    %v284 = vld [vmem:[#allocation2 + $0x570] sm:$0xff]
    %v285 = vld [vmem:[#allocation2 + $0x578] sm:$0xff]
    %v286 = vld [vmem:[#allocation2 + $0x580] sm:$0xff]
    %v287 = vld [vmem:[#allocation2 + $0x588] sm:$0xff]
    %v288 = vld [vmem:[#allocation2 + $0x590] sm:$0xff]
    %v289 = vld [vmem:[#allocation2 + $0x598] sm:$0xff]
    %v290 = vld [vmem:[#allocation2 + $0x5a0] sm:$0xff]
    %v291 = vld [vmem:[#allocation2 + $0x5a8] sm:$0xff]
    %v292 = vld [vmem:[#allocation2 + $0x5b0] sm:$0xff]
    %v293 = vld [vmem:[#allocation2 + $0x5b8] sm:$0xff]
    %v294 = vld [vmem:[#allocation2 + $0x5c0] sm:$0xff]
    %v295 = vld [vmem:[#allocation2 + $0x5c8] sm:$0xff]
    %v296 = vld [vmem:[#allocation2 + $0x5d0] sm:$0xff]
    %v297 = vld [vmem:[#allocation2 + $0x5d8] sm:$0xff]
    %v298 = vld [vmem:[#allocation2 + $0x5e0] sm:$0xff]
    %v299 = vld [vmem:[#allocation2 + $0x5e8] sm:$0xff]
    %v300 = vld [vmem:[#allocation2 + $0x5f0] sm:$0xff]
    %v301 = vld [vmem:[#allocation2 + $0x5f8] sm:$0xff]
    %v302 = vld [vmem:[#allocation2 + $0x600] sm:$0xff]
    %v303 = vld [vmem:[#allocation2 + $0x608] sm:$0xff]
    %v304 = vld [vmem:[#allocation2 + $0x610] sm:$0xff]
    %v305 = vld [vmem:[#allocation2 + $0x618] sm:$0xff]
    %v306 = vunpack.c.0.s8 %v110
    %v307 = vunpack.c.1.s8 %v110
    %v308 = vunpack.c.2.s8 %v110
    %v309 = vunpack.c.3.s8 %v110
    %v310 = vunpack.c.0.s8 %v111
    %v311 = vunpack.c.1.s8 %v111
    %v312 = vunpack.c.2.s8 %v111
    %v313 = vunpack.c.3.s8 %v111
    %v314 = vunpack.c.0.s8 %v112
    %v315 = vunpack.c.1.s8 %v112
    %v316 = vunpack.c.2.s8 %v112
    %v317 = vunpack.c.3.s8 %v112
    %v318 = vunpack.c.0.s8 %v113
    %v319 = vunpack.c.1.s8 %v113
    %v320 = vunpack.c.2.s8 %v113
    %v321 = vunpack.c.3.s8 %v113
    %v322 = vunpack.c.0.s8 %v114
    %v323 = vunpack.c.1.s8 %v114
    %v324 = vunpack.c.2.s8 %v114
    %v325 = vunpack.c.3.s8 %v114
    %v326 = vunpack.c.0.s8 %v115
    %v327 = vunpack.c.1.s8 %v115
    %v328 = vunpack.c.2.s8 %v115
    %v329 = vunpack.c.3.s8 %v115
    %v330 = vunpack.c.0.s8 %v116
    %v331 = vunpack.c.1.s8 %v116
    %v332 = vunpack.c.2.s8 %v116
    %v333 = vunpack.c.3.s8 %v116
    %v334 = vunpack.c.0.s8 %v117
    %v335 = vunpack.c.1.s8 %v117
    %v336 = vunpack.c.2.s8 %v117
    %v337 = vunpack.c.3.s8 %v117
    %v338 = vunpack.c.0.s8 %v118
    %v339 = vunpack.c.1.s8 %v118
    %v340 = vunpack.c.2.s8 %v118
    %v341 = vunpack.c.3.s8 %v118
    %v342 = vunpack.c.0.s8 %v119
    %v343 = vunpack.c.1.s8 %v119
    %v344 = vunpack.c.2.s8 %v119
    %v345 = vunpack.c.3.s8 %v119
    %v346 = vunpack.c.0.s8 %v120
    %v347 = vunpack.c.1.s8 %v120
    %v348 = vunpack.c.2.s8 %v120
    %v349 = vunpack.c.3.s8 %v120
    %v350 = vunpack.c.0.s8 %v121
    %v351 = vunpack.c.1.s8 %v121
    %v352 = vunpack.c.2.s8 %v121
    %v353 = vunpack.c.3.s8 %v121
    %v354 = vunpack.c.0.s8 %v122
    %v355 = vunpack.c.1.s8 %v122
    %v356 = vunpack.c.2.s8 %v122
    %v357 = vunpack.c.3.s8 %v122
    %v358 = vunpack.c.0.s8 %v123
    %v359 = vunpack.c.1.s8 %v123
    %v360 = vunpack.c.2.s8 %v123
    %v361 = vunpack.c.3.s8 %v123
    %v362 = vunpack.c.0.s8 %v124
    %v363 = vunpack.c.1.s8 %v124
    %v364 = vunpack.c.2.s8 %v124
    %v365 = vunpack.c.3.s8 %v124
    %v366 = vunpack.c.0.s8 %v125
    %v367 = vunpack.c.1.s8 %v125
    %v368 = vunpack.c.2.s8 %v125
    %v369 = vunpack.c.3.s8 %v125
    %v370 = vunpack.c.0.s8 %v126
    %v371 = vunpack.c.1.s8 %v126
    %v372 = vunpack.c.2.s8 %v126
    %v373 = vunpack.c.3.s8 %v126
    %v374 = vunpack.c.0.s8 %v127
    %v375 = vunpack.c.1.s8 %v127
    %v376 = vunpack.c.2.s8 %v127
    %v377 = vunpack.c.3.s8 %v127
    %v378 = vunpack.c.0.s8 %v128
    %v379 = vunpack.c.1.s8 %v128
    %v380 = vunpack.c.2.s8 %v128
    %v381 = vunpack.c.3.s8 %v128
    %v382 = vunpack.c.0.s8 %v129
    %v383 = vunpack.c.1.s8 %v129
    %v384 = vunpack.c.2.s8 %v129
    %v385 = vunpack.c.3.s8 %v129
    %v386 = vunpack.c.0.s8 %v130
    %v387 = vunpack.c.1.s8 %v130
    %v388 = vunpack.c.2.s8 %v130
    %v389 = vunpack.c.3.s8 %v130
    %v390 = vunpack.c.0.s8 %v131
    %v391 = vunpack.c.1.s8 %v131
    %v392 = vunpack.c.2.s8 %v131
    %v393 = vunpack.c.3.s8 %v131
    %v394 = vunpack.c.0.s8 %v132
    %v395 = vunpack.c.1.s8 %v132
    %v396 = vunpack.c.2.s8 %v132
    %v397 = vunpack.c.3.s8 %v132
    %v398 = vunpack.c.0.s8 %v133
    %v399 = vunpack.c.1.s8 %v133
    %v400 = vunpack.c.2.s8 %v133
    %v401 = vunpack.c.3.s8 %v133
    %v402 = vunpack.c.0.s8 %v134
    %v403 = vunpack.c.1.s8 %v134
    %v404 = vunpack.c.2.s8 %v134
    %v405 = vunpack.c.3.s8 %v134
    %v406 = vunpack.c.0.s8 %v135
    %v407 = vunpack.c.1.s8 %v135
    %v408 = vunpack.c.2.s8 %v135
    %v409 = vunpack.c.3.s8 %v135
    %v410 = vunpack.c.0.s8 %v136
    %v411 = vunpack.c.1.s8 %v136
    %v412 = vunpack.c.2.s8 %v136
    %v413 = vunpack.c.3.s8 %v136
    %v414 = vunpack.c.0.s8 %v137
    %v415 = vunpack.c.1.s8 %v137
    %v416 = vunpack.c.2.s8 %v137
    %v417 = vunpack.c.3.s8 %v137
    %v418 = vunpack.c.0.s8 %v138
    %v419 = vunpack.c.1.s8 %v138
    %v420 = vunpack.c.2.s8 %v138
    %v421 = vunpack.c.3.s8 %v138
    %v422 = vunpack.c.0.s8 %v139
    %v423 = vunpack.c.1.s8 %v139
    %v424 = vunpack.c.2.s8 %v139
    %v425 = vunpack.c.3.s8 %v139
    %v426 = vunpack.c.0.s8 %v140
    %v427 = vunpack.c.1.s8 %v140
    %v428 = vunpack.c.2.s8 %v140
    %v429 = vunpack.c.3.s8 %v140
    %v430 = vunpack.c.0.s8 %v141
    %v431 = vunpack.c.1.s8 %v141
    %v432 = vunpack.c.2.s8 %v141
    %v433 = vunpack.c.3.s8 %v141
    %v434 = vunpack.c.0.s8 %v142
    %v435 = vunpack.c.1.s8 %v142
    %v436 = vunpack.c.2.s8 %v142
    %v437 = vunpack.c.3.s8 %v142
    %v438 = vunpack.c.0.s8 %v143
    %v439 = vunpack.c.1.s8 %v143
    %v440 = vunpack.c.2.s8 %v143
    %v441 = vunpack.c.3.s8 %v143
    %v442 = vunpack.c.0.s8 %v144
    %v443 = vunpack.c.1.s8 %v144
    %v444 = vunpack.c.2.s8 %v144
    %v445 = vunpack.c.3.s8 %v144
    %v446 = vunpack.c.0.s8 %v145
    %v447 = vunpack.c.1.s8 %v145
    %v448 = vunpack.c.2.s8 %v145
    %v449 = vunpack.c.3.s8 %v145
    %v450 = vunpack.c.0.s8 %v146
    %v451 = vunpack.c.1.s8 %v146
    %v452 = vunpack.c.2.s8 %v146
    %v453 = vunpack.c.3.s8 %v146
    %v454 = vunpack.c.0.s8 %v147
    %v455 = vunpack.c.1.s8 %v147
    %v456 = vunpack.c.2.s8 %v147
    %v457 = vunpack.c.3.s8 %v147
    %v458 = vunpack.c.0.s8 %v148
    %v459 = vunpack.c.1.s8 %v148
    %v460 = vunpack.c.2.s8 %v148
    %v461 = vunpack.c.3.s8 %v148
    %v462 = vunpack.c.0.s8 %v149
    %v463 = vunpack.c.1.s8 %v149
    %v464 = vunpack.c.2.s8 %v149
    %v465 = vunpack.c.3.s8 %v149
    %v466 = vunpack.c.0.s8 %v150
    %v467 = vunpack.c.1.s8 %v150
    %v468 = vunpack.c.2.s8 %v150
    %v469 = vunpack.c.3.s8 %v150
    %v470 = vunpack.c.0.s8 %v151
    %v471 = vunpack.c.1.s8 %v151
    %v472 = vunpack.c.2.s8 %v151
    %v473 = vunpack.c.3.s8 %v151
    %v474 = vunpack.c.0.s8 %v152
    %v475 = vunpack.c.1.s8 %v152
    %v476 = vunpack.c.2.s8 %v152
    %v477 = vunpack.c.3.s8 %v152
    %v478 = vunpack.c.0.s8 %v153
    %v479 = vunpack.c.1.s8 %v153
    %v480 = vunpack.c.2.s8 %v153
    %v481 = vunpack.c.3.s8 %v153
    %v482 = vunpack.c.0.s8 %v154
    %v483 = vunpack.c.1.s8 %v154
    %v484 = vunpack.c.2.s8 %v154
    %v485 = vunpack.c.3.s8 %v154
    %v486 = vunpack.c.0.s8 %v155
    %v487 = vunpack.c.1.s8 %v155
    %v488 = vunpack.c.2.s8 %v155
    %v489 = vunpack.c.3.s8 %v155
    %v490 = vunpack.c.0.s8 %v156
    %v491 = vunpack.c.1.s8 %v156
    %v492 = vunpack.c.2.s8 %v156
    %v493 = vunpack.c.3.s8 %v156
    %v494 = vunpack.c.0.s8 %v157
    %v495 = vunpack.c.1.s8 %v157
    %v496 = vunpack.c.2.s8 %v157
    %v497 = vunpack.c.3.s8 %v157
    %v498 = vunpack.c.0.s8 %v158
    %v499 = vunpack.c.1.s8 %v158
    %v500 = vunpack.c.2.s8 %v158
    %v501 = vunpack.c.3.s8 %v158
    %v502 = vunpack.c.0.s8 %v159
    %v503 = vunpack.c.1.s8 %v159
    %v504 = vunpack.c.2.s8 %v159
    %v505 = vunpack.c.3.s8 %v159
    %v506 = vunpack.c.0.s8 %v160
    %v507 = vunpack.c.1.s8 %v160
    %v508 = vunpack.c.2.s8 %v160
    %v509 = vunpack.c.3.s8 %v160
    %v510 = vunpack.c.0.s8 %v161
    %v511 = vunpack.c.1.s8 %v161
    %v512 = vunpack.c.2.s8 %v161
    %v513 = vunpack.c.3.s8 %v161
    %v514 = vunpack.c.0.s8 %v162
    %v515 = vunpack.c.1.s8 %v162
    %v516 = vunpack.c.2.s8 %v162
    %v517 = vunpack.c.3.s8 %v162
    %v518 = vunpack.c.0.s8 %v163
    %v519 = vunpack.c.1.s8 %v163
    %v520 = vunpack.c.2.s8 %v163
    %v521 = vunpack.c.3.s8 %v163
    %v522 = vunpack.c.0.s8 %v164
    %v523 = vunpack.c.1.s8 %v164
    %v524 = vunpack.c.2.s8 %v164
    %v525 = vunpack.c.3.s8 %v164
    %v526 = vunpack.c.0.s8 %v165
    %v527 = vunpack.c.1.s8 %v165
    %v528 = vunpack.c.2.s8 %v165
    %v529 = vunpack.c.3.s8 %v165
    %v530 = vunpack.c.0.s8 %v166
    %v531 = vunpack.c.1.s8 %v166
    %v532 = vunpack.c.2.s8 %v166
    %v533 = vunpack.c.3.s8 %v166
    %v534 = vunpack.c.0.s8 %v167
    %v535 = vunpack.c.1.s8 %v167
    %v536 = vunpack.c.2.s8 %v167
    %v537 = vunpack.c.3.s8 %v167
    %v538 = vunpack.c.0.s8 %v168
    %v539 = vunpack.c.1.s8 %v168
    %v540 = vunpack.c.2.s8 %v168
    %v541 = vunpack.c.3.s8 %v168
    %v542 = vunpack.c.0.s8 %v169
    %v543 = vunpack.c.1.s8 %v169
    %v544 = vunpack.c.2.s8 %v169
    %v545 = vunpack.c.3.s8 %v169
    %v546 = vunpack.c.0.s8 %v170
    %v547 = vunpack.c.1.s8 %v170
    %v548 = vunpack.c.2.s8 %v170
    %v549 = vunpack.c.3.s8 %v170
    %v550 = vunpack.c.0.s8 %v171
    %v551 = vunpack.c.1.s8 %v171
    %v552 = vunpack.c.2.s8 %v171
    %v553 = vunpack.c.3.s8 %v171
    %v554 = vunpack.c.0.s8 %v172
    %v555 = vunpack.c.1.s8 %v172
    %v556 = vunpack.c.2.s8 %v172
    %v557 = vunpack.c.3.s8 %v172
    %v558 = vunpack.c.0.s8 %v173
    %v559 = vunpack.c.1.s8 %v173
    %v560 = vunpack.c.2.s8 %v173
    %v561 = vunpack.c.3.s8 %v173
    %v562 = vunpack.c.0.s8 %v174
    %v563 = vunpack.c.1.s8 %v174
    %v564 = vunpack.c.2.s8 %v174
    %v565 = vunpack.c.3.s8 %v174
    %v566 = vunpack.c.0.s8 %v175
    %v567 = vunpack.c.1.s8 %v175
    %v568 = vunpack.c.2.s8 %v175
    %v569 = vunpack.c.3.s8 %v175
    %v570 = vunpack.c.0.s8 %v176
    %v571 = vunpack.c.1.s8 %v176
    %v572 = vunpack.c.2.s8 %v176
    %v573 = vunpack.c.3.s8 %v176
    %v574 = vunpack.c.0.s8 %v177
    %v575 = vunpack.c.1.s8 %v177
    %v576 = vunpack.c.2.s8 %v177
    %v577 = vunpack.c.3.s8 %v177
    %v578 = vunpack.c.0.s8 %v178
    %v579 = vunpack.c.1.s8 %v178
    %v580 = vunpack.c.2.s8 %v178
    %v581 = vunpack.c.3.s8 %v178
    %v582 = vunpack.c.0.s8 %v179
    %v583 = vunpack.c.1.s8 %v179
    %v584 = vunpack.c.2.s8 %v179
    %v585 = vunpack.c.3.s8 %v179
    %v586 = vunpack.c.0.s8 %v180
    %v587 = vunpack.c.1.s8 %v180
    %v588 = vunpack.c.2.s8 %v180
    %v589 = vunpack.c.3.s8 %v180
    %v590 = vunpack.c.0.s8 %v181
    %v591 = vunpack.c.1.s8 %v181
    %v592 = vunpack.c.2.s8 %v181
    %v593 = vunpack.c.3.s8 %v181
    %v594 = vunpack.c.0.s8 %v182
    %v595 = vunpack.c.1.s8 %v182
    %v596 = vunpack.c.2.s8 %v182
    %v597 = vunpack.c.3.s8 %v182
    %v598 = vunpack.c.0.s8 %v183
    %v599 = vunpack.c.1.s8 %v183
    %v600 = vunpack.c.2.s8 %v183
    %v601 = vunpack.c.3.s8 %v183
    %v602 = vunpack.c.0.s8 %v184
    %v603 = vunpack.c.1.s8 %v184
    %v604 = vunpack.c.2.s8 %v184
    %v605 = vunpack.c.3.s8 %v184
    %v606 = vunpack.c.0.s8 %v185
    %v607 = vunpack.c.1.s8 %v185
    %v608 = vunpack.c.2.s8 %v185
    %v609 = vunpack.c.3.s8 %v185
    %v610 = vunpack.c.0.s8 %v186
    %v611 = vunpack.c.1.s8 %v186
    %v612 = vunpack.c.2.s8 %v186
    %v613 = vunpack.c.3.s8 %v186
    %v614 = vunpack.c.0.s8 %v187
    %v615 = vunpack.c.1.s8 %v187
    %v616 = vunpack.c.2.s8 %v187
    %v617 = vunpack.c.3.s8 %v187
    %v618 = vunpack.c.0.s8 %v188
    %v619 = vunpack.c.1.s8 %v188
    %v620 = vunpack.c.2.s8 %v188
    %v621 = vunpack.c.3.s8 %v188
    %v622 = vunpack.c.0.s8 %v189
    %v623 = vunpack.c.1.s8 %v189
    %v624 = vunpack.c.2.s8 %v189
    %v625 = vunpack.c.3.s8 %v189
    %v626 = vunpack.c.0.s8 %v190
    %v627 = vunpack.c.1.s8 %v190
    %v628 = vunpack.c.2.s8 %v190
    %v629 = vunpack.c.3.s8 %v190
    %v630 = vunpack.c.0.s8 %v191
    %v631 = vunpack.c.1.s8 %v191
    %v632 = vunpack.c.2.s8 %v191
    %v633 = vunpack.c.3.s8 %v191
    %v634 = vunpack.c.0.s8 %v192
    %v635 = vunpack.c.1.s8 %v192
    %v636 = vunpack.c.2.s8 %v192
    %v637 = vunpack.c.3.s8 %v192
    %v638 = vunpack.c.0.s8 %v193
    %v639 = vunpack.c.1.s8 %v193
    %v640 = vunpack.c.2.s8 %v193
    %v641 = vunpack.c.3.s8 %v193
    %v642 = vunpack.c.0.s8 %v194
    %v643 = vunpack.c.1.s8 %v194
    %v644 = vunpack.c.2.s8 %v194
    %v645 = vunpack.c.3.s8 %v194
    %v646 = vunpack.c.0.s8 %v195
    %v647 = vunpack.c.1.s8 %v195
    %v648 = vunpack.c.2.s8 %v195
    %v649 = vunpack.c.3.s8 %v195
    %v650 = vunpack.c.0.s8 %v196
    %v651 = vunpack.c.1.s8 %v196
    %v652 = vunpack.c.2.s8 %v196
    %v653 = vunpack.c.3.s8 %v196
    %v654 = vunpack.c.0.s8 %v197
    %v655 = vunpack.c.1.s8 %v197
    %v656 = vunpack.c.2.s8 %v197
    %v657 = vunpack.c.3.s8 %v197
    %v658 = vunpack.c.0.s8 %v198
    %v659 = vunpack.c.1.s8 %v198
    %v660 = vunpack.c.2.s8 %v198
    %v661 = vunpack.c.3.s8 %v198
    %v662 = vunpack.c.0.s8 %v199
    %v663 = vunpack.c.1.s8 %v199
    %v664 = vunpack.c.2.s8 %v199
    %v665 = vunpack.c.3.s8 %v199
    %v666 = vunpack.c.0.s8 %v200
    %v667 = vunpack.c.1.s8 %v200
    %v668 = vunpack.c.2.s8 %v200
    %v669 = vunpack.c.3.s8 %v200
    %v670 = vunpack.c.0.s8 %v201
    %v671 = vunpack.c.1.s8 %v201
    %v672 = vunpack.c.2.s8 %v201
    %v673 = vunpack.c.3.s8 %v201
    %v674 = vunpack.c.0.s8 %v202
    %v675 = vunpack.c.1.s8 %v202
    %v676 = vunpack.c.2.s8 %v202
    %v677 = vunpack.c.3.s8 %v202
    %v678 = vunpack.c.0.s8 %v203
    %v679 = vunpack.c.1.s8 %v203
    %v680 = vunpack.c.2.s8 %v203
    %v681 = vunpack.c.3.s8 %v203
    %v682 = vunpack.c.0.s8 %v204
    %v683 = vunpack.c.1.s8 %v204
    %v684 = vunpack.c.2.s8 %v204
    %v685 = vunpack.c.3.s8 %v204
    %v686 = vunpack.c.0.s8 %v205
    %v687 = vunpack.c.1.s8 %v205
    %v688 = vunpack.c.2.s8 %v205
    %v689 = vunpack.c.3.s8 %v205
    %v690 = vunpack.c.0.s8 %v206
    %v691 = vunpack.c.1.s8 %v206
    %v692 = vunpack.c.2.s8 %v206
    %v693 = vunpack.c.3.s8 %v206
    %v694 = vunpack.c.0.s8 %v207
    %v695 = vunpack.c.1.s8 %v207
    %v696 = vunpack.c.2.s8 %v207
    %v697 = vunpack.c.3.s8 %v207
    %v698 = vunpack.c.0.s8 %v208
    %v699 = vunpack.c.1.s8 %v208
    %v700 = vunpack.c.2.s8 %v208
    %v701 = vunpack.c.3.s8 %v208
    %v702 = vunpack.c.0.s8 %v209
    %v703 = vunpack.c.1.s8 %v209
    %v704 = vunpack.c.2.s8 %v209
    %v705 = vunpack.c.3.s8 %v209
    %v706 = vunpack.c.0.s8 %v210
    %v707 = vunpack.c.1.s8 %v210
    %v708 = vunpack.c.2.s8 %v210
    %v709 = vunpack.c.3.s8 %v210
    %v710 = vunpack.c.0.s8 %v211
    %v711 = vunpack.c.1.s8 %v211
    %v712 = vunpack.c.2.s8 %v211
    %v713 = vunpack.c.3.s8 %v211
    %v714 = vunpack.c.0.s8 %v212
    %v715 = vunpack.c.1.s8 %v212
    %v716 = vunpack.c.2.s8 %v212
    %v717 = vunpack.c.3.s8 %v212
    %v718 = vunpack.c.0.s8 %v213
    %v719 = vunpack.c.1.s8 %v213
    %v720 = vunpack.c.2.s8 %v213
    %v721 = vunpack.c.3.s8 %v213
    %v722 = vunpack.c.0.s8 %v214
    %v723 = vunpack.c.1.s8 %v214
    %v724 = vunpack.c.2.s8 %v214
    %v725 = vunpack.c.3.s8 %v214
    %v726 = vunpack.c.0.s8 %v215
    %v727 = vunpack.c.1.s8 %v215
    %v728 = vunpack.c.2.s8 %v215
    %v729 = vunpack.c.3.s8 %v215
    %v730 = vunpack.c.0.s8 %v216
    %v731 = vunpack.c.1.s8 %v216
    %v732 = vunpack.c.2.s8 %v216
    %v733 = vunpack.c.3.s8 %v216
    %v734 = vunpack.c.0.s8 %v217
    %v735 = vunpack.c.1.s8 %v217
    %v736 = vunpack.c.2.s8 %v217
    %v737 = vunpack.c.3.s8 %v217
    %v738 = vunpack.c.0.s8 %v218
    %v739 = vunpack.c.1.s8 %v218
    %v740 = vunpack.c.2.s8 %v218
    %v741 = vunpack.c.3.s8 %v218
    %v742 = vunpack.c.0.s8 %v219
    %v743 = vunpack.c.1.s8 %v219
    %v744 = vunpack.c.2.s8 %v219
    %v745 = vunpack.c.3.s8 %v219
    %v746 = vunpack.c.0.s8 %v220
    %v747 = vunpack.c.1.s8 %v220
    %v748 = vunpack.c.2.s8 %v220
    %v749 = vunpack.c.3.s8 %v220
    %v750 = vunpack.c.0.s8 %v221
    %v751 = vunpack.c.1.s8 %v221
    %v752 = vunpack.c.2.s8 %v221
    %v753 = vunpack.c.3.s8 %v221
    %v754 = vunpack.c.0.s8 %v222
    %v755 = vunpack.c.1.s8 %v222
    %v756 = vunpack.c.2.s8 %v222
    %v757 = vunpack.c.3.s8 %v222
    %v758 = vunpack.c.0.s8 %v223
    %v759 = vunpack.c.1.s8 %v223
    %v760 = vunpack.c.2.s8 %v223
    %v761 = vunpack.c.3.s8 %v223
    %v762 = vunpack.c.0.s8 %v224
    %v763 = vunpack.c.1.s8 %v224
    %v764 = vunpack.c.2.s8 %v224
    %v765 = vunpack.c.3.s8 %v224
    %v766 = vunpack.c.0.s8 %v225
    %v767 = vunpack.c.1.s8 %v225
    %v768 = vunpack.c.2.s8 %v225
    %v769 = vunpack.c.3.s8 %v225
    %v770 = vunpack.c.0.s8 %v226
    %v771 = vunpack.c.1.s8 %v226
    %v772 = vunpack.c.2.s8 %v226
    %v773 = vunpack.c.3.s8 %v226
    %v774 = vunpack.c.0.s8 %v227
    %v775 = vunpack.c.1.s8 %v227
    %v776 = vunpack.c.2.s8 %v227
    %v777 = vunpack.c.3.s8 %v227
    %v778 = vunpack.c.0.s8 %v228
    %v779 = vunpack.c.1.s8 %v228
    %v780 = vunpack.c.2.s8 %v228
    %v781 = vunpack.c.3.s8 %v228
    %v782 = vunpack.c.0.s8 %v229
    %v783 = vunpack.c.1.s8 %v229
    %v784 = vunpack.c.2.s8 %v229
    %v785 = vunpack.c.3.s8 %v229
    %v786 = vunpack.c.0.s8 %v230
    %v787 = vunpack.c.1.s8 %v230
    %v788 = vunpack.c.2.s8 %v230
    %v789 = vunpack.c.3.s8 %v230
    %v790 = vunpack.c.0.s8 %v231
    %v791 = vunpack.c.1.s8 %v231
    %v792 = vunpack.c.2.s8 %v231
    %v793 = vunpack.c.3.s8 %v231
    %v794 = vunpack.c.0.s8 %v232
    %v795 = vunpack.c.1.s8 %v232
    %v796 = vunpack.c.2.s8 %v232
    %v797 = vunpack.c.3.s8 %v232
    %v798 = vunpack.c.0.s8 %v233
    %v799 = vunpack.c.1.s8 %v233
    %v800 = vunpack.c.2.s8 %v233
    %v801 = vunpack.c.3.s8 %v233
    %v802 = vunpack.c.0.s8 %v234
    %v803 = vunpack.c.1.s8 %v234
    %v804 = vunpack.c.2.s8 %v234
    %v805 = vunpack.c.3.s8 %v234
    %v806 = vunpack.c.0.s8 %v235
    %v807 = vunpack.c.1.s8 %v235
    %v808 = vunpack.c.2.s8 %v235
    %v809 = vunpack.c.3.s8 %v235
    %v810 = vunpack.c.0.s8 %v236
    %v811 = vunpack.c.1.s8 %v236
    %v812 = vunpack.c.2.s8 %v236
    %v813 = vunpack.c.3.s8 %v236
    %v814 = vunpack.c.0.s8 %v237
    %v815 = vunpack.c.1.s8 %v237
    %v816 = vunpack.c.2.s8 %v237
    %v817 = vunpack.c.3.s8 %v237
    %v818 = vunpack.c.0.s8 %v238
    %v819 = vunpack.c.1.s8 %v238
    %v820 = vunpack.c.2.s8 %v238
    %v821 = vunpack.c.3.s8 %v238
    %v822 = vunpack.c.0.s8 %v239
    %v823 = vunpack.c.1.s8 %v239
    %v824 = vunpack.c.2.s8 %v239
    %v825 = vunpack.c.3.s8 %v239
    %v826 = vunpack.c.0.s8 %v240
    %v827 = vunpack.c.1.s8 %v240
    %v828 = vunpack.c.2.s8 %v240
    %v829 = vunpack.c.3.s8 %v240
    %v830 = vunpack.c.0.s8 %v241
    %v831 = vunpack.c.1.s8 %v241
    %v832 = vunpack.c.2.s8 %v241
    %v833 = vunpack.c.3.s8 %v241
    %v834 = vunpack.c.0.s8 %v242
    %v835 = vunpack.c.1.s8 %v242
    %v836 = vunpack.c.2.s8 %v242
    %v837 = vunpack.c.3.s8 %v242
    %v838 = vunpack.c.0.s8 %v243
    %v839 = vunpack.c.1.s8 %v243
    %v840 = vunpack.c.2.s8 %v243
    %v841 = vunpack.c.3.s8 %v243
    %v842 = vunpack.c.0.s8 %v244
    %v843 = vunpack.c.1.s8 %v244
    %v844 = vunpack.c.2.s8 %v244
    %v845 = vunpack.c.3.s8 %v244
    %v846 = vunpack.c.0.s8 %v245
    %v847 = vunpack.c.1.s8 %v245
    %v848 = vunpack.c.2.s8 %v245
    %v849 = vunpack.c.3.s8 %v245
    %v850 = vunpack.c.0.s8 %v246
    %v851 = vunpack.c.1.s8 %v246
    %v852 = vunpack.c.2.s8 %v246
    %v853 = vunpack.c.3.s8 %v246
    %v854 = vunpack.c.0.s8 %v247
    %v855 = vunpack.c.1.s8 %v247
    %v856 = vunpack.c.2.s8 %v247
    %v857 = vunpack.c.3.s8 %v247
    %v858 = vunpack.c.0.s8 %v248
    %v859 = vunpack.c.1.s8 %v248
    %v860 = vunpack.c.2.s8 %v248
    %v861 = vunpack.c.3.s8 %v248
    %v862 = vunpack.c.0.s8 %v249
    %v863 = vunpack.c.1.s8 %v249
    %v864 = vunpack.c.2.s8 %v249
    %v865 = vunpack.c.3.s8 %v249
    %v866 = vunpack.c.0.s8 %v250
    %v867 = vunpack.c.1.s8 %v250
    %v868 = vunpack.c.2.s8 %v250
    %v869 = vunpack.c.3.s8 %v250
    %v870 = vunpack.c.0.s8 %v251
    %v871 = vunpack.c.1.s8 %v251
    %v872 = vunpack.c.2.s8 %v251
    %v873 = vunpack.c.3.s8 %v251
    %v874 = vunpack.c.0.s8 %v252
    %v875 = vunpack.c.1.s8 %v252
    %v876 = vunpack.c.2.s8 %v252
    %v877 = vunpack.c.3.s8 %v252
    %v878 = vunpack.c.0.s8 %v253
    %v879 = vunpack.c.1.s8 %v253
    %v880 = vunpack.c.2.s8 %v253
    %v881 = vunpack.c.3.s8 %v253
    %v882 = vunpack.c.0.s8 %v254
    %v883 = vunpack.c.1.s8 %v254
    %v884 = vunpack.c.2.s8 %v254
    %v885 = vunpack.c.3.s8 %v254
    %v886 = vunpack.c.0.s8 %v255
    %v887 = vunpack.c.1.s8 %v255
    %v888 = vunpack.c.2.s8 %v255
    %v889 = vunpack.c.3.s8 %v255
    %v890 = vunpack.c.0.s8 %v256
    %v891 = vunpack.c.1.s8 %v256
    %v892 = vunpack.c.2.s8 %v256
    %v893 = vunpack.c.3.s8 %v256
    %v894 = vunpack.c.0.s8 %v257
    %v895 = vunpack.c.1.s8 %v257
    %v896 = vunpack.c.2.s8 %v257
    %v897 = vunpack.c.3.s8 %v257
    %v898 = vunpack.c.0.s8 %v258
    %v899 = vunpack.c.1.s8 %v258
    %v900 = vunpack.c.2.s8 %v258
    %v901 = vunpack.c.3.s8 %v258
    %v902 = vunpack.c.0.s8 %v259
    %v903 = vunpack.c.1.s8 %v259
    %v904 = vunpack.c.2.s8 %v259
    %v905 = vunpack.c.3.s8 %v259
    %v906 = vunpack.c.0.s8 %v260
    %v907 = vunpack.c.1.s8 %v260
    %v908 = vunpack.c.2.s8 %v260
    %v909 = vunpack.c.3.s8 %v260
    %v910 = vunpack.c.0.s8 %v261
    %v911 = vunpack.c.1.s8 %v261
    %v912 = vunpack.c.2.s8 %v261
    %v913 = vunpack.c.3.s8 %v261
    %v914 = vunpack.c.0.s8 %v262
    %v915 = vunpack.c.1.s8 %v262
    %v916 = vunpack.c.2.s8 %v262
    %v917 = vunpack.c.3.s8 %v262
    %v918 = vunpack.c.0.s8 %v263
    %v919 = vunpack.c.1.s8 %v263
    %v920 = vunpack.c.2.s8 %v263
    %v921 = vunpack.c.3.s8 %v263
    %v922 = vunpack.c.0.s8 %v264
    %v923 = vunpack.c.1.s8 %v264
    %v924 = vunpack.c.2.s8 %v264
    %v925 = vunpack.c.3.s8 %v264
    %v926 = vunpack.c.0.s8 %v265
    %v927 = vunpack.c.1.s8 %v265
    %v928 = vunpack.c.2.s8 %v265
    %v929 = vunpack.c.3.s8 %v265
    %v930 = vunpack.c.0.s8 %v266
    %v931 = vunpack.c.1.s8 %v266
    %v932 = vunpack.c.2.s8 %v266
    %v933 = vunpack.c.3.s8 %v266
    %v934 = vunpack.c.0.s8 %v267
    %v935 = vunpack.c.1.s8 %v267
    %v936 = vunpack.c.2.s8 %v267
    %v937 = vunpack.c.3.s8 %v267
    %v938 = vunpack.c.0.s8 %v268
    %v939 = vunpack.c.1.s8 %v268
    %v940 = vunpack.c.2.s8 %v268
    %v941 = vunpack.c.3.s8 %v268
    %v942 = vunpack.c.0.s8 %v269
    %v943 = vunpack.c.1.s8 %v269
    %v944 = vunpack.c.2.s8 %v269
    %v945 = vunpack.c.3.s8 %v269
    %v946 = vunpack.c.0.s8 %v270
    %v947 = vunpack.c.1.s8 %v270
    %v948 = vunpack.c.2.s8 %v270
    %v949 = vunpack.c.3.s8 %v270
    %v950 = vunpack.c.0.s8 %v271
    %v951 = vunpack.c.1.s8 %v271
    %v952 = vunpack.c.2.s8 %v271
    %v953 = vunpack.c.3.s8 %v271
    %v954 = vunpack.c.0.s8 %v272
    %v955 = vunpack.c.1.s8 %v272
    %v956 = vunpack.c.2.s8 %v272
    %v957 = vunpack.c.3.s8 %v272
    %v958 = vunpack.c.0.s8 %v273
    %v959 = vunpack.c.1.s8 %v273
    %v960 = vunpack.c.2.s8 %v273
    %v961 = vunpack.c.3.s8 %v273
    %v962 = vunpack.c.0.s8 %v274
    %v963 = vunpack.c.1.s8 %v274
    %v964 = vunpack.c.2.s8 %v274
    %v965 = vunpack.c.3.s8 %v274
    %v966 = vunpack.c.0.s8 %v275
    %v967 = vunpack.c.1.s8 %v275
    %v968 = vunpack.c.2.s8 %v275
    %v969 = vunpack.c.3.s8 %v275
    %v970 = vunpack.c.0.s8 %v276
    %v971 = vunpack.c.1.s8 %v276
    %v972 = vunpack.c.2.s8 %v276
    %v973 = vunpack.c.3.s8 %v276
    %v974 = vunpack.c.0.s8 %v277
    %v975 = vunpack.c.1.s8 %v277
    %v976 = vunpack.c.2.s8 %v277
    %v977 = vunpack.c.3.s8 %v277
    %v978 = vunpack.c.0.s8 %v278
    %v979 = vunpack.c.1.s8 %v278
    %v980 = vunpack.c.2.s8 %v278
    %v981 = vunpack.c.3.s8 %v278
    %v982 = vunpack.c.0.s8 %v279
    %v983 = vunpack.c.1.s8 %v279
    %v984 = vunpack.c.2.s8 %v279
    %v985 = vunpack.c.3.s8 %v279
    %v986 = vunpack.c.0.s8 %v280
    %v987 = vunpack.c.1.s8 %v280
    %v988 = vunpack.c.2.s8 %v280
    %v989 = vunpack.c.3.s8 %v280
    %v990 = vunpack.c.0.s8 %v281
    %v991 = vunpack.c.1.s8 %v281
    %v992 = vunpack.c.2.s8 %v281
    %v993 = vunpack.c.3.s8 %v281
    %v994 = vunpack.c.0.s8 %v282
    %v995 = vunpack.c.1.s8 %v282
    %v996 = vunpack.c.2.s8 %v282
    %v997 = vunpack.c.3.s8 %v282
    %v998 = vunpack.c.0.s8 %v283
    %v999 = vunpack.c.1.s8 %v283
    %v1000 = vunpack.c.2.s8 %v283
    %v1001 = vunpack.c.3.s8 %v283
    %v1002 = vunpack.c.0.s8 %v284
    %v1003 = vunpack.c.1.s8 %v284
    %v1004 = vunpack.c.2.s8 %v284
    %v1005 = vunpack.c.3.s8 %v284
    %v1006 = vunpack.c.0.s8 %v285
    %v1007 = vunpack.c.1.s8 %v285
    %v1008 = vunpack.c.2.s8 %v285
    %v1009 = vunpack.c.3.s8 %v285
    %v1010 = vunpack.c.0.s8 %v286
    %v1011 = vunpack.c.1.s8 %v286
    %v1012 = vunpack.c.2.s8 %v286
    %v1013 = vunpack.c.3.s8 %v286
    %v1014 = vunpack.c.0.s8 %v287
    %v1015 = vunpack.c.1.s8 %v287
    %v1016 = vunpack.c.2.s8 %v287
    %v1017 = vunpack.c.3.s8 %v287
    %v1018 = vunpack.c.0.s8 %v288
    %v1019 = vunpack.c.1.s8 %v288
    %v1020 = vunpack.c.2.s8 %v288
    %v1021 = vunpack.c.3.s8 %v288
    %v1022 = vunpack.c.0.s8 %v289
    %v1023 = vunpack.c.1.s8 %v289
    %v1024 = vunpack.c.2.s8 %v289
    %v1025 = vunpack.c.3.s8 %v289
    %v1026 = vunpack.c.0.s8 %v290
    %v1027 = vunpack.c.1.s8 %v290
    %v1028 = vunpack.c.2.s8 %v290
    %v1029 = vunpack.c.3.s8 %v290
    %v1030 = vunpack.c.0.s8 %v291
    %v1031 = vunpack.c.1.s8 %v291
    %v1032 = vunpack.c.2.s8 %v291
    %v1033 = vunpack.c.3.s8 %v291
    %v1034 = vunpack.c.0.s8 %v292
    %v1035 = vunpack.c.1.s8 %v292
    %v1036 = vunpack.c.2.s8 %v292
    %v1037 = vunpack.c.3.s8 %v292
    %v1038 = vunpack.c.0.s8 %v293
    %v1039 = vunpack.c.1.s8 %v293
    %v1040 = vunpack.c.2.s8 %v293
    %v1041 = vunpack.c.3.s8 %v293
    %v1042 = vunpack.c.0.s8 %v294
    %v1043 = vunpack.c.1.s8 %v294
    %v1044 = vunpack.c.2.s8 %v294
    %v1045 = vunpack.c.3.s8 %v294
    %v1046 = vunpack.c.0.s8 %v295
    %v1047 = vunpack.c.1.s8 %v295
    %v1048 = vunpack.c.2.s8 %v295
    %v1049 = vunpack.c.3.s8 %v295
    %v1050 = vunpack.c.0.s8 %v296
    %v1051 = vunpack.c.1.s8 %v296
    %v1052 = vunpack.c.2.s8 %v296
    %v1053 = vunpack.c.3.s8 %v296
    %v1054 = vunpack.c.0.s8 %v297
    %v1055 = vunpack.c.1.s8 %v297
    %v1056 = vunpack.c.2.s8 %v297
    %v1057 = vunpack.c.3.s8 %v297
    %v1058 = vunpack.c.0.s8 %v298
    %v1059 = vunpack.c.1.s8 %v298
    %v1060 = vunpack.c.2.s8 %v298
    %v1061 = vunpack.c.3.s8 %v298
    %v1062 = vunpack.c.0.s8 %v299
    %v1063 = vunpack.c.1.s8 %v299
    %v1064 = vunpack.c.2.s8 %v299
    %v1065 = vunpack.c.3.s8 %v299
    %v1066 = vunpack.c.0.s8 %v300
    %v1067 = vunpack.c.1.s8 %v300
    %v1068 = vunpack.c.2.s8 %v300
    %v1069 = vunpack.c.3.s8 %v300
    %v1070 = vunpack.c.0.s8 %v301
    %v1071 = vunpack.c.1.s8 %v301
    %v1072 = vunpack.c.2.s8 %v301
    %v1073 = vunpack.c.3.s8 %v301
    %v1074 = vunpack.c.0.s8 %v302
    %v1075 = vunpack.c.1.s8 %v302
    %v1076 = vunpack.c.2.s8 %v302
    %v1077 = vunpack.c.3.s8 %v302
    %v1078 = vunpack.c.0.s8 %v303
    %v1079 = vunpack.c.1.s8 %v303
    %v1080 = vunpack.c.2.s8 %v303
    %v1081 = vunpack.c.3.s8 %v303
    %v1082 = vunpack.c.0.s8 %v304
    %v1083 = vunpack.c.1.s8 %v304
    %v1084 = vunpack.c.2.s8 %v304
    %v1085 = vunpack.c.3.s8 %v304
    %v1086 = vunpack.c.0.s8 %v305
    %v1087 = vunpack.c.1.s8 %v305
    %v1088 = vunpack.c.2.s8 %v305
    %v1089 = vunpack.c.3.s8 %v305
    %v1090 = vcvt.s32.f32 %v306
    %v1091 = vcvt.s32.f32 %v307
    %v1092 = vcvt.s32.f32 %v308
    %v1093 = vcvt.s32.f32 %v309
    %v1094 = vcvt.s32.f32 %v310
    %v1095 = vcvt.s32.f32 %v311
    %v1096 = vcvt.s32.f32 %v312
    %v1097 = vcvt.s32.f32 %v313
    %v1098 = vcvt.s32.f32 %v314
    %v1099 = vcvt.s32.f32 %v315
    %v1100 = vcvt.s32.f32 %v316
    %v1101 = vcvt.s32.f32 %v317
    %v1102 = vcvt.s32.f32 %v318
    %v1103 = vcvt.s32.f32 %v319
    %v1104 = vcvt.s32.f32 %v320
    %v1105 = vcvt.s32.f32 %v321
    %v1106 = vcvt.s32.f32 %v322
    %v1107 = vcvt.s32.f32 %v323
    %v1108 = vcvt.s32.f32 %v324
    %v1109 = vcvt.s32.f32 %v325
    %v1110 = vcvt.s32.f32 %v326
    %v1111 = vcvt.s32.f32 %v327
    %v1112 = vcvt.s32.f32 %v328
    %v1113 = vcvt.s32.f32 %v329
    %v1114 = vcvt.s32.f32 %v330
    %v1115 = vcvt.s32.f32 %v331
    %v1116 = vcvt.s32.f32 %v332
    %v1117 = vcvt.s32.f32 %v333
    %v1118 = vcvt.s32.f32 %v334
    %v1119 = vcvt.s32.f32 %v335
    %v1120 = vcvt.s32.f32 %v336
    %v1121 = vcvt.s32.f32 %v337
    %v1122 = vcvt.s32.f32 %v338
    %v1123 = vcvt.s32.f32 %v339
    %v1124 = vcvt.s32.f32 %v340
    %v1125 = vcvt.s32.f32 %v341
    %v1126 = vcvt.s32.f32 %v342
    %v1127 = vcvt.s32.f32 %v343
    %v1128 = vcvt.s32.f32 %v344
    %v1129 = vcvt.s32.f32 %v345
    %v1130 = vcvt.s32.f32 %v346
    %v1131 = vcvt.s32.f32 %v347
    %v1132 = vcvt.s32.f32 %v348
    %v1133 = vcvt.s32.f32 %v349
    %v1134 = vcvt.s32.f32 %v350
    %v1135 = vcvt.s32.f32 %v351
    %v1136 = vcvt.s32.f32 %v352
    %v1137 = vcvt.s32.f32 %v353
    %v1138 = vcvt.s32.f32 %v354
    %v1139 = vcvt.s32.f32 %v355
    %v1140 = vcvt.s32.f32 %v356
    %v1141 = vcvt.s32.f32 %v357
    %v1142 = vcvt.s32.f32 %v358
    %v1143 = vcvt.s32.f32 %v359
    %v1144 = vcvt.s32.f32 %v360
    %v1145 = vcvt.s32.f32 %v361
    %v1146 = vcvt.s32.f32 %v362
    %v1147 = vcvt.s32.f32 %v363
    %v1148 = vcvt.s32.f32 %v364
    %v1149 = vcvt.s32.f32 %v365
    %v1150 = vcvt.s32.f32 %v366
    %v1151 = vcvt.s32.f32 %v367
    %v1152 = vcvt.s32.f32 %v368
    %v1153 = vcvt.s32.f32 %v369
    %v1154 = vcvt.s32.f32 %v370
    %v1155 = vcvt.s32.f32 %v371
    %v1156 = vcvt.s32.f32 %v372
    %v1157 = vcvt.s32.f32 %v373
    %v1158 = vcvt.s32.f32 %v374
    %v1159 = vcvt.s32.f32 %v375
    %v1160 = vcvt.s32.f32 %v376
    %v1161 = vcvt.s32.f32 %v377
    %v1162 = vcvt.s32.f32 %v378
    %v1163 = vcvt.s32.f32 %v379
    %v1164 = vcvt.s32.f32 %v380
    %v1165 = vcvt.s32.f32 %v381
    %v1166 = vcvt.s32.f32 %v382
    %v1167 = vcvt.s32.f32 %v383
    %v1168 = vcvt.s32.f32 %v384
    %v1169 = vcvt.s32.f32 %v385
    %v1170 = vcvt.s32.f32 %v386
    %v1171 = vcvt.s32.f32 %v387
    %v1172 = vcvt.s32.f32 %v388
    %v1173 = vcvt.s32.f32 %v389
    %v1174 = vcvt.s32.f32 %v390
    %v1175 = vcvt.s32.f32 %v391
    %v1176 = vcvt.s32.f32 %v392
    %v1177 = vcvt.s32.f32 %v393
    %v1178 = vcvt.s32.f32 %v394
    %v1179 = vcvt.s32.f32 %v395
    %v1180 = vcvt.s32.f32 %v396
    %v1181 = vcvt.s32.f32 %v397
    %v1182 = vcvt.s32.f32 %v398
    %v1183 = vcvt.s32.f32 %v399
    %v1184 = vcvt.s32.f32 %v400
    %v1185 = vcvt.s32.f32 %v401
    %v1186 = vcvt.s32.f32 %v402
    %v1187 = vcvt.s32.f32 %v403
    %v1188 = vcvt.s32.f32 %v404
    %v1189 = vcvt.s32.f32 %v405
    %v1190 = vcvt.s32.f32 %v406
    %v1191 = vcvt.s32.f32 %v407
    %v1192 = vcvt.s32.f32 %v408
    %v1193 = vcvt.s32.f32 %v409
    %v1194 = vcvt.s32.f32 %v410
    %v1195 = vcvt.s32.f32 %v411
    %v1196 = vcvt.s32.f32 %v412
    %v1197 = vcvt.s32.f32 %v413
    %v1198 = vcvt.s32.f32 %v414
    %v1199 = vcvt.s32.f32 %v415
    %v1200 = vcvt.s32.f32 %v416
    %v1201 = vcvt.s32.f32 %v417
    %v1202 = vcvt.s32.f32 %v418
    %v1203 = vcvt.s32.f32 %v419
    %v1204 = vcvt.s32.f32 %v420
    %v1205 = vcvt.s32.f32 %v421
    %v1206 = vcvt.s32.f32 %v422
    %v1207 = vcvt.s32.f32 %v423
    %v1208 = vcvt.s32.f32 %v424
    %v1209 = vcvt.s32.f32 %v425
    %v1210 = vcvt.s32.f32 %v426
    %v1211 = vcvt.s32.f32 %v427
    %v1212 = vcvt.s32.f32 %v428
    %v1213 = vcvt.s32.f32 %v429
    %v1214 = vcvt.s32.f32 %v430
    %v1215 = vcvt.s32.f32 %v431
    %v1216 = vcvt.s32.f32 %v432
    %v1217 = vcvt.s32.f32 %v433
    %v1218 = vcvt.s32.f32 %v434
    %v1219 = vcvt.s32.f32 %v435
    %v1220 = vcvt.s32.f32 %v436
    %v1221 = vcvt.s32.f32 %v437
    %v1222 = vcvt.s32.f32 %v438
    %v1223 = vcvt.s32.f32 %v439
    %v1224 = vcvt.s32.f32 %v440
    %v1225 = vcvt.s32.f32 %v441
    %v1226 = vcvt.s32.f32 %v442
    %v1227 = vcvt.s32.f32 %v443
    %v1228 = vcvt.s32.f32 %v444
    %v1229 = vcvt.s32.f32 %v445
    %v1230 = vcvt.s32.f32 %v446
    %v1231 = vcvt.s32.f32 %v447
    %v1232 = vcvt.s32.f32 %v448
    %v1233 = vcvt.s32.f32 %v449
    %v1234 = vcvt.s32.f32 %v450
    %v1235 = vcvt.s32.f32 %v451
    %v1236 = vcvt.s32.f32 %v452
    %v1237 = vcvt.s32.f32 %v453
    %v1238 = vcvt.s32.f32 %v454
    %v1239 = vcvt.s32.f32 %v455
    %v1240 = vcvt.s32.f32 %v456
    %v1241 = vcvt.s32.f32 %v457
    %v1242 = vcvt.s32.f32 %v458
    %v1243 = vcvt.s32.f32 %v459
    %v1244 = vcvt.s32.f32 %v460
    %v1245 = vcvt.s32.f32 %v461
    %v1246 = vcvt.s32.f32 %v462
    %v1247 = vcvt.s32.f32 %v463
    %v1248 = vcvt.s32.f32 %v464
    %v1249 = vcvt.s32.f32 %v465
    %v1250 = vcvt.s32.f32 %v466
    %v1251 = vcvt.s32.f32 %v467
    %v1252 = vcvt.s32.f32 %v468
    %v1253 = vcvt.s32.f32 %v469
    %v1254 = vcvt.s32.f32 %v470
    %v1255 = vcvt.s32.f32 %v471
    %v1256 = vcvt.s32.f32 %v472
    %v1257 = vcvt.s32.f32 %v473
    %v1258 = vcvt.s32.f32 %v474
    %v1259 = vcvt.s32.f32 %v475
    %v1260 = vcvt.s32.f32 %v476
    %v1261 = vcvt.s32.f32 %v477
    %v1262 = vcvt.s32.f32 %v478
    %v1263 = vcvt.s32.f32 %v479
    %v1264 = vcvt.s32.f32 %v480
    %v1265 = vcvt.s32.f32 %v481
    %v1266 = vcvt.s32.f32 %v482
    %v1267 = vcvt.s32.f32 %v483
    %v1268 = vcvt.s32.f32 %v484
    %v1269 = vcvt.s32.f32 %v485
    %v1270 = vcvt.s32.f32 %v486
    %v1271 = vcvt.s32.f32 %v487
    %v1272 = vcvt.s32.f32 %v488
    %v1273 = vcvt.s32.f32 %v489
    %v1274 = vcvt.s32.f32 %v490
    %v1275 = vcvt.s32.f32 %v491
    %v1276 = vcvt.s32.f32 %v492
    %v1277 = vcvt.s32.f32 %v493
    %v1278 = vcvt.s32.f32 %v494
    %v1279 = vcvt.s32.f32 %v495
    %v1280 = vcvt.s32.f32 %v496
    %v1281 = vcvt.s32.f32 %v497
    %v1282 = vcvt.s32.f32 %v498
    %v1283 = vcvt.s32.f32 %v499
    %v1284 = vcvt.s32.f32 %v500
    %v1285 = vcvt.s32.f32 %v501
    %v1286 = vcvt.s32.f32 %v502
    %v1287 = vcvt.s32.f32 %v503
    %v1288 = vcvt.s32.f32 %v504
    %v1289 = vcvt.s32.f32 %v505
    %v1290 = vcvt.s32.f32 %v506
    %v1291 = vcvt.s32.f32 %v507
    %v1292 = vcvt.s32.f32 %v508
    %v1293 = vcvt.s32.f32 %v509
    %v1294 = vcvt.s32.f32 %v510
    %v1295 = vcvt.s32.f32 %v511
    %v1296 = vcvt.s32.f32 %v512
    %v1297 = vcvt.s32.f32 %v513
    %v1298 = vcvt.s32.f32 %v514
    %v1299 = vcvt.s32.f32 %v515
    %v1300 = vcvt.s32.f32 %v516
    %v1301 = vcvt.s32.f32 %v517
    %v1302 = vcvt.s32.f32 %v518
    %v1303 = vcvt.s32.f32 %v519
    %v1304 = vcvt.s32.f32 %v520
    %v1305 = vcvt.s32.f32 %v521
    %v1306 = vcvt.s32.f32 %v522
    %v1307 = vcvt.s32.f32 %v523
    %v1308 = vcvt.s32.f32 %v524
    %v1309 = vcvt.s32.f32 %v525
    %v1310 = vcvt.s32.f32 %v526
    %v1311 = vcvt.s32.f32 %v527
    %v1312 = vcvt.s32.f32 %v528
    %v1313 = vcvt.s32.f32 %v529
    %v1314 = vcvt.s32.f32 %v530
    %v1315 = vcvt.s32.f32 %v531
    %v1316 = vcvt.s32.f32 %v532
    %v1317 = vcvt.s32.f32 %v533
    %v1318 = vcvt.s32.f32 %v534
    %v1319 = vcvt.s32.f32 %v535
    %v1320 = vcvt.s32.f32 %v536
    %v1321 = vcvt.s32.f32 %v537
    %v1322 = vcvt.s32.f32 %v538
    %v1323 = vcvt.s32.f32 %v539
    %v1324 = vcvt.s32.f32 %v540
    %v1325 = vcvt.s32.f32 %v541
    %v1326 = vcvt.s32.f32 %v542
    %v1327 = vcvt.s32.f32 %v543
    %v1328 = vcvt.s32.f32 %v544
    %v1329 = vcvt.s32.f32 %v545
    %v1330 = vcvt.s32.f32 %v546
    %v1331 = vcvt.s32.f32 %v547
    %v1332 = vcvt.s32.f32 %v548
    %v1333 = vcvt.s32.f32 %v549
    %v1334 = vcvt.s32.f32 %v550
    %v1335 = vcvt.s32.f32 %v551
    %v1336 = vcvt.s32.f32 %v552
    %v1337 = vcvt.s32.f32 %v553
    %v1338 = vcvt.s32.f32 %v554
    %v1339 = vcvt.s32.f32 %v555
    %v1340 = vcvt.s32.f32 %v556
    %v1341 = vcvt.s32.f32 %v557
    %v1342 = vcvt.s32.f32 %v558
    %v1343 = vcvt.s32.f32 %v559
    %v1344 = vcvt.s32.f32 %v560
    %v1345 = vcvt.s32.f32 %v561
    %v1346 = vcvt.s32.f32 %v562
    %v1347 = vcvt.s32.f32 %v563
    %v1348 = vcvt.s32.f32 %v564
    %v1349 = vcvt.s32.f32 %v565
    %v1350 = vcvt.s32.f32 %v566
    %v1351 = vcvt.s32.f32 %v567
    %v1352 = vcvt.s32.f32 %v568
    %v1353 = vcvt.s32.f32 %v569
    %v1354 = vcvt.s32.f32 %v570
    %v1355 = vcvt.s32.f32 %v571
    %v1356 = vcvt.s32.f32 %v572
    %v1357 = vcvt.s32.f32 %v573
    %v1358 = vcvt.s32.f32 %v574
    %v1359 = vcvt.s32.f32 %v575
    %v1360 = vcvt.s32.f32 %v576
    %v1361 = vcvt.s32.f32 %v577
    %v1362 = vcvt.s32.f32 %v578
    %v1363 = vcvt.s32.f32 %v579
    %v1364 = vcvt.s32.f32 %v580
    %v1365 = vcvt.s32.f32 %v581
    %v1366 = vcvt.s32.f32 %v582
    %v1367 = vcvt.s32.f32 %v583
    %v1368 = vcvt.s32.f32 %v584
    %v1369 = vcvt.s32.f32 %v585
    %v1370 = vcvt.s32.f32 %v586
    %v1371 = vcvt.s32.f32 %v587
    %v1372 = vcvt.s32.f32 %v588
    %v1373 = vcvt.s32.f32 %v589
    %v1374 = vcvt.s32.f32 %v590
    %v1375 = vcvt.s32.f32 %v591
    %v1376 = vcvt.s32.f32 %v592
    %v1377 = vcvt.s32.f32 %v593
    %v1378 = vcvt.s32.f32 %v594
    %v1379 = vcvt.s32.f32 %v595
    %v1380 = vcvt.s32.f32 %v596
    %v1381 = vcvt.s32.f32 %v597
    %v1382 = vcvt.s32.f32 %v598
    %v1383 = vcvt.s32.f32 %v599
    %v1384 = vcvt.s32.f32 %v600
    %v1385 = vcvt.s32.f32 %v601
    %v1386 = vcvt.s32.f32 %v602
    %v1387 = vcvt.s32.f32 %v603
    %v1388 = vcvt.s32.f32 %v604
    %v1389 = vcvt.s32.f32 %v605
    %v1390 = vcvt.s32.f32 %v606
    %v1391 = vcvt.s32.f32 %v607
    %v1392 = vcvt.s32.f32 %v608
    %v1393 = vcvt.s32.f32 %v609
    %v1394 = vcvt.s32.f32 %v610
    %v1395 = vcvt.s32.f32 %v611
    %v1396 = vcvt.s32.f32 %v612
    %v1397 = vcvt.s32.f32 %v613
    %v1398 = vcvt.s32.f32 %v614
    %v1399 = vcvt.s32.f32 %v615
    %v1400 = vcvt.s32.f32 %v616
    %v1401 = vcvt.s32.f32 %v617
    %v1402 = vcvt.s32.f32 %v618
    %v1403 = vcvt.s32.f32 %v619
    %v1404 = vcvt.s32.f32 %v620
    %v1405 = vcvt.s32.f32 %v621
    %v1406 = vcvt.s32.f32 %v622
    %v1407 = vcvt.s32.f32 %v623
    %v1408 = vcvt.s32.f32 %v624
    %v1409 = vcvt.s32.f32 %v625
    %v1410 = vcvt.s32.f32 %v626
    %v1411 = vcvt.s32.f32 %v627
    %v1412 = vcvt.s32.f32 %v628
    %v1413 = vcvt.s32.f32 %v629
    %v1414 = vcvt.s32.f32 %v630
    %v1415 = vcvt.s32.f32 %v631
    %v1416 = vcvt.s32.f32 %v632
    %v1417 = vcvt.s32.f32 %v633
    %v1418 = vcvt.s32.f32 %v634
    %v1419 = vcvt.s32.f32 %v635
    %v1420 = vcvt.s32.f32 %v636
    %v1421 = vcvt.s32.f32 %v637
    %v1422 = vcvt.s32.f32 %v638
    %v1423 = vcvt.s32.f32 %v639
    %v1424 = vcvt.s32.f32 %v640
    %v1425 = vcvt.s32.f32 %v641
    %v1426 = vcvt.s32.f32 %v642
    %v1427 = vcvt.s32.f32 %v643
    %v1428 = vcvt.s32.f32 %v644
    %v1429 = vcvt.s32.f32 %v645
    %v1430 = vcvt.s32.f32 %v646
    %v1431 = vcvt.s32.f32 %v647
    %v1432 = vcvt.s32.f32 %v648
    %v1433 = vcvt.s32.f32 %v649
    %v1434 = vcvt.s32.f32 %v650
    %v1435 = vcvt.s32.f32 %v651
    %v1436 = vcvt.s32.f32 %v652
    %v1437 = vcvt.s32.f32 %v653
    %v1438 = vcvt.s32.f32 %v654
    %v1439 = vcvt.s32.f32 %v655
    %v1440 = vcvt.s32.f32 %v656
    %v1441 = vcvt.s32.f32 %v657
    %v1442 = vcvt.s32.f32 %v658
    %v1443 = vcvt.s32.f32 %v659
    %v1444 = vcvt.s32.f32 %v660
    %v1445 = vcvt.s32.f32 %v661
    %v1446 = vcvt.s32.f32 %v662
    %v1447 = vcvt.s32.f32 %v663
    %v1448 = vcvt.s32.f32 %v664
    %v1449 = vcvt.s32.f32 %v665
    %v1450 = vcvt.s32.f32 %v666
    %v1451 = vcvt.s32.f32 %v667
    %v1452 = vcvt.s32.f32 %v668
    %v1453 = vcvt.s32.f32 %v669
    %v1454 = vcvt.s32.f32 %v670
    %v1455 = vcvt.s32.f32 %v671
    %v1456 = vcvt.s32.f32 %v672
    %v1457 = vcvt.s32.f32 %v673
    %v1458 = vcvt.s32.f32 %v674
    %v1459 = vcvt.s32.f32 %v675
    %v1460 = vcvt.s32.f32 %v676
    %v1461 = vcvt.s32.f32 %v677
    %v1462 = vcvt.s32.f32 %v678
    %v1463 = vcvt.s32.f32 %v679
    %v1464 = vcvt.s32.f32 %v680
    %v1465 = vcvt.s32.f32 %v681
    %v1466 = vcvt.s32.f32 %v682
    %v1467 = vcvt.s32.f32 %v683
    %v1468 = vcvt.s32.f32 %v684
    %v1469 = vcvt.s32.f32 %v685
    %v1470 = vcvt.s32.f32 %v686
    %v1471 = vcvt.s32.f32 %v687
    %v1472 = vcvt.s32.f32 %v688
    %v1473 = vcvt.s32.f32 %v689
    %v1474 = vcvt.s32.f32 %v690
    %v1475 = vcvt.s32.f32 %v691
    %v1476 = vcvt.s32.f32 %v692
    %v1477 = vcvt.s32.f32 %v693
    %v1478 = vcvt.s32.f32 %v694
    %v1479 = vcvt.s32.f32 %v695
    %v1480 = vcvt.s32.f32 %v696
    %v1481 = vcvt.s32.f32 %v697
    %v1482 = vcvt.s32.f32 %v698
    %v1483 = vcvt.s32.f32 %v699
    %v1484 = vcvt.s32.f32 %v700
    %v1485 = vcvt.s32.f32 %v701
    %v1486 = vcvt.s32.f32 %v702
    %v1487 = vcvt.s32.f32 %v703
    %v1488 = vcvt.s32.f32 %v704
    %v1489 = vcvt.s32.f32 %v705
    %v1490 = vcvt.s32.f32 %v706
    %v1491 = vcvt.s32.f32 %v707
    %v1492 = vcvt.s32.f32 %v708
    %v1493 = vcvt.s32.f32 %v709
    %v1494 = vcvt.s32.f32 %v710
    %v1495 = vcvt.s32.f32 %v711
    %v1496 = vcvt.s32.f32 %v712
    %v1497 = vcvt.s32.f32 %v713
    %v1498 = vcvt.s32.f32 %v714
    %v1499 = vcvt.s32.f32 %v715
    %v1500 = vcvt.s32.f32 %v716
    %v1501 = vcvt.s32.f32 %v717
    %v1502 = vcvt.s32.f32 %v718
    %v1503 = vcvt.s32.f32 %v719
    %v1504 = vcvt.s32.f32 %v720
    %v1505 = vcvt.s32.f32 %v721
    %v1506 = vcvt.s32.f32 %v722
    %v1507 = vcvt.s32.f32 %v723
    %v1508 = vcvt.s32.f32 %v724
    %v1509 = vcvt.s32.f32 %v725
    %v1510 = vcvt.s32.f32 %v726
    %v1511 = vcvt.s32.f32 %v727
    %v1512 = vcvt.s32.f32 %v728
    %v1513 = vcvt.s32.f32 %v729
    %v1514 = vcvt.s32.f32 %v730
    %v1515 = vcvt.s32.f32 %v731
    %v1516 = vcvt.s32.f32 %v732
    %v1517 = vcvt.s32.f32 %v733
    %v1518 = vcvt.s32.f32 %v734
    %v1519 = vcvt.s32.f32 %v735
    %v1520 = vcvt.s32.f32 %v736
    %v1521 = vcvt.s32.f32 %v737
    %v1522 = vcvt.s32.f32 %v738
    %v1523 = vcvt.s32.f32 %v739
    %v1524 = vcvt.s32.f32 %v740
    %v1525 = vcvt.s32.f32 %v741
    %v1526 = vcvt.s32.f32 %v742
    %v1527 = vcvt.s32.f32 %v743
    %v1528 = vcvt.s32.f32 %v744
    %v1529 = vcvt.s32.f32 %v745
    %v1530 = vcvt.s32.f32 %v746
    %v1531 = vcvt.s32.f32 %v747
    %v1532 = vcvt.s32.f32 %v748
    %v1533 = vcvt.s32.f32 %v749
    %v1534 = vcvt.s32.f32 %v750
    %v1535 = vcvt.s32.f32 %v751
    %v1536 = vcvt.s32.f32 %v752
    %v1537 = vcvt.s32.f32 %v753
    %v1538 = vcvt.s32.f32 %v754
    %v1539 = vcvt.s32.f32 %v755
    %v1540 = vcvt.s32.f32 %v756
    %v1541 = vcvt.s32.f32 %v757
    %v1542 = vcvt.s32.f32 %v758
    %v1543 = vcvt.s32.f32 %v759
    %v1544 = vcvt.s32.f32 %v760
    %v1545 = vcvt.s32.f32 %v761
    %v1546 = vcvt.s32.f32 %v762
    %v1547 = vcvt.s32.f32 %v763
    %v1548 = vcvt.s32.f32 %v764
    %v1549 = vcvt.s32.f32 %v765
    %v1550 = vcvt.s32.f32 %v766
    %v1551 = vcvt.s32.f32 %v767
    %v1552 = vcvt.s32.f32 %v768
    %v1553 = vcvt.s32.f32 %v769
    %v1554 = vcvt.s32.f32 %v770
    %v1555 = vcvt.s32.f32 %v771
    %v1556 = vcvt.s32.f32 %v772
    %v1557 = vcvt.s32.f32 %v773
    %v1558 = vcvt.s32.f32 %v774
    %v1559 = vcvt.s32.f32 %v775
    %v1560 = vcvt.s32.f32 %v776
    %v1561 = vcvt.s32.f32 %v777
    %v1562 = vcvt.s32.f32 %v778
    %v1563 = vcvt.s32.f32 %v779
    %v1564 = vcvt.s32.f32 %v780
    %v1565 = vcvt.s32.f32 %v781
    %v1566 = vcvt.s32.f32 %v782
    %v1567 = vcvt.s32.f32 %v783
    %v1568 = vcvt.s32.f32 %v784
    %v1569 = vcvt.s32.f32 %v785
    %v1570 = vcvt.s32.f32 %v786
    %v1571 = vcvt.s32.f32 %v787
    %v1572 = vcvt.s32.f32 %v788
    %v1573 = vcvt.s32.f32 %v789
    %v1574 = vcvt.s32.f32 %v790
    %v1575 = vcvt.s32.f32 %v791
    %v1576 = vcvt.s32.f32 %v792
    %v1577 = vcvt.s32.f32 %v793
    %v1578 = vcvt.s32.f32 %v794
    %v1579 = vcvt.s32.f32 %v795
    %v1580 = vcvt.s32.f32 %v796
    %v1581 = vcvt.s32.f32 %v797
    %v1582 = vcvt.s32.f32 %v798
    %v1583 = vcvt.s32.f32 %v799
    %v1584 = vcvt.s32.f32 %v800
    %v1585 = vcvt.s32.f32 %v801
    %v1586 = vcvt.s32.f32 %v802
    %v1587 = vcvt.s32.f32 %v803
    %v1588 = vcvt.s32.f32 %v804
    %v1589 = vcvt.s32.f32 %v805
    %v1590 = vcvt.s32.f32 %v806
    %v1591 = vcvt.s32.f32 %v807
    %v1592 = vcvt.s32.f32 %v808
    %v1593 = vcvt.s32.f32 %v809
    %v1594 = vcvt.s32.f32 %v810
    %v1595 = vcvt.s32.f32 %v811
    %v1596 = vcvt.s32.f32 %v812
    %v1597 = vcvt.s32.f32 %v813
    %v1598 = vcvt.s32.f32 %v814
    %v1599 = vcvt.s32.f32 %v815
    %v1600 = vcvt.s32.f32 %v816
    %v1601 = vcvt.s32.f32 %v817
    %v1602 = vcvt.s32.f32 %v818
    %v1603 = vcvt.s32.f32 %v819
    %v1604 = vcvt.s32.f32 %v820
    %v1605 = vcvt.s32.f32 %v821
    %v1606 = vcvt.s32.f32 %v822
    %v1607 = vcvt.s32.f32 %v823
    %v1608 = vcvt.s32.f32 %v824
    %v1609 = vcvt.s32.f32 %v825
    %v1610 = vcvt.s32.f32 %v826
    %v1611 = vcvt.s32.f32 %v827
    %v1612 = vcvt.s32.f32 %v828
    %v1613 = vcvt.s32.f32 %v829
    %v1614 = vcvt.s32.f32 %v830
    %v1615 = vcvt.s32.f32 %v831
    %v1616 = vcvt.s32.f32 %v832
    %v1617 = vcvt.s32.f32 %v833
    %v1618 = vcvt.s32.f32 %v834
    %v1619 = vcvt.s32.f32 %v835
    %v1620 = vcvt.s32.f32 %v836
    %v1621 = vcvt.s32.f32 %v837
    %v1622 = vcvt.s32.f32 %v838
    %v1623 = vcvt.s32.f32 %v839
    %v1624 = vcvt.s32.f32 %v840
    %v1625 = vcvt.s32.f32 %v841
    %v1626 = vcvt.s32.f32 %v842
    %v1627 = vcvt.s32.f32 %v843
    %v1628 = vcvt.s32.f32 %v844
    %v1629 = vcvt.s32.f32 %v845
    %v1630 = vcvt.s32.f32 %v846
    %v1631 = vcvt.s32.f32 %v847
    %v1632 = vcvt.s32.f32 %v848
    %v1633 = vcvt.s32.f32 %v849
    %v1634 = vcvt.s32.f32 %v850
    %v1635 = vcvt.s32.f32 %v851
    %v1636 = vcvt.s32.f32 %v852
    %v1637 = vcvt.s32.f32 %v853
    %v1638 = vcvt.s32.f32 %v854
    %v1639 = vcvt.s32.f32 %v855
    %v1640 = vcvt.s32.f32 %v856
    %v1641 = vcvt.s32.f32 %v857
    %v1642 = vcvt.s32.f32 %v858
    %v1643 = vcvt.s32.f32 %v859
    %v1644 = vcvt.s32.f32 %v860
    %v1645 = vcvt.s32.f32 %v861
    %v1646 = vcvt.s32.f32 %v862
    %v1647 = vcvt.s32.f32 %v863
    %v1648 = vcvt.s32.f32 %v864
    %v1649 = vcvt.s32.f32 %v865
    %v1650 = vcvt.s32.f32 %v866
    %v1651 = vcvt.s32.f32 %v867
    %v1652 = vcvt.s32.f32 %v868
    %v1653 = vcvt.s32.f32 %v869
    %v1654 = vcvt.s32.f32 %v870
    %v1655 = vcvt.s32.f32 %v871
    %v1656 = vcvt.s32.f32 %v872
    %v1657 = vcvt.s32.f32 %v873
    %v1658 = vcvt.s32.f32 %v874
    %v1659 = vcvt.s32.f32 %v875
    %v1660 = vcvt.s32.f32 %v876
    %v1661 = vcvt.s32.f32 %v877
    %v1662 = vcvt.s32.f32 %v878
    %v1663 = vcvt.s32.f32 %v879
    %v1664 = vcvt.s32.f32 %v880
    %v1665 = vcvt.s32.f32 %v881
    %v1666 = vcvt.s32.f32 %v882
    %v1667 = vcvt.s32.f32 %v883
    %v1668 = vcvt.s32.f32 %v884
    %v1669 = vcvt.s32.f32 %v885
    %v1670 = vcvt.s32.f32 %v886
    %v1671 = vcvt.s32.f32 %v887
    %v1672 = vcvt.s32.f32 %v888
    %v1673 = vcvt.s32.f32 %v889
    %v1674 = vcvt.s32.f32 %v890
    %v1675 = vcvt.s32.f32 %v891
    %v1676 = vcvt.s32.f32 %v892
    %v1677 = vcvt.s32.f32 %v893
    %v1678 = vcvt.s32.f32 %v894
    %v1679 = vcvt.s32.f32 %v895
    %v1680 = vcvt.s32.f32 %v896
    %v1681 = vcvt.s32.f32 %v897
    %v1682 = vcvt.s32.f32 %v898
    %v1683 = vcvt.s32.f32 %v899
    %v1684 = vcvt.s32.f32 %v900
    %v1685 = vcvt.s32.f32 %v901
    %v1686 = vcvt.s32.f32 %v902
    %v1687 = vcvt.s32.f32 %v903
    %v1688 = vcvt.s32.f32 %v904
    %v1689 = vcvt.s32.f32 %v905
    %v1690 = vcvt.s32.f32 %v906
    %v1691 = vcvt.s32.f32 %v907
    %v1692 = vcvt.s32.f32 %v908
    %v1693 = vcvt.s32.f32 %v909
    %v1694 = vcvt.s32.f32 %v910
    %v1695 = vcvt.s32.f32 %v911
    %v1696 = vcvt.s32.f32 %v912
    %v1697 = vcvt.s32.f32 %v913
    %v1698 = vcvt.s32.f32 %v914
    %v1699 = vcvt.s32.f32 %v915
    %v1700 = vcvt.s32.f32 %v916
    %v1701 = vcvt.s32.f32 %v917
    %v1702 = vcvt.s32.f32 %v918
    %v1703 = vcvt.s32.f32 %v919
    %v1704 = vcvt.s32.f32 %v920
    %v1705 = vcvt.s32.f32 %v921
    %v1706 = vcvt.s32.f32 %v922
    %v1707 = vcvt.s32.f32 %v923
    %v1708 = vcvt.s32.f32 %v924
    %v1709 = vcvt.s32.f32 %v925
    %v1710 = vcvt.s32.f32 %v926
    %v1711 = vcvt.s32.f32 %v927
    %v1712 = vcvt.s32.f32 %v928
    %v1713 = vcvt.s32.f32 %v929
    %v1714 = vcvt.s32.f32 %v930
    %v1715 = vcvt.s32.f32 %v931
    %v1716 = vcvt.s32.f32 %v932
    %v1717 = vcvt.s32.f32 %v933
    %v1718 = vcvt.s32.f32 %v934
    %v1719 = vcvt.s32.f32 %v935
    %v1720 = vcvt.s32.f32 %v936
    %v1721 = vcvt.s32.f32 %v937
    %v1722 = vcvt.s32.f32 %v938
    %v1723 = vcvt.s32.f32 %v939
    %v1724 = vcvt.s32.f32 %v940
    %v1725 = vcvt.s32.f32 %v941
    %v1726 = vcvt.s32.f32 %v942
    %v1727 = vcvt.s32.f32 %v943
    %v1728 = vcvt.s32.f32 %v944
    %v1729 = vcvt.s32.f32 %v945
    %v1730 = vcvt.s32.f32 %v946
    %v1731 = vcvt.s32.f32 %v947
    %v1732 = vcvt.s32.f32 %v948
    %v1733 = vcvt.s32.f32 %v949
    %v1734 = vcvt.s32.f32 %v950
    %v1735 = vcvt.s32.f32 %v951
    %v1736 = vcvt.s32.f32 %v952
    %v1737 = vcvt.s32.f32 %v953
    %v1738 = vcvt.s32.f32 %v954
    %v1739 = vcvt.s32.f32 %v955
    %v1740 = vcvt.s32.f32 %v956
    %v1741 = vcvt.s32.f32 %v957
    %v1742 = vcvt.s32.f32 %v958
    %v1743 = vcvt.s32.f32 %v959
    %v1744 = vcvt.s32.f32 %v960
    %v1745 = vcvt.s32.f32 %v961
    %v1746 = vcvt.s32.f32 %v962
    %v1747 = vcvt.s32.f32 %v963
    %v1748 = vcvt.s32.f32 %v964
    %v1749 = vcvt.s32.f32 %v965
    %v1750 = vcvt.s32.f32 %v966
    %v1751 = vcvt.s32.f32 %v967
    %v1752 = vcvt.s32.f32 %v968
    %v1753 = vcvt.s32.f32 %v969
    %v1754 = vcvt.s32.f32 %v970
    %v1755 = vcvt.s32.f32 %v971
    %v1756 = vcvt.s32.f32 %v972
    %v1757 = vcvt.s32.f32 %v973
    %v1758 = vcvt.s32.f32 %v974
    %v1759 = vcvt.s32.f32 %v975
    %v1760 = vcvt.s32.f32 %v976
    %v1761 = vcvt.s32.f32 %v977
    %v1762 = vcvt.s32.f32 %v978
    %v1763 = vcvt.s32.f32 %v979
    %v1764 = vcvt.s32.f32 %v980
    %v1765 = vcvt.s32.f32 %v981
    %v1766 = vcvt.s32.f32 %v982
    %v1767 = vcvt.s32.f32 %v983
    %v1768 = vcvt.s32.f32 %v984
    %v1769 = vcvt.s32.f32 %v985
    %v1770 = vcvt.s32.f32 %v986
    %v1771 = vcvt.s32.f32 %v987
    %v1772 = vcvt.s32.f32 %v988
    %v1773 = vcvt.s32.f32 %v989
    %v1774 = vcvt.s32.f32 %v990
    %v1775 = vcvt.s32.f32 %v991
    %v1776 = vcvt.s32.f32 %v992
    %v1777 = vcvt.s32.f32 %v993
    %v1778 = vcvt.s32.f32 %v994
    %v1779 = vcvt.s32.f32 %v995
    %v1780 = vcvt.s32.f32 %v996
    %v1781 = vcvt.s32.f32 %v997
    %v1782 = vcvt.s32.f32 %v998
    %v1783 = vcvt.s32.f32 %v999
    %v1784 = vcvt.s32.f32 %v1000
    %v1785 = vcvt.s32.f32 %v1001
    %v1786 = vcvt.s32.f32 %v1002
    %v1787 = vcvt.s32.f32 %v1003
    %v1788 = vcvt.s32.f32 %v1004
    %v1789 = vcvt.s32.f32 %v1005
    %v1790 = vcvt.s32.f32 %v1006
    %v1791 = vcvt.s32.f32 %v1007
    %v1792 = vcvt.s32.f32 %v1008
    %v1793 = vcvt.s32.f32 %v1009
    %v1794 = vcvt.s32.f32 %v1010
    %v1795 = vcvt.s32.f32 %v1011
    %v1796 = vcvt.s32.f32 %v1012
    %v1797 = vcvt.s32.f32 %v1013
    %v1798 = vcvt.s32.f32 %v1014
    %v1799 = vcvt.s32.f32 %v1015
    %v1800 = vcvt.s32.f32 %v1016
    %v1801 = vcvt.s32.f32 %v1017
    %v1802 = vcvt.s32.f32 %v1018
    %v1803 = vcvt.s32.f32 %v1019
    %v1804 = vcvt.s32.f32 %v1020
    %v1805 = vcvt.s32.f32 %v1021
    %v1806 = vcvt.s32.f32 %v1022
    %v1807 = vcvt.s32.f32 %v1023
    %v1808 = vcvt.s32.f32 %v1024
    %v1809 = vcvt.s32.f32 %v1025
    %v1810 = vcvt.s32.f32 %v1026
    %v1811 = vcvt.s32.f32 %v1027
    %v1812 = vcvt.s32.f32 %v1028
    %v1813 = vcvt.s32.f32 %v1029
    %v1814 = vcvt.s32.f32 %v1030
    %v1815 = vcvt.s32.f32 %v1031
    %v1816 = vcvt.s32.f32 %v1032
    %v1817 = vcvt.s32.f32 %v1033
    %v1818 = vcvt.s32.f32 %v1034
    %v1819 = vcvt.s32.f32 %v1035
    %v1820 = vcvt.s32.f32 %v1036
    %v1821 = vcvt.s32.f32 %v1037
    %v1822 = vcvt.s32.f32 %v1038
    %v1823 = vcvt.s32.f32 %v1039
    %v1824 = vcvt.s32.f32 %v1040
    %v1825 = vcvt.s32.f32 %v1041
    %v1826 = vcvt.s32.f32 %v1042
    %v1827 = vcvt.s32.f32 %v1043
    %v1828 = vcvt.s32.f32 %v1044
    %v1829 = vcvt.s32.f32 %v1045
    %v1830 = vcvt.s32.f32 %v1046
    %v1831 = vcvt.s32.f32 %v1047
    %v1832 = vcvt.s32.f32 %v1048
    %v1833 = vcvt.s32.f32 %v1049
    %v1834 = vcvt.s32.f32 %v1050
    %v1835 = vcvt.s32.f32 %v1051
    %v1836 = vcvt.s32.f32 %v1052
    %v1837 = vcvt.s32.f32 %v1053
    %v1838 = vcvt.s32.f32 %v1054
    %v1839 = vcvt.s32.f32 %v1055
    %v1840 = vcvt.s32.f32 %v1056
    %v1841 = vcvt.s32.f32 %v1057
    %v1842 = vcvt.s32.f32 %v1058
    %v1843 = vcvt.s32.f32 %v1059
    %v1844 = vcvt.s32.f32 %v1060
    %v1845 = vcvt.s32.f32 %v1061
    %v1846 = vcvt.s32.f32 %v1062
    %v1847 = vcvt.s32.f32 %v1063
    %v1848 = vcvt.s32.f32 %v1064
    %v1849 = vcvt.s32.f32 %v1065
    %v1850 = vcvt.s32.f32 %v1066
    %v1851 = vcvt.s32.f32 %v1067
    %v1852 = vcvt.s32.f32 %v1068
    %v1853 = vcvt.s32.f32 %v1069
    %v1854 = vcvt.s32.f32 %v1070
    %v1855 = vcvt.s32.f32 %v1071
    %v1856 = vcvt.s32.f32 %v1072
    %v1857 = vcvt.s32.f32 %v1073
    %v1858 = vcvt.s32.f32 %v1074
    %v1859 = vcvt.s32.f32 %v1075
    %v1860 = vcvt.s32.f32 %v1076
    %v1861 = vcvt.s32.f32 %v1077
    %v1862 = vcvt.s32.f32 %v1078
    %v1863 = vcvt.s32.f32 %v1079
    %v1864 = vcvt.s32.f32 %v1080
    %v1865 = vcvt.s32.f32 %v1081
    %v1866 = vcvt.s32.f32 %v1082
    %v1867 = vcvt.s32.f32 %v1083
    %v1868 = vcvt.s32.f32 %v1084
    %v1869 = vcvt.s32.f32 %v1085
    %v1870 = vcvt.s32.f32 %v1086
    %v1871 = vcvt.s32.f32 %v1087
    %v1872 = vcvt.s32.f32 %v1088
    %v1873 = vcvt.s32.f32 %v1089
    %v1874 = vpack.c.bf16 %v1098, %v1090
    %v1875 = vpack.c.bf16 %v1099, %v1091
    %v1876 = vpack.c.bf16 %v1100, %v1092
    %v1877 = vpack.c.bf16 %v1101, %v1093
    %v1878 = vpack.c.bf16 %v1102, %v1094
    %v1879 = vpack.c.bf16 %v1103, %v1095
    %v1880 = vpack.c.bf16 %v1104, %v1096
    %v1881 = vpack.c.bf16 %v1105, %v1097
    %v1882 = vpack.c.bf16 %v1114, %v1106
    %v1883 = vpack.c.bf16 %v1115, %v1107
    %v1884 = vpack.c.bf16 %v1116, %v1108
    %v1885 = vpack.c.bf16 %v1117, %v1109
    %v1886 = vpack.c.bf16 %v1118, %v1110
    %v1887 = vpack.c.bf16 %v1119, %v1111
    %v1888 = vpack.c.bf16 %v1120, %v1112
    %v1889 = vpack.c.bf16 %v1121, %v1113
    %v1890 = vpack.c.bf16 %v1130, %v1122
    %v1891 = vpack.c.bf16 %v1131, %v1123
    %v1892 = vpack.c.bf16 %v1132, %v1124
    %v1893 = vpack.c.bf16 %v1133, %v1125
    %v1894 = vpack.c.bf16 %v1134, %v1126
    %v1895 = vpack.c.bf16 %v1135, %v1127
    %v1896 = vpack.c.bf16 %v1136, %v1128
    %v1897 = vpack.c.bf16 %v1137, %v1129
    %v1898 = vpack.c.bf16 %v1146, %v1138
    %v1899 = vpack.c.bf16 %v1147, %v1139
    %v1900 = vpack.c.bf16 %v1148, %v1140
    %v1901 = vpack.c.bf16 %v1149, %v1141
    %v1902 = vpack.c.bf16 %v1150, %v1142
    %v1903 = vpack.c.bf16 %v1151, %v1143
    %v1904 = vpack.c.bf16 %v1152, %v1144
    %v1905 = vpack.c.bf16 %v1153, %v1145
    %v1906 = vpack.c.bf16 %v1162, %v1154
    %v1907 = vpack.c.bf16 %v1163, %v1155
    %v1908 = vpack.c.bf16 %v1164, %v1156
    %v1909 = vpack.c.bf16 %v1165, %v1157
    %v1910 = vpack.c.bf16 %v1166, %v1158
    %v1911 = vpack.c.bf16 %v1167, %v1159
    %v1912 = vpack.c.bf16 %v1168, %v1160
    %v1913 = vpack.c.bf16 %v1169, %v1161
    %v1914 = vpack.c.bf16 %v1178, %v1170
    %v1915 = vpack.c.bf16 %v1179, %v1171
    %v1916 = vpack.c.bf16 %v1180, %v1172
    %v1917 = vpack.c.bf16 %v1181, %v1173
    %v1918 = vpack.c.bf16 %v1182, %v1174
    %v1919 = vpack.c.bf16 %v1183, %v1175
    %v1920 = vpack.c.bf16 %v1184, %v1176
    %v1921 = vpack.c.bf16 %v1185, %v1177
    %v1922 = vpack.c.bf16 %v1194, %v1186
    %v1923 = vpack.c.bf16 %v1195, %v1187
    %v1924 = vpack.c.bf16 %v1196, %v1188
    %v1925 = vpack.c.bf16 %v1197, %v1189
    %v1926 = vpack.c.bf16 %v1198, %v1190
    %v1927 = vpack.c.bf16 %v1199, %v1191
    %v1928 = vpack.c.bf16 %v1200, %v1192
    %v1929 = vpack.c.bf16 %v1201, %v1193
    %v1930 = vpack.c.bf16 %v1210, %v1202
    %v1931 = vpack.c.bf16 %v1211, %v1203
    %v1932 = vpack.c.bf16 %v1212, %v1204
    %v1933 = vpack.c.bf16 %v1213, %v1205
    %v1934 = vpack.c.bf16 %v1214, %v1206
    %v1935 = vpack.c.bf16 %v1215, %v1207
    %v1936 = vpack.c.bf16 %v1216, %v1208
    %v1937 = vpack.c.bf16 %v1217, %v1209
    %v1938 = vpack.c.bf16 %v1226, %v1218
    %v1939 = vpack.c.bf16 %v1227, %v1219
    %v1940 = vpack.c.bf16 %v1228, %v1220
    %v1941 = vpack.c.bf16 %v1229, %v1221
    %v1942 = vpack.c.bf16 %v1230, %v1222
    %v1943 = vpack.c.bf16 %v1231, %v1223
    %v1944 = vpack.c.bf16 %v1232, %v1224
    %v1945 = vpack.c.bf16 %v1233, %v1225
    %v1946 = vpack.c.bf16 %v1242, %v1234
    %v1947 = vpack.c.bf16 %v1243, %v1235
    %v1948 = vpack.c.bf16 %v1244, %v1236
    %v1949 = vpack.c.bf16 %v1245, %v1237
    %v1950 = vpack.c.bf16 %v1246, %v1238
    %v1951 = vpack.c.bf16 %v1247, %v1239
    %v1952 = vpack.c.bf16 %v1248, %v1240
    %v1953 = vpack.c.bf16 %v1249, %v1241
    %v1954 = vpack.c.bf16 %v1258, %v1250
    %v1955 = vpack.c.bf16 %v1259, %v1251
    %v1956 = vpack.c.bf16 %v1260, %v1252
    %v1957 = vpack.c.bf16 %v1261, %v1253
    %v1958 = vpack.c.bf16 %v1262, %v1254
    %v1959 = vpack.c.bf16 %v1263, %v1255
    %v1960 = vpack.c.bf16 %v1264, %v1256
    %v1961 = vpack.c.bf16 %v1265, %v1257
    %v1962 = vpack.c.bf16 %v1274, %v1266
    %v1963 = vpack.c.bf16 %v1275, %v1267
    %v1964 = vpack.c.bf16 %v1276, %v1268
    %v1965 = vpack.c.bf16 %v1277, %v1269
    %v1966 = vpack.c.bf16 %v1278, %v1270
    %v1967 = vpack.c.bf16 %v1279, %v1271
    %v1968 = vpack.c.bf16 %v1280, %v1272
    %v1969 = vpack.c.bf16 %v1281, %v1273
    %v1970 = vpack.c.bf16 %v1290, %v1282
    %v1971 = vpack.c.bf16 %v1291, %v1283
    %v1972 = vpack.c.bf16 %v1292, %v1284
    %v1973 = vpack.c.bf16 %v1293, %v1285
    %v1974 = vpack.c.bf16 %v1294, %v1286
    %v1975 = vpack.c.bf16 %v1295, %v1287
    %v1976 = vpack.c.bf16 %v1296, %v1288
    %v1977 = vpack.c.bf16 %v1297, %v1289
    %v1978 = vpack.c.bf16 %v1306, %v1298
    %v1979 = vpack.c.bf16 %v1307, %v1299
    %v1980 = vpack.c.bf16 %v1308, %v1300
    %v1981 = vpack.c.bf16 %v1309, %v1301
    %v1982 = vpack.c.bf16 %v1310, %v1302
    %v1983 = vpack.c.bf16 %v1311, %v1303
    %v1984 = vpack.c.bf16 %v1312, %v1304
    %v1985 = vpack.c.bf16 %v1313, %v1305
    %v1986 = vpack.c.bf16 %v1322, %v1314
    %v1987 = vpack.c.bf16 %v1323, %v1315
    %v1988 = vpack.c.bf16 %v1324, %v1316
    %v1989 = vpack.c.bf16 %v1325, %v1317
    %v1990 = vpack.c.bf16 %v1326, %v1318
    %v1991 = vpack.c.bf16 %v1327, %v1319
    %v1992 = vpack.c.bf16 %v1328, %v1320
    %v1993 = vpack.c.bf16 %v1329, %v1321
    %v1994 = vpack.c.bf16 %v1338, %v1330
    %v1995 = vpack.c.bf16 %v1339, %v1331
    %v1996 = vpack.c.bf16 %v1340, %v1332
    %v1997 = vpack.c.bf16 %v1341, %v1333
    %v1998 = vpack.c.bf16 %v1342, %v1334
    %v1999 = vpack.c.bf16 %v1343, %v1335
    %v2000 = vpack.c.bf16 %v1344, %v1336
    %v2001 = vpack.c.bf16 %v1345, %v1337
    %v2002 = vpack.c.bf16 %v1354, %v1346
    %v2003 = vpack.c.bf16 %v1355, %v1347
    %v2004 = vpack.c.bf16 %v1356, %v1348
    %v2005 = vpack.c.bf16 %v1357, %v1349
    %v2006 = vpack.c.bf16 %v1358, %v1350
    %v2007 = vpack.c.bf16 %v1359, %v1351
    %v2008 = vpack.c.bf16 %v1360, %v1352
    %v2009 = vpack.c.bf16 %v1361, %v1353
    %v2010 = vpack.c.bf16 %v1370, %v1362
    %v2011 = vpack.c.bf16 %v1371, %v1363
    %v2012 = vpack.c.bf16 %v1372, %v1364
    %v2013 = vpack.c.bf16 %v1373, %v1365
    %v2014 = vpack.c.bf16 %v1374, %v1366
    %v2015 = vpack.c.bf16 %v1375, %v1367
    %v2016 = vpack.c.bf16 %v1376, %v1368
    %v2017 = vpack.c.bf16 %v1377, %v1369
    %v2018 = vpack.c.bf16 %v1386, %v1378
    %v2019 = vpack.c.bf16 %v1387, %v1379
    %v2020 = vpack.c.bf16 %v1388, %v1380
    %v2021 = vpack.c.bf16 %v1389, %v1381
    %v2022 = vpack.c.bf16 %v1390, %v1382
    %v2023 = vpack.c.bf16 %v1391, %v1383
    %v2024 = vpack.c.bf16 %v1392, %v1384
    %v2025 = vpack.c.bf16 %v1393, %v1385
    %v2026 = vpack.c.bf16 %v1402, %v1394
    %v2027 = vpack.c.bf16 %v1403, %v1395
    %v2028 = vpack.c.bf16 %v1404, %v1396
    %v2029 = vpack.c.bf16 %v1405, %v1397
    %v2030 = vpack.c.bf16 %v1406, %v1398
    %v2031 = vpack.c.bf16 %v1407, %v1399
    %v2032 = vpack.c.bf16 %v1408, %v1400
    %v2033 = vpack.c.bf16 %v1409, %v1401
    %v2034 = vpack.c.bf16 %v1418, %v1410
    %v2035 = vpack.c.bf16 %v1419, %v1411
    %v2036 = vpack.c.bf16 %v1420, %v1412
    %v2037 = vpack.c.bf16 %v1421, %v1413
    %v2038 = vpack.c.bf16 %v1422, %v1414
    %v2039 = vpack.c.bf16 %v1423, %v1415
    %v2040 = vpack.c.bf16 %v1424, %v1416
    %v2041 = vpack.c.bf16 %v1425, %v1417
    %v2042 = vpack.c.bf16 %v1434, %v1426
    %v2043 = vpack.c.bf16 %v1435, %v1427
    %v2044 = vpack.c.bf16 %v1436, %v1428
    %v2045 = vpack.c.bf16 %v1437, %v1429
    %v2046 = vpack.c.bf16 %v1438, %v1430
    %v2047 = vpack.c.bf16 %v1439, %v1431
    %v2048 = vpack.c.bf16 %v1440, %v1432
    %v2049 = vpack.c.bf16 %v1441, %v1433
    %v2050 = vpack.c.bf16 %v1450, %v1442
    %v2051 = vpack.c.bf16 %v1451, %v1443
    %v2052 = vpack.c.bf16 %v1452, %v1444
    %v2053 = vpack.c.bf16 %v1453, %v1445
    %v2054 = vpack.c.bf16 %v1454, %v1446
    %v2055 = vpack.c.bf16 %v1455, %v1447
    %v2056 = vpack.c.bf16 %v1456, %v1448
    %v2057 = vpack.c.bf16 %v1457, %v1449
    %v2058 = vpack.c.bf16 %v1466, %v1458
    %v2059 = vpack.c.bf16 %v1467, %v1459
    %v2060 = vpack.c.bf16 %v1468, %v1460
    %v2061 = vpack.c.bf16 %v1469, %v1461
    %v2062 = vpack.c.bf16 %v1470, %v1462
    %v2063 = vpack.c.bf16 %v1471, %v1463
    %v2064 = vpack.c.bf16 %v1472, %v1464
    %v2065 = vpack.c.bf16 %v1473, %v1465
    %v2066 = vpack.c.bf16 %v1482, %v1474
    %v2067 = vpack.c.bf16 %v1483, %v1475
    %v2068 = vpack.c.bf16 %v1484, %v1476
    %v2069 = vpack.c.bf16 %v1485, %v1477
    %v2070 = vpack.c.bf16 %v1486, %v1478
    %v2071 = vpack.c.bf16 %v1487, %v1479
    %v2072 = vpack.c.bf16 %v1488, %v1480
    %v2073 = vpack.c.bf16 %v1489, %v1481
    %v2074 = vpack.c.bf16 %v1498, %v1490
    %v2075 = vpack.c.bf16 %v1499, %v1491
    %v2076 = vpack.c.bf16 %v1500, %v1492
    %v2077 = vpack.c.bf16 %v1501, %v1493
    %v2078 = vpack.c.bf16 %v1502, %v1494
    %v2079 = vpack.c.bf16 %v1503, %v1495
    %v2080 = vpack.c.bf16 %v1504, %v1496
    %v2081 = vpack.c.bf16 %v1505, %v1497
    %v2082 = vpack.c.bf16 %v1514, %v1506
    %v2083 = vpack.c.bf16 %v1515, %v1507
    %v2084 = vpack.c.bf16 %v1516, %v1508
    %v2085 = vpack.c.bf16 %v1517, %v1509
    %v2086 = vpack.c.bf16 %v1518, %v1510
    %v2087 = vpack.c.bf16 %v1519, %v1511
    %v2088 = vpack.c.bf16 %v1520, %v1512
    %v2089 = vpack.c.bf16 %v1521, %v1513
    %v2090 = vpack.c.bf16 %v1530, %v1522
    %v2091 = vpack.c.bf16 %v1531, %v1523
    %v2092 = vpack.c.bf16 %v1532, %v1524
    %v2093 = vpack.c.bf16 %v1533, %v1525
    %v2094 = vpack.c.bf16 %v1534, %v1526
    %v2095 = vpack.c.bf16 %v1535, %v1527
    %v2096 = vpack.c.bf16 %v1536, %v1528
    %v2097 = vpack.c.bf16 %v1537, %v1529
    %v2098 = vpack.c.bf16 %v1546, %v1538
    %v2099 = vpack.c.bf16 %v1547, %v1539
    %v2100 = vpack.c.bf16 %v1548, %v1540
    %v2101 = vpack.c.bf16 %v1549, %v1541
    %v2102 = vpack.c.bf16 %v1550, %v1542
    %v2103 = vpack.c.bf16 %v1551, %v1543
    %v2104 = vpack.c.bf16 %v1552, %v1544
    %v2105 = vpack.c.bf16 %v1553, %v1545
    %v2106 = vpack.c.bf16 %v1562, %v1554
    %v2107 = vpack.c.bf16 %v1563, %v1555
    %v2108 = vpack.c.bf16 %v1564, %v1556
    %v2109 = vpack.c.bf16 %v1565, %v1557
    %v2110 = vpack.c.bf16 %v1566, %v1558
    %v2111 = vpack.c.bf16 %v1567, %v1559
    %v2112 = vpack.c.bf16 %v1568, %v1560
    %v2113 = vpack.c.bf16 %v1569, %v1561
    %v2114 = vpack.c.bf16 %v1578, %v1570
    %v2115 = vpack.c.bf16 %v1579, %v1571
    %v2116 = vpack.c.bf16 %v1580, %v1572
    %v2117 = vpack.c.bf16 %v1581, %v1573
    %v2118 = vpack.c.bf16 %v1582, %v1574
    %v2119 = vpack.c.bf16 %v1583, %v1575
    %v2120 = vpack.c.bf16 %v1584, %v1576
    %v2121 = vpack.c.bf16 %v1585, %v1577
    %v2122 = vpack.c.bf16 %v1594, %v1586
    %v2123 = vpack.c.bf16 %v1595, %v1587
    %v2124 = vpack.c.bf16 %v1596, %v1588
    %v2125 = vpack.c.bf16 %v1597, %v1589
    %v2126 = vpack.c.bf16 %v1598, %v1590
    %v2127 = vpack.c.bf16 %v1599, %v1591
    %v2128 = vpack.c.bf16 %v1600, %v1592
    %v2129 = vpack.c.bf16 %v1601, %v1593
    %v2130 = vpack.c.bf16 %v1610, %v1602
    %v2131 = vpack.c.bf16 %v1611, %v1603
    %v2132 = vpack.c.bf16 %v1612, %v1604
    %v2133 = vpack.c.bf16 %v1613, %v1605
    %v2134 = vpack.c.bf16 %v1614, %v1606
    %v2135 = vpack.c.bf16 %v1615, %v1607
    %v2136 = vpack.c.bf16 %v1616, %v1608
    %v2137 = vpack.c.bf16 %v1617, %v1609
    %v2138 = vpack.c.bf16 %v1626, %v1618
    %v2139 = vpack.c.bf16 %v1627, %v1619
    %v2140 = vpack.c.bf16 %v1628, %v1620
    %v2141 = vpack.c.bf16 %v1629, %v1621
    %v2142 = vpack.c.bf16 %v1630, %v1622
    %v2143 = vpack.c.bf16 %v1631, %v1623
    %v2144 = vpack.c.bf16 %v1632, %v1624
    %v2145 = vpack.c.bf16 %v1633, %v1625
    %v2146 = vpack.c.bf16 %v1642, %v1634
    %v2147 = vpack.c.bf16 %v1643, %v1635
    %v2148 = vpack.c.bf16 %v1644, %v1636
    %v2149 = vpack.c.bf16 %v1645, %v1637
    %v2150 = vpack.c.bf16 %v1646, %v1638
    %v2151 = vpack.c.bf16 %v1647, %v1639
    %v2152 = vpack.c.bf16 %v1648, %v1640
    %v2153 = vpack.c.bf16 %v1649, %v1641
    %v2154 = vpack.c.bf16 %v1658, %v1650
    %v2155 = vpack.c.bf16 %v1659, %v1651
    %v2156 = vpack.c.bf16 %v1660, %v1652
    %v2157 = vpack.c.bf16 %v1661, %v1653
    %v2158 = vpack.c.bf16 %v1662, %v1654
    %v2159 = vpack.c.bf16 %v1663, %v1655
    %v2160 = vpack.c.bf16 %v1664, %v1656
    %v2161 = vpack.c.bf16 %v1665, %v1657
    %v2162 = vpack.c.bf16 %v1674, %v1666
    %v2163 = vpack.c.bf16 %v1675, %v1667
    %v2164 = vpack.c.bf16 %v1676, %v1668
    %v2165 = vpack.c.bf16 %v1677, %v1669
    %v2166 = vpack.c.bf16 %v1678, %v1670
    %v2167 = vpack.c.bf16 %v1679, %v1671
    %v2168 = vpack.c.bf16 %v1680, %v1672
    %v2169 = vpack.c.bf16 %v1681, %v1673
    %v2170 = vpack.c.bf16 %v1690, %v1682
    %v2171 = vpack.c.bf16 %v1691, %v1683
    %v2172 = vpack.c.bf16 %v1692, %v1684
    %v2173 = vpack.c.bf16 %v1693, %v1685
    %v2174 = vpack.c.bf16 %v1694, %v1686
    %v2175 = vpack.c.bf16 %v1695, %v1687
    %v2176 = vpack.c.bf16 %v1696, %v1688
    %v2177 = vpack.c.bf16 %v1697, %v1689
    %v2178 = vpack.c.bf16 %v1706, %v1698
    %v2179 = vpack.c.bf16 %v1707, %v1699
    %v2180 = vpack.c.bf16 %v1708, %v1700
    %v2181 = vpack.c.bf16 %v1709, %v1701
    %v2182 = vpack.c.bf16 %v1710, %v1702
    %v2183 = vpack.c.bf16 %v1711, %v1703
    %v2184 = vpack.c.bf16 %v1712, %v1704
    %v2185 = vpack.c.bf16 %v1713, %v1705
    %v2186 = vpack.c.bf16 %v1722, %v1714
    %v2187 = vpack.c.bf16 %v1723, %v1715
    %v2188 = vpack.c.bf16 %v1724, %v1716
    %v2189 = vpack.c.bf16 %v1725, %v1717
    %v2190 = vpack.c.bf16 %v1726, %v1718
    %v2191 = vpack.c.bf16 %v1727, %v1719
    %v2192 = vpack.c.bf16 %v1728, %v1720
    %v2193 = vpack.c.bf16 %v1729, %v1721
    %v2194 = vpack.c.bf16 %v1738, %v1730
    %v2195 = vpack.c.bf16 %v1739, %v1731
    %v2196 = vpack.c.bf16 %v1740, %v1732
    %v2197 = vpack.c.bf16 %v1741, %v1733
    %v2198 = vpack.c.bf16 %v1742, %v1734
    %v2199 = vpack.c.bf16 %v1743, %v1735
    %v2200 = vpack.c.bf16 %v1744, %v1736
    %v2201 = vpack.c.bf16 %v1745, %v1737
    %v2202 = vpack.c.bf16 %v1754, %v1746
    %v2203 = vpack.c.bf16 %v1755, %v1747
    %v2204 = vpack.c.bf16 %v1756, %v1748
    %v2205 = vpack.c.bf16 %v1757, %v1749
    %v2206 = vpack.c.bf16 %v1758, %v1750
    %v2207 = vpack.c.bf16 %v1759, %v1751
    %v2208 = vpack.c.bf16 %v1760, %v1752
    %v2209 = vpack.c.bf16 %v1761, %v1753
    %v2210 = vpack.c.bf16 %v1770, %v1762
    %v2211 = vpack.c.bf16 %v1771, %v1763
    %v2212 = vpack.c.bf16 %v1772, %v1764
    %v2213 = vpack.c.bf16 %v1773, %v1765
    %v2214 = vpack.c.bf16 %v1774, %v1766
    %v2215 = vpack.c.bf16 %v1775, %v1767
    %v2216 = vpack.c.bf16 %v1776, %v1768
    %v2217 = vpack.c.bf16 %v1777, %v1769
    %v2218 = vpack.c.bf16 %v1786, %v1778
    %v2219 = vpack.c.bf16 %v1787, %v1779
    %v2220 = vpack.c.bf16 %v1788, %v1780
    %v2221 = vpack.c.bf16 %v1789, %v1781
    %v2222 = vpack.c.bf16 %v1790, %v1782
    %v2223 = vpack.c.bf16 %v1791, %v1783
    %v2224 = vpack.c.bf16 %v1792, %v1784
    %v2225 = vpack.c.bf16 %v1793, %v1785
    %v2226 = vpack.c.bf16 %v1802, %v1794
    %v2227 = vpack.c.bf16 %v1803, %v1795
    %v2228 = vpack.c.bf16 %v1804, %v1796
    %v2229 = vpack.c.bf16 %v1805, %v1797
    %v2230 = vpack.c.bf16 %v1806, %v1798
    %v2231 = vpack.c.bf16 %v1807, %v1799
    %v2232 = vpack.c.bf16 %v1808, %v1800
    %v2233 = vpack.c.bf16 %v1809, %v1801
    %v2234 = vpack.c.bf16 %v1818, %v1810
    %v2235 = vpack.c.bf16 %v1819, %v1811
    %v2236 = vpack.c.bf16 %v1820, %v1812
    %v2237 = vpack.c.bf16 %v1821, %v1813
    %v2238 = vpack.c.bf16 %v1822, %v1814
    %v2239 = vpack.c.bf16 %v1823, %v1815
    %v2240 = vpack.c.bf16 %v1824, %v1816
    %v2241 = vpack.c.bf16 %v1825, %v1817
    %v2242 = vpack.c.bf16 %v1834, %v1826
    %v2243 = vpack.c.bf16 %v1835, %v1827
    %v2244 = vpack.c.bf16 %v1836, %v1828
    %v2245 = vpack.c.bf16 %v1837, %v1829
    %v2246 = vpack.c.bf16 %v1838, %v1830
    %v2247 = vpack.c.bf16 %v1839, %v1831
    %v2248 = vpack.c.bf16 %v1840, %v1832
    %v2249 = vpack.c.bf16 %v1841, %v1833
    %v2250 = vpack.c.bf16 %v1850, %v1842
    %v2251 = vpack.c.bf16 %v1851, %v1843
    %v2252 = vpack.c.bf16 %v1852, %v1844
    %v2253 = vpack.c.bf16 %v1853, %v1845
    %v2254 = vpack.c.bf16 %v1854, %v1846
    %v2255 = vpack.c.bf16 %v1855, %v1847
    %v2256 = vpack.c.bf16 %v1856, %v1848
    %v2257 = vpack.c.bf16 %v1857, %v1849
    %v2258 = vpack.c.bf16 %v1866, %v1858
    %v2259 = vpack.c.bf16 %v1867, %v1859
    %v2260 = vpack.c.bf16 %v1868, %v1860
    %v2261 = vpack.c.bf16 %v1869, %v1861
    %v2262 = vpack.c.bf16 %v1870, %v1862
    %v2263 = vpack.c.bf16 %v1871, %v1863
    %v2264 = vpack.c.bf16 %v1872, %v1864
    %v2265 = vpack.c.bf16 %v1873, %v1865
    %v2266 = vld [vmem:[%s2] sm:$0xff]
    %v2267 = vld [vmem:[%s3] sm:$0xff]
    %v2272 = vunpack.c.l.b16 %v106
    %v2273 = vunpack.c.h.b16 %v106
    %v2274 = vunpack.c.l.b16 %v107
    %v2275 = vunpack.c.h.b16 %v107
    %v2276 = vunpack.c.l.b16 %v108
    %v2277 = vunpack.c.h.b16 %v108
    %v2278 = vunpack.c.l.b16 %v109
    %v2279 = vpack.c.b16 %v2272, %v2272
    %v2280 = vpack.c.b16 %v2273, %v2273
    %v2281 = vpack.c.b16 %v2274, %v2274
    %v2282 = vpack.c.b16 %v2275, %v2275
    %v2283 = vpack.c.b16 %v2276, %v2276
    %v2284 = vpack.c.b16 %v2277, %v2277
    %v2285 = vpack.c.b16 %v2278, %v2278
    %vm2292 = vcmask 130048
    %v2294 = vsel %vm2292, %v2285, 0
    %2296 = vmatpush.bf16.msra.mxu0 %v1930
    %2297 = vmatpush.bf16.msra.mxu0 %v1922
    %2298 = vmatpush.bf16.msra.mxu0 %v1914
    %2299 = vmatpush.bf16.msra.mxu0 %v1906
    %2300 = vmatpush.bf16.msra.mxu0 %v1898
    %2301 = vmatpush.bf16.msra.mxu0 %v1890
    %2302 = vmatpush.bf16.msra.mxu0 %v1882
    %2303 = vmatpush.bf16.msra.mxu0 %v1874
    %2304 = vmatmul.bf16.gmra.mxu0 %v2279
    %v2305 = vpop.f32.mrf.mxu0
    %v2306 = vadd.f32 0.0, %v2305
    %v2307 = vpop.f32.mrf.mxu0
    %2308 = vdwg.mxu0
    %2309 = vmatpush.bf16.msra.mxu0 %v1994
    %2310 = vmatpush.bf16.msra.mxu0 %v1986
    %2311 = vmatpush.bf16.msra.mxu0 %v1978
    %2312 = vmatpush.bf16.msra.mxu0 %v1970
    %2313 = vmatpush.bf16.msra.mxu0 %v1962
    %2314 = vmatpush.bf16.msra.mxu0 %v1954
    %2315 = vmatpush.bf16.msra.mxu0 %v1946
    %2316 = vmatpush.bf16.msra.mxu0 %v1938
    %2317 = vmatmul.bf16.gmra.mxu0 %v2280
    %v2318 = vpop.f32.mrf.mxu0
    %v2319 = vadd.f32 %v2306, %v2318
    %v2320 = vpop.f32.mrf.mxu0
    %2321 = vdwg.mxu0
    %2322 = vmatpush.bf16.msra.mxu0 %v2058
    %2323 = vmatpush.bf16.msra.mxu0 %v2050
    %2324 = vmatpush.bf16.msra.mxu0 %v2042
    %2325 = vmatpush.bf16.msra.mxu0 %v2034
    %2326 = vmatpush.bf16.msra.mxu0 %v2026
    %2327 = vmatpush.bf16.msra.mxu0 %v2018
    %2328 = vmatpush.bf16.msra.mxu0 %v2010
    %2329 = vmatpush.bf16.msra.mxu0 %v2002
    %2330 = vmatmul.bf16.gmra.mxu0 %v2281
    %v2331 = vpop.f32.mrf.mxu0
    %v2332 = vadd.f32 %v2319, %v2331
    %v2333 = vpop.f32.mrf.mxu0
    %2334 = vdwg.mxu0
    %2335 = vmatpush.bf16.msra.mxu0 %v2122
    %2336 = vmatpush.bf16.msra.mxu0 %v2114
    %2337 = vmatpush.bf16.msra.mxu0 %v2106
    %2338 = vmatpush.bf16.msra.mxu0 %v2098
    %2339 = vmatpush.bf16.msra.mxu0 %v2090
    %2340 = vmatpush.bf16.msra.mxu0 %v2082
    %2341 = vmatpush.bf16.msra.mxu0 %v2074
    %2342 = vmatpush.bf16.msra.mxu0 %v2066
    %2343 = vmatmul.bf16.gmra.mxu0 %v2282
    %v2344 = vpop.f32.mrf.mxu0
    %v2345 = vadd.f32 %v2332, %v2344
    %v2346 = vpop.f32.mrf.mxu0
    %2347 = vdwg.mxu0
    %2348 = vmatpush.bf16.msra.mxu0 %v2186
    %2349 = vmatpush.bf16.msra.mxu0 %v2178
    %2350 = vmatpush.bf16.msra.mxu0 %v2170
    %2351 = vmatpush.bf16.msra.mxu0 %v2162
    %2352 = vmatpush.bf16.msra.mxu0 %v2154
    %2353 = vmatpush.bf16.msra.mxu0 %v2146
    %2354 = vmatpush.bf16.msra.mxu0 %v2138
    %2355 = vmatpush.bf16.msra.mxu0 %v2130
    %2356 = vmatmul.bf16.gmra.mxu0 %v2283
    %v2357 = vpop.f32.mrf.mxu0
    %v2358 = vadd.f32 %v2345, %v2357
    %v2359 = vpop.f32.mrf.mxu0
    %2360 = vdwg.mxu0
    %2361 = vmatpush.bf16.msra.mxu0 %v2250
    %2362 = vmatpush.bf16.msra.mxu0 %v2242
    %2363 = vmatpush.bf16.msra.mxu0 %v2234
    %2364 = vmatpush.bf16.msra.mxu0 %v2226
    %2365 = vmatpush.bf16.msra.mxu0 %v2218
    %2366 = vmatpush.bf16.msra.mxu0 %v2210
    %2367 = vmatpush.bf16.msra.mxu0 %v2202
    %2368 = vmatpush.bf16.msra.mxu0 %v2194
    %2369 = vmatmul.bf16.gmra.mxu0 %v2284
    %v2370 = vpop.f32.mrf.mxu0
    %v2371 = vadd.f32 %v2358, %v2370
    %v2372 = vpop.f32.mrf.mxu0
    %2373 = vdwg.mxu0
    %2374 = vmatpush.bf16.msra.mxu0 0
    %2375 = vmatpush.bf16.msra.mxu0 0
    %2376 = vmatpush.bf16.msra.mxu0 0
    %2377 = vmatpush.bf16.msra.mxu0 0
    %2378 = vmatpush.bf16.msra.mxu0 0
    %2379 = vmatpush.bf16.msra.mxu0 0
    %2380 = vmatpush.bf16.msra.mxu0 0
    %2381 = vmatpush.bf16.msra.mxu0 %v2258
    %2382 = vmatmul.bf16.gmra.mxu0 %v2294
    %v2383 = vpop.f32.mrf.mxu0
    %v2384 = vadd.f32 %v2371, %v2383
    %v2385 = vpop.f32.mrf.mxu0
    %2386 = vdwg.mxu0
    %2387 = vmatpush.bf16.msra.mxu0 %v1931
    %2388 = vmatpush.bf16.msra.mxu0 %v1923
    %2389 = vmatpush.bf16.msra.mxu0 %v1915
    %2390 = vmatpush.bf16.msra.mxu0 %v1907
    %2391 = vmatpush.bf16.msra.mxu0 %v1899
    %2392 = vmatpush.bf16.msra.mxu0 %v1891
    %2393 = vmatpush.bf16.msra.mxu0 %v1883
    %2394 = vmatpush.bf16.msra.mxu0 %v1875
    %2395 = vmatmul.bf16.gmra.mxu0 %v2279
    %v2396 = vpop.f32.mrf.mxu0
    %v2397 = vadd.f32 0.0, %v2396
    %v2398 = vpop.f32.mrf.mxu0
    %2399 = vdwg.mxu0
    %2400 = vmatpush.bf16.msra.mxu0 %v1995
    %2401 = vmatpush.bf16.msra.mxu0 %v1987
    %2402 = vmatpush.bf16.msra.mxu0 %v1979
    %2403 = vmatpush.bf16.msra.mxu0 %v1971
    %2404 = vmatpush.bf16.msra.mxu0 %v1963
    %2405 = vmatpush.bf16.msra.mxu0 %v1955
    %2406 = vmatpush.bf16.msra.mxu0 %v1947
    %2407 = vmatpush.bf16.msra.mxu0 %v1939
    %2408 = vmatmul.bf16.gmra.mxu0 %v2280
    %v2409 = vpop.f32.mrf.mxu0
    %v2410 = vadd.f32 %v2397, %v2409
    %v2411 = vpop.f32.mrf.mxu0
    %2412 = vdwg.mxu0
    %2413 = vmatpush.bf16.msra.mxu0 %v2059
    %2414 = vmatpush.bf16.msra.mxu0 %v2051
    %2415 = vmatpush.bf16.msra.mxu0 %v2043
    %2416 = vmatpush.bf16.msra.mxu0 %v2035
    %2417 = vmatpush.bf16.msra.mxu0 %v2027
    %2418 = vmatpush.bf16.msra.mxu0 %v2019
    %2419 = vmatpush.bf16.msra.mxu0 %v2011
    %2420 = vmatpush.bf16.msra.mxu0 %v2003
    %2421 = vmatmul.bf16.gmra.mxu0 %v2281
    %v2422 = vpop.f32.mrf.mxu0
    %v2423 = vadd.f32 %v2410, %v2422
    %v2424 = vpop.f32.mrf.mxu0
    %2425 = vdwg.mxu0
    %2426 = vmatpush.bf16.msra.mxu0 %v2123
    %2427 = vmatpush.bf16.msra.mxu0 %v2115
    %2428 = vmatpush.bf16.msra.mxu0 %v2107
    %2429 = vmatpush.bf16.msra.mxu0 %v2099
    %2430 = vmatpush.bf16.msra.mxu0 %v2091
    %2431 = vmatpush.bf16.msra.mxu0 %v2083
    %2432 = vmatpush.bf16.msra.mxu0 %v2075
    %2433 = vmatpush.bf16.msra.mxu0 %v2067
    %2434 = vmatmul.bf16.gmra.mxu0 %v2282
    %v2435 = vpop.f32.mrf.mxu0
    %v2436 = vadd.f32 %v2423, %v2435
    %v2437 = vpop.f32.mrf.mxu0
    %2438 = vdwg.mxu0
    %2439 = vmatpush.bf16.msra.mxu0 %v2187
    %2440 = vmatpush.bf16.msra.mxu0 %v2179
    %2441 = vmatpush.bf16.msra.mxu0 %v2171
    %2442 = vmatpush.bf16.msra.mxu0 %v2163
    %2443 = vmatpush.bf16.msra.mxu0 %v2155
    %2444 = vmatpush.bf16.msra.mxu0 %v2147
    %2445 = vmatpush.bf16.msra.mxu0 %v2139
    %2446 = vmatpush.bf16.msra.mxu0 %v2131
    %2447 = vmatmul.bf16.gmra.mxu0 %v2283
    %v2448 = vpop.f32.mrf.mxu0
    %v2449 = vadd.f32 %v2436, %v2448
    %v2450 = vpop.f32.mrf.mxu0
    %2451 = vdwg.mxu0
    %2452 = vmatpush.bf16.msra.mxu0 %v2251
    %2453 = vmatpush.bf16.msra.mxu0 %v2243
    %2454 = vmatpush.bf16.msra.mxu0 %v2235
    %2455 = vmatpush.bf16.msra.mxu0 %v2227
    %2456 = vmatpush.bf16.msra.mxu0 %v2219
    %2457 = vmatpush.bf16.msra.mxu0 %v2211
    %2458 = vmatpush.bf16.msra.mxu0 %v2203
    %2459 = vmatpush.bf16.msra.mxu0 %v2195
    %2460 = vmatmul.bf16.gmra.mxu0 %v2284
    %v2461 = vpop.f32.mrf.mxu0
    %v2462 = vadd.f32 %v2449, %v2461
    %v2463 = vpop.f32.mrf.mxu0
    %2464 = vdwg.mxu0
    %2465 = vmatpush.bf16.msra.mxu0 0
    %2466 = vmatpush.bf16.msra.mxu0 0
    %2467 = vmatpush.bf16.msra.mxu0 0
    %2468 = vmatpush.bf16.msra.mxu0 0
    %2469 = vmatpush.bf16.msra.mxu0 0
    %2470 = vmatpush.bf16.msra.mxu0 0
    %2471 = vmatpush.bf16.msra.mxu0 0
    %2472 = vmatpush.bf16.msra.mxu0 %v2259
    %2473 = vmatmul.bf16.gmra.mxu0 %v2294
    %v2474 = vpop.f32.mrf.mxu0
    %v2475 = vadd.f32 %v2462, %v2474
    %v2476 = vpop.f32.mrf.mxu0
    %2477 = vdwg.mxu0
    %2478 = vmatpush.bf16.msra.mxu0 %v1932
    %2479 = vmatpush.bf16.msra.mxu0 %v1924
    %2480 = vmatpush.bf16.msra.mxu0 %v1916
    %2481 = vmatpush.bf16.msra.mxu0 %v1908
    %2482 = vmatpush.bf16.msra.mxu0 %v1900
    %2483 = vmatpush.bf16.msra.mxu0 %v1892
    %2484 = vmatpush.bf16.msra.mxu0 %v1884
    %2485 = vmatpush.bf16.msra.mxu0 %v1876
    %2486 = vmatmul.bf16.gmra.mxu0 %v2279
    %v2487 = vpop.f32.mrf.mxu0
    %v2488 = vadd.f32 0.0, %v2487
    %v2489 = vpop.f32.mrf.mxu0
    %2490 = vdwg.mxu0
    %2491 = vmatpush.bf16.msra.mxu0 %v1996
    %2492 = vmatpush.bf16.msra.mxu0 %v1988
    %2493 = vmatpush.bf16.msra.mxu0 %v1980
    %2494 = vmatpush.bf16.msra.mxu0 %v1972
    %2495 = vmatpush.bf16.msra.mxu0 %v1964
    %2496 = vmatpush.bf16.msra.mxu0 %v1956
    %2497 = vmatpush.bf16.msra.mxu0 %v1948
    %2498 = vmatpush.bf16.msra.mxu0 %v1940
    %2499 = vmatmul.bf16.gmra.mxu0 %v2280
    %v2500 = vpop.f32.mrf.mxu0
    %v2501 = vadd.f32 %v2488, %v2500
    %v2502 = vpop.f32.mrf.mxu0
    %2503 = vdwg.mxu0
    %2504 = vmatpush.bf16.msra.mxu0 %v2060
    %2505 = vmatpush.bf16.msra.mxu0 %v2052
    %2506 = vmatpush.bf16.msra.mxu0 %v2044
    %2507 = vmatpush.bf16.msra.mxu0 %v2036
    %2508 = vmatpush.bf16.msra.mxu0 %v2028
    %2509 = vmatpush.bf16.msra.mxu0 %v2020
    %2510 = vmatpush.bf16.msra.mxu0 %v2012
    %2511 = vmatpush.bf16.msra.mxu0 %v2004
    %2512 = vmatmul.bf16.gmra.mxu0 %v2281
    %v2513 = vpop.f32.mrf.mxu0
    %v2514 = vadd.f32 %v2501, %v2513
    %v2515 = vpop.f32.mrf.mxu0
    %2516 = vdwg.mxu0
    %2517 = vmatpush.bf16.msra.mxu0 %v2124
    %2518 = vmatpush.bf16.msra.mxu0 %v2116
    %2519 = vmatpush.bf16.msra.mxu0 %v2108
    %2520 = vmatpush.bf16.msra.mxu0 %v2100
    %2521 = vmatpush.bf16.msra.mxu0 %v2092
    %2522 = vmatpush.bf16.msra.mxu0 %v2084
    %2523 = vmatpush.bf16.msra.mxu0 %v2076
    %2524 = vmatpush.bf16.msra.mxu0 %v2068
    %2525 = vmatmul.bf16.gmra.mxu0 %v2282
    %v2526 = vpop.f32.mrf.mxu0
    %v2527 = vadd.f32 %v2514, %v2526
    %v2528 = vpop.f32.mrf.mxu0
    %2529 = vdwg.mxu0
    %2530 = vmatpush.bf16.msra.mxu0 %v2188
    %2531 = vmatpush.bf16.msra.mxu0 %v2180
    %2532 = vmatpush.bf16.msra.mxu0 %v2172
    %2533 = vmatpush.bf16.msra.mxu0 %v2164
    %2534 = vmatpush.bf16.msra.mxu0 %v2156
    %2535 = vmatpush.bf16.msra.mxu0 %v2148
    %2536 = vmatpush.bf16.msra.mxu0 %v2140
    %2537 = vmatpush.bf16.msra.mxu0 %v2132
    %2538 = vmatmul.bf16.gmra.mxu0 %v2283
    %v2539 = vpop.f32.mrf.mxu0
    %v2540 = vadd.f32 %v2527, %v2539
    %v2541 = vpop.f32.mrf.mxu0
    %2542 = vdwg.mxu0
    %2543 = vmatpush.bf16.msra.mxu0 %v2252
    %2544 = vmatpush.bf16.msra.mxu0 %v2244
    %2545 = vmatpush.bf16.msra.mxu0 %v2236
    %2546 = vmatpush.bf16.msra.mxu0 %v2228
    %2547 = vmatpush.bf16.msra.mxu0 %v2220
    %2548 = vmatpush.bf16.msra.mxu0 %v2212
    %2549 = vmatpush.bf16.msra.mxu0 %v2204
    %2550 = vmatpush.bf16.msra.mxu0 %v2196
    %2551 = vmatmul.bf16.gmra.mxu0 %v2284
    %v2552 = vpop.f32.mrf.mxu0
    %v2553 = vadd.f32 %v2540, %v2552
    %v2554 = vpop.f32.mrf.mxu0
    %2555 = vdwg.mxu0
    %2556 = vmatpush.bf16.msra.mxu0 0
    %2557 = vmatpush.bf16.msra.mxu0 0
    %2558 = vmatpush.bf16.msra.mxu0 0
    %2559 = vmatpush.bf16.msra.mxu0 0
    %2560 = vmatpush.bf16.msra.mxu0 0
    %2561 = vmatpush.bf16.msra.mxu0 0
    %2562 = vmatpush.bf16.msra.mxu0 0
    %2563 = vmatpush.bf16.msra.mxu0 %v2260
    %2564 = vmatmul.bf16.gmra.mxu0 %v2294
    %v2565 = vpop.f32.mrf.mxu0
    %v2566 = vadd.f32 %v2553, %v2565
    %v2567 = vpop.f32.mrf.mxu0
    %2568 = vdwg.mxu0
    %2569 = vmatpush.bf16.msra.mxu0 %v1933
    %2570 = vmatpush.bf16.msra.mxu0 %v1925
    %2571 = vmatpush.bf16.msra.mxu0 %v1917
    %2572 = vmatpush.bf16.msra.mxu0 %v1909
    %2573 = vmatpush.bf16.msra.mxu0 %v1901
    %2574 = vmatpush.bf16.msra.mxu0 %v1893
    %2575 = vmatpush.bf16.msra.mxu0 %v1885
    %2576 = vmatpush.bf16.msra.mxu0 %v1877
    %2577 = vmatmul.bf16.gmra.mxu0 %v2279
    %v2578 = vpop.f32.mrf.mxu0
    %v2579 = vadd.f32 0.0, %v2578
    %v2580 = vpop.f32.mrf.mxu0
    %2581 = vdwg.mxu0
    %2582 = vmatpush.bf16.msra.mxu0 %v1997
    %2583 = vmatpush.bf16.msra.mxu0 %v1989
    %2584 = vmatpush.bf16.msra.mxu0 %v1981
    %2585 = vmatpush.bf16.msra.mxu0 %v1973
    %2586 = vmatpush.bf16.msra.mxu0 %v1965
    %2587 = vmatpush.bf16.msra.mxu0 %v1957
    %2588 = vmatpush.bf16.msra.mxu0 %v1949
    %2589 = vmatpush.bf16.msra.mxu0 %v1941
    %2590 = vmatmul.bf16.gmra.mxu0 %v2280
    %v2591 = vpop.f32.mrf.mxu0
    %v2592 = vadd.f32 %v2579, %v2591
    %v2593 = vpop.f32.mrf.mxu0
    %2594 = vdwg.mxu0
    %2595 = vmatpush.bf16.msra.mxu0 %v2061
    %2596 = vmatpush.bf16.msra.mxu0 %v2053
    %2597 = vmatpush.bf16.msra.mxu0 %v2045
    %2598 = vmatpush.bf16.msra.mxu0 %v2037
    %2599 = vmatpush.bf16.msra.mxu0 %v2029
    %2600 = vmatpush.bf16.msra.mxu0 %v2021
    %2601 = vmatpush.bf16.msra.mxu0 %v2013
    %2602 = vmatpush.bf16.msra.mxu0 %v2005
    %2603 = vmatmul.bf16.gmra.mxu0 %v2281
    %v2604 = vpop.f32.mrf.mxu0
    %v2605 = vadd.f32 %v2592, %v2604
    %v2606 = vpop.f32.mrf.mxu0
    %2607 = vdwg.mxu0
    %2608 = vmatpush.bf16.msra.mxu0 %v2125
    %2609 = vmatpush.bf16.msra.mxu0 %v2117
    %2610 = vmatpush.bf16.msra.mxu0 %v2109
    %2611 = vmatpush.bf16.msra.mxu0 %v2101
    %2612 = vmatpush.bf16.msra.mxu0 %v2093
    %2613 = vmatpush.bf16.msra.mxu0 %v2085
    %2614 = vmatpush.bf16.msra.mxu0 %v2077
    %2615 = vmatpush.bf16.msra.mxu0 %v2069
    %2616 = vmatmul.bf16.gmra.mxu0 %v2282
    %v2617 = vpop.f32.mrf.mxu0
    %v2618 = vadd.f32 %v2605, %v2617
    %v2619 = vpop.f32.mrf.mxu0
    %2620 = vdwg.mxu0
    %2621 = vmatpush.bf16.msra.mxu0 %v2189
    %2622 = vmatpush.bf16.msra.mxu0 %v2181
    %2623 = vmatpush.bf16.msra.mxu0 %v2173
    %2624 = vmatpush.bf16.msra.mxu0 %v2165
    %2625 = vmatpush.bf16.msra.mxu0 %v2157
    %2626 = vmatpush.bf16.msra.mxu0 %v2149
    %2627 = vmatpush.bf16.msra.mxu0 %v2141
    %2628 = vmatpush.bf16.msra.mxu0 %v2133
    %2629 = vmatmul.bf16.gmra.mxu0 %v2283
    %v2630 = vpop.f32.mrf.mxu0
    %v2631 = vadd.f32 %v2618, %v2630
    %v2632 = vpop.f32.mrf.mxu0
    %2633 = vdwg.mxu0
    %2634 = vmatpush.bf16.msra.mxu0 %v2253
    %2635 = vmatpush.bf16.msra.mxu0 %v2245
    %2636 = vmatpush.bf16.msra.mxu0 %v2237
    %2637 = vmatpush.bf16.msra.mxu0 %v2229
    %2638 = vmatpush.bf16.msra.mxu0 %v2221
    %2639 = vmatpush.bf16.msra.mxu0 %v2213
    %2640 = vmatpush.bf16.msra.mxu0 %v2205
    %2641 = vmatpush.bf16.msra.mxu0 %v2197
    %2642 = vmatmul.bf16.gmra.mxu0 %v2284
    %v2643 = vpop.f32.mrf.mxu0
    %v2644 = vadd.f32 %v2631, %v2643
    %v2645 = vpop.f32.mrf.mxu0
    %2646 = vdwg.mxu0
    %2647 = vmatpush.bf16.msra.mxu0 0
    %2648 = vmatpush.bf16.msra.mxu0 0
    %2649 = vmatpush.bf16.msra.mxu0 0
    %2650 = vmatpush.bf16.msra.mxu0 0
    %2651 = vmatpush.bf16.msra.mxu0 0
    %2652 = vmatpush.bf16.msra.mxu0 0
    %2653 = vmatpush.bf16.msra.mxu0 0
    %2654 = vmatpush.bf16.msra.mxu0 %v2261
    %2655 = vmatmul.bf16.gmra.mxu0 %v2294
    %v2656 = vpop.f32.mrf.mxu0
    %v2657 = vadd.f32 %v2644, %v2656
    %v2658 = vpop.f32.mrf.mxu0
    %2659 = vdwg.mxu0
    %2660 = vmatpush.bf16.msra.mxu0 %v1934
    %2661 = vmatpush.bf16.msra.mxu0 %v1926
    %2662 = vmatpush.bf16.msra.mxu0 %v1918
    %2663 = vmatpush.bf16.msra.mxu0 %v1910
    %2664 = vmatpush.bf16.msra.mxu0 %v1902
    %2665 = vmatpush.bf16.msra.mxu0 %v1894
    %2666 = vmatpush.bf16.msra.mxu0 %v1886
    %2667 = vmatpush.bf16.msra.mxu0 %v1878
    %2668 = vmatmul.bf16.gmra.mxu0 %v2279
    %v2669 = vpop.f32.mrf.mxu0
    %v2670 = vadd.f32 0.0, %v2669
    %v2671 = vpop.f32.mrf.mxu0
    %2672 = vdwg.mxu0
    %2673 = vmatpush.bf16.msra.mxu0 %v1998
    %2674 = vmatpush.bf16.msra.mxu0 %v1990
    %2675 = vmatpush.bf16.msra.mxu0 %v1982
    %2676 = vmatpush.bf16.msra.mxu0 %v1974
    %2677 = vmatpush.bf16.msra.mxu0 %v1966
    %2678 = vmatpush.bf16.msra.mxu0 %v1958
    %2679 = vmatpush.bf16.msra.mxu0 %v1950
    %2680 = vmatpush.bf16.msra.mxu0 %v1942
    %2681 = vmatmul.bf16.gmra.mxu0 %v2280
    %v2682 = vpop.f32.mrf.mxu0
    %v2683 = vadd.f32 %v2670, %v2682
    %v2684 = vpop.f32.mrf.mxu0
    %2685 = vdwg.mxu0
    %2686 = vmatpush.bf16.msra.mxu0 %v2062
    %2687 = vmatpush.bf16.msra.mxu0 %v2054
    %2688 = vmatpush.bf16.msra.mxu0 %v2046
    %2689 = vmatpush.bf16.msra.mxu0 %v2038
    %2690 = vmatpush.bf16.msra.mxu0 %v2030
    %2691 = vmatpush.bf16.msra.mxu0 %v2022
    %2692 = vmatpush.bf16.msra.mxu0 %v2014
    %2693 = vmatpush.bf16.msra.mxu0 %v2006
    %2694 = vmatmul.bf16.gmra.mxu0 %v2281
    %v2695 = vpop.f32.mrf.mxu0
    %v2696 = vadd.f32 %v2683, %v2695
    %v2697 = vpop.f32.mrf.mxu0
    %2698 = vdwg.mxu0
    %2699 = vmatpush.bf16.msra.mxu0 %v2126
    %2700 = vmatpush.bf16.msra.mxu0 %v2118
    %2701 = vmatpush.bf16.msra.mxu0 %v2110
    %2702 = vmatpush.bf16.msra.mxu0 %v2102
    %2703 = vmatpush.bf16.msra.mxu0 %v2094
    %2704 = vmatpush.bf16.msra.mxu0 %v2086
    %2705 = vmatpush.bf16.msra.mxu0 %v2078
    %2706 = vmatpush.bf16.msra.mxu0 %v2070
    %2707 = vmatmul.bf16.gmra.mxu0 %v2282
    %v2708 = vpop.f32.mrf.mxu0
    %v2709 = vadd.f32 %v2696, %v2708
    %v2710 = vpop.f32.mrf.mxu0
    %2711 = vdwg.mxu0
    %2712 = vmatpush.bf16.msra.mxu0 %v2190
    %2713 = vmatpush.bf16.msra.mxu0 %v2182
    %2714 = vmatpush.bf16.msra.mxu0 %v2174
    %2715 = vmatpush.bf16.msra.mxu0 %v2166
    %2716 = vmatpush.bf16.msra.mxu0 %v2158
    %2717 = vmatpush.bf16.msra.mxu0 %v2150
    %2718 = vmatpush.bf16.msra.mxu0 %v2142
    %2719 = vmatpush.bf16.msra.mxu0 %v2134
    %2720 = vmatmul.bf16.gmra.mxu0 %v2283
    %v2721 = vpop.f32.mrf.mxu0
    %v2722 = vadd.f32 %v2709, %v2721
    %v2723 = vpop.f32.mrf.mxu0
    %2724 = vdwg.mxu0
    %2725 = vmatpush.bf16.msra.mxu0 %v2254
    %2726 = vmatpush.bf16.msra.mxu0 %v2246
    %2727 = vmatpush.bf16.msra.mxu0 %v2238
    %2728 = vmatpush.bf16.msra.mxu0 %v2230
    %2729 = vmatpush.bf16.msra.mxu0 %v2222
    %2730 = vmatpush.bf16.msra.mxu0 %v2214
    %2731 = vmatpush.bf16.msra.mxu0 %v2206
    %2732 = vmatpush.bf16.msra.mxu0 %v2198
    %2733 = vmatmul.bf16.gmra.mxu0 %v2284
    %v2734 = vpop.f32.mrf.mxu0
    %v2735 = vadd.f32 %v2722, %v2734
    %v2736 = vpop.f32.mrf.mxu0
    %2737 = vdwg.mxu0
    %2738 = vmatpush.bf16.msra.mxu0 0
    %2739 = vmatpush.bf16.msra.mxu0 0
    %2740 = vmatpush.bf16.msra.mxu0 0
    %2741 = vmatpush.bf16.msra.mxu0 0
    %2742 = vmatpush.bf16.msra.mxu0 0
    %2743 = vmatpush.bf16.msra.mxu0 0
    %2744 = vmatpush.bf16.msra.mxu0 0
    %2745 = vmatpush.bf16.msra.mxu0 %v2262
    %2746 = vmatmul.bf16.gmra.mxu0 %v2294
    %v2747 = vpop.f32.mrf.mxu0
    %v2748 = vadd.f32 %v2735, %v2747
    %v2749 = vpop.f32.mrf.mxu0
    %2750 = vdwg.mxu0
    %2751 = vmatpush.bf16.msra.mxu0 %v1935
    %2752 = vmatpush.bf16.msra.mxu0 %v1927
    %2753 = vmatpush.bf16.msra.mxu0 %v1919
    %2754 = vmatpush.bf16.msra.mxu0 %v1911
    %2755 = vmatpush.bf16.msra.mxu0 %v1903
    %2756 = vmatpush.bf16.msra.mxu0 %v1895
    %2757 = vmatpush.bf16.msra.mxu0 %v1887
    %2758 = vmatpush.bf16.msra.mxu0 %v1879
    %2759 = vmatmul.bf16.gmra.mxu0 %v2279
    %v2760 = vpop.f32.mrf.mxu0
    %v2761 = vadd.f32 0.0, %v2760
    %v2762 = vpop.f32.mrf.mxu0
    %2763 = vdwg.mxu0
    %2764 = vmatpush.bf16.msra.mxu0 %v1999
    %2765 = vmatpush.bf16.msra.mxu0 %v1991
    %2766 = vmatpush.bf16.msra.mxu0 %v1983
    %2767 = vmatpush.bf16.msra.mxu0 %v1975
    %2768 = vmatpush.bf16.msra.mxu0 %v1967
    %2769 = vmatpush.bf16.msra.mxu0 %v1959
    %2770 = vmatpush.bf16.msra.mxu0 %v1951
    %2771 = vmatpush.bf16.msra.mxu0 %v1943
    %2772 = vmatmul.bf16.gmra.mxu0 %v2280
    %v2773 = vpop.f32.mrf.mxu0
    %v2774 = vadd.f32 %v2761, %v2773
    %v2775 = vpop.f32.mrf.mxu0
    %2776 = vdwg.mxu0
    %2777 = vmatpush.bf16.msra.mxu0 %v2063
    %2778 = vmatpush.bf16.msra.mxu0 %v2055
    %2779 = vmatpush.bf16.msra.mxu0 %v2047
    %2780 = vmatpush.bf16.msra.mxu0 %v2039
    %2781 = vmatpush.bf16.msra.mxu0 %v2031
    %2782 = vmatpush.bf16.msra.mxu0 %v2023
    %2783 = vmatpush.bf16.msra.mxu0 %v2015
    %2784 = vmatpush.bf16.msra.mxu0 %v2007
    %2785 = vmatmul.bf16.gmra.mxu0 %v2281
    %v2786 = vpop.f32.mrf.mxu0
    %v2787 = vadd.f32 %v2774, %v2786
    %v2788 = vpop.f32.mrf.mxu0
    %2789 = vdwg.mxu0
    %2790 = vmatpush.bf16.msra.mxu0 %v2127
    %2791 = vmatpush.bf16.msra.mxu0 %v2119
    %2792 = vmatpush.bf16.msra.mxu0 %v2111
    %2793 = vmatpush.bf16.msra.mxu0 %v2103
    %2794 = vmatpush.bf16.msra.mxu0 %v2095
    %2795 = vmatpush.bf16.msra.mxu0 %v2087
    %2796 = vmatpush.bf16.msra.mxu0 %v2079
    %2797 = vmatpush.bf16.msra.mxu0 %v2071
    %2798 = vmatmul.bf16.gmra.mxu0 %v2282
    %v2799 = vpop.f32.mrf.mxu0
    %v2800 = vadd.f32 %v2787, %v2799
    %v2801 = vpop.f32.mrf.mxu0
    %2802 = vdwg.mxu0
    %2803 = vmatpush.bf16.msra.mxu0 %v2191
    %2804 = vmatpush.bf16.msra.mxu0 %v2183
    %2805 = vmatpush.bf16.msra.mxu0 %v2175
    %2806 = vmatpush.bf16.msra.mxu0 %v2167
    %2807 = vmatpush.bf16.msra.mxu0 %v2159
    %2808 = vmatpush.bf16.msra.mxu0 %v2151
    %2809 = vmatpush.bf16.msra.mxu0 %v2143
    %2810 = vmatpush.bf16.msra.mxu0 %v2135
    %2811 = vmatmul.bf16.gmra.mxu0 %v2283
    %v2812 = vpop.f32.mrf.mxu0
    %v2813 = vadd.f32 %v2800, %v2812
    %v2814 = vpop.f32.mrf.mxu0
    %2815 = vdwg.mxu0
    %2816 = vmatpush.bf16.msra.mxu0 %v2255
    %2817 = vmatpush.bf16.msra.mxu0 %v2247
    %2818 = vmatpush.bf16.msra.mxu0 %v2239
    %2819 = vmatpush.bf16.msra.mxu0 %v2231
    %2820 = vmatpush.bf16.msra.mxu0 %v2223
    %2821 = vmatpush.bf16.msra.mxu0 %v2215
    %2822 = vmatpush.bf16.msra.mxu0 %v2207
    %2823 = vmatpush.bf16.msra.mxu0 %v2199
    %2824 = vmatmul.bf16.gmra.mxu0 %v2284
    %v2825 = vpop.f32.mrf.mxu0
    %v2826 = vadd.f32 %v2813, %v2825
    %v2827 = vpop.f32.mrf.mxu0
    %2828 = vdwg.mxu0
    %2829 = vmatpush.bf16.msra.mxu0 0
    %2830 = vmatpush.bf16.msra.mxu0 0
    %2831 = vmatpush.bf16.msra.mxu0 0
    %2832 = vmatpush.bf16.msra.mxu0 0
    %2833 = vmatpush.bf16.msra.mxu0 0
    %2834 = vmatpush.bf16.msra.mxu0 0
    %2835 = vmatpush.bf16.msra.mxu0 0
    %2836 = vmatpush.bf16.msra.mxu0 %v2263
    %2837 = vmatmul.bf16.gmra.mxu0 %v2294
    %v2838 = vpop.f32.mrf.mxu0
    %v2839 = vadd.f32 %v2826, %v2838
    %v2840 = vpop.f32.mrf.mxu0
    %2841 = vdwg.mxu0
    %2842 = vmatpush.bf16.msra.mxu0 %v1936
    %2843 = vmatpush.bf16.msra.mxu0 %v1928
    %2844 = vmatpush.bf16.msra.mxu0 %v1920
    %2845 = vmatpush.bf16.msra.mxu0 %v1912
    %2846 = vmatpush.bf16.msra.mxu0 %v1904
    %2847 = vmatpush.bf16.msra.mxu0 %v1896
    %2848 = vmatpush.bf16.msra.mxu0 %v1888
    %2849 = vmatpush.bf16.msra.mxu0 %v1880
    %2850 = vmatmul.bf16.gmra.mxu0 %v2279
    %v2851 = vpop.f32.mrf.mxu0
    %v2852 = vadd.f32 0.0, %v2851
    %v2853 = vpop.f32.mrf.mxu0
    %2854 = vdwg.mxu0
    %2855 = vmatpush.bf16.msra.mxu0 %v2000
    %2856 = vmatpush.bf16.msra.mxu0 %v1992
    %2857 = vmatpush.bf16.msra.mxu0 %v1984
    %2858 = vmatpush.bf16.msra.mxu0 %v1976
    %2859 = vmatpush.bf16.msra.mxu0 %v1968
    %2860 = vmatpush.bf16.msra.mxu0 %v1960
    %2861 = vmatpush.bf16.msra.mxu0 %v1952
    %2862 = vmatpush.bf16.msra.mxu0 %v1944
    %2863 = vmatmul.bf16.gmra.mxu0 %v2280
    %v2864 = vpop.f32.mrf.mxu0
    %v2865 = vadd.f32 %v2852, %v2864
    %v2866 = vpop.f32.mrf.mxu0
    %2867 = vdwg.mxu0
    %2868 = vmatpush.bf16.msra.mxu0 %v2064
    %2869 = vmatpush.bf16.msra.mxu0 %v2056
    %2870 = vmatpush.bf16.msra.mxu0 %v2048
    %2871 = vmatpush.bf16.msra.mxu0 %v2040
    %2872 = vmatpush.bf16.msra.mxu0 %v2032
    %2873 = vmatpush.bf16.msra.mxu0 %v2024
    %2874 = vmatpush.bf16.msra.mxu0 %v2016
    %2875 = vmatpush.bf16.msra.mxu0 %v2008
    %2876 = vmatmul.bf16.gmra.mxu0 %v2281
    %v2877 = vpop.f32.mrf.mxu0
    %v2878 = vadd.f32 %v2865, %v2877
    %v2879 = vpop.f32.mrf.mxu0
    %2880 = vdwg.mxu0
    %2881 = vmatpush.bf16.msra.mxu0 %v2128
    %2882 = vmatpush.bf16.msra.mxu0 %v2120
    %2883 = vmatpush.bf16.msra.mxu0 %v2112
    %2884 = vmatpush.bf16.msra.mxu0 %v2104
    %2885 = vmatpush.bf16.msra.mxu0 %v2096
    %2886 = vmatpush.bf16.msra.mxu0 %v2088
    %2887 = vmatpush.bf16.msra.mxu0 %v2080
    %2888 = vmatpush.bf16.msra.mxu0 %v2072
    %2889 = vmatmul.bf16.gmra.mxu0 %v2282
    %v2890 = vpop.f32.mrf.mxu0
    %v2891 = vadd.f32 %v2878, %v2890
    %v2892 = vpop.f32.mrf.mxu0
    %2893 = vdwg.mxu0
    %2894 = vmatpush.bf16.msra.mxu0 %v2192
    %2895 = vmatpush.bf16.msra.mxu0 %v2184
    %2896 = vmatpush.bf16.msra.mxu0 %v2176
    %2897 = vmatpush.bf16.msra.mxu0 %v2168
    %2898 = vmatpush.bf16.msra.mxu0 %v2160
    %2899 = vmatpush.bf16.msra.mxu0 %v2152
    %2900 = vmatpush.bf16.msra.mxu0 %v2144
    %2901 = vmatpush.bf16.msra.mxu0 %v2136
    %2902 = vmatmul.bf16.gmra.mxu0 %v2283
    %v2903 = vpop.f32.mrf.mxu0
    %v2904 = vadd.f32 %v2891, %v2903
    %v2905 = vpop.f32.mrf.mxu0
    %2906 = vdwg.mxu0
    %2907 = vmatpush.bf16.msra.mxu0 %v2256
    %2908 = vmatpush.bf16.msra.mxu0 %v2248
    %2909 = vmatpush.bf16.msra.mxu0 %v2240
    %2910 = vmatpush.bf16.msra.mxu0 %v2232
    %2911 = vmatpush.bf16.msra.mxu0 %v2224
    %2912 = vmatpush.bf16.msra.mxu0 %v2216
    %2913 = vmatpush.bf16.msra.mxu0 %v2208
    %2914 = vmatpush.bf16.msra.mxu0 %v2200
    %2915 = vmatmul.bf16.gmra.mxu0 %v2284
    %v2916 = vpop.f32.mrf.mxu0
    %v2917 = vadd.f32 %v2904, %v2916
    %v2918 = vpop.f32.mrf.mxu0
    %2919 = vdwg.mxu0
    %2920 = vmatpush.bf16.msra.mxu0 0
    %2921 = vmatpush.bf16.msra.mxu0 0
    %2922 = vmatpush.bf16.msra.mxu0 0
    %2923 = vmatpush.bf16.msra.mxu0 0
    %2924 = vmatpush.bf16.msra.mxu0 0
    %2925 = vmatpush.bf16.msra.mxu0 0
    %2926 = vmatpush.bf16.msra.mxu0 0
    %2927 = vmatpush.bf16.msra.mxu0 %v2264
    %2928 = vmatmul.bf16.gmra.mxu0 %v2294
    %v2929 = vpop.f32.mrf.mxu0
    %v2930 = vadd.f32 %v2917, %v2929
    %v2931 = vpop.f32.mrf.mxu0
    %2932 = vdwg.mxu0
    %2933 = vmatpush.bf16.msra.mxu0 %v1937
    %2934 = vmatpush.bf16.msra.mxu0 %v1929
    %2935 = vmatpush.bf16.msra.mxu0 %v1921
    %2936 = vmatpush.bf16.msra.mxu0 %v1913
    %2937 = vmatpush.bf16.msra.mxu0 %v1905
    %2938 = vmatpush.bf16.msra.mxu0 %v1897
    %2939 = vmatpush.bf16.msra.mxu0 %v1889
    %2940 = vmatpush.bf16.msra.mxu0 %v1881
    %2941 = vmatmul.bf16.gmra.mxu0 %v2279
    %v2942 = vpop.f32.mrf.mxu0
    %v2943 = vadd.f32 0.0, %v2942
    %v2944 = vpop.f32.mrf.mxu0
    %2945 = vdwg.mxu0
    %2946 = vmatpush.bf16.msra.mxu0 %v2001
    %2947 = vmatpush.bf16.msra.mxu0 %v1993
    %2948 = vmatpush.bf16.msra.mxu0 %v1985
    %2949 = vmatpush.bf16.msra.mxu0 %v1977
    %2950 = vmatpush.bf16.msra.mxu0 %v1969
    %2951 = vmatpush.bf16.msra.mxu0 %v1961
    %2952 = vmatpush.bf16.msra.mxu0 %v1953
    %2953 = vmatpush.bf16.msra.mxu0 %v1945
    %2954 = vmatmul.bf16.gmra.mxu0 %v2280
    %v2955 = vpop.f32.mrf.mxu0
    %v2956 = vadd.f32 %v2943, %v2955
    %v2957 = vpop.f32.mrf.mxu0
    %2958 = vdwg.mxu0
    %2959 = vmatpush.bf16.msra.mxu0 %v2065
    %2960 = vmatpush.bf16.msra.mxu0 %v2057
    %2961 = vmatpush.bf16.msra.mxu0 %v2049
    %2962 = vmatpush.bf16.msra.mxu0 %v2041
    %2963 = vmatpush.bf16.msra.mxu0 %v2033
    %2964 = vmatpush.bf16.msra.mxu0 %v2025
    %2965 = vmatpush.bf16.msra.mxu0 %v2017
    %2966 = vmatpush.bf16.msra.mxu0 %v2009
    %2967 = vmatmul.bf16.gmra.mxu0 %v2281
    %v2968 = vpop.f32.mrf.mxu0
    %v2969 = vadd.f32 %v2956, %v2968
    %v2970 = vpop.f32.mrf.mxu0
    %2971 = vdwg.mxu0
    %2972 = vmatpush.bf16.msra.mxu0 %v2129
    %2973 = vmatpush.bf16.msra.mxu0 %v2121
    %2974 = vmatpush.bf16.msra.mxu0 %v2113
    %2975 = vmatpush.bf16.msra.mxu0 %v2105
    %2976 = vmatpush.bf16.msra.mxu0 %v2097
    %2977 = vmatpush.bf16.msra.mxu0 %v2089
    %2978 = vmatpush.bf16.msra.mxu0 %v2081
    %2979 = vmatpush.bf16.msra.mxu0 %v2073
    %2980 = vmatmul.bf16.gmra.mxu0 %v2282
    %v2981 = vpop.f32.mrf.mxu0
    %v2982 = vadd.f32 %v2969, %v2981
    %v2983 = vpop.f32.mrf.mxu0
    %2984 = vdwg.mxu0
    %2985 = vmatpush.bf16.msra.mxu0 %v2193
    %2986 = vmatpush.bf16.msra.mxu0 %v2185
    %2987 = vmatpush.bf16.msra.mxu0 %v2177
    %2988 = vmatpush.bf16.msra.mxu0 %v2169
    %2989 = vmatpush.bf16.msra.mxu0 %v2161
    %2990 = vmatpush.bf16.msra.mxu0 %v2153
    %2991 = vmatpush.bf16.msra.mxu0 %v2145
    %2992 = vmatpush.bf16.msra.mxu0 %v2137
    %2993 = vmatmul.bf16.gmra.mxu0 %v2283
    %v2994 = vpop.f32.mrf.mxu0
    %v2995 = vadd.f32 %v2982, %v2994
    %v2996 = vpop.f32.mrf.mxu0
    %2997 = vdwg.mxu0
    %2998 = vmatpush.bf16.msra.mxu0 %v2257
    %2999 = vmatpush.bf16.msra.mxu0 %v2249
    %3000 = vmatpush.bf16.msra.mxu0 %v2241
    %3001 = vmatpush.bf16.msra.mxu0 %v2233
    %3002 = vmatpush.bf16.msra.mxu0 %v2225
    %3003 = vmatpush.bf16.msra.mxu0 %v2217
    %3004 = vmatpush.bf16.msra.mxu0 %v2209
    %3005 = vmatpush.bf16.msra.mxu0 %v2201
    %3006 = vmatmul.bf16.gmra.mxu0 %v2284
    %v3007 = vpop.f32.mrf.mxu0
    %v3008 = vadd.f32 %v2995, %v3007
    %v3009 = vpop.f32.mrf.mxu0
    %3010 = vdwg.mxu0
    %3011 = vmatpush.bf16.msra.mxu0 0
    %3012 = vmatpush.bf16.msra.mxu0 0
    %3013 = vmatpush.bf16.msra.mxu0 0
    %3014 = vmatpush.bf16.msra.mxu0 0
    %3015 = vmatpush.bf16.msra.mxu0 0
    %3016 = vmatpush.bf16.msra.mxu0 0
    %3017 = vmatpush.bf16.msra.mxu0 0
    %3018 = vmatpush.bf16.msra.mxu0 %v2265
    %3019 = vmatmul.bf16.gmra.mxu0 %v2294
    %v3020 = vpop.f32.mrf.mxu0
    %v3021 = vadd.f32 %v3008, %v3020
    %v3022 = vpop.f32.mrf.mxu0
    %3023 = vdwg.mxu0
    %v3025 = vperm.slane %v2266, 0
    %v3026 = vperm.slane %v2266, 1
    %v3027 = vperm.slane %v2266, 2
    %v3028 = vperm.slane %v2266, 3
    %v3029 = vperm.slane %v2266, 4
    %v3030 = vperm.slane %v2266, 5
    %v3031 = vperm.slane %v2266, 6
    %v3032 = vperm.slane %v2266, 7
    %v3041 = vmul.f32 %v2384, %v3025
    %v3042 = vmul.f32 %v2475, %v3026
    %v3043 = vmul.f32 %v2566, %v3027
    %v3044 = vmul.f32 %v2657, %v3028
    %v3045 = vmul.f32 %v2748, %v3029
    %v3046 = vmul.f32 %v2839, %v3030
    %v3047 = vmul.f32 %v2930, %v3031
    %v3048 = vmul.f32 %v3021, %v3032
    %v3050 = vperm.slane %v2267, 0
    %v3051 = vperm.slane %v2267, 1
    %v3052 = vperm.slane %v2267, 2
    %v3053 = vperm.slane %v2267, 3
    %v3054 = vperm.slane %v2267, 4
    %v3055 = vperm.slane %v2267, 5
    %v3056 = vperm.slane %v2267, 6
    %v3057 = vperm.slane %v2267, 7
    %v3066 = vadd.f32 %v3041, %v3050
    %v3067 = vadd.f32 %v3042, %v3051
    %v3068 = vadd.f32 %v3043, %v3052
    %v3069 = vadd.f32 %v3044, %v3053
    %v3070 = vadd.f32 %v3045, %v3054
    %v3071 = vadd.f32 %v3046, %v3055
    %v3072 = vadd.f32 %v3047, %v3056
    %v3073 = vadd.f32 %v3048, %v3057
    %v3074 = vmax.f32 %v3066, 0.0
    %v3075 = vmax.f32 %v3067, 0.0
    %v3076 = vmax.f32 %v3068, 0.0
    %v3077 = vmax.f32 %v3069, 0.0
    %v3078 = vmax.f32 %v3070, 0.0
    %v3079 = vmax.f32 %v3071, 0.0
    %v3080 = vmax.f32 %v3072, 0.0
    %v3081 = vmax.f32 %v3073, 0.0
    %v3082 = vpack.c.bf16 %v3074, %v3074
    %v3083 = vpack.c.bf16 %v3075, %v3075
    %v3084 = vpack.c.bf16 %v3076, %v3076
    %v3085 = vpack.c.bf16 %v3077, %v3077
    %v3086 = vpack.c.bf16 %v3078, %v3078
    %v3087 = vpack.c.bf16 %v3079, %v3079
    %v3088 = vpack.c.bf16 %v3080, %v3080
    %v3089 = vpack.c.bf16 %v3081, %v3081
    %v3090 = vld [vmem:[#allocation5] sm:$0xff]
    %v3091 = vld [vmem:[#allocation5 + $0x8] sm:$0xff]
    %v3092 = vld [vmem:[#allocation5 + $0x10] sm:$0xff]
    %v3093 = vld [vmem:[#allocation5 + $0x18] sm:$0xff]
    %v3094 = vld [vmem:[#allocation5 + $0x20] sm:$0xff]
    %v3095 = vld [vmem:[#allocation5 + $0x28] sm:$0xff]
    %v3096 = vld [vmem:[#allocation5 + $0x30] sm:$0xff]
    %v3097 = vld [vmem:[#allocation5 + $0x38] sm:$0xff]
    %v3098 = vld [vmem:[#allocation5 + $0x40] sm:$0xff]
    %v3099 = vld [vmem:[#allocation5 + $0x48] sm:$0xff]
    %v3100 = vld [vmem:[#allocation5 + $0x50] sm:$0xff]
    %v3101 = vld [vmem:[#allocation5 + $0x58] sm:$0xff]
    %v3102 = vld [vmem:[#allocation5 + $0x60] sm:$0xff]
    %v3103 = vld [vmem:[#allocation5 + $0x68] sm:$0xff]
    %v3104 = vld [vmem:[#allocation5 + $0x70] sm:$0xff]
    %v3105 = vld [vmem:[#allocation5 + $0x78] sm:$0xff]
    %v3106 = vld [vmem:[#allocation5 + $0x80] sm:$0xff]
    %v3107 = vld [vmem:[#allocation5 + $0x88] sm:$0xff]
    %v3108 = vld [vmem:[#allocation5 + $0x90] sm:$0xff]
    %v3109 = vld [vmem:[#allocation5 + $0x98] sm:$0xff]
    %v3110 = vld [vmem:[#allocation5 + $0xa0] sm:$0xff]
    %v3111 = vld [vmem:[#allocation5 + $0xa8] sm:$0xff]
    %v3112 = vld [vmem:[#allocation5 + $0xb0] sm:$0xff]
    %v3113 = vld [vmem:[#allocation5 + $0xb8] sm:$0xff]
    %v3114 = vld [vmem:[#allocation5 + $0xc0] sm:$0xff]
    %v3115 = vld [vmem:[#allocation5 + $0xc8] sm:$0xff]
    %v3116 = vld [vmem:[#allocation5 + $0xd0] sm:$0xff]
    %v3117 = vld [vmem:[#allocation5 + $0xd8] sm:$0xff]
    %v3118 = vld [vmem:[#allocation5 + $0xe0] sm:$0xff]
    %v3119 = vld [vmem:[#allocation5 + $0xe8] sm:$0xff]
    %v3120 = vld [vmem:[#allocation5 + $0xf0] sm:$0xff]
    %v3121 = vld [vmem:[#allocation5 + $0xf8] sm:$0xff]
    %v3122 = vld [vmem:[#allocation5 + $0x100] sm:$0xff]
    %v3123 = vld [vmem:[#allocation5 + $0x108] sm:$0xff]
    %v3124 = vld [vmem:[#allocation5 + $0x110] sm:$0xff]
    %v3125 = vld [vmem:[#allocation5 + $0x118] sm:$0xff]
    %v3126 = vld [vmem:[#allocation5 + $0x120] sm:$0xff]
    %v3127 = vld [vmem:[#allocation5 + $0x128] sm:$0xff]
    %v3128 = vld [vmem:[#allocation5 + $0x130] sm:$0xff]
    %v3129 = vld [vmem:[#allocation5 + $0x138] sm:$0xff]
    %v3130 = vld [vmem:[#allocation5 + $0x140] sm:$0xff]
    %v3131 = vld [vmem:[#allocation5 + $0x148] sm:$0xff]
    %v3132 = vld [vmem:[#allocation5 + $0x150] sm:$0xff]
    %v3133 = vld [vmem:[#allocation5 + $0x158] sm:$0xff]
    %v3134 = vld [vmem:[#allocation5 + $0x160] sm:$0xff]
    %v3135 = vld [vmem:[#allocation5 + $0x168] sm:$0xff]
    %v3136 = vld [vmem:[#allocation5 + $0x170] sm:$0xff]
    %v3137 = vld [vmem:[#allocation5 + $0x178] sm:$0xff]
    %v3138 = vld [vmem:[#allocation5 + $0x180] sm:$0xff]
    %v3139 = vld [vmem:[#allocation5 + $0x188] sm:$0xff]
    %v3140 = vld [vmem:[#allocation5 + $0x190] sm:$0xff]
    %v3141 = vld [vmem:[#allocation5 + $0x198] sm:$0xff]
    %v3142 = vld [vmem:[#allocation5 + $0x1a0] sm:$0xff]
    %v3143 = vld [vmem:[#allocation5 + $0x1a8] sm:$0xff]
    %v3144 = vld [vmem:[#allocation5 + $0x1b0] sm:$0xff]
    %v3145 = vld [vmem:[#allocation5 + $0x1b8] sm:$0xff]
    %v3146 = vld [vmem:[#allocation5 + $0x1c0] sm:$0xff]
    %v3147 = vld [vmem:[#allocation5 + $0x1c8] sm:$0xff]
    %v3148 = vld [vmem:[#allocation5 + $0x1d0] sm:$0xff]
    %v3149 = vld [vmem:[#allocation5 + $0x1d8] sm:$0xff]
    %v3150 = vld [vmem:[#allocation5 + $0x1e0] sm:$0xff]
    %v3151 = vld [vmem:[#allocation5 + $0x1e8] sm:$0xff]
    %v3152 = vld [vmem:[#allocation5 + $0x1f0] sm:$0xff]
    %v3153 = vld [vmem:[#allocation5 + $0x1f8] sm:$0xff]
    %v3154 = vld [vmem:[#allocation5 + $0x200] sm:$0xff]
    %v3155 = vld [vmem:[#allocation5 + $0x208] sm:$0xff]
    %v3156 = vld [vmem:[#allocation5 + $0x210] sm:$0xff]
    %v3157 = vld [vmem:[#allocation5 + $0x218] sm:$0xff]
    %v3158 = vld [vmem:[#allocation5 + $0x220] sm:$0xff]
    %v3159 = vld [vmem:[#allocation5 + $0x228] sm:$0xff]
    %v3160 = vld [vmem:[#allocation5 + $0x230] sm:$0xff]
    %v3161 = vld [vmem:[#allocation5 + $0x238] sm:$0xff]
    %v3162 = vld [vmem:[#allocation5 + $0x240] sm:$0xff]
    %v3163 = vld [vmem:[#allocation5 + $0x248] sm:$0xff]
    %v3164 = vld [vmem:[#allocation5 + $0x250] sm:$0xff]
    %v3165 = vld [vmem:[#allocation5 + $0x258] sm:$0xff]
    %v3166 = vld [vmem:[#allocation5 + $0x260] sm:$0xff]
    %v3167 = vld [vmem:[#allocation5 + $0x268] sm:$0xff]
    %v3168 = vld [vmem:[#allocation5 + $0x270] sm:$0xff]
    %v3169 = vld [vmem:[#allocation5 + $0x278] sm:$0xff]
    %v3170 = vld [vmem:[#allocation5 + $0x280] sm:$0xff]
    %v3171 = vld [vmem:[#allocation5 + $0x288] sm:$0xff]
    %v3172 = vld [vmem:[#allocation5 + $0x290] sm:$0xff]
    %v3173 = vld [vmem:[#allocation5 + $0x298] sm:$0xff]
    %v3174 = vld [vmem:[#allocation5 + $0x2a0] sm:$0xff]
    %v3175 = vld [vmem:[#allocation5 + $0x2a8] sm:$0xff]
    %v3176 = vld [vmem:[#allocation5 + $0x2b0] sm:$0xff]
    %v3177 = vld [vmem:[#allocation5 + $0x2b8] sm:$0xff]
    %v3178 = vld [vmem:[#allocation5 + $0x2c0] sm:$0xff]
    %v3179 = vld [vmem:[#allocation5 + $0x2c8] sm:$0xff]
    %v3180 = vld [vmem:[#allocation5 + $0x2d0] sm:$0xff]
    %v3181 = vld [vmem:[#allocation5 + $0x2d8] sm:$0xff]
    %v3182 = vld [vmem:[#allocation5 + $0x2e0] sm:$0xff]
    %v3183 = vld [vmem:[#allocation5 + $0x2e8] sm:$0xff]
    %v3184 = vld [vmem:[#allocation5 + $0x2f0] sm:$0xff]
    %v3185 = vld [vmem:[#allocation5 + $0x2f8] sm:$0xff]
    %v3186 = vld [vmem:[#allocation5 + $0x300] sm:$0xff]
    %v3187 = vld [vmem:[#allocation5 + $0x308] sm:$0xff]
    %v3188 = vld [vmem:[#allocation5 + $0x310] sm:$0xff]
    %v3189 = vld [vmem:[#allocation5 + $0x318] sm:$0xff]
    %v3190 = vld [vmem:[#allocation5 + $0x320] sm:$0xff]
    %v3191 = vld [vmem:[#allocation5 + $0x328] sm:$0xff]
    %v3192 = vld [vmem:[#allocation5 + $0x330] sm:$0xff]
    %v3193 = vld [vmem:[#allocation5 + $0x338] sm:$0xff]
    %v3194 = vld [vmem:[#allocation5 + $0x340] sm:$0xff]
    %v3195 = vld [vmem:[#allocation5 + $0x348] sm:$0xff]
    %v3196 = vld [vmem:[#allocation5 + $0x350] sm:$0xff]
    %v3197 = vld [vmem:[#allocation5 + $0x358] sm:$0xff]
    %v3198 = vld [vmem:[#allocation5 + $0x360] sm:$0xff]
    %v3199 = vld [vmem:[#allocation5 + $0x368] sm:$0xff]
    %v3200 = vld [vmem:[#allocation5 + $0x370] sm:$0xff]
    %v3201 = vld [vmem:[#allocation5 + $0x378] sm:$0xff]
    %v3202 = vld [vmem:[#allocation5 + $0x380] sm:$0xff]
    %v3203 = vld [vmem:[#allocation5 + $0x388] sm:$0xff]
    %v3204 = vld [vmem:[#allocation5 + $0x390] sm:$0xff]
    %v3205 = vld [vmem:[#allocation5 + $0x398] sm:$0xff]
    %v3206 = vld [vmem:[#allocation5 + $0x3a0] sm:$0xff]
    %v3207 = vld [vmem:[#allocation5 + $0x3a8] sm:$0xff]
    %v3208 = vld [vmem:[#allocation5 + $0x3b0] sm:$0xff]
    %v3209 = vld [vmem:[#allocation5 + $0x3b8] sm:$0xff]
    %v3210 = vld [vmem:[#allocation5 + $0x3c0] sm:$0xff]
    %v3211 = vld [vmem:[#allocation5 + $0x3c8] sm:$0xff]
    %v3212 = vld [vmem:[#allocation5 + $0x3d0] sm:$0xff]
    %v3213 = vld [vmem:[#allocation5 + $0x3d8] sm:$0xff]
    %v3214 = vld [vmem:[#allocation5 + $0x3e0] sm:$0xff]
    %v3215 = vld [vmem:[#allocation5 + $0x3e8] sm:$0xff]
    %v3216 = vld [vmem:[#allocation5 + $0x3f0] sm:$0xff]
    %v3217 = vld [vmem:[#allocation5 + $0x3f8] sm:$0xff]
    %v3218 = vld [vmem:[#allocation5 + $0x400] sm:$0xff]
    %v3219 = vld [vmem:[#allocation5 + $0x408] sm:$0xff]
    %v3220 = vld [vmem:[#allocation5 + $0x410] sm:$0xff]
    %v3221 = vld [vmem:[#allocation5 + $0x418] sm:$0xff]
    %v3222 = vld [vmem:[#allocation5 + $0x420] sm:$0xff]
    %v3223 = vld [vmem:[#allocation5 + $0x428] sm:$0xff]
    %v3224 = vld [vmem:[#allocation5 + $0x430] sm:$0xff]
    %v3225 = vld [vmem:[#allocation5 + $0x438] sm:$0xff]
    %v3226 = vld [vmem:[#allocation5 + $0x440] sm:$0xff]
    %v3227 = vld [vmem:[#allocation5 + $0x448] sm:$0xff]
    %v3228 = vld [vmem:[#allocation5 + $0x450] sm:$0xff]
    %v3229 = vld [vmem:[#allocation5 + $0x458] sm:$0xff]
    %v3230 = vld [vmem:[#allocation5 + $0x460] sm:$0xff]
    %v3231 = vld [vmem:[#allocation5 + $0x468] sm:$0xff]
    %v3232 = vld [vmem:[#allocation5 + $0x470] sm:$0xff]
    %v3233 = vld [vmem:[#allocation5 + $0x478] sm:$0xff]
    %v3234 = vld [vmem:[#allocation5 + $0x480] sm:$0xff]
    %v3235 = vld [vmem:[#allocation5 + $0x488] sm:$0xff]
    %v3236 = vld [vmem:[#allocation5 + $0x490] sm:$0xff]
    %v3237 = vld [vmem:[#allocation5 + $0x498] sm:$0xff]
    %v3238 = vld [vmem:[#allocation5 + $0x4a0] sm:$0xff]
    %v3239 = vld [vmem:[#allocation5 + $0x4a8] sm:$0xff]
    %v3240 = vld [vmem:[#allocation5 + $0x4b0] sm:$0xff]
    %v3241 = vld [vmem:[#allocation5 + $0x4b8] sm:$0xff]
    %v3242 = vld [vmem:[#allocation5 + $0x4c0] sm:$0xff]
    %v3243 = vld [vmem:[#allocation5 + $0x4c8] sm:$0xff]
    %v3244 = vld [vmem:[#allocation5 + $0x4d0] sm:$0xff]
    %v3245 = vld [vmem:[#allocation5 + $0x4d8] sm:$0xff]
    %v3246 = vld [vmem:[#allocation5 + $0x4e0] sm:$0xff]
    %v3247 = vld [vmem:[#allocation5 + $0x4e8] sm:$0xff]
    %v3248 = vld [vmem:[#allocation5 + $0x4f0] sm:$0xff]
    %v3249 = vld [vmem:[#allocation5 + $0x4f8] sm:$0xff]
    %v3250 = vld [vmem:[#allocation5 + $0x500] sm:$0xff]
    %v3251 = vld [vmem:[#allocation5 + $0x508] sm:$0xff]
    %v3252 = vld [vmem:[#allocation5 + $0x510] sm:$0xff]
    %v3253 = vld [vmem:[#allocation5 + $0x518] sm:$0xff]
    %v3254 = vld [vmem:[#allocation5 + $0x520] sm:$0xff]
    %v3255 = vld [vmem:[#allocation5 + $0x528] sm:$0xff]
    %v3256 = vld [vmem:[#allocation5 + $0x530] sm:$0xff]
    %v3257 = vld [vmem:[#allocation5 + $0x538] sm:$0xff]
    %v3258 = vld [vmem:[#allocation5 + $0x540] sm:$0xff]
    %v3259 = vld [vmem:[#allocation5 + $0x548] sm:$0xff]
    %v3260 = vld [vmem:[#allocation5 + $0x550] sm:$0xff]
    %v3261 = vld [vmem:[#allocation5 + $0x558] sm:$0xff]
    %v3262 = vld [vmem:[#allocation5 + $0x560] sm:$0xff]
    %v3263 = vld [vmem:[#allocation5 + $0x568] sm:$0xff]
    %v3264 = vld [vmem:[#allocation5 + $0x570] sm:$0xff]
    %v3265 = vld [vmem:[#allocation5 + $0x578] sm:$0xff]
    %v3266 = vld [vmem:[#allocation5 + $0x580] sm:$0xff]
    %v3267 = vld [vmem:[#allocation5 + $0x588] sm:$0xff]
    %v3268 = vld [vmem:[#allocation5 + $0x590] sm:$0xff]
    %v3269 = vld [vmem:[#allocation5 + $0x598] sm:$0xff]
    %v3270 = vld [vmem:[#allocation5 + $0x5a0] sm:$0xff]
    %v3271 = vld [vmem:[#allocation5 + $0x5a8] sm:$0xff]
    %v3272 = vld [vmem:[#allocation5 + $0x5b0] sm:$0xff]
    %v3273 = vld [vmem:[#allocation5 + $0x5b8] sm:$0xff]
    %v3274 = vld [vmem:[#allocation5 + $0x5c0] sm:$0xff]
    %v3275 = vld [vmem:[#allocation5 + $0x5c8] sm:$0xff]
    %v3276 = vld [vmem:[#allocation5 + $0x5d0] sm:$0xff]
    %v3277 = vld [vmem:[#allocation5 + $0x5d8] sm:$0xff]
    %v3278 = vld [vmem:[#allocation5 + $0x5e0] sm:$0xff]
    %v3279 = vld [vmem:[#allocation5 + $0x5e8] sm:$0xff]
    %v3280 = vld [vmem:[#allocation5 + $0x5f0] sm:$0xff]
    %v3281 = vld [vmem:[#allocation5 + $0x5f8] sm:$0xff]
    %v3282 = vld [vmem:[#allocation5 + $0x600] sm:$0xff]
    %v3283 = vld [vmem:[#allocation5 + $0x608] sm:$0xff]
    %v3284 = vld [vmem:[#allocation5 + $0x610] sm:$0xff]
    %v3285 = vld [vmem:[#allocation5 + $0x618] sm:$0xff]
    %v3286 = vld [vmem:[#allocation5 + $0x620] sm:$0xff]
    %v3287 = vld [vmem:[#allocation5 + $0x628] sm:$0xff]
    %v3288 = vld [vmem:[#allocation5 + $0x630] sm:$0xff]
    %v3289 = vld [vmem:[#allocation5 + $0x638] sm:$0xff]
    %v3290 = vld [vmem:[#allocation5 + $0x640] sm:$0xff]
    %v3291 = vld [vmem:[#allocation5 + $0x648] sm:$0xff]
    %v3292 = vld [vmem:[#allocation5 + $0x650] sm:$0xff]
    %v3293 = vld [vmem:[#allocation5 + $0x658] sm:$0xff]
    %v3294 = vld [vmem:[#allocation5 + $0x660] sm:$0xff]
    %v3295 = vld [vmem:[#allocation5 + $0x668] sm:$0xff]
    %v3296 = vld [vmem:[#allocation5 + $0x670] sm:$0xff]
    %v3297 = vld [vmem:[#allocation5 + $0x678] sm:$0xff]
    %v3298 = vld [vmem:[#allocation5 + $0x680] sm:$0xff]
    %v3299 = vld [vmem:[#allocation5 + $0x688] sm:$0xff]
    %v3300 = vld [vmem:[#allocation5 + $0x690] sm:$0xff]
    %v3301 = vld [vmem:[#allocation5 + $0x698] sm:$0xff]
    %v3302 = vld [vmem:[#allocation5 + $0x6a0] sm:$0xff]
    %v3303 = vld [vmem:[#allocation5 + $0x6a8] sm:$0xff]
    %v3304 = vld [vmem:[#allocation5 + $0x6b0] sm:$0xff]
    %v3305 = vld [vmem:[#allocation5 + $0x6b8] sm:$0xff]
    %v3306 = vld [vmem:[#allocation5 + $0x6c0] sm:$0xff]
    %v3307 = vld [vmem:[#allocation5 + $0x6c8] sm:$0xff]
    %v3308 = vld [vmem:[#allocation5 + $0x6d0] sm:$0xff]
    %v3309 = vld [vmem:[#allocation5 + $0x6d8] sm:$0xff]
    %v3310 = vld [vmem:[#allocation5 + $0x6e0] sm:$0xff]
    %v3311 = vld [vmem:[#allocation5 + $0x6e8] sm:$0xff]
    %v3312 = vld [vmem:[#allocation5 + $0x6f0] sm:$0xff]
    %v3313 = vld [vmem:[#allocation5 + $0x6f8] sm:$0xff]
    %v3314 = vld [vmem:[#allocation5 + $0x700] sm:$0xff]
    %v3315 = vld [vmem:[#allocation5 + $0x708] sm:$0xff]
    %v3316 = vld [vmem:[#allocation5 + $0x710] sm:$0xff]
    %v3317 = vld [vmem:[#allocation5 + $0x718] sm:$0xff]
    %v3318 = vld [vmem:[#allocation5 + $0x720] sm:$0xff]
    %v3319 = vld [vmem:[#allocation5 + $0x728] sm:$0xff]
    %v3320 = vld [vmem:[#allocation5 + $0x730] sm:$0xff]
    %v3321 = vld [vmem:[#allocation5 + $0x738] sm:$0xff]
    %v3322 = vld [vmem:[#allocation5 + $0x740] sm:$0xff]
    %v3323 = vld [vmem:[#allocation5 + $0x748] sm:$0xff]
    %v3324 = vld [vmem:[#allocation5 + $0x750] sm:$0xff]
    %v3325 = vld [vmem:[#allocation5 + $0x758] sm:$0xff]
    %v3326 = vld [vmem:[#allocation5 + $0x760] sm:$0xff]
    %v3327 = vld [vmem:[#allocation5 + $0x768] sm:$0xff]
    %v3328 = vld [vmem:[#allocation5 + $0x770] sm:$0xff]
    %v3329 = vld [vmem:[#allocation5 + $0x778] sm:$0xff]
    %v3330 = vld [vmem:[#allocation5 + $0x780] sm:$0xff]
    %v3331 = vld [vmem:[#allocation5 + $0x788] sm:$0xff]
    %v3332 = vld [vmem:[#allocation5 + $0x790] sm:$0xff]
    %v3333 = vld [vmem:[#allocation5 + $0x798] sm:$0xff]
    %v3334 = vld [vmem:[#allocation5 + $0x7a0] sm:$0xff]
    %v3335 = vld [vmem:[#allocation5 + $0x7a8] sm:$0xff]
    %v3336 = vld [vmem:[#allocation5 + $0x7b0] sm:$0xff]
    %v3337 = vld [vmem:[#allocation5 + $0x7b8] sm:$0xff]
    %v3338 = vld [vmem:[#allocation5 + $0x7c0] sm:$0xff]
    %v3339 = vld [vmem:[#allocation5 + $0x7c8] sm:$0xff]
    %v3340 = vld [vmem:[#allocation5 + $0x7d0] sm:$0xff]
    %v3341 = vld [vmem:[#allocation5 + $0x7d8] sm:$0xff]
    %v3342 = vld [vmem:[#allocation5 + $0x7e0] sm:$0xff]
    %v3343 = vld [vmem:[#allocation5 + $0x7e8] sm:$0xff]
    %v3344 = vld [vmem:[#allocation5 + $0x7f0] sm:$0xff]
    %v3345 = vld [vmem:[#allocation5 + $0x7f8] sm:$0xff]
    %v3346 = vunpack.c.0.s8 %v3090
    %v3347 = vunpack.c.0.s8 %v3091
    %v3348 = vunpack.c.0.s8 %v3092
    %v3349 = vunpack.c.0.s8 %v3093
    %v3350 = vunpack.c.0.s8 %v3094
    %v3351 = vunpack.c.0.s8 %v3095
    %v3352 = vunpack.c.0.s8 %v3096
    %v3353 = vunpack.c.0.s8 %v3097
    %v3354 = vunpack.c.1.s8 %v3090
    %v3355 = vunpack.c.1.s8 %v3091
    %v3356 = vunpack.c.1.s8 %v3092
    %v3357 = vunpack.c.1.s8 %v3093
    %v3358 = vunpack.c.1.s8 %v3094
    %v3359 = vunpack.c.1.s8 %v3095
    %v3360 = vunpack.c.1.s8 %v3096
    %v3361 = vunpack.c.1.s8 %v3097
    %v3362 = vunpack.c.2.s8 %v3090
    %v3363 = vunpack.c.2.s8 %v3091
    %v3364 = vunpack.c.2.s8 %v3092
    %v3365 = vunpack.c.2.s8 %v3093
    %v3366 = vunpack.c.2.s8 %v3094
    %v3367 = vunpack.c.2.s8 %v3095
    %v3368 = vunpack.c.2.s8 %v3096
    %v3369 = vunpack.c.2.s8 %v3097
    %v3370 = vunpack.c.3.s8 %v3090
    %v3371 = vunpack.c.3.s8 %v3091
    %v3372 = vunpack.c.3.s8 %v3092
    %v3373 = vunpack.c.3.s8 %v3093
    %v3374 = vunpack.c.3.s8 %v3094
    %v3375 = vunpack.c.3.s8 %v3095
    %v3376 = vunpack.c.3.s8 %v3096
    %v3377 = vunpack.c.3.s8 %v3097
    %v3378 = vunpack.c.0.s8 %v3098
    %v3379 = vunpack.c.0.s8 %v3099
    %v3380 = vunpack.c.0.s8 %v3100
    %v3381 = vunpack.c.0.s8 %v3101
    %v3382 = vunpack.c.0.s8 %v3102
    %v3383 = vunpack.c.0.s8 %v3103
    %v3384 = vunpack.c.0.s8 %v3104
    %v3385 = vunpack.c.0.s8 %v3105
    %v3386 = vunpack.c.1.s8 %v3098
    %v3387 = vunpack.c.1.s8 %v3099
    %v3388 = vunpack.c.1.s8 %v3100
    %v3389 = vunpack.c.1.s8 %v3101
    %v3390 = vunpack.c.1.s8 %v3102
    %v3391 = vunpack.c.1.s8 %v3103
    %v3392 = vunpack.c.1.s8 %v3104
    %v3393 = vunpack.c.1.s8 %v3105
    %v3394 = vunpack.c.2.s8 %v3098
    %v3395 = vunpack.c.2.s8 %v3099
    %v3396 = vunpack.c.2.s8 %v3100
    %v3397 = vunpack.c.2.s8 %v3101
    %v3398 = vunpack.c.2.s8 %v3102
    %v3399 = vunpack.c.2.s8 %v3103
    %v3400 = vunpack.c.2.s8 %v3104
    %v3401 = vunpack.c.2.s8 %v3105
    %v3402 = vunpack.c.3.s8 %v3098
    %v3403 = vunpack.c.3.s8 %v3099
    %v3404 = vunpack.c.3.s8 %v3100
    %v3405 = vunpack.c.3.s8 %v3101
    %v3406 = vunpack.c.3.s8 %v3102
    %v3407 = vunpack.c.3.s8 %v3103
    %v3408 = vunpack.c.3.s8 %v3104
    %v3409 = vunpack.c.3.s8 %v3105
    %v3410 = vunpack.c.0.s8 %v3106
    %v3411 = vunpack.c.0.s8 %v3107
    %v3412 = vunpack.c.0.s8 %v3108
    %v3413 = vunpack.c.0.s8 %v3109
    %v3414 = vunpack.c.0.s8 %v3110
    %v3415 = vunpack.c.0.s8 %v3111
    %v3416 = vunpack.c.0.s8 %v3112
    %v3417 = vunpack.c.0.s8 %v3113
    %v3418 = vunpack.c.1.s8 %v3106
    %v3419 = vunpack.c.1.s8 %v3107
    %v3420 = vunpack.c.1.s8 %v3108
    %v3421 = vunpack.c.1.s8 %v3109
    %v3422 = vunpack.c.1.s8 %v3110
    %v3423 = vunpack.c.1.s8 %v3111
    %v3424 = vunpack.c.1.s8 %v3112
    %v3425 = vunpack.c.1.s8 %v3113
    %v3426 = vunpack.c.2.s8 %v3106
    %v3427 = vunpack.c.2.s8 %v3107
    %v3428 = vunpack.c.2.s8 %v3108
    %v3429 = vunpack.c.2.s8 %v3109
    %v3430 = vunpack.c.2.s8 %v3110
    %v3431 = vunpack.c.2.s8 %v3111
    %v3432 = vunpack.c.2.s8 %v3112
    %v3433 = vunpack.c.2.s8 %v3113
    %v3434 = vunpack.c.3.s8 %v3106
    %v3435 = vunpack.c.3.s8 %v3107
    %v3436 = vunpack.c.3.s8 %v3108
    %v3437 = vunpack.c.3.s8 %v3109
    %v3438 = vunpack.c.3.s8 %v3110
    %v3439 = vunpack.c.3.s8 %v3111
    %v3440 = vunpack.c.3.s8 %v3112
    %v3441 = vunpack.c.3.s8 %v3113
    %v3442 = vunpack.c.0.s8 %v3114
    %v3443 = vunpack.c.0.s8 %v3115
    %v3444 = vunpack.c.0.s8 %v3116
    %v3445 = vunpack.c.0.s8 %v3117
    %v3446 = vunpack.c.0.s8 %v3118
    %v3447 = vunpack.c.0.s8 %v3119
    %v3448 = vunpack.c.0.s8 %v3120
    %v3449 = vunpack.c.0.s8 %v3121
    %v3450 = vunpack.c.1.s8 %v3114
    %v3451 = vunpack.c.1.s8 %v3115
    %v3452 = vunpack.c.1.s8 %v3116
    %v3453 = vunpack.c.1.s8 %v3117
    %v3454 = vunpack.c.1.s8 %v3118
    %v3455 = vunpack.c.1.s8 %v3119
    %v3456 = vunpack.c.1.s8 %v3120
    %v3457 = vunpack.c.1.s8 %v3121
    %v3458 = vunpack.c.2.s8 %v3114
    %v3459 = vunpack.c.2.s8 %v3115
    %v3460 = vunpack.c.2.s8 %v3116
    %v3461 = vunpack.c.2.s8 %v3117
    %v3462 = vunpack.c.2.s8 %v3118
    %v3463 = vunpack.c.2.s8 %v3119
    %v3464 = vunpack.c.2.s8 %v3120
    %v3465 = vunpack.c.2.s8 %v3121
    %v3466 = vunpack.c.3.s8 %v3114
    %v3467 = vunpack.c.3.s8 %v3115
    %v3468 = vunpack.c.3.s8 %v3116
    %v3469 = vunpack.c.3.s8 %v3117
    %v3470 = vunpack.c.3.s8 %v3118
    %v3471 = vunpack.c.3.s8 %v3119
    %v3472 = vunpack.c.3.s8 %v3120
    %v3473 = vunpack.c.3.s8 %v3121
    %v3474 = vunpack.c.0.s8 %v3122
    %v3475 = vunpack.c.0.s8 %v3123
    %v3476 = vunpack.c.0.s8 %v3124
    %v3477 = vunpack.c.0.s8 %v3125
    %v3478 = vunpack.c.0.s8 %v3126
    %v3479 = vunpack.c.0.s8 %v3127
    %v3480 = vunpack.c.0.s8 %v3128
    %v3481 = vunpack.c.0.s8 %v3129
    %v3482 = vunpack.c.1.s8 %v3122
    %v3483 = vunpack.c.1.s8 %v3123
    %v3484 = vunpack.c.1.s8 %v3124
    %v3485 = vunpack.c.1.s8 %v3125
    %v3486 = vunpack.c.1.s8 %v3126
    %v3487 = vunpack.c.1.s8 %v3127
    %v3488 = vunpack.c.1.s8 %v3128
    %v3489 = vunpack.c.1.s8 %v3129
    %v3490 = vunpack.c.2.s8 %v3122
    %v3491 = vunpack.c.2.s8 %v3123
    %v3492 = vunpack.c.2.s8 %v3124
    %v3493 = vunpack.c.2.s8 %v3125
    %v3494 = vunpack.c.2.s8 %v3126
    %v3495 = vunpack.c.2.s8 %v3127
    %v3496 = vunpack.c.2.s8 %v3128
    %v3497 = vunpack.c.2.s8 %v3129
    %v3498 = vunpack.c.3.s8 %v3122
    %v3499 = vunpack.c.3.s8 %v3123
    %v3500 = vunpack.c.3.s8 %v3124
    %v3501 = vunpack.c.3.s8 %v3125
    %v3502 = vunpack.c.3.s8 %v3126
    %v3503 = vunpack.c.3.s8 %v3127
    %v3504 = vunpack.c.3.s8 %v3128
    %v3505 = vunpack.c.3.s8 %v3129
    %v3506 = vunpack.c.0.s8 %v3130
    %v3507 = vunpack.c.0.s8 %v3131
    %v3508 = vunpack.c.0.s8 %v3132
    %v3509 = vunpack.c.0.s8 %v3133
    %v3510 = vunpack.c.0.s8 %v3134
    %v3511 = vunpack.c.0.s8 %v3135
    %v3512 = vunpack.c.0.s8 %v3136
    %v3513 = vunpack.c.0.s8 %v3137
    %v3514 = vunpack.c.1.s8 %v3130
    %v3515 = vunpack.c.1.s8 %v3131
    %v3516 = vunpack.c.1.s8 %v3132
    %v3517 = vunpack.c.1.s8 %v3133
    %v3518 = vunpack.c.1.s8 %v3134
    %v3519 = vunpack.c.1.s8 %v3135
    %v3520 = vunpack.c.1.s8 %v3136
    %v3521 = vunpack.c.1.s8 %v3137
    %v3522 = vunpack.c.2.s8 %v3130
    %v3523 = vunpack.c.2.s8 %v3131
    %v3524 = vunpack.c.2.s8 %v3132
    %v3525 = vunpack.c.2.s8 %v3133
    %v3526 = vunpack.c.2.s8 %v3134
    %v3527 = vunpack.c.2.s8 %v3135
    %v3528 = vunpack.c.2.s8 %v3136
    %v3529 = vunpack.c.2.s8 %v3137
    %v3530 = vunpack.c.3.s8 %v3130
    %v3531 = vunpack.c.3.s8 %v3131
    %v3532 = vunpack.c.3.s8 %v3132
    %v3533 = vunpack.c.3.s8 %v3133
    %v3534 = vunpack.c.3.s8 %v3134
    %v3535 = vunpack.c.3.s8 %v3135
    %v3536 = vunpack.c.3.s8 %v3136
    %v3537 = vunpack.c.3.s8 %v3137
    %v3538 = vunpack.c.0.s8 %v3138
    %v3539 = vunpack.c.0.s8 %v3139
    %v3540 = vunpack.c.0.s8 %v3140
    %v3541 = vunpack.c.0.s8 %v3141
    %v3542 = vunpack.c.0.s8 %v3142
    %v3543 = vunpack.c.0.s8 %v3143
    %v3544 = vunpack.c.0.s8 %v3144
    %v3545 = vunpack.c.0.s8 %v3145
    %v3546 = vunpack.c.1.s8 %v3138
    %v3547 = vunpack.c.1.s8 %v3139
    %v3548 = vunpack.c.1.s8 %v3140
    %v3549 = vunpack.c.1.s8 %v3141
    %v3550 = vunpack.c.1.s8 %v3142
    %v3551 = vunpack.c.1.s8 %v3143
    %v3552 = vunpack.c.1.s8 %v3144
    %v3553 = vunpack.c.1.s8 %v3145
    %v3554 = vunpack.c.2.s8 %v3138
    %v3555 = vunpack.c.2.s8 %v3139
    %v3556 = vunpack.c.2.s8 %v3140
    %v3557 = vunpack.c.2.s8 %v3141
    %v3558 = vunpack.c.2.s8 %v3142
    %v3559 = vunpack.c.2.s8 %v3143
    %v3560 = vunpack.c.2.s8 %v3144
    %v3561 = vunpack.c.2.s8 %v3145
    %v3562 = vunpack.c.3.s8 %v3138
    %v3563 = vunpack.c.3.s8 %v3139
    %v3564 = vunpack.c.3.s8 %v3140
    %v3565 = vunpack.c.3.s8 %v3141
    %v3566 = vunpack.c.3.s8 %v3142
    %v3567 = vunpack.c.3.s8 %v3143
    %v3568 = vunpack.c.3.s8 %v3144
    %v3569 = vunpack.c.3.s8 %v3145
    %v3570 = vunpack.c.0.s8 %v3146
    %v3571 = vunpack.c.0.s8 %v3147
    %v3572 = vunpack.c.0.s8 %v3148
    %v3573 = vunpack.c.0.s8 %v3149
    %v3574 = vunpack.c.0.s8 %v3150
    %v3575 = vunpack.c.0.s8 %v3151
    %v3576 = vunpack.c.0.s8 %v3152
    %v3577 = vunpack.c.0.s8 %v3153
    %v3578 = vunpack.c.1.s8 %v3146
    %v3579 = vunpack.c.1.s8 %v3147
    %v3580 = vunpack.c.1.s8 %v3148
    %v3581 = vunpack.c.1.s8 %v3149
    %v3582 = vunpack.c.1.s8 %v3150
    %v3583 = vunpack.c.1.s8 %v3151
    %v3584 = vunpack.c.1.s8 %v3152
    %v3585 = vunpack.c.1.s8 %v3153
    %v3586 = vunpack.c.2.s8 %v3146
    %v3587 = vunpack.c.2.s8 %v3147
    %v3588 = vunpack.c.2.s8 %v3148
    %v3589 = vunpack.c.2.s8 %v3149
    %v3590 = vunpack.c.2.s8 %v3150
    %v3591 = vunpack.c.2.s8 %v3151
    %v3592 = vunpack.c.2.s8 %v3152
    %v3593 = vunpack.c.2.s8 %v3153
    %v3594 = vunpack.c.3.s8 %v3146
    %v3595 = vunpack.c.3.s8 %v3147
    %v3596 = vunpack.c.3.s8 %v3148
    %v3597 = vunpack.c.3.s8 %v3149
    %v3598 = vunpack.c.3.s8 %v3150
    %v3599 = vunpack.c.3.s8 %v3151
    %v3600 = vunpack.c.3.s8 %v3152
    %v3601 = vunpack.c.3.s8 %v3153
    %v3602 = vunpack.c.0.s8 %v3154
    %v3603 = vunpack.c.0.s8 %v3155
    %v3604 = vunpack.c.0.s8 %v3156
    %v3605 = vunpack.c.0.s8 %v3157
    %v3606 = vunpack.c.0.s8 %v3158
    %v3607 = vunpack.c.0.s8 %v3159
    %v3608 = vunpack.c.0.s8 %v3160
    %v3609 = vunpack.c.0.s8 %v3161
    %v3610 = vunpack.c.1.s8 %v3154
    %v3611 = vunpack.c.1.s8 %v3155
    %v3612 = vunpack.c.1.s8 %v3156
    %v3613 = vunpack.c.1.s8 %v3157
    %v3614 = vunpack.c.1.s8 %v3158
    %v3615 = vunpack.c.1.s8 %v3159
    %v3616 = vunpack.c.1.s8 %v3160
    %v3617 = vunpack.c.1.s8 %v3161
    %v3618 = vunpack.c.2.s8 %v3154
    %v3619 = vunpack.c.2.s8 %v3155
    %v3620 = vunpack.c.2.s8 %v3156
    %v3621 = vunpack.c.2.s8 %v3157
    %v3622 = vunpack.c.2.s8 %v3158
    %v3623 = vunpack.c.2.s8 %v3159
    %v3624 = vunpack.c.2.s8 %v3160
    %v3625 = vunpack.c.2.s8 %v3161
    %v3626 = vunpack.c.3.s8 %v3154
    %v3627 = vunpack.c.3.s8 %v3155
    %v3628 = vunpack.c.3.s8 %v3156
    %v3629 = vunpack.c.3.s8 %v3157
    %v3630 = vunpack.c.3.s8 %v3158
    %v3631 = vunpack.c.3.s8 %v3159
    %v3632 = vunpack.c.3.s8 %v3160
    %v3633 = vunpack.c.3.s8 %v3161
    %v3634 = vunpack.c.0.s8 %v3162
    %v3635 = vunpack.c.0.s8 %v3163
    %v3636 = vunpack.c.0.s8 %v3164
    %v3637 = vunpack.c.0.s8 %v3165
    %v3638 = vunpack.c.0.s8 %v3166
    %v3639 = vunpack.c.0.s8 %v3167
    %v3640 = vunpack.c.0.s8 %v3168
    %v3641 = vunpack.c.0.s8 %v3169
    %v3642 = vunpack.c.1.s8 %v3162
    %v3643 = vunpack.c.1.s8 %v3163
    %v3644 = vunpack.c.1.s8 %v3164
    %v3645 = vunpack.c.1.s8 %v3165
    %v3646 = vunpack.c.1.s8 %v3166
    %v3647 = vunpack.c.1.s8 %v3167
    %v3648 = vunpack.c.1.s8 %v3168
    %v3649 = vunpack.c.1.s8 %v3169
    %v3650 = vunpack.c.2.s8 %v3162
    %v3651 = vunpack.c.2.s8 %v3163
    %v3652 = vunpack.c.2.s8 %v3164
    %v3653 = vunpack.c.2.s8 %v3165
    %v3654 = vunpack.c.2.s8 %v3166
    %v3655 = vunpack.c.2.s8 %v3167
    %v3656 = vunpack.c.2.s8 %v3168
    %v3657 = vunpack.c.2.s8 %v3169
    %v3658 = vunpack.c.3.s8 %v3162
    %v3659 = vunpack.c.3.s8 %v3163
    %v3660 = vunpack.c.3.s8 %v3164
    %v3661 = vunpack.c.3.s8 %v3165
    %v3662 = vunpack.c.3.s8 %v3166
    %v3663 = vunpack.c.3.s8 %v3167
    %v3664 = vunpack.c.3.s8 %v3168
    %v3665 = vunpack.c.3.s8 %v3169
    %v3666 = vunpack.c.0.s8 %v3170
    %v3667 = vunpack.c.0.s8 %v3171
    %v3668 = vunpack.c.0.s8 %v3172
    %v3669 = vunpack.c.0.s8 %v3173
    %v3670 = vunpack.c.0.s8 %v3174
    %v3671 = vunpack.c.0.s8 %v3175
    %v3672 = vunpack.c.0.s8 %v3176
    %v3673 = vunpack.c.0.s8 %v3177
    %v3674 = vunpack.c.1.s8 %v3170
    %v3675 = vunpack.c.1.s8 %v3171
    %v3676 = vunpack.c.1.s8 %v3172
    %v3677 = vunpack.c.1.s8 %v3173
    %v3678 = vunpack.c.1.s8 %v3174
    %v3679 = vunpack.c.1.s8 %v3175
    %v3680 = vunpack.c.1.s8 %v3176
    %v3681 = vunpack.c.1.s8 %v3177
    %v3682 = vunpack.c.2.s8 %v3170
    %v3683 = vunpack.c.2.s8 %v3171
    %v3684 = vunpack.c.2.s8 %v3172
    %v3685 = vunpack.c.2.s8 %v3173
    %v3686 = vunpack.c.2.s8 %v3174
    %v3687 = vunpack.c.2.s8 %v3175
    %v3688 = vunpack.c.2.s8 %v3176
    %v3689 = vunpack.c.2.s8 %v3177
    %v3690 = vunpack.c.3.s8 %v3170
    %v3691 = vunpack.c.3.s8 %v3171
    %v3692 = vunpack.c.3.s8 %v3172
    %v3693 = vunpack.c.3.s8 %v3173
    %v3694 = vunpack.c.3.s8 %v3174
    %v3695 = vunpack.c.3.s8 %v3175
    %v3696 = vunpack.c.3.s8 %v3176
    %v3697 = vunpack.c.3.s8 %v3177
    %v3698 = vunpack.c.0.s8 %v3178
    %v3699 = vunpack.c.0.s8 %v3179
    %v3700 = vunpack.c.0.s8 %v3180
    %v3701 = vunpack.c.0.s8 %v3181
    %v3702 = vunpack.c.0.s8 %v3182
    %v3703 = vunpack.c.0.s8 %v3183
    %v3704 = vunpack.c.0.s8 %v3184
    %v3705 = vunpack.c.0.s8 %v3185
    %v3706 = vunpack.c.1.s8 %v3178
    %v3707 = vunpack.c.1.s8 %v3179
    %v3708 = vunpack.c.1.s8 %v3180
    %v3709 = vunpack.c.1.s8 %v3181
    %v3710 = vunpack.c.1.s8 %v3182
    %v3711 = vunpack.c.1.s8 %v3183
    %v3712 = vunpack.c.1.s8 %v3184
    %v3713 = vunpack.c.1.s8 %v3185
    %v3714 = vunpack.c.2.s8 %v3178
    %v3715 = vunpack.c.2.s8 %v3179
    %v3716 = vunpack.c.2.s8 %v3180
    %v3717 = vunpack.c.2.s8 %v3181
    %v3718 = vunpack.c.2.s8 %v3182
    %v3719 = vunpack.c.2.s8 %v3183
    %v3720 = vunpack.c.2.s8 %v3184
    %v3721 = vunpack.c.2.s8 %v3185
    %v3722 = vunpack.c.3.s8 %v3178
    %v3723 = vunpack.c.3.s8 %v3179
    %v3724 = vunpack.c.3.s8 %v3180
    %v3725 = vunpack.c.3.s8 %v3181
    %v3726 = vunpack.c.3.s8 %v3182
    %v3727 = vunpack.c.3.s8 %v3183
    %v3728 = vunpack.c.3.s8 %v3184
    %v3729 = vunpack.c.3.s8 %v3185
    %v3730 = vunpack.c.0.s8 %v3186
    %v3731 = vunpack.c.0.s8 %v3187
    %v3732 = vunpack.c.0.s8 %v3188
    %v3733 = vunpack.c.0.s8 %v3189
    %v3734 = vunpack.c.0.s8 %v3190
    %v3735 = vunpack.c.0.s8 %v3191
    %v3736 = vunpack.c.0.s8 %v3192
    %v3737 = vunpack.c.0.s8 %v3193
    %v3738 = vunpack.c.1.s8 %v3186
    %v3739 = vunpack.c.1.s8 %v3187
    %v3740 = vunpack.c.1.s8 %v3188
    %v3741 = vunpack.c.1.s8 %v3189
    %v3742 = vunpack.c.1.s8 %v3190
    %v3743 = vunpack.c.1.s8 %v3191
    %v3744 = vunpack.c.1.s8 %v3192
    %v3745 = vunpack.c.1.s8 %v3193
    %v3746 = vunpack.c.2.s8 %v3186
    %v3747 = vunpack.c.2.s8 %v3187
    %v3748 = vunpack.c.2.s8 %v3188
    %v3749 = vunpack.c.2.s8 %v3189
    %v3750 = vunpack.c.2.s8 %v3190
    %v3751 = vunpack.c.2.s8 %v3191
    %v3752 = vunpack.c.2.s8 %v3192
    %v3753 = vunpack.c.2.s8 %v3193
    %v3754 = vunpack.c.3.s8 %v3186
    %v3755 = vunpack.c.3.s8 %v3187
    %v3756 = vunpack.c.3.s8 %v3188
    %v3757 = vunpack.c.3.s8 %v3189
    %v3758 = vunpack.c.3.s8 %v3190
    %v3759 = vunpack.c.3.s8 %v3191
    %v3760 = vunpack.c.3.s8 %v3192
    %v3761 = vunpack.c.3.s8 %v3193
    %v3762 = vunpack.c.0.s8 %v3194
    %v3763 = vunpack.c.0.s8 %v3195
    %v3764 = vunpack.c.0.s8 %v3196
    %v3765 = vunpack.c.0.s8 %v3197
    %v3766 = vunpack.c.0.s8 %v3198
    %v3767 = vunpack.c.0.s8 %v3199
    %v3768 = vunpack.c.0.s8 %v3200
    %v3769 = vunpack.c.0.s8 %v3201
    %v3770 = vunpack.c.1.s8 %v3194
    %v3771 = vunpack.c.1.s8 %v3195
    %v3772 = vunpack.c.1.s8 %v3196
    %v3773 = vunpack.c.1.s8 %v3197
    %v3774 = vunpack.c.1.s8 %v3198
    %v3775 = vunpack.c.1.s8 %v3199
    %v3776 = vunpack.c.1.s8 %v3200
    %v3777 = vunpack.c.1.s8 %v3201
    %v3778 = vunpack.c.2.s8 %v3194
    %v3779 = vunpack.c.2.s8 %v3195
    %v3780 = vunpack.c.2.s8 %v3196
    %v3781 = vunpack.c.2.s8 %v3197
    %v3782 = vunpack.c.2.s8 %v3198
    %v3783 = vunpack.c.2.s8 %v3199
    %v3784 = vunpack.c.2.s8 %v3200
    %v3785 = vunpack.c.2.s8 %v3201
    %v3786 = vunpack.c.3.s8 %v3194
    %v3787 = vunpack.c.3.s8 %v3195
    %v3788 = vunpack.c.3.s8 %v3196
    %v3789 = vunpack.c.3.s8 %v3197
    %v3790 = vunpack.c.3.s8 %v3198
    %v3791 = vunpack.c.3.s8 %v3199
    %v3792 = vunpack.c.3.s8 %v3200
    %v3793 = vunpack.c.3.s8 %v3201
    %v3794 = vunpack.c.0.s8 %v3202
    %v3795 = vunpack.c.0.s8 %v3203
    %v3796 = vunpack.c.0.s8 %v3204
    %v3797 = vunpack.c.0.s8 %v3205
    %v3798 = vunpack.c.0.s8 %v3206
    %v3799 = vunpack.c.0.s8 %v3207
    %v3800 = vunpack.c.0.s8 %v3208
    %v3801 = vunpack.c.0.s8 %v3209
    %v3802 = vunpack.c.1.s8 %v3202
    %v3803 = vunpack.c.1.s8 %v3203
    %v3804 = vunpack.c.1.s8 %v3204
    %v3805 = vunpack.c.1.s8 %v3205
    %v3806 = vunpack.c.1.s8 %v3206
    %v3807 = vunpack.c.1.s8 %v3207
    %v3808 = vunpack.c.1.s8 %v3208
    %v3809 = vunpack.c.1.s8 %v3209
    %v3810 = vunpack.c.2.s8 %v3202
    %v3811 = vunpack.c.2.s8 %v3203
    %v3812 = vunpack.c.2.s8 %v3204
    %v3813 = vunpack.c.2.s8 %v3205
    %v3814 = vunpack.c.2.s8 %v3206
    %v3815 = vunpack.c.2.s8 %v3207
    %v3816 = vunpack.c.2.s8 %v3208
    %v3817 = vunpack.c.2.s8 %v3209
    %v3818 = vunpack.c.3.s8 %v3202
    %v3819 = vunpack.c.3.s8 %v3203
    %v3820 = vunpack.c.3.s8 %v3204
    %v3821 = vunpack.c.3.s8 %v3205
    %v3822 = vunpack.c.3.s8 %v3206
    %v3823 = vunpack.c.3.s8 %v3207
    %v3824 = vunpack.c.3.s8 %v3208
    %v3825 = vunpack.c.3.s8 %v3209
    %v3826 = vunpack.c.0.s8 %v3210
    %v3827 = vunpack.c.0.s8 %v3211
    %v3828 = vunpack.c.0.s8 %v3212
    %v3829 = vunpack.c.0.s8 %v3213
    %v3830 = vunpack.c.0.s8 %v3214
    %v3831 = vunpack.c.0.s8 %v3215
    %v3832 = vunpack.c.0.s8 %v3216
    %v3833 = vunpack.c.0.s8 %v3217
    %v3834 = vunpack.c.1.s8 %v3210
    %v3835 = vunpack.c.1.s8 %v3211
    %v3836 = vunpack.c.1.s8 %v3212
    %v3837 = vunpack.c.1.s8 %v3213
    %v3838 = vunpack.c.1.s8 %v3214
    %v3839 = vunpack.c.1.s8 %v3215
    %v3840 = vunpack.c.1.s8 %v3216
    %v3841 = vunpack.c.1.s8 %v3217
    %v3842 = vunpack.c.2.s8 %v3210
    %v3843 = vunpack.c.2.s8 %v3211
    %v3844 = vunpack.c.2.s8 %v3212
    %v3845 = vunpack.c.2.s8 %v3213
    %v3846 = vunpack.c.2.s8 %v3214
    %v3847 = vunpack.c.2.s8 %v3215
    %v3848 = vunpack.c.2.s8 %v3216
    %v3849 = vunpack.c.2.s8 %v3217
    %v3850 = vunpack.c.3.s8 %v3210
    %v3851 = vunpack.c.3.s8 %v3211
    %v3852 = vunpack.c.3.s8 %v3212
    %v3853 = vunpack.c.3.s8 %v3213
    %v3854 = vunpack.c.3.s8 %v3214
    %v3855 = vunpack.c.3.s8 %v3215
    %v3856 = vunpack.c.3.s8 %v3216
    %v3857 = vunpack.c.3.s8 %v3217
    %v3858 = vunpack.c.0.s8 %v3218
    %v3859 = vunpack.c.0.s8 %v3219
    %v3860 = vunpack.c.0.s8 %v3220
    %v3861 = vunpack.c.0.s8 %v3221
    %v3862 = vunpack.c.0.s8 %v3222
    %v3863 = vunpack.c.0.s8 %v3223
    %v3864 = vunpack.c.0.s8 %v3224
    %v3865 = vunpack.c.0.s8 %v3225
    %v3866 = vunpack.c.1.s8 %v3218
    %v3867 = vunpack.c.1.s8 %v3219
    %v3868 = vunpack.c.1.s8 %v3220
    %v3869 = vunpack.c.1.s8 %v3221
    %v3870 = vunpack.c.1.s8 %v3222
    %v3871 = vunpack.c.1.s8 %v3223
    %v3872 = vunpack.c.1.s8 %v3224
    %v3873 = vunpack.c.1.s8 %v3225
    %v3874 = vunpack.c.2.s8 %v3218
    %v3875 = vunpack.c.2.s8 %v3219
    %v3876 = vunpack.c.2.s8 %v3220
    %v3877 = vunpack.c.2.s8 %v3221
    %v3878 = vunpack.c.2.s8 %v3222
    %v3879 = vunpack.c.2.s8 %v3223
    %v3880 = vunpack.c.2.s8 %v3224
    %v3881 = vunpack.c.2.s8 %v3225
    %v3882 = vunpack.c.3.s8 %v3218
    %v3883 = vunpack.c.3.s8 %v3219
    %v3884 = vunpack.c.3.s8 %v3220
    %v3885 = vunpack.c.3.s8 %v3221
    %v3886 = vunpack.c.3.s8 %v3222
    %v3887 = vunpack.c.3.s8 %v3223
    %v3888 = vunpack.c.3.s8 %v3224
    %v3889 = vunpack.c.3.s8 %v3225
    %v3890 = vunpack.c.0.s8 %v3226
    %v3891 = vunpack.c.0.s8 %v3227
    %v3892 = vunpack.c.0.s8 %v3228
    %v3893 = vunpack.c.0.s8 %v3229
    %v3894 = vunpack.c.0.s8 %v3230
    %v3895 = vunpack.c.0.s8 %v3231
    %v3896 = vunpack.c.0.s8 %v3232
    %v3897 = vunpack.c.0.s8 %v3233
    %v3898 = vunpack.c.1.s8 %v3226
    %v3899 = vunpack.c.1.s8 %v3227
    %v3900 = vunpack.c.1.s8 %v3228
    %v3901 = vunpack.c.1.s8 %v3229
    %v3902 = vunpack.c.1.s8 %v3230
    %v3903 = vunpack.c.1.s8 %v3231
    %v3904 = vunpack.c.1.s8 %v3232
    %v3905 = vunpack.c.1.s8 %v3233
    %v3906 = vunpack.c.2.s8 %v3226
    %v3907 = vunpack.c.2.s8 %v3227
    %v3908 = vunpack.c.2.s8 %v3228
    %v3909 = vunpack.c.2.s8 %v3229
    %v3910 = vunpack.c.2.s8 %v3230
    %v3911 = vunpack.c.2.s8 %v3231
    %v3912 = vunpack.c.2.s8 %v3232
    %v3913 = vunpack.c.2.s8 %v3233
    %v3914 = vunpack.c.3.s8 %v3226
    %v3915 = vunpack.c.3.s8 %v3227
    %v3916 = vunpack.c.3.s8 %v3228
    %v3917 = vunpack.c.3.s8 %v3229
    %v3918 = vunpack.c.3.s8 %v3230
    %v3919 = vunpack.c.3.s8 %v3231
    %v3920 = vunpack.c.3.s8 %v3232
    %v3921 = vunpack.c.3.s8 %v3233
    %v3922 = vunpack.c.0.s8 %v3234
    %v3923 = vunpack.c.0.s8 %v3235
    %v3924 = vunpack.c.0.s8 %v3236
    %v3925 = vunpack.c.0.s8 %v3237
    %v3926 = vunpack.c.0.s8 %v3238
    %v3927 = vunpack.c.0.s8 %v3239
    %v3928 = vunpack.c.0.s8 %v3240
    %v3929 = vunpack.c.0.s8 %v3241
    %v3930 = vunpack.c.1.s8 %v3234
    %v3931 = vunpack.c.1.s8 %v3235
    %v3932 = vunpack.c.1.s8 %v3236
    %v3933 = vunpack.c.1.s8 %v3237
    %v3934 = vunpack.c.1.s8 %v3238
    %v3935 = vunpack.c.1.s8 %v3239
    %v3936 = vunpack.c.1.s8 %v3240
    %v3937 = vunpack.c.1.s8 %v3241
    %v3938 = vunpack.c.2.s8 %v3234
    %v3939 = vunpack.c.2.s8 %v3235
    %v3940 = vunpack.c.2.s8 %v3236
    %v3941 = vunpack.c.2.s8 %v3237
    %v3942 = vunpack.c.2.s8 %v3238
    %v3943 = vunpack.c.2.s8 %v3239
    %v3944 = vunpack.c.2.s8 %v3240
    %v3945 = vunpack.c.2.s8 %v3241
    %v3946 = vunpack.c.3.s8 %v3234
    %v3947 = vunpack.c.3.s8 %v3235
    %v3948 = vunpack.c.3.s8 %v3236
    %v3949 = vunpack.c.3.s8 %v3237
    %v3950 = vunpack.c.3.s8 %v3238
    %v3951 = vunpack.c.3.s8 %v3239
    %v3952 = vunpack.c.3.s8 %v3240
    %v3953 = vunpack.c.3.s8 %v3241
    %v3954 = vunpack.c.0.s8 %v3242
    %v3955 = vunpack.c.0.s8 %v3243
    %v3956 = vunpack.c.0.s8 %v3244
    %v3957 = vunpack.c.0.s8 %v3245
    %v3958 = vunpack.c.0.s8 %v3246
    %v3959 = vunpack.c.0.s8 %v3247
    %v3960 = vunpack.c.0.s8 %v3248
    %v3961 = vunpack.c.0.s8 %v3249
    %v3962 = vunpack.c.1.s8 %v3242
    %v3963 = vunpack.c.1.s8 %v3243
    %v3964 = vunpack.c.1.s8 %v3244
    %v3965 = vunpack.c.1.s8 %v3245
    %v3966 = vunpack.c.1.s8 %v3246
    %v3967 = vunpack.c.1.s8 %v3247
    %v3968 = vunpack.c.1.s8 %v3248
    %v3969 = vunpack.c.1.s8 %v3249
    %v3970 = vunpack.c.2.s8 %v3242
    %v3971 = vunpack.c.2.s8 %v3243
    %v3972 = vunpack.c.2.s8 %v3244
    %v3973 = vunpack.c.2.s8 %v3245
    %v3974 = vunpack.c.2.s8 %v3246
    %v3975 = vunpack.c.2.s8 %v3247
    %v3976 = vunpack.c.2.s8 %v3248
    %v3977 = vunpack.c.2.s8 %v3249
    %v3978 = vunpack.c.3.s8 %v3242
    %v3979 = vunpack.c.3.s8 %v3243
    %v3980 = vunpack.c.3.s8 %v3244
    %v3981 = vunpack.c.3.s8 %v3245
    %v3982 = vunpack.c.3.s8 %v3246
    %v3983 = vunpack.c.3.s8 %v3247
    %v3984 = vunpack.c.3.s8 %v3248
    %v3985 = vunpack.c.3.s8 %v3249
    %v3986 = vunpack.c.0.s8 %v3250
    %v3987 = vunpack.c.0.s8 %v3251
    %v3988 = vunpack.c.0.s8 %v3252
    %v3989 = vunpack.c.0.s8 %v3253
    %v3990 = vunpack.c.0.s8 %v3254
    %v3991 = vunpack.c.0.s8 %v3255
    %v3992 = vunpack.c.0.s8 %v3256
    %v3993 = vunpack.c.0.s8 %v3257
    %v3994 = vunpack.c.1.s8 %v3250
    %v3995 = vunpack.c.1.s8 %v3251
    %v3996 = vunpack.c.1.s8 %v3252
    %v3997 = vunpack.c.1.s8 %v3253
    %v3998 = vunpack.c.1.s8 %v3254
    %v3999 = vunpack.c.1.s8 %v3255
    %v4000 = vunpack.c.1.s8 %v3256
    %v4001 = vunpack.c.1.s8 %v3257
    %v4002 = vunpack.c.2.s8 %v3250
    %v4003 = vunpack.c.2.s8 %v3251
    %v4004 = vunpack.c.2.s8 %v3252
    %v4005 = vunpack.c.2.s8 %v3253
    %v4006 = vunpack.c.2.s8 %v3254
    %v4007 = vunpack.c.2.s8 %v3255
    %v4008 = vunpack.c.2.s8 %v3256
    %v4009 = vunpack.c.2.s8 %v3257
    %v4010 = vunpack.c.3.s8 %v3250
    %v4011 = vunpack.c.3.s8 %v3251
    %v4012 = vunpack.c.3.s8 %v3252
    %v4013 = vunpack.c.3.s8 %v3253
    %v4014 = vunpack.c.3.s8 %v3254
    %v4015 = vunpack.c.3.s8 %v3255
    %v4016 = vunpack.c.3.s8 %v3256
    %v4017 = vunpack.c.3.s8 %v3257
    %v4018 = vunpack.c.0.s8 %v3258
    %v4019 = vunpack.c.0.s8 %v3259
    %v4020 = vunpack.c.0.s8 %v3260
    %v4021 = vunpack.c.0.s8 %v3261
    %v4022 = vunpack.c.0.s8 %v3262
    %v4023 = vunpack.c.0.s8 %v3263
    %v4024 = vunpack.c.0.s8 %v3264
    %v4025 = vunpack.c.0.s8 %v3265
    %v4026 = vunpack.c.1.s8 %v3258
    %v4027 = vunpack.c.1.s8 %v3259
    %v4028 = vunpack.c.1.s8 %v3260
    %v4029 = vunpack.c.1.s8 %v3261
    %v4030 = vunpack.c.1.s8 %v3262
    %v4031 = vunpack.c.1.s8 %v3263
    %v4032 = vunpack.c.1.s8 %v3264
    %v4033 = vunpack.c.1.s8 %v3265
    %v4034 = vunpack.c.2.s8 %v3258
    %v4035 = vunpack.c.2.s8 %v3259
    %v4036 = vunpack.c.2.s8 %v3260
    %v4037 = vunpack.c.2.s8 %v3261
    %v4038 = vunpack.c.2.s8 %v3262
    %v4039 = vunpack.c.2.s8 %v3263
    %v4040 = vunpack.c.2.s8 %v3264
    %v4041 = vunpack.c.2.s8 %v3265
    %v4042 = vunpack.c.3.s8 %v3258
    %v4043 = vunpack.c.3.s8 %v3259
    %v4044 = vunpack.c.3.s8 %v3260
    %v4045 = vunpack.c.3.s8 %v3261
    %v4046 = vunpack.c.3.s8 %v3262
    %v4047 = vunpack.c.3.s8 %v3263
    %v4048 = vunpack.c.3.s8 %v3264
    %v4049 = vunpack.c.3.s8 %v3265
    %v4050 = vunpack.c.0.s8 %v3266
    %v4051 = vunpack.c.0.s8 %v3267
    %v4052 = vunpack.c.0.s8 %v3268
    %v4053 = vunpack.c.0.s8 %v3269
    %v4054 = vunpack.c.0.s8 %v3270
    %v4055 = vunpack.c.0.s8 %v3271
    %v4056 = vunpack.c.0.s8 %v3272
    %v4057 = vunpack.c.0.s8 %v3273
    %v4058 = vunpack.c.1.s8 %v3266
    %v4059 = vunpack.c.1.s8 %v3267
    %v4060 = vunpack.c.1.s8 %v3268
    %v4061 = vunpack.c.1.s8 %v3269
    %v4062 = vunpack.c.1.s8 %v3270
    %v4063 = vunpack.c.1.s8 %v3271
    %v4064 = vunpack.c.1.s8 %v3272
    %v4065 = vunpack.c.1.s8 %v3273
    %v4066 = vunpack.c.2.s8 %v3266
    %v4067 = vunpack.c.2.s8 %v3267
    %v4068 = vunpack.c.2.s8 %v3268
    %v4069 = vunpack.c.2.s8 %v3269
    %v4070 = vunpack.c.2.s8 %v3270
    %v4071 = vunpack.c.2.s8 %v3271
    %v4072 = vunpack.c.2.s8 %v3272
    %v4073 = vunpack.c.2.s8 %v3273
    %v4074 = vunpack.c.3.s8 %v3266
    %v4075 = vunpack.c.3.s8 %v3267
    %v4076 = vunpack.c.3.s8 %v3268
    %v4077 = vunpack.c.3.s8 %v3269
    %v4078 = vunpack.c.3.s8 %v3270
    %v4079 = vunpack.c.3.s8 %v3271
    %v4080 = vunpack.c.3.s8 %v3272
    %v4081 = vunpack.c.3.s8 %v3273
    %v4082 = vunpack.c.0.s8 %v3274
    %v4083 = vunpack.c.0.s8 %v3275
    %v4084 = vunpack.c.0.s8 %v3276
    %v4085 = vunpack.c.0.s8 %v3277
    %v4086 = vunpack.c.0.s8 %v3278
    %v4087 = vunpack.c.0.s8 %v3279
    %v4088 = vunpack.c.0.s8 %v3280
    %v4089 = vunpack.c.0.s8 %v3281
    %v4090 = vunpack.c.1.s8 %v3274
    %v4091 = vunpack.c.1.s8 %v3275
    %v4092 = vunpack.c.1.s8 %v3276
    %v4093 = vunpack.c.1.s8 %v3277
    %v4094 = vunpack.c.1.s8 %v3278
    %v4095 = vunpack.c.1.s8 %v3279
    %v4096 = vunpack.c.1.s8 %v3280
    %v4097 = vunpack.c.1.s8 %v3281
    %v4098 = vunpack.c.2.s8 %v3274
    %v4099 = vunpack.c.2.s8 %v3275
    %v4100 = vunpack.c.2.s8 %v3276
    %v4101 = vunpack.c.2.s8 %v3277
    %v4102 = vunpack.c.2.s8 %v3278
    %v4103 = vunpack.c.2.s8 %v3279
    %v4104 = vunpack.c.2.s8 %v3280
    %v4105 = vunpack.c.2.s8 %v3281
    %v4106 = vunpack.c.3.s8 %v3274
    %v4107 = vunpack.c.3.s8 %v3275
    %v4108 = vunpack.c.3.s8 %v3276
    %v4109 = vunpack.c.3.s8 %v3277
    %v4110 = vunpack.c.3.s8 %v3278
    %v4111 = vunpack.c.3.s8 %v3279
    %v4112 = vunpack.c.3.s8 %v3280
    %v4113 = vunpack.c.3.s8 %v3281
    %v4114 = vunpack.c.0.s8 %v3282
    %v4115 = vunpack.c.0.s8 %v3283
    %v4116 = vunpack.c.0.s8 %v3284
    %v4117 = vunpack.c.0.s8 %v3285
    %v4118 = vunpack.c.0.s8 %v3286
    %v4119 = vunpack.c.0.s8 %v3287
    %v4120 = vunpack.c.0.s8 %v3288
    %v4121 = vunpack.c.0.s8 %v3289
    %v4122 = vunpack.c.1.s8 %v3282
    %v4123 = vunpack.c.1.s8 %v3283
    %v4124 = vunpack.c.1.s8 %v3284
    %v4125 = vunpack.c.1.s8 %v3285
    %v4126 = vunpack.c.1.s8 %v3286
    %v4127 = vunpack.c.1.s8 %v3287
    %v4128 = vunpack.c.1.s8 %v3288
    %v4129 = vunpack.c.1.s8 %v3289
    %v4130 = vunpack.c.2.s8 %v3282
    %v4131 = vunpack.c.2.s8 %v3283
    %v4132 = vunpack.c.2.s8 %v3284
    %v4133 = vunpack.c.2.s8 %v3285
    %v4134 = vunpack.c.2.s8 %v3286
    %v4135 = vunpack.c.2.s8 %v3287
    %v4136 = vunpack.c.2.s8 %v3288
    %v4137 = vunpack.c.2.s8 %v3289
    %v4138 = vunpack.c.3.s8 %v3282
    %v4139 = vunpack.c.3.s8 %v3283
    %v4140 = vunpack.c.3.s8 %v3284
    %v4141 = vunpack.c.3.s8 %v3285
    %v4142 = vunpack.c.3.s8 %v3286
    %v4143 = vunpack.c.3.s8 %v3287
    %v4144 = vunpack.c.3.s8 %v3288
    %v4145 = vunpack.c.3.s8 %v3289
    %v4146 = vunpack.c.0.s8 %v3290
    %v4147 = vunpack.c.0.s8 %v3291
    %v4148 = vunpack.c.0.s8 %v3292
    %v4149 = vunpack.c.0.s8 %v3293
    %v4150 = vunpack.c.0.s8 %v3294
    %v4151 = vunpack.c.0.s8 %v3295
    %v4152 = vunpack.c.0.s8 %v3296
    %v4153 = vunpack.c.0.s8 %v3297
    %v4154 = vunpack.c.1.s8 %v3290
    %v4155 = vunpack.c.1.s8 %v3291
    %v4156 = vunpack.c.1.s8 %v3292
    %v4157 = vunpack.c.1.s8 %v3293
    %v4158 = vunpack.c.1.s8 %v3294
    %v4159 = vunpack.c.1.s8 %v3295
    %v4160 = vunpack.c.1.s8 %v3296
    %v4161 = vunpack.c.1.s8 %v3297
    %v4162 = vunpack.c.2.s8 %v3290
    %v4163 = vunpack.c.2.s8 %v3291
    %v4164 = vunpack.c.2.s8 %v3292
    %v4165 = vunpack.c.2.s8 %v3293
    %v4166 = vunpack.c.2.s8 %v3294
    %v4167 = vunpack.c.2.s8 %v3295
    %v4168 = vunpack.c.2.s8 %v3296
    %v4169 = vunpack.c.2.s8 %v3297
    %v4170 = vunpack.c.3.s8 %v3290
    %v4171 = vunpack.c.3.s8 %v3291
    %v4172 = vunpack.c.3.s8 %v3292
    %v4173 = vunpack.c.3.s8 %v3293
    %v4174 = vunpack.c.3.s8 %v3294
    %v4175 = vunpack.c.3.s8 %v3295
    %v4176 = vunpack.c.3.s8 %v3296
    %v4177 = vunpack.c.3.s8 %v3297
    %v4178 = vunpack.c.0.s8 %v3298
    %v4179 = vunpack.c.0.s8 %v3299
    %v4180 = vunpack.c.0.s8 %v3300
    %v4181 = vunpack.c.0.s8 %v3301
    %v4182 = vunpack.c.0.s8 %v3302
    %v4183 = vunpack.c.0.s8 %v3303
    %v4184 = vunpack.c.0.s8 %v3304
    %v4185 = vunpack.c.0.s8 %v3305
    %v4186 = vunpack.c.1.s8 %v3298
    %v4187 = vunpack.c.1.s8 %v3299
    %v4188 = vunpack.c.1.s8 %v3300
    %v4189 = vunpack.c.1.s8 %v3301
    %v4190 = vunpack.c.1.s8 %v3302
    %v4191 = vunpack.c.1.s8 %v3303
    %v4192 = vunpack.c.1.s8 %v3304
    %v4193 = vunpack.c.1.s8 %v3305
    %v4194 = vunpack.c.2.s8 %v3298
    %v4195 = vunpack.c.2.s8 %v3299
    %v4196 = vunpack.c.2.s8 %v3300
    %v4197 = vunpack.c.2.s8 %v3301
    %v4198 = vunpack.c.2.s8 %v3302
    %v4199 = vunpack.c.2.s8 %v3303
    %v4200 = vunpack.c.2.s8 %v3304
    %v4201 = vunpack.c.2.s8 %v3305
    %v4202 = vunpack.c.3.s8 %v3298
    %v4203 = vunpack.c.3.s8 %v3299
    %v4204 = vunpack.c.3.s8 %v3300
    %v4205 = vunpack.c.3.s8 %v3301
    %v4206 = vunpack.c.3.s8 %v3302
    %v4207 = vunpack.c.3.s8 %v3303
    %v4208 = vunpack.c.3.s8 %v3304
    %v4209 = vunpack.c.3.s8 %v3305
    %v4210 = vunpack.c.0.s8 %v3306
    %v4211 = vunpack.c.0.s8 %v3307
    %v4212 = vunpack.c.0.s8 %v3308
    %v4213 = vunpack.c.0.s8 %v3309
    %v4214 = vunpack.c.0.s8 %v3310
    %v4215 = vunpack.c.0.s8 %v3311
    %v4216 = vunpack.c.0.s8 %v3312
    %v4217 = vunpack.c.0.s8 %v3313
    %v4218 = vunpack.c.1.s8 %v3306
    %v4219 = vunpack.c.1.s8 %v3307
    %v4220 = vunpack.c.1.s8 %v3308
    %v4221 = vunpack.c.1.s8 %v3309
    %v4222 = vunpack.c.1.s8 %v3310
    %v4223 = vunpack.c.1.s8 %v3311
    %v4224 = vunpack.c.1.s8 %v3312
    %v4225 = vunpack.c.1.s8 %v3313
    %v4226 = vunpack.c.2.s8 %v3306
    %v4227 = vunpack.c.2.s8 %v3307
    %v4228 = vunpack.c.2.s8 %v3308
    %v4229 = vunpack.c.2.s8 %v3309
    %v4230 = vunpack.c.2.s8 %v3310
    %v4231 = vunpack.c.2.s8 %v3311
    %v4232 = vunpack.c.2.s8 %v3312
    %v4233 = vunpack.c.2.s8 %v3313
    %v4234 = vunpack.c.3.s8 %v3306
    %v4235 = vunpack.c.3.s8 %v3307
    %v4236 = vunpack.c.3.s8 %v3308
    %v4237 = vunpack.c.3.s8 %v3309
    %v4238 = vunpack.c.3.s8 %v3310
    %v4239 = vunpack.c.3.s8 %v3311
    %v4240 = vunpack.c.3.s8 %v3312
    %v4241 = vunpack.c.3.s8 %v3313
    %v4242 = vunpack.c.0.s8 %v3314
    %v4243 = vunpack.c.0.s8 %v3315
    %v4244 = vunpack.c.0.s8 %v3316
    %v4245 = vunpack.c.0.s8 %v3317
    %v4246 = vunpack.c.0.s8 %v3318
    %v4247 = vunpack.c.0.s8 %v3319
    %v4248 = vunpack.c.0.s8 %v3320
    %v4249 = vunpack.c.0.s8 %v3321
    %v4250 = vunpack.c.1.s8 %v3314
    %v4251 = vunpack.c.1.s8 %v3315
    %v4252 = vunpack.c.1.s8 %v3316
    %v4253 = vunpack.c.1.s8 %v3317
    %v4254 = vunpack.c.1.s8 %v3318
    %v4255 = vunpack.c.1.s8 %v3319
    %v4256 = vunpack.c.1.s8 %v3320
    %v4257 = vunpack.c.1.s8 %v3321
    %v4258 = vunpack.c.2.s8 %v3314
    %v4259 = vunpack.c.2.s8 %v3315
    %v4260 = vunpack.c.2.s8 %v3316
    %v4261 = vunpack.c.2.s8 %v3317
    %v4262 = vunpack.c.2.s8 %v3318
    %v4263 = vunpack.c.2.s8 %v3319
    %v4264 = vunpack.c.2.s8 %v3320
    %v4265 = vunpack.c.2.s8 %v3321
    %v4266 = vunpack.c.3.s8 %v3314
    %v4267 = vunpack.c.3.s8 %v3315
    %v4268 = vunpack.c.3.s8 %v3316
    %v4269 = vunpack.c.3.s8 %v3317
    %v4270 = vunpack.c.3.s8 %v3318
    %v4271 = vunpack.c.3.s8 %v3319
    %v4272 = vunpack.c.3.s8 %v3320
    %v4273 = vunpack.c.3.s8 %v3321
    %v4274 = vunpack.c.0.s8 %v3322
    %v4275 = vunpack.c.0.s8 %v3323
    %v4276 = vunpack.c.0.s8 %v3324
    %v4277 = vunpack.c.0.s8 %v3325
    %v4278 = vunpack.c.0.s8 %v3326
    %v4279 = vunpack.c.0.s8 %v3327
    %v4280 = vunpack.c.0.s8 %v3328
    %v4281 = vunpack.c.0.s8 %v3329
    %v4282 = vunpack.c.1.s8 %v3322
    %v4283 = vunpack.c.1.s8 %v3323
    %v4284 = vunpack.c.1.s8 %v3324
    %v4285 = vunpack.c.1.s8 %v3325
    %v4286 = vunpack.c.1.s8 %v3326
    %v4287 = vunpack.c.1.s8 %v3327
    %v4288 = vunpack.c.1.s8 %v3328
    %v4289 = vunpack.c.1.s8 %v3329
    %v4290 = vunpack.c.2.s8 %v3322
    %v4291 = vunpack.c.2.s8 %v3323
    %v4292 = vunpack.c.2.s8 %v3324
    %v4293 = vunpack.c.2.s8 %v3325
    %v4294 = vunpack.c.2.s8 %v3326
    %v4295 = vunpack.c.2.s8 %v3327
    %v4296 = vunpack.c.2.s8 %v3328
    %v4297 = vunpack.c.2.s8 %v3329
    %v4298 = vunpack.c.3.s8 %v3322
    %v4299 = vunpack.c.3.s8 %v3323
    %v4300 = vunpack.c.3.s8 %v3324
    %v4301 = vunpack.c.3.s8 %v3325
    %v4302 = vunpack.c.3.s8 %v3326
    %v4303 = vunpack.c.3.s8 %v3327
    %v4304 = vunpack.c.3.s8 %v3328
    %v4305 = vunpack.c.3.s8 %v3329
    %v4306 = vunpack.c.0.s8 %v3330
    %v4307 = vunpack.c.0.s8 %v3331
    %v4308 = vunpack.c.0.s8 %v3332
    %v4309 = vunpack.c.0.s8 %v3333
    %v4310 = vunpack.c.0.s8 %v3334
    %v4311 = vunpack.c.0.s8 %v3335
    %v4312 = vunpack.c.0.s8 %v3336
    %v4313 = vunpack.c.0.s8 %v3337
    %v4314 = vunpack.c.1.s8 %v3330
    %v4315 = vunpack.c.1.s8 %v3331
    %v4316 = vunpack.c.1.s8 %v3332
    %v4317 = vunpack.c.1.s8 %v3333
    %v4318 = vunpack.c.1.s8 %v3334
    %v4319 = vunpack.c.1.s8 %v3335
    %v4320 = vunpack.c.1.s8 %v3336
    %v4321 = vunpack.c.1.s8 %v3337
    %v4322 = vunpack.c.2.s8 %v3330
    %v4323 = vunpack.c.2.s8 %v3331
    %v4324 = vunpack.c.2.s8 %v3332
    %v4325 = vunpack.c.2.s8 %v3333
    %v4326 = vunpack.c.2.s8 %v3334
    %v4327 = vunpack.c.2.s8 %v3335
    %v4328 = vunpack.c.2.s8 %v3336
    %v4329 = vunpack.c.2.s8 %v3337
    %v4330 = vunpack.c.3.s8 %v3330
    %v4331 = vunpack.c.3.s8 %v3331
    %v4332 = vunpack.c.3.s8 %v3332
    %v4333 = vunpack.c.3.s8 %v3333
    %v4334 = vunpack.c.3.s8 %v3334
    %v4335 = vunpack.c.3.s8 %v3335
    %v4336 = vunpack.c.3.s8 %v3336
    %v4337 = vunpack.c.3.s8 %v3337
    %v4338 = vunpack.c.0.s8 %v3338
    %v4339 = vunpack.c.0.s8 %v3339
    %v4340 = vunpack.c.0.s8 %v3340
    %v4341 = vunpack.c.0.s8 %v3341
    %v4342 = vunpack.c.0.s8 %v3342
    %v4343 = vunpack.c.0.s8 %v3343
    %v4344 = vunpack.c.0.s8 %v3344
    %v4345 = vunpack.c.0.s8 %v3345
    %v4346 = vunpack.c.1.s8 %v3338
    %v4347 = vunpack.c.1.s8 %v3339
    %v4348 = vunpack.c.1.s8 %v3340
    %v4349 = vunpack.c.1.s8 %v3341
    %v4350 = vunpack.c.1.s8 %v3342
    %v4351 = vunpack.c.1.s8 %v3343
    %v4352 = vunpack.c.1.s8 %v3344
    %v4353 = vunpack.c.1.s8 %v3345
    %v4354 = vunpack.c.2.s8 %v3338
    %v4355 = vunpack.c.2.s8 %v3339
    %v4356 = vunpack.c.2.s8 %v3340
    %v4357 = vunpack.c.2.s8 %v3341
    %v4358 = vunpack.c.2.s8 %v3342
    %v4359 = vunpack.c.2.s8 %v3343
    %v4360 = vunpack.c.2.s8 %v3344
    %v4361 = vunpack.c.2.s8 %v3345
    %v4362 = vunpack.c.3.s8 %v3338
    %v4363 = vunpack.c.3.s8 %v3339
    %v4364 = vunpack.c.3.s8 %v3340
    %v4365 = vunpack.c.3.s8 %v3341
    %v4366 = vunpack.c.3.s8 %v3342
    %v4367 = vunpack.c.3.s8 %v3343
    %v4368 = vunpack.c.3.s8 %v3344
    %v4369 = vunpack.c.3.s8 %v3345
    %v4370 = vcvt.s32.f32 %v3346
    %v4371 = vcvt.s32.f32 %v3347
    %v4372 = vcvt.s32.f32 %v3348
    %v4373 = vcvt.s32.f32 %v3349
    %v4374 = vcvt.s32.f32 %v3350
    %v4375 = vcvt.s32.f32 %v3351
    %v4376 = vcvt.s32.f32 %v3352
    %v4377 = vcvt.s32.f32 %v3353
    %v4378 = vcvt.s32.f32 %v3354
    %v4379 = vcvt.s32.f32 %v3355
    %v4380 = vcvt.s32.f32 %v3356
    %v4381 = vcvt.s32.f32 %v3357
    %v4382 = vcvt.s32.f32 %v3358
    %v4383 = vcvt.s32.f32 %v3359
    %v4384 = vcvt.s32.f32 %v3360
    %v4385 = vcvt.s32.f32 %v3361
    %v4386 = vcvt.s32.f32 %v3362
    %v4387 = vcvt.s32.f32 %v3363
    %v4388 = vcvt.s32.f32 %v3364
    %v4389 = vcvt.s32.f32 %v3365
    %v4390 = vcvt.s32.f32 %v3366
    %v4391 = vcvt.s32.f32 %v3367
    %v4392 = vcvt.s32.f32 %v3368
    %v4393 = vcvt.s32.f32 %v3369
    %v4394 = vcvt.s32.f32 %v3370
    %v4395 = vcvt.s32.f32 %v3371
    %v4396 = vcvt.s32.f32 %v3372
    %v4397 = vcvt.s32.f32 %v3373
    %v4398 = vcvt.s32.f32 %v3374
    %v4399 = vcvt.s32.f32 %v3375
    %v4400 = vcvt.s32.f32 %v3376
    %v4401 = vcvt.s32.f32 %v3377
    %v4402 = vcvt.s32.f32 %v3378
    %v4403 = vcvt.s32.f32 %v3379
    %v4404 = vcvt.s32.f32 %v3380
    %v4405 = vcvt.s32.f32 %v3381
    %v4406 = vcvt.s32.f32 %v3382
    %v4407 = vcvt.s32.f32 %v3383
    %v4408 = vcvt.s32.f32 %v3384
    %v4409 = vcvt.s32.f32 %v3385
    %v4410 = vcvt.s32.f32 %v3386
    %v4411 = vcvt.s32.f32 %v3387
    %v4412 = vcvt.s32.f32 %v3388
    %v4413 = vcvt.s32.f32 %v3389
    %v4414 = vcvt.s32.f32 %v3390
    %v4415 = vcvt.s32.f32 %v3391
    %v4416 = vcvt.s32.f32 %v3392
    %v4417 = vcvt.s32.f32 %v3393
    %v4418 = vcvt.s32.f32 %v3394
    %v4419 = vcvt.s32.f32 %v3395
    %v4420 = vcvt.s32.f32 %v3396
    %v4421 = vcvt.s32.f32 %v3397
    %v4422 = vcvt.s32.f32 %v3398
    %v4423 = vcvt.s32.f32 %v3399
    %v4424 = vcvt.s32.f32 %v3400
    %v4425 = vcvt.s32.f32 %v3401
    %v4426 = vcvt.s32.f32 %v3402
    %v4427 = vcvt.s32.f32 %v3403
    %v4428 = vcvt.s32.f32 %v3404
    %v4429 = vcvt.s32.f32 %v3405
    %v4430 = vcvt.s32.f32 %v3406
    %v4431 = vcvt.s32.f32 %v3407
    %v4432 = vcvt.s32.f32 %v3408
    %v4433 = vcvt.s32.f32 %v3409
    %v4434 = vcvt.s32.f32 %v3410
    %v4435 = vcvt.s32.f32 %v3411
    %v4436 = vcvt.s32.f32 %v3412
    %v4437 = vcvt.s32.f32 %v3413
    %v4438 = vcvt.s32.f32 %v3414
    %v4439 = vcvt.s32.f32 %v3415
    %v4440 = vcvt.s32.f32 %v3416
    %v4441 = vcvt.s32.f32 %v3417
    %v4442 = vcvt.s32.f32 %v3418
    %v4443 = vcvt.s32.f32 %v3419
    %v4444 = vcvt.s32.f32 %v3420
    %v4445 = vcvt.s32.f32 %v3421
    %v4446 = vcvt.s32.f32 %v3422
    %v4447 = vcvt.s32.f32 %v3423
    %v4448 = vcvt.s32.f32 %v3424
    %v4449 = vcvt.s32.f32 %v3425
    %v4450 = vcvt.s32.f32 %v3426
    %v4451 = vcvt.s32.f32 %v3427
    %v4452 = vcvt.s32.f32 %v3428
    %v4453 = vcvt.s32.f32 %v3429
    %v4454 = vcvt.s32.f32 %v3430
    %v4455 = vcvt.s32.f32 %v3431
    %v4456 = vcvt.s32.f32 %v3432
    %v4457 = vcvt.s32.f32 %v3433
    %v4458 = vcvt.s32.f32 %v3434
    %v4459 = vcvt.s32.f32 %v3435
    %v4460 = vcvt.s32.f32 %v3436
    %v4461 = vcvt.s32.f32 %v3437
    %v4462 = vcvt.s32.f32 %v3438
    %v4463 = vcvt.s32.f32 %v3439
    %v4464 = vcvt.s32.f32 %v3440
    %v4465 = vcvt.s32.f32 %v3441
    %v4466 = vcvt.s32.f32 %v3442
    %v4467 = vcvt.s32.f32 %v3443
    %v4468 = vcvt.s32.f32 %v3444
    %v4469 = vcvt.s32.f32 %v3445
    %v4470 = vcvt.s32.f32 %v3446
    %v4471 = vcvt.s32.f32 %v3447
    %v4472 = vcvt.s32.f32 %v3448
    %v4473 = vcvt.s32.f32 %v3449
    %v4474 = vcvt.s32.f32 %v3450
    %v4475 = vcvt.s32.f32 %v3451
    %v4476 = vcvt.s32.f32 %v3452
    %v4477 = vcvt.s32.f32 %v3453
    %v4478 = vcvt.s32.f32 %v3454
    %v4479 = vcvt.s32.f32 %v3455
    %v4480 = vcvt.s32.f32 %v3456
    %v4481 = vcvt.s32.f32 %v3457
    %v4482 = vcvt.s32.f32 %v3458
    %v4483 = vcvt.s32.f32 %v3459
    %v4484 = vcvt.s32.f32 %v3460
    %v4485 = vcvt.s32.f32 %v3461
    %v4486 = vcvt.s32.f32 %v3462
    %v4487 = vcvt.s32.f32 %v3463
    %v4488 = vcvt.s32.f32 %v3464
    %v4489 = vcvt.s32.f32 %v3465
    %v4490 = vcvt.s32.f32 %v3466
    %v4491 = vcvt.s32.f32 %v3467
    %v4492 = vcvt.s32.f32 %v3468
    %v4493 = vcvt.s32.f32 %v3469
    %v4494 = vcvt.s32.f32 %v3470
    %v4495 = vcvt.s32.f32 %v3471
    %v4496 = vcvt.s32.f32 %v3472
    %v4497 = vcvt.s32.f32 %v3473
    %v4498 = vcvt.s32.f32 %v3474
    %v4499 = vcvt.s32.f32 %v3475
    %v4500 = vcvt.s32.f32 %v3476
    %v4501 = vcvt.s32.f32 %v3477
    %v4502 = vcvt.s32.f32 %v3478
    %v4503 = vcvt.s32.f32 %v3479
    %v4504 = vcvt.s32.f32 %v3480
    %v4505 = vcvt.s32.f32 %v3481
    %v4506 = vcvt.s32.f32 %v3482
    %v4507 = vcvt.s32.f32 %v3483
    %v4508 = vcvt.s32.f32 %v3484
    %v4509 = vcvt.s32.f32 %v3485
    %v4510 = vcvt.s32.f32 %v3486
    %v4511 = vcvt.s32.f32 %v3487
    %v4512 = vcvt.s32.f32 %v3488
    %v4513 = vcvt.s32.f32 %v3489
    %v4514 = vcvt.s32.f32 %v3490
    %v4515 = vcvt.s32.f32 %v3491
    %v4516 = vcvt.s32.f32 %v3492
    %v4517 = vcvt.s32.f32 %v3493
    %v4518 = vcvt.s32.f32 %v3494
    %v4519 = vcvt.s32.f32 %v3495
    %v4520 = vcvt.s32.f32 %v3496
    %v4521 = vcvt.s32.f32 %v3497
    %v4522 = vcvt.s32.f32 %v3498
    %v4523 = vcvt.s32.f32 %v3499
    %v4524 = vcvt.s32.f32 %v3500
    %v4525 = vcvt.s32.f32 %v3501
    %v4526 = vcvt.s32.f32 %v3502
    %v4527 = vcvt.s32.f32 %v3503
    %v4528 = vcvt.s32.f32 %v3504
    %v4529 = vcvt.s32.f32 %v3505
    %v4530 = vcvt.s32.f32 %v3506
    %v4531 = vcvt.s32.f32 %v3507
    %v4532 = vcvt.s32.f32 %v3508
    %v4533 = vcvt.s32.f32 %v3509
    %v4534 = vcvt.s32.f32 %v3510
    %v4535 = vcvt.s32.f32 %v3511
    %v4536 = vcvt.s32.f32 %v3512
    %v4537 = vcvt.s32.f32 %v3513
    %v4538 = vcvt.s32.f32 %v3514
    %v4539 = vcvt.s32.f32 %v3515
    %v4540 = vcvt.s32.f32 %v3516
    %v4541 = vcvt.s32.f32 %v3517
    %v4542 = vcvt.s32.f32 %v3518
    %v4543 = vcvt.s32.f32 %v3519
    %v4544 = vcvt.s32.f32 %v3520
    %v4545 = vcvt.s32.f32 %v3521
    %v4546 = vcvt.s32.f32 %v3522
    %v4547 = vcvt.s32.f32 %v3523
    %v4548 = vcvt.s32.f32 %v3524
    %v4549 = vcvt.s32.f32 %v3525
    %v4550 = vcvt.s32.f32 %v3526
    %v4551 = vcvt.s32.f32 %v3527
    %v4552 = vcvt.s32.f32 %v3528
    %v4553 = vcvt.s32.f32 %v3529
    %v4554 = vcvt.s32.f32 %v3530
    %v4555 = vcvt.s32.f32 %v3531
    %v4556 = vcvt.s32.f32 %v3532
    %v4557 = vcvt.s32.f32 %v3533
    %v4558 = vcvt.s32.f32 %v3534
    %v4559 = vcvt.s32.f32 %v3535
    %v4560 = vcvt.s32.f32 %v3536
    %v4561 = vcvt.s32.f32 %v3537
    %v4562 = vcvt.s32.f32 %v3538
    %v4563 = vcvt.s32.f32 %v3539
    %v4564 = vcvt.s32.f32 %v3540
    %v4565 = vcvt.s32.f32 %v3541
    %v4566 = vcvt.s32.f32 %v3542
    %v4567 = vcvt.s32.f32 %v3543
    %v4568 = vcvt.s32.f32 %v3544
    %v4569 = vcvt.s32.f32 %v3545
    %v4570 = vcvt.s32.f32 %v3546
    %v4571 = vcvt.s32.f32 %v3547
    %v4572 = vcvt.s32.f32 %v3548
    %v4573 = vcvt.s32.f32 %v3549
    %v4574 = vcvt.s32.f32 %v3550
    %v4575 = vcvt.s32.f32 %v3551
    %v4576 = vcvt.s32.f32 %v3552
    %v4577 = vcvt.s32.f32 %v3553
    %v4578 = vcvt.s32.f32 %v3554
    %v4579 = vcvt.s32.f32 %v3555
    %v4580 = vcvt.s32.f32 %v3556
    %v4581 = vcvt.s32.f32 %v3557
    %v4582 = vcvt.s32.f32 %v3558
    %v4583 = vcvt.s32.f32 %v3559
    %v4584 = vcvt.s32.f32 %v3560
    %v4585 = vcvt.s32.f32 %v3561
    %v4586 = vcvt.s32.f32 %v3562
    %v4587 = vcvt.s32.f32 %v3563
    %v4588 = vcvt.s32.f32 %v3564
    %v4589 = vcvt.s32.f32 %v3565
    %v4590 = vcvt.s32.f32 %v3566
    %v4591 = vcvt.s32.f32 %v3567
    %v4592 = vcvt.s32.f32 %v3568
    %v4593 = vcvt.s32.f32 %v3569
    %v4594 = vcvt.s32.f32 %v3570
    %v4595 = vcvt.s32.f32 %v3571
    %v4596 = vcvt.s32.f32 %v3572
    %v4597 = vcvt.s32.f32 %v3573
    %v4598 = vcvt.s32.f32 %v3574
    %v4599 = vcvt.s32.f32 %v3575
    %v4600 = vcvt.s32.f32 %v3576
    %v4601 = vcvt.s32.f32 %v3577
    %v4602 = vcvt.s32.f32 %v3578
    %v4603 = vcvt.s32.f32 %v3579
    %v4604 = vcvt.s32.f32 %v3580
    %v4605 = vcvt.s32.f32 %v3581
    %v4606 = vcvt.s32.f32 %v3582
    %v4607 = vcvt.s32.f32 %v3583
    %v4608 = vcvt.s32.f32 %v3584
    %v4609 = vcvt.s32.f32 %v3585
    %v4610 = vcvt.s32.f32 %v3586
    %v4611 = vcvt.s32.f32 %v3587
    %v4612 = vcvt.s32.f32 %v3588
    %v4613 = vcvt.s32.f32 %v3589
    %v4614 = vcvt.s32.f32 %v3590
    %v4615 = vcvt.s32.f32 %v3591
    %v4616 = vcvt.s32.f32 %v3592
    %v4617 = vcvt.s32.f32 %v3593
    %v4618 = vcvt.s32.f32 %v3594
    %v4619 = vcvt.s32.f32 %v3595
    %v4620 = vcvt.s32.f32 %v3596
    %v4621 = vcvt.s32.f32 %v3597
    %v4622 = vcvt.s32.f32 %v3598
    %v4623 = vcvt.s32.f32 %v3599
    %v4624 = vcvt.s32.f32 %v3600
    %v4625 = vcvt.s32.f32 %v3601
    %v4626 = vcvt.s32.f32 %v3602
    %v4627 = vcvt.s32.f32 %v3603
    %v4628 = vcvt.s32.f32 %v3604
    %v4629 = vcvt.s32.f32 %v3605
    %v4630 = vcvt.s32.f32 %v3606
    %v4631 = vcvt.s32.f32 %v3607
    %v4632 = vcvt.s32.f32 %v3608
    %v4633 = vcvt.s32.f32 %v3609
    %v4634 = vcvt.s32.f32 %v3610
    %v4635 = vcvt.s32.f32 %v3611
    %v4636 = vcvt.s32.f32 %v3612
    %v4637 = vcvt.s32.f32 %v3613
    %v4638 = vcvt.s32.f32 %v3614
    %v4639 = vcvt.s32.f32 %v3615
    %v4640 = vcvt.s32.f32 %v3616
    %v4641 = vcvt.s32.f32 %v3617
    %v4642 = vcvt.s32.f32 %v3618
    %v4643 = vcvt.s32.f32 %v3619
    %v4644 = vcvt.s32.f32 %v3620
    %v4645 = vcvt.s32.f32 %v3621
    %v4646 = vcvt.s32.f32 %v3622
    %v4647 = vcvt.s32.f32 %v3623
    %v4648 = vcvt.s32.f32 %v3624
    %v4649 = vcvt.s32.f32 %v3625
    %v4650 = vcvt.s32.f32 %v3626
    %v4651 = vcvt.s32.f32 %v3627
    %v4652 = vcvt.s32.f32 %v3628
    %v4653 = vcvt.s32.f32 %v3629
    %v4654 = vcvt.s32.f32 %v3630
    %v4655 = vcvt.s32.f32 %v3631
    %v4656 = vcvt.s32.f32 %v3632
    %v4657 = vcvt.s32.f32 %v3633
    %v4658 = vcvt.s32.f32 %v3634
    %v4659 = vcvt.s32.f32 %v3635
    %v4660 = vcvt.s32.f32 %v3636
    %v4661 = vcvt.s32.f32 %v3637
    %v4662 = vcvt.s32.f32 %v3638
    %v4663 = vcvt.s32.f32 %v3639
    %v4664 = vcvt.s32.f32 %v3640
    %v4665 = vcvt.s32.f32 %v3641
    %v4666 = vcvt.s32.f32 %v3642
    %v4667 = vcvt.s32.f32 %v3643
    %v4668 = vcvt.s32.f32 %v3644
    %v4669 = vcvt.s32.f32 %v3645
    %v4670 = vcvt.s32.f32 %v3646
    %v4671 = vcvt.s32.f32 %v3647
    %v4672 = vcvt.s32.f32 %v3648
    %v4673 = vcvt.s32.f32 %v3649
    %v4674 = vcvt.s32.f32 %v3650
    %v4675 = vcvt.s32.f32 %v3651
    %v4676 = vcvt.s32.f32 %v3652
    %v4677 = vcvt.s32.f32 %v3653
    %v4678 = vcvt.s32.f32 %v3654
    %v4679 = vcvt.s32.f32 %v3655
    %v4680 = vcvt.s32.f32 %v3656
    %v4681 = vcvt.s32.f32 %v3657
    %v4682 = vcvt.s32.f32 %v3658
    %v4683 = vcvt.s32.f32 %v3659
    %v4684 = vcvt.s32.f32 %v3660
    %v4685 = vcvt.s32.f32 %v3661
    %v4686 = vcvt.s32.f32 %v3662
    %v4687 = vcvt.s32.f32 %v3663
    %v4688 = vcvt.s32.f32 %v3664
    %v4689 = vcvt.s32.f32 %v3665
    %v4690 = vcvt.s32.f32 %v3666
    %v4691 = vcvt.s32.f32 %v3667
    %v4692 = vcvt.s32.f32 %v3668
    %v4693 = vcvt.s32.f32 %v3669
    %v4694 = vcvt.s32.f32 %v3670
    %v4695 = vcvt.s32.f32 %v3671
    %v4696 = vcvt.s32.f32 %v3672
    %v4697 = vcvt.s32.f32 %v3673
    %v4698 = vcvt.s32.f32 %v3674
    %v4699 = vcvt.s32.f32 %v3675
    %v4700 = vcvt.s32.f32 %v3676
    %v4701 = vcvt.s32.f32 %v3677
    %v4702 = vcvt.s32.f32 %v3678
    %v4703 = vcvt.s32.f32 %v3679
    %v4704 = vcvt.s32.f32 %v3680
    %v4705 = vcvt.s32.f32 %v3681
    %v4706 = vcvt.s32.f32 %v3682
    %v4707 = vcvt.s32.f32 %v3683
    %v4708 = vcvt.s32.f32 %v3684
    %v4709 = vcvt.s32.f32 %v3685
    %v4710 = vcvt.s32.f32 %v3686
    %v4711 = vcvt.s32.f32 %v3687
    %v4712 = vcvt.s32.f32 %v3688
    %v4713 = vcvt.s32.f32 %v3689
    %v4714 = vcvt.s32.f32 %v3690
    %v4715 = vcvt.s32.f32 %v3691
    %v4716 = vcvt.s32.f32 %v3692
    %v4717 = vcvt.s32.f32 %v3693
    %v4718 = vcvt.s32.f32 %v3694
    %v4719 = vcvt.s32.f32 %v3695
    %v4720 = vcvt.s32.f32 %v3696
    %v4721 = vcvt.s32.f32 %v3697
    %v4722 = vcvt.s32.f32 %v3698
    %v4723 = vcvt.s32.f32 %v3699
    %v4724 = vcvt.s32.f32 %v3700
    %v4725 = vcvt.s32.f32 %v3701
    %v4726 = vcvt.s32.f32 %v3702
    %v4727 = vcvt.s32.f32 %v3703
    %v4728 = vcvt.s32.f32 %v3704
    %v4729 = vcvt.s32.f32 %v3705
    %v4730 = vcvt.s32.f32 %v3706
    %v4731 = vcvt.s32.f32 %v3707
    %v4732 = vcvt.s32.f32 %v3708
    %v4733 = vcvt.s32.f32 %v3709
    %v4734 = vcvt.s32.f32 %v3710
    %v4735 = vcvt.s32.f32 %v3711
    %v4736 = vcvt.s32.f32 %v3712
    %v4737 = vcvt.s32.f32 %v3713
    %v4738 = vcvt.s32.f32 %v3714
    %v4739 = vcvt.s32.f32 %v3715
    %v4740 = vcvt.s32.f32 %v3716
    %v4741 = vcvt.s32.f32 %v3717
    %v4742 = vcvt.s32.f32 %v3718
    %v4743 = vcvt.s32.f32 %v3719
    %v4744 = vcvt.s32.f32 %v3720
    %v4745 = vcvt.s32.f32 %v3721
    %v4746 = vcvt.s32.f32 %v3722
    %v4747 = vcvt.s32.f32 %v3723
    %v4748 = vcvt.s32.f32 %v3724
    %v4749 = vcvt.s32.f32 %v3725
    %v4750 = vcvt.s32.f32 %v3726
    %v4751 = vcvt.s32.f32 %v3727
    %v4752 = vcvt.s32.f32 %v3728
    %v4753 = vcvt.s32.f32 %v3729
    %v4754 = vcvt.s32.f32 %v3730
    %v4755 = vcvt.s32.f32 %v3731
    %v4756 = vcvt.s32.f32 %v3732
    %v4757 = vcvt.s32.f32 %v3733
    %v4758 = vcvt.s32.f32 %v3734
    %v4759 = vcvt.s32.f32 %v3735
    %v4760 = vcvt.s32.f32 %v3736
    %v4761 = vcvt.s32.f32 %v3737
    %v4762 = vcvt.s32.f32 %v3738
    %v4763 = vcvt.s32.f32 %v3739
    %v4764 = vcvt.s32.f32 %v3740
    %v4765 = vcvt.s32.f32 %v3741
    %v4766 = vcvt.s32.f32 %v3742
    %v4767 = vcvt.s32.f32 %v3743
    %v4768 = vcvt.s32.f32 %v3744
    %v4769 = vcvt.s32.f32 %v3745
    %v4770 = vcvt.s32.f32 %v3746
    %v4771 = vcvt.s32.f32 %v3747
    %v4772 = vcvt.s32.f32 %v3748
    %v4773 = vcvt.s32.f32 %v3749
    %v4774 = vcvt.s32.f32 %v3750
    %v4775 = vcvt.s32.f32 %v3751
    %v4776 = vcvt.s32.f32 %v3752
    %v4777 = vcvt.s32.f32 %v3753
    %v4778 = vcvt.s32.f32 %v3754
    %v4779 = vcvt.s32.f32 %v3755
    %v4780 = vcvt.s32.f32 %v3756
    %v4781 = vcvt.s32.f32 %v3757
    %v4782 = vcvt.s32.f32 %v3758
    %v4783 = vcvt.s32.f32 %v3759
    %v4784 = vcvt.s32.f32 %v3760
    %v4785 = vcvt.s32.f32 %v3761
    %v4786 = vcvt.s32.f32 %v3762
    %v4787 = vcvt.s32.f32 %v3763
    %v4788 = vcvt.s32.f32 %v3764
    %v4789 = vcvt.s32.f32 %v3765
    %v4790 = vcvt.s32.f32 %v3766
    %v4791 = vcvt.s32.f32 %v3767
    %v4792 = vcvt.s32.f32 %v3768
    %v4793 = vcvt.s32.f32 %v3769
    %v4794 = vcvt.s32.f32 %v3770
    %v4795 = vcvt.s32.f32 %v3771
    %v4796 = vcvt.s32.f32 %v3772
    %v4797 = vcvt.s32.f32 %v3773
    %v4798 = vcvt.s32.f32 %v3774
    %v4799 = vcvt.s32.f32 %v3775
    %v4800 = vcvt.s32.f32 %v3776
    %v4801 = vcvt.s32.f32 %v3777
    %v4802 = vcvt.s32.f32 %v3778
    %v4803 = vcvt.s32.f32 %v3779
    %v4804 = vcvt.s32.f32 %v3780
    %v4805 = vcvt.s32.f32 %v3781
    %v4806 = vcvt.s32.f32 %v3782
    %v4807 = vcvt.s32.f32 %v3783
    %v4808 = vcvt.s32.f32 %v3784
    %v4809 = vcvt.s32.f32 %v3785
    %v4810 = vcvt.s32.f32 %v3786
    %v4811 = vcvt.s32.f32 %v3787
    %v4812 = vcvt.s32.f32 %v3788
    %v4813 = vcvt.s32.f32 %v3789
    %v4814 = vcvt.s32.f32 %v3790
    %v4815 = vcvt.s32.f32 %v3791
    %v4816 = vcvt.s32.f32 %v3792
    %v4817 = vcvt.s32.f32 %v3793
    %v4818 = vcvt.s32.f32 %v3794
    %v4819 = vcvt.s32.f32 %v3795
    %v4820 = vcvt.s32.f32 %v3796
    %v4821 = vcvt.s32.f32 %v3797
    %v4822 = vcvt.s32.f32 %v3798
    %v4823 = vcvt.s32.f32 %v3799
    %v4824 = vcvt.s32.f32 %v3800
    %v4825 = vcvt.s32.f32 %v3801
    %v4826 = vcvt.s32.f32 %v3802
    %v4827 = vcvt.s32.f32 %v3803
    %v4828 = vcvt.s32.f32 %v3804
    %v4829 = vcvt.s32.f32 %v3805
    %v4830 = vcvt.s32.f32 %v3806
    %v4831 = vcvt.s32.f32 %v3807
    %v4832 = vcvt.s32.f32 %v3808
    %v4833 = vcvt.s32.f32 %v3809
    %v4834 = vcvt.s32.f32 %v3810
    %v4835 = vcvt.s32.f32 %v3811
    %v4836 = vcvt.s32.f32 %v3812
    %v4837 = vcvt.s32.f32 %v3813
    %v4838 = vcvt.s32.f32 %v3814
    %v4839 = vcvt.s32.f32 %v3815
    %v4840 = vcvt.s32.f32 %v3816
    %v4841 = vcvt.s32.f32 %v3817
    %v4842 = vcvt.s32.f32 %v3818
    %v4843 = vcvt.s32.f32 %v3819
    %v4844 = vcvt.s32.f32 %v3820
    %v4845 = vcvt.s32.f32 %v3821
    %v4846 = vcvt.s32.f32 %v3822
    %v4847 = vcvt.s32.f32 %v3823
    %v4848 = vcvt.s32.f32 %v3824
    %v4849 = vcvt.s32.f32 %v3825
    %v4850 = vcvt.s32.f32 %v3826
    %v4851 = vcvt.s32.f32 %v3827
    %v4852 = vcvt.s32.f32 %v3828
    %v4853 = vcvt.s32.f32 %v3829
    %v4854 = vcvt.s32.f32 %v3830
    %v4855 = vcvt.s32.f32 %v3831
    %v4856 = vcvt.s32.f32 %v3832
    %v4857 = vcvt.s32.f32 %v3833
    %v4858 = vcvt.s32.f32 %v3834
    %v4859 = vcvt.s32.f32 %v3835
    %v4860 = vcvt.s32.f32 %v3836
    %v4861 = vcvt.s32.f32 %v3837
    %v4862 = vcvt.s32.f32 %v3838
    %v4863 = vcvt.s32.f32 %v3839
    %v4864 = vcvt.s32.f32 %v3840
    %v4865 = vcvt.s32.f32 %v3841
    %v4866 = vcvt.s32.f32 %v3842
    %v4867 = vcvt.s32.f32 %v3843
    %v4868 = vcvt.s32.f32 %v3844
    %v4869 = vcvt.s32.f32 %v3845
    %v4870 = vcvt.s32.f32 %v3846
    %v4871 = vcvt.s32.f32 %v3847
    %v4872 = vcvt.s32.f32 %v3848
    %v4873 = vcvt.s32.f32 %v3849
    %v4874 = vcvt.s32.f32 %v3850
    %v4875 = vcvt.s32.f32 %v3851
    %v4876 = vcvt.s32.f32 %v3852
    %v4877 = vcvt.s32.f32 %v3853
    %v4878 = vcvt.s32.f32 %v3854
    %v4879 = vcvt.s32.f32 %v3855
    %v4880 = vcvt.s32.f32 %v3856
    %v4881 = vcvt.s32.f32 %v3857
    %v4882 = vcvt.s32.f32 %v3858
    %v4883 = vcvt.s32.f32 %v3859
    %v4884 = vcvt.s32.f32 %v3860
    %v4885 = vcvt.s32.f32 %v3861
    %v4886 = vcvt.s32.f32 %v3862
    %v4887 = vcvt.s32.f32 %v3863
    %v4888 = vcvt.s32.f32 %v3864
    %v4889 = vcvt.s32.f32 %v3865
    %v4890 = vcvt.s32.f32 %v3866
    %v4891 = vcvt.s32.f32 %v3867
    %v4892 = vcvt.s32.f32 %v3868
    %v4893 = vcvt.s32.f32 %v3869
    %v4894 = vcvt.s32.f32 %v3870
    %v4895 = vcvt.s32.f32 %v3871
    %v4896 = vcvt.s32.f32 %v3872
    %v4897 = vcvt.s32.f32 %v3873
    %v4898 = vcvt.s32.f32 %v3874
    %v4899 = vcvt.s32.f32 %v3875
    %v4900 = vcvt.s32.f32 %v3876
    %v4901 = vcvt.s32.f32 %v3877
    %v4902 = vcvt.s32.f32 %v3878
    %v4903 = vcvt.s32.f32 %v3879
    %v4904 = vcvt.s32.f32 %v3880
    %v4905 = vcvt.s32.f32 %v3881
    %v4906 = vcvt.s32.f32 %v3882
    %v4907 = vcvt.s32.f32 %v3883
    %v4908 = vcvt.s32.f32 %v3884
    %v4909 = vcvt.s32.f32 %v3885
    %v4910 = vcvt.s32.f32 %v3886
    %v4911 = vcvt.s32.f32 %v3887
    %v4912 = vcvt.s32.f32 %v3888
    %v4913 = vcvt.s32.f32 %v3889
    %v4914 = vcvt.s32.f32 %v3890
    %v4915 = vcvt.s32.f32 %v3891
    %v4916 = vcvt.s32.f32 %v3892
    %v4917 = vcvt.s32.f32 %v3893
    %v4918 = vcvt.s32.f32 %v3894
    %v4919 = vcvt.s32.f32 %v3895
    %v4920 = vcvt.s32.f32 %v3896
    %v4921 = vcvt.s32.f32 %v3897
    %v4922 = vcvt.s32.f32 %v3898
    %v4923 = vcvt.s32.f32 %v3899
    %v4924 = vcvt.s32.f32 %v3900
    %v4925 = vcvt.s32.f32 %v3901
    %v4926 = vcvt.s32.f32 %v3902
    %v4927 = vcvt.s32.f32 %v3903
    %v4928 = vcvt.s32.f32 %v3904
    %v4929 = vcvt.s32.f32 %v3905
    %v4930 = vcvt.s32.f32 %v3906
    %v4931 = vcvt.s32.f32 %v3907
    %v4932 = vcvt.s32.f32 %v3908
    %v4933 = vcvt.s32.f32 %v3909
    %v4934 = vcvt.s32.f32 %v3910
    %v4935 = vcvt.s32.f32 %v3911
    %v4936 = vcvt.s32.f32 %v3912
    %v4937 = vcvt.s32.f32 %v3913
    %v4938 = vcvt.s32.f32 %v3914
    %v4939 = vcvt.s32.f32 %v3915
    %v4940 = vcvt.s32.f32 %v3916
    %v4941 = vcvt.s32.f32 %v3917
    %v4942 = vcvt.s32.f32 %v3918
    %v4943 = vcvt.s32.f32 %v3919
    %v4944 = vcvt.s32.f32 %v3920
    %v4945 = vcvt.s32.f32 %v3921
    %v4946 = vcvt.s32.f32 %v3922
    %v4947 = vcvt.s32.f32 %v3923
    %v4948 = vcvt.s32.f32 %v3924
    %v4949 = vcvt.s32.f32 %v3925
    %v4950 = vcvt.s32.f32 %v3926
    %v4951 = vcvt.s32.f32 %v3927
    %v4952 = vcvt.s32.f32 %v3928
    %v4953 = vcvt.s32.f32 %v3929
    %v4954 = vcvt.s32.f32 %v3930
    %v4955 = vcvt.s32.f32 %v3931
    %v4956 = vcvt.s32.f32 %v3932
    %v4957 = vcvt.s32.f32 %v3933
    %v4958 = vcvt.s32.f32 %v3934
    %v4959 = vcvt.s32.f32 %v3935
    %v4960 = vcvt.s32.f32 %v3936
    %v4961 = vcvt.s32.f32 %v3937
    %v4962 = vcvt.s32.f32 %v3938
    %v4963 = vcvt.s32.f32 %v3939
    %v4964 = vcvt.s32.f32 %v3940
    %v4965 = vcvt.s32.f32 %v3941
    %v4966 = vcvt.s32.f32 %v3942
    %v4967 = vcvt.s32.f32 %v3943
    %v4968 = vcvt.s32.f32 %v3944
    %v4969 = vcvt.s32.f32 %v3945
    %v4970 = vcvt.s32.f32 %v3946
    %v4971 = vcvt.s32.f32 %v3947
    %v4972 = vcvt.s32.f32 %v3948
    %v4973 = vcvt.s32.f32 %v3949
    %v4974 = vcvt.s32.f32 %v3950
    %v4975 = vcvt.s32.f32 %v3951
    %v4976 = vcvt.s32.f32 %v3952
    %v4977 = vcvt.s32.f32 %v3953
    %v4978 = vcvt.s32.f32 %v3954
    %v4979 = vcvt.s32.f32 %v3955
    %v4980 = vcvt.s32.f32 %v3956
    %v4981 = vcvt.s32.f32 %v3957
    %v4982 = vcvt.s32.f32 %v3958
    %v4983 = vcvt.s32.f32 %v3959
    %v4984 = vcvt.s32.f32 %v3960
    %v4985 = vcvt.s32.f32 %v3961
    %v4986 = vcvt.s32.f32 %v3962
    %v4987 = vcvt.s32.f32 %v3963
    %v4988 = vcvt.s32.f32 %v3964
    %v4989 = vcvt.s32.f32 %v3965
    %v4990 = vcvt.s32.f32 %v3966
    %v4991 = vcvt.s32.f32 %v3967
    %v4992 = vcvt.s32.f32 %v3968
    %v4993 = vcvt.s32.f32 %v3969
    %v4994 = vcvt.s32.f32 %v3970
    %v4995 = vcvt.s32.f32 %v3971
    %v4996 = vcvt.s32.f32 %v3972
    %v4997 = vcvt.s32.f32 %v3973
    %v4998 = vcvt.s32.f32 %v3974
    %v4999 = vcvt.s32.f32 %v3975
    %v5000 = vcvt.s32.f32 %v3976
    %v5001 = vcvt.s32.f32 %v3977
    %v5002 = vcvt.s32.f32 %v3978
    %v5003 = vcvt.s32.f32 %v3979
    %v5004 = vcvt.s32.f32 %v3980
    %v5005 = vcvt.s32.f32 %v3981
    %v5006 = vcvt.s32.f32 %v3982
    %v5007 = vcvt.s32.f32 %v3983
    %v5008 = vcvt.s32.f32 %v3984
    %v5009 = vcvt.s32.f32 %v3985
    %v5010 = vcvt.s32.f32 %v3986
    %v5011 = vcvt.s32.f32 %v3987
    %v5012 = vcvt.s32.f32 %v3988
    %v5013 = vcvt.s32.f32 %v3989
    %v5014 = vcvt.s32.f32 %v3990
    %v5015 = vcvt.s32.f32 %v3991
    %v5016 = vcvt.s32.f32 %v3992
    %v5017 = vcvt.s32.f32 %v3993
    %v5018 = vcvt.s32.f32 %v3994
    %v5019 = vcvt.s32.f32 %v3995
    %v5020 = vcvt.s32.f32 %v3996
    %v5021 = vcvt.s32.f32 %v3997
    %v5022 = vcvt.s32.f32 %v3998
    %v5023 = vcvt.s32.f32 %v3999
    %v5024 = vcvt.s32.f32 %v4000
    %v5025 = vcvt.s32.f32 %v4001
    %v5026 = vcvt.s32.f32 %v4002
    %v5027 = vcvt.s32.f32 %v4003
    %v5028 = vcvt.s32.f32 %v4004
    %v5029 = vcvt.s32.f32 %v4005
    %v5030 = vcvt.s32.f32 %v4006
    %v5031 = vcvt.s32.f32 %v4007
    %v5032 = vcvt.s32.f32 %v4008
    %v5033 = vcvt.s32.f32 %v4009
    %v5034 = vcvt.s32.f32 %v4010
    %v5035 = vcvt.s32.f32 %v4011
    %v5036 = vcvt.s32.f32 %v4012
    %v5037 = vcvt.s32.f32 %v4013
    %v5038 = vcvt.s32.f32 %v4014
    %v5039 = vcvt.s32.f32 %v4015
    %v5040 = vcvt.s32.f32 %v4016
    %v5041 = vcvt.s32.f32 %v4017
    %v5042 = vcvt.s32.f32 %v4018
    %v5043 = vcvt.s32.f32 %v4019
    %v5044 = vcvt.s32.f32 %v4020
    %v5045 = vcvt.s32.f32 %v4021
    %v5046 = vcvt.s32.f32 %v4022
    %v5047 = vcvt.s32.f32 %v4023
    %v5048 = vcvt.s32.f32 %v4024
    %v5049 = vcvt.s32.f32 %v4025
    %v5050 = vcvt.s32.f32 %v4026
    %v5051 = vcvt.s32.f32 %v4027
    %v5052 = vcvt.s32.f32 %v4028
    %v5053 = vcvt.s32.f32 %v4029
    %v5054 = vcvt.s32.f32 %v4030
    %v5055 = vcvt.s32.f32 %v4031
    %v5056 = vcvt.s32.f32 %v4032
    %v5057 = vcvt.s32.f32 %v4033
    %v5058 = vcvt.s32.f32 %v4034
    %v5059 = vcvt.s32.f32 %v4035
    %v5060 = vcvt.s32.f32 %v4036
    %v5061 = vcvt.s32.f32 %v4037
    %v5062 = vcvt.s32.f32 %v4038
    %v5063 = vcvt.s32.f32 %v4039
    %v5064 = vcvt.s32.f32 %v4040
    %v5065 = vcvt.s32.f32 %v4041
    %v5066 = vcvt.s32.f32 %v4042
    %v5067 = vcvt.s32.f32 %v4043
    %v5068 = vcvt.s32.f32 %v4044
    %v5069 = vcvt.s32.f32 %v4045
    %v5070 = vcvt.s32.f32 %v4046
    %v5071 = vcvt.s32.f32 %v4047
    %v5072 = vcvt.s32.f32 %v4048
    %v5073 = vcvt.s32.f32 %v4049
    %v5074 = vcvt.s32.f32 %v4050
    %v5075 = vcvt.s32.f32 %v4051
    %v5076 = vcvt.s32.f32 %v4052
    %v5077 = vcvt.s32.f32 %v4053
    %v5078 = vcvt.s32.f32 %v4054
    %v5079 = vcvt.s32.f32 %v4055
    %v5080 = vcvt.s32.f32 %v4056
    %v5081 = vcvt.s32.f32 %v4057
    %v5082 = vcvt.s32.f32 %v4058
    %v5083 = vcvt.s32.f32 %v4059
    %v5084 = vcvt.s32.f32 %v4060
    %v5085 = vcvt.s32.f32 %v4061
    %v5086 = vcvt.s32.f32 %v4062
    %v5087 = vcvt.s32.f32 %v4063
    %v5088 = vcvt.s32.f32 %v4064
    %v5089 = vcvt.s32.f32 %v4065
    %v5090 = vcvt.s32.f32 %v4066
    %v5091 = vcvt.s32.f32 %v4067
    %v5092 = vcvt.s32.f32 %v4068
    %v5093 = vcvt.s32.f32 %v4069
    %v5094 = vcvt.s32.f32 %v4070
    %v5095 = vcvt.s32.f32 %v4071
    %v5096 = vcvt.s32.f32 %v4072
    %v5097 = vcvt.s32.f32 %v4073
    %v5098 = vcvt.s32.f32 %v4074
    %v5099 = vcvt.s32.f32 %v4075
    %v5100 = vcvt.s32.f32 %v4076
    %v5101 = vcvt.s32.f32 %v4077
    %v5102 = vcvt.s32.f32 %v4078
    %v5103 = vcvt.s32.f32 %v4079
    %v5104 = vcvt.s32.f32 %v4080
    %v5105 = vcvt.s32.f32 %v4081
    %v5106 = vcvt.s32.f32 %v4082
    %v5107 = vcvt.s32.f32 %v4083
    %v5108 = vcvt.s32.f32 %v4084
    %v5109 = vcvt.s32.f32 %v4085
    %v5110 = vcvt.s32.f32 %v4086
    %v5111 = vcvt.s32.f32 %v4087
    %v5112 = vcvt.s32.f32 %v4088
    %v5113 = vcvt.s32.f32 %v4089
    %v5114 = vcvt.s32.f32 %v4090
    %v5115 = vcvt.s32.f32 %v4091
    %v5116 = vcvt.s32.f32 %v4092
    %v5117 = vcvt.s32.f32 %v4093
    %v5118 = vcvt.s32.f32 %v4094
    %v5119 = vcvt.s32.f32 %v4095
    %v5120 = vcvt.s32.f32 %v4096
    %v5121 = vcvt.s32.f32 %v4097
    %v5122 = vcvt.s32.f32 %v4098
    %v5123 = vcvt.s32.f32 %v4099
    %v5124 = vcvt.s32.f32 %v4100
    %v5125 = vcvt.s32.f32 %v4101
    %v5126 = vcvt.s32.f32 %v4102
    %v5127 = vcvt.s32.f32 %v4103
    %v5128 = vcvt.s32.f32 %v4104
    %v5129 = vcvt.s32.f32 %v4105
    %v5130 = vcvt.s32.f32 %v4106
    %v5131 = vcvt.s32.f32 %v4107
    %v5132 = vcvt.s32.f32 %v4108
    %v5133 = vcvt.s32.f32 %v4109
    %v5134 = vcvt.s32.f32 %v4110
    %v5135 = vcvt.s32.f32 %v4111
    %v5136 = vcvt.s32.f32 %v4112
    %v5137 = vcvt.s32.f32 %v4113
    %v5138 = vcvt.s32.f32 %v4114
    %v5139 = vcvt.s32.f32 %v4115
    %v5140 = vcvt.s32.f32 %v4116
    %v5141 = vcvt.s32.f32 %v4117
    %v5142 = vcvt.s32.f32 %v4118
    %v5143 = vcvt.s32.f32 %v4119
    %v5144 = vcvt.s32.f32 %v4120
    %v5145 = vcvt.s32.f32 %v4121
    %v5146 = vcvt.s32.f32 %v4122
    %v5147 = vcvt.s32.f32 %v4123
    %v5148 = vcvt.s32.f32 %v4124
    %v5149 = vcvt.s32.f32 %v4125
    %v5150 = vcvt.s32.f32 %v4126
    %v5151 = vcvt.s32.f32 %v4127
    %v5152 = vcvt.s32.f32 %v4128
    %v5153 = vcvt.s32.f32 %v4129
    %v5154 = vcvt.s32.f32 %v4130
    %v5155 = vcvt.s32.f32 %v4131
    %v5156 = vcvt.s32.f32 %v4132
    %v5157 = vcvt.s32.f32 %v4133
    %v5158 = vcvt.s32.f32 %v4134
    %v5159 = vcvt.s32.f32 %v4135
    %v5160 = vcvt.s32.f32 %v4136
    %v5161 = vcvt.s32.f32 %v4137
    %v5162 = vcvt.s32.f32 %v4138
    %v5163 = vcvt.s32.f32 %v4139
    %v5164 = vcvt.s32.f32 %v4140
    %v5165 = vcvt.s32.f32 %v4141
    %v5166 = vcvt.s32.f32 %v4142
    %v5167 = vcvt.s32.f32 %v4143
    %v5168 = vcvt.s32.f32 %v4144
    %v5169 = vcvt.s32.f32 %v4145
    %v5170 = vcvt.s32.f32 %v4146
    %v5171 = vcvt.s32.f32 %v4147
    %v5172 = vcvt.s32.f32 %v4148
    %v5173 = vcvt.s32.f32 %v4149
    %v5174 = vcvt.s32.f32 %v4150
    %v5175 = vcvt.s32.f32 %v4151
    %v5176 = vcvt.s32.f32 %v4152
    %v5177 = vcvt.s32.f32 %v4153
    %v5178 = vcvt.s32.f32 %v4154
    %v5179 = vcvt.s32.f32 %v4155
    %v5180 = vcvt.s32.f32 %v4156
    %v5181 = vcvt.s32.f32 %v4157
    %v5182 = vcvt.s32.f32 %v4158
    %v5183 = vcvt.s32.f32 %v4159
    %v5184 = vcvt.s32.f32 %v4160
    %v5185 = vcvt.s32.f32 %v4161
    %v5186 = vcvt.s32.f32 %v4162
    %v5187 = vcvt.s32.f32 %v4163
    %v5188 = vcvt.s32.f32 %v4164
    %v5189 = vcvt.s32.f32 %v4165
    %v5190 = vcvt.s32.f32 %v4166
    %v5191 = vcvt.s32.f32 %v4167
    %v5192 = vcvt.s32.f32 %v4168
    %v5193 = vcvt.s32.f32 %v4169
    %v5194 = vcvt.s32.f32 %v4170
    %v5195 = vcvt.s32.f32 %v4171
    %v5196 = vcvt.s32.f32 %v4172
    %v5197 = vcvt.s32.f32 %v4173
    %v5198 = vcvt.s32.f32 %v4174
    %v5199 = vcvt.s32.f32 %v4175
    %v5200 = vcvt.s32.f32 %v4176
    %v5201 = vcvt.s32.f32 %v4177
    %v5202 = vcvt.s32.f32 %v4178
    %v5203 = vcvt.s32.f32 %v4179
    %v5204 = vcvt.s32.f32 %v4180
    %v5205 = vcvt.s32.f32 %v4181
    %v5206 = vcvt.s32.f32 %v4182
    %v5207 = vcvt.s32.f32 %v4183
    %v5208 = vcvt.s32.f32 %v4184
    %v5209 = vcvt.s32.f32 %v4185
    %v5210 = vcvt.s32.f32 %v4186
    %v5211 = vcvt.s32.f32 %v4187
    %v5212 = vcvt.s32.f32 %v4188
    %v5213 = vcvt.s32.f32 %v4189
    %v5214 = vcvt.s32.f32 %v4190
    %v5215 = vcvt.s32.f32 %v4191
    %v5216 = vcvt.s32.f32 %v4192
    %v5217 = vcvt.s32.f32 %v4193
    %v5218 = vcvt.s32.f32 %v4194
    %v5219 = vcvt.s32.f32 %v4195
    %v5220 = vcvt.s32.f32 %v4196
    %v5221 = vcvt.s32.f32 %v4197
    %v5222 = vcvt.s32.f32 %v4198
    %v5223 = vcvt.s32.f32 %v4199
    %v5224 = vcvt.s32.f32 %v4200
    %v5225 = vcvt.s32.f32 %v4201
    %v5226 = vcvt.s32.f32 %v4202
    %v5227 = vcvt.s32.f32 %v4203
    %v5228 = vcvt.s32.f32 %v4204
    %v5229 = vcvt.s32.f32 %v4205
    %v5230 = vcvt.s32.f32 %v4206
    %v5231 = vcvt.s32.f32 %v4207
    %v5232 = vcvt.s32.f32 %v4208
    %v5233 = vcvt.s32.f32 %v4209
    %v5234 = vcvt.s32.f32 %v4210
    %v5235 = vcvt.s32.f32 %v4211
    %v5236 = vcvt.s32.f32 %v4212
    %v5237 = vcvt.s32.f32 %v4213
    %v5238 = vcvt.s32.f32 %v4214
    %v5239 = vcvt.s32.f32 %v4215
    %v5240 = vcvt.s32.f32 %v4216
    %v5241 = vcvt.s32.f32 %v4217
    %v5242 = vcvt.s32.f32 %v4218
    %v5243 = vcvt.s32.f32 %v4219
    %v5244 = vcvt.s32.f32 %v4220
    %v5245 = vcvt.s32.f32 %v4221
    %v5246 = vcvt.s32.f32 %v4222
    %v5247 = vcvt.s32.f32 %v4223
    %v5248 = vcvt.s32.f32 %v4224
    %v5249 = vcvt.s32.f32 %v4225
    %v5250 = vcvt.s32.f32 %v4226
    %v5251 = vcvt.s32.f32 %v4227
    %v5252 = vcvt.s32.f32 %v4228
    %v5253 = vcvt.s32.f32 %v4229
    %v5254 = vcvt.s32.f32 %v4230
    %v5255 = vcvt.s32.f32 %v4231
    %v5256 = vcvt.s32.f32 %v4232
    %v5257 = vcvt.s32.f32 %v4233
    %v5258 = vcvt.s32.f32 %v4234
    %v5259 = vcvt.s32.f32 %v4235
    %v5260 = vcvt.s32.f32 %v4236
    %v5261 = vcvt.s32.f32 %v4237
    %v5262 = vcvt.s32.f32 %v4238
    %v5263 = vcvt.s32.f32 %v4239
    %v5264 = vcvt.s32.f32 %v4240
    %v5265 = vcvt.s32.f32 %v4241
    %v5266 = vcvt.s32.f32 %v4242
    %v5267 = vcvt.s32.f32 %v4243
    %v5268 = vcvt.s32.f32 %v4244
    %v5269 = vcvt.s32.f32 %v4245
    %v5270 = vcvt.s32.f32 %v4246
    %v5271 = vcvt.s32.f32 %v4247
    %v5272 = vcvt.s32.f32 %v4248
    %v5273 = vcvt.s32.f32 %v4249
    %v5274 = vcvt.s32.f32 %v4250
    %v5275 = vcvt.s32.f32 %v4251
    %v5276 = vcvt.s32.f32 %v4252
    %v5277 = vcvt.s32.f32 %v4253
    %v5278 = vcvt.s32.f32 %v4254
    %v5279 = vcvt.s32.f32 %v4255
    %v5280 = vcvt.s32.f32 %v4256
    %v5281 = vcvt.s32.f32 %v4257
    %v5282 = vcvt.s32.f32 %v4258
    %v5283 = vcvt.s32.f32 %v4259
    %v5284 = vcvt.s32.f32 %v4260
    %v5285 = vcvt.s32.f32 %v4261
    %v5286 = vcvt.s32.f32 %v4262
    %v5287 = vcvt.s32.f32 %v4263
    %v5288 = vcvt.s32.f32 %v4264
    %v5289 = vcvt.s32.f32 %v4265
    %v5290 = vcvt.s32.f32 %v4266
    %v5291 = vcvt.s32.f32 %v4267
    %v5292 = vcvt.s32.f32 %v4268
    %v5293 = vcvt.s32.f32 %v4269
    %v5294 = vcvt.s32.f32 %v4270
    %v5295 = vcvt.s32.f32 %v4271
    %v5296 = vcvt.s32.f32 %v4272
    %v5297 = vcvt.s32.f32 %v4273
    %v5298 = vcvt.s32.f32 %v4274
    %v5299 = vcvt.s32.f32 %v4275
    %v5300 = vcvt.s32.f32 %v4276
    %v5301 = vcvt.s32.f32 %v4277
    %v5302 = vcvt.s32.f32 %v4278
    %v5303 = vcvt.s32.f32 %v4279
    %v5304 = vcvt.s32.f32 %v4280
    %v5305 = vcvt.s32.f32 %v4281
    %v5306 = vcvt.s32.f32 %v4282
    %v5307 = vcvt.s32.f32 %v4283
    %v5308 = vcvt.s32.f32 %v4284
    %v5309 = vcvt.s32.f32 %v4285
    %v5310 = vcvt.s32.f32 %v4286
    %v5311 = vcvt.s32.f32 %v4287
    %v5312 = vcvt.s32.f32 %v4288
    %v5313 = vcvt.s32.f32 %v4289
    %v5314 = vcvt.s32.f32 %v4290
    %v5315 = vcvt.s32.f32 %v4291
    %v5316 = vcvt.s32.f32 %v4292
    %v5317 = vcvt.s32.f32 %v4293
    %v5318 = vcvt.s32.f32 %v4294
    %v5319 = vcvt.s32.f32 %v4295
    %v5320 = vcvt.s32.f32 %v4296
    %v5321 = vcvt.s32.f32 %v4297
    %v5322 = vcvt.s32.f32 %v4298
    %v5323 = vcvt.s32.f32 %v4299
    %v5324 = vcvt.s32.f32 %v4300
    %v5325 = vcvt.s32.f32 %v4301
    %v5326 = vcvt.s32.f32 %v4302
    %v5327 = vcvt.s32.f32 %v4303
    %v5328 = vcvt.s32.f32 %v4304
    %v5329 = vcvt.s32.f32 %v4305
    %v5330 = vcvt.s32.f32 %v4306
    %v5331 = vcvt.s32.f32 %v4307
    %v5332 = vcvt.s32.f32 %v4308
    %v5333 = vcvt.s32.f32 %v4309
    %v5334 = vcvt.s32.f32 %v4310
    %v5335 = vcvt.s32.f32 %v4311
    %v5336 = vcvt.s32.f32 %v4312
    %v5337 = vcvt.s32.f32 %v4313
    %v5338 = vcvt.s32.f32 %v4314
    %v5339 = vcvt.s32.f32 %v4315
    %v5340 = vcvt.s32.f32 %v4316
    %v5341 = vcvt.s32.f32 %v4317
    %v5342 = vcvt.s32.f32 %v4318
    %v5343 = vcvt.s32.f32 %v4319
    %v5344 = vcvt.s32.f32 %v4320
    %v5345 = vcvt.s32.f32 %v4321
    %v5346 = vcvt.s32.f32 %v4322
    %v5347 = vcvt.s32.f32 %v4323
    %v5348 = vcvt.s32.f32 %v4324
    %v5349 = vcvt.s32.f32 %v4325
    %v5350 = vcvt.s32.f32 %v4326
    %v5351 = vcvt.s32.f32 %v4327
    %v5352 = vcvt.s32.f32 %v4328
    %v5353 = vcvt.s32.f32 %v4329
    %v5354 = vcvt.s32.f32 %v4330
    %v5355 = vcvt.s32.f32 %v4331
    %v5356 = vcvt.s32.f32 %v4332
    %v5357 = vcvt.s32.f32 %v4333
    %v5358 = vcvt.s32.f32 %v4334
    %v5359 = vcvt.s32.f32 %v4335
    %v5360 = vcvt.s32.f32 %v4336
    %v5361 = vcvt.s32.f32 %v4337
    %v5362 = vcvt.s32.f32 %v4338
    %v5363 = vcvt.s32.f32 %v4339
    %v5364 = vcvt.s32.f32 %v4340
    %v5365 = vcvt.s32.f32 %v4341
    %v5366 = vcvt.s32.f32 %v4342
    %v5367 = vcvt.s32.f32 %v4343
    %v5368 = vcvt.s32.f32 %v4344
    %v5369 = vcvt.s32.f32 %v4345
    %v5370 = vcvt.s32.f32 %v4346
    %v5371 = vcvt.s32.f32 %v4347
    %v5372 = vcvt.s32.f32 %v4348
    %v5373 = vcvt.s32.f32 %v4349
    %v5374 = vcvt.s32.f32 %v4350
    %v5375 = vcvt.s32.f32 %v4351
    %v5376 = vcvt.s32.f32 %v4352
    %v5377 = vcvt.s32.f32 %v4353
    %v5378 = vcvt.s32.f32 %v4354
    %v5379 = vcvt.s32.f32 %v4355
    %v5380 = vcvt.s32.f32 %v4356
    %v5381 = vcvt.s32.f32 %v4357
    %v5382 = vcvt.s32.f32 %v4358
    %v5383 = vcvt.s32.f32 %v4359
    %v5384 = vcvt.s32.f32 %v4360
    %v5385 = vcvt.s32.f32 %v4361
    %v5386 = vcvt.s32.f32 %v4362
    %v5387 = vcvt.s32.f32 %v4363
    %v5388 = vcvt.s32.f32 %v4364
    %v5389 = vcvt.s32.f32 %v4365
    %v5390 = vcvt.s32.f32 %v4366
    %v5391 = vcvt.s32.f32 %v4367
    %v5392 = vcvt.s32.f32 %v4368
    %v5393 = vcvt.s32.f32 %v4369
    %v5394 = vpack.c.bf16 %v4378, %v4370
    %v5395 = vpack.c.bf16 %v4379, %v4371
    %v5396 = vpack.c.bf16 %v4380, %v4372
    %v5397 = vpack.c.bf16 %v4381, %v4373
    %v5398 = vpack.c.bf16 %v4382, %v4374
    %v5399 = vpack.c.bf16 %v4383, %v4375
    %v5400 = vpack.c.bf16 %v4384, %v4376
    %v5401 = vpack.c.bf16 %v4385, %v4377
    %v5402 = vpack.c.bf16 %v4394, %v4386
    %v5403 = vpack.c.bf16 %v4395, %v4387
    %v5404 = vpack.c.bf16 %v4396, %v4388
    %v5405 = vpack.c.bf16 %v4397, %v4389
    %v5406 = vpack.c.bf16 %v4398, %v4390
    %v5407 = vpack.c.bf16 %v4399, %v4391
    %v5408 = vpack.c.bf16 %v4400, %v4392
    %v5409 = vpack.c.bf16 %v4401, %v4393
    %v5410 = vpack.c.bf16 %v4410, %v4402
    %v5411 = vpack.c.bf16 %v4411, %v4403
    %v5412 = vpack.c.bf16 %v4412, %v4404
    %v5413 = vpack.c.bf16 %v4413, %v4405
    %v5414 = vpack.c.bf16 %v4414, %v4406
    %v5415 = vpack.c.bf16 %v4415, %v4407
    %v5416 = vpack.c.bf16 %v4416, %v4408
    %v5417 = vpack.c.bf16 %v4417, %v4409
    %v5418 = vpack.c.bf16 %v4426, %v4418
    %v5419 = vpack.c.bf16 %v4427, %v4419
    %v5420 = vpack.c.bf16 %v4428, %v4420
    %v5421 = vpack.c.bf16 %v4429, %v4421
    %v5422 = vpack.c.bf16 %v4430, %v4422
    %v5423 = vpack.c.bf16 %v4431, %v4423
    %v5424 = vpack.c.bf16 %v4432, %v4424
    %v5425 = vpack.c.bf16 %v4433, %v4425
    %v5426 = vpack.c.bf16 %v4442, %v4434
    %v5427 = vpack.c.bf16 %v4443, %v4435
    %v5428 = vpack.c.bf16 %v4444, %v4436
    %v5429 = vpack.c.bf16 %v4445, %v4437
    %v5430 = vpack.c.bf16 %v4446, %v4438
    %v5431 = vpack.c.bf16 %v4447, %v4439
    %v5432 = vpack.c.bf16 %v4448, %v4440
    %v5433 = vpack.c.bf16 %v4449, %v4441
    %v5434 = vpack.c.bf16 %v4458, %v4450
    %v5435 = vpack.c.bf16 %v4459, %v4451
    %v5436 = vpack.c.bf16 %v4460, %v4452
    %v5437 = vpack.c.bf16 %v4461, %v4453
    %v5438 = vpack.c.bf16 %v4462, %v4454
    %v5439 = vpack.c.bf16 %v4463, %v4455
    %v5440 = vpack.c.bf16 %v4464, %v4456
    %v5441 = vpack.c.bf16 %v4465, %v4457
    %v5442 = vpack.c.bf16 %v4474, %v4466
    %v5443 = vpack.c.bf16 %v4475, %v4467
    %v5444 = vpack.c.bf16 %v4476, %v4468
    %v5445 = vpack.c.bf16 %v4477, %v4469
    %v5446 = vpack.c.bf16 %v4478, %v4470
    %v5447 = vpack.c.bf16 %v4479, %v4471
    %v5448 = vpack.c.bf16 %v4480, %v4472
    %v5449 = vpack.c.bf16 %v4481, %v4473
    %v5450 = vpack.c.bf16 %v4490, %v4482
    %v5451 = vpack.c.bf16 %v4491, %v4483
    %v5452 = vpack.c.bf16 %v4492, %v4484
    %v5453 = vpack.c.bf16 %v4493, %v4485
    %v5454 = vpack.c.bf16 %v4494, %v4486
    %v5455 = vpack.c.bf16 %v4495, %v4487
    %v5456 = vpack.c.bf16 %v4496, %v4488
    %v5457 = vpack.c.bf16 %v4497, %v4489
    %v5458 = vpack.c.bf16 %v4506, %v4498
    %v5459 = vpack.c.bf16 %v4507, %v4499
    %v5460 = vpack.c.bf16 %v4508, %v4500
    %v5461 = vpack.c.bf16 %v4509, %v4501
    %v5462 = vpack.c.bf16 %v4510, %v4502
    %v5463 = vpack.c.bf16 %v4511, %v4503
    %v5464 = vpack.c.bf16 %v4512, %v4504
    %v5465 = vpack.c.bf16 %v4513, %v4505
    %v5466 = vpack.c.bf16 %v4522, %v4514
    %v5467 = vpack.c.bf16 %v4523, %v4515
    %v5468 = vpack.c.bf16 %v4524, %v4516
    %v5469 = vpack.c.bf16 %v4525, %v4517
    %v5470 = vpack.c.bf16 %v4526, %v4518
    %v5471 = vpack.c.bf16 %v4527, %v4519
    %v5472 = vpack.c.bf16 %v4528, %v4520
    %v5473 = vpack.c.bf16 %v4529, %v4521
    %v5474 = vpack.c.bf16 %v4538, %v4530
    %v5475 = vpack.c.bf16 %v4539, %v4531
    %v5476 = vpack.c.bf16 %v4540, %v4532
    %v5477 = vpack.c.bf16 %v4541, %v4533
    %v5478 = vpack.c.bf16 %v4542, %v4534
    %v5479 = vpack.c.bf16 %v4543, %v4535
    %v5480 = vpack.c.bf16 %v4544, %v4536
    %v5481 = vpack.c.bf16 %v4545, %v4537
    %v5482 = vpack.c.bf16 %v4554, %v4546
    %v5483 = vpack.c.bf16 %v4555, %v4547
    %v5484 = vpack.c.bf16 %v4556, %v4548
    %v5485 = vpack.c.bf16 %v4557, %v4549
    %v5486 = vpack.c.bf16 %v4558, %v4550
    %v5487 = vpack.c.bf16 %v4559, %v4551
    %v5488 = vpack.c.bf16 %v4560, %v4552
    %v5489 = vpack.c.bf16 %v4561, %v4553
    %v5490 = vpack.c.bf16 %v4570, %v4562
    %v5491 = vpack.c.bf16 %v4571, %v4563
    %v5492 = vpack.c.bf16 %v4572, %v4564
    %v5493 = vpack.c.bf16 %v4573, %v4565
    %v5494 = vpack.c.bf16 %v4574, %v4566
    %v5495 = vpack.c.bf16 %v4575, %v4567
    %v5496 = vpack.c.bf16 %v4576, %v4568
    %v5497 = vpack.c.bf16 %v4577, %v4569
    %v5498 = vpack.c.bf16 %v4586, %v4578
    %v5499 = vpack.c.bf16 %v4587, %v4579
    %v5500 = vpack.c.bf16 %v4588, %v4580
    %v5501 = vpack.c.bf16 %v4589, %v4581
    %v5502 = vpack.c.bf16 %v4590, %v4582
    %v5503 = vpack.c.bf16 %v4591, %v4583
    %v5504 = vpack.c.bf16 %v4592, %v4584
    %v5505 = vpack.c.bf16 %v4593, %v4585
    %v5506 = vpack.c.bf16 %v4602, %v4594
    %v5507 = vpack.c.bf16 %v4603, %v4595
    %v5508 = vpack.c.bf16 %v4604, %v4596
    %v5509 = vpack.c.bf16 %v4605, %v4597
    %v5510 = vpack.c.bf16 %v4606, %v4598
    %v5511 = vpack.c.bf16 %v4607, %v4599
    %v5512 = vpack.c.bf16 %v4608, %v4600
    %v5513 = vpack.c.bf16 %v4609, %v4601
    %v5514 = vpack.c.bf16 %v4618, %v4610
    %v5515 = vpack.c.bf16 %v4619, %v4611
    %v5516 = vpack.c.bf16 %v4620, %v4612
    %v5517 = vpack.c.bf16 %v4621, %v4613
    %v5518 = vpack.c.bf16 %v4622, %v4614
    %v5519 = vpack.c.bf16 %v4623, %v4615
    %v5520 = vpack.c.bf16 %v4624, %v4616
    %v5521 = vpack.c.bf16 %v4625, %v4617
    %v5522 = vpack.c.bf16 %v4634, %v4626
    %v5523 = vpack.c.bf16 %v4635, %v4627
    %v5524 = vpack.c.bf16 %v4636, %v4628
    %v5525 = vpack.c.bf16 %v4637, %v4629
    %v5526 = vpack.c.bf16 %v4638, %v4630
    %v5527 = vpack.c.bf16 %v4639, %v4631
    %v5528 = vpack.c.bf16 %v4640, %v4632
    %v5529 = vpack.c.bf16 %v4641, %v4633
    %v5530 = vpack.c.bf16 %v4650, %v4642
    %v5531 = vpack.c.bf16 %v4651, %v4643
    %v5532 = vpack.c.bf16 %v4652, %v4644
    %v5533 = vpack.c.bf16 %v4653, %v4645
    %v5534 = vpack.c.bf16 %v4654, %v4646
    %v5535 = vpack.c.bf16 %v4655, %v4647
    %v5536 = vpack.c.bf16 %v4656, %v4648
    %v5537 = vpack.c.bf16 %v4657, %v4649
    %v5538 = vpack.c.bf16 %v4666, %v4658
    %v5539 = vpack.c.bf16 %v4667, %v4659
    %v5540 = vpack.c.bf16 %v4668, %v4660
    %v5541 = vpack.c.bf16 %v4669, %v4661
    %v5542 = vpack.c.bf16 %v4670, %v4662
    %v5543 = vpack.c.bf16 %v4671, %v4663
    %v5544 = vpack.c.bf16 %v4672, %v4664
    %v5545 = vpack.c.bf16 %v4673, %v4665
    %v5546 = vpack.c.bf16 %v4682, %v4674
    %v5547 = vpack.c.bf16 %v4683, %v4675
    %v5548 = vpack.c.bf16 %v4684, %v4676
    %v5549 = vpack.c.bf16 %v4685, %v4677
    %v5550 = vpack.c.bf16 %v4686, %v4678
    %v5551 = vpack.c.bf16 %v4687, %v4679
    %v5552 = vpack.c.bf16 %v4688, %v4680
    %v5553 = vpack.c.bf16 %v4689, %v4681
    %v5554 = vpack.c.bf16 %v4698, %v4690
    %v5555 = vpack.c.bf16 %v4699, %v4691
    %v5556 = vpack.c.bf16 %v4700, %v4692
    %v5557 = vpack.c.bf16 %v4701, %v4693
    %v5558 = vpack.c.bf16 %v4702, %v4694
    %v5559 = vpack.c.bf16 %v4703, %v4695
    %v5560 = vpack.c.bf16 %v4704, %v4696
    %v5561 = vpack.c.bf16 %v4705, %v4697
    %v5562 = vpack.c.bf16 %v4714, %v4706
    %v5563 = vpack.c.bf16 %v4715, %v4707
    %v5564 = vpack.c.bf16 %v4716, %v4708
    %v5565 = vpack.c.bf16 %v4717, %v4709
    %v5566 = vpack.c.bf16 %v4718, %v4710
    %v5567 = vpack.c.bf16 %v4719, %v4711
    %v5568 = vpack.c.bf16 %v4720, %v4712
    %v5569 = vpack.c.bf16 %v4721, %v4713
    %v5570 = vpack.c.bf16 %v4730, %v4722
    %v5571 = vpack.c.bf16 %v4731, %v4723
    %v5572 = vpack.c.bf16 %v4732, %v4724
    %v5573 = vpack.c.bf16 %v4733, %v4725
    %v5574 = vpack.c.bf16 %v4734, %v4726
    %v5575 = vpack.c.bf16 %v4735, %v4727
    %v5576 = vpack.c.bf16 %v4736, %v4728
    %v5577 = vpack.c.bf16 %v4737, %v4729
    %v5578 = vpack.c.bf16 %v4746, %v4738
    %v5579 = vpack.c.bf16 %v4747, %v4739
    %v5580 = vpack.c.bf16 %v4748, %v4740
    %v5581 = vpack.c.bf16 %v4749, %v4741
    %v5582 = vpack.c.bf16 %v4750, %v4742
    %v5583 = vpack.c.bf16 %v4751, %v4743
    %v5584 = vpack.c.bf16 %v4752, %v4744
    %v5585 = vpack.c.bf16 %v4753, %v4745
    %v5586 = vpack.c.bf16 %v4762, %v4754
    %v5587 = vpack.c.bf16 %v4763, %v4755
    %v5588 = vpack.c.bf16 %v4764, %v4756
    %v5589 = vpack.c.bf16 %v4765, %v4757
    %v5590 = vpack.c.bf16 %v4766, %v4758
    %v5591 = vpack.c.bf16 %v4767, %v4759
    %v5592 = vpack.c.bf16 %v4768, %v4760
    %v5593 = vpack.c.bf16 %v4769, %v4761
    %v5594 = vpack.c.bf16 %v4778, %v4770
    %v5595 = vpack.c.bf16 %v4779, %v4771
    %v5596 = vpack.c.bf16 %v4780, %v4772
    %v5597 = vpack.c.bf16 %v4781, %v4773
    %v5598 = vpack.c.bf16 %v4782, %v4774
    %v5599 = vpack.c.bf16 %v4783, %v4775
    %v5600 = vpack.c.bf16 %v4784, %v4776
    %v5601 = vpack.c.bf16 %v4785, %v4777
    %v5602 = vpack.c.bf16 %v4794, %v4786
    %v5603 = vpack.c.bf16 %v4795, %v4787
    %v5604 = vpack.c.bf16 %v4796, %v4788
    %v5605 = vpack.c.bf16 %v4797, %v4789
    %v5606 = vpack.c.bf16 %v4798, %v4790
    %v5607 = vpack.c.bf16 %v4799, %v4791
    %v5608 = vpack.c.bf16 %v4800, %v4792
    %v5609 = vpack.c.bf16 %v4801, %v4793
    %v5610 = vpack.c.bf16 %v4810, %v4802
    %v5611 = vpack.c.bf16 %v4811, %v4803
    %v5612 = vpack.c.bf16 %v4812, %v4804
    %v5613 = vpack.c.bf16 %v4813, %v4805
    %v5614 = vpack.c.bf16 %v4814, %v4806
    %v5615 = vpack.c.bf16 %v4815, %v4807
    %v5616 = vpack.c.bf16 %v4816, %v4808
    %v5617 = vpack.c.bf16 %v4817, %v4809
    %v5618 = vpack.c.bf16 %v4826, %v4818
    %v5619 = vpack.c.bf16 %v4827, %v4819
    %v5620 = vpack.c.bf16 %v4828, %v4820
    %v5621 = vpack.c.bf16 %v4829, %v4821
    %v5622 = vpack.c.bf16 %v4830, %v4822
    %v5623 = vpack.c.bf16 %v4831, %v4823
    %v5624 = vpack.c.bf16 %v4832, %v4824
    %v5625 = vpack.c.bf16 %v4833, %v4825
    %v5626 = vpack.c.bf16 %v4842, %v4834
    %v5627 = vpack.c.bf16 %v4843, %v4835
    %v5628 = vpack.c.bf16 %v4844, %v4836
    %v5629 = vpack.c.bf16 %v4845, %v4837
    %v5630 = vpack.c.bf16 %v4846, %v4838
    %v5631 = vpack.c.bf16 %v4847, %v4839
    %v5632 = vpack.c.bf16 %v4848, %v4840
    %v5633 = vpack.c.bf16 %v4849, %v4841
    %v5634 = vpack.c.bf16 %v4858, %v4850
    %v5635 = vpack.c.bf16 %v4859, %v4851
    %v5636 = vpack.c.bf16 %v4860, %v4852
    %v5637 = vpack.c.bf16 %v4861, %v4853
    %v5638 = vpack.c.bf16 %v4862, %v4854
    %v5639 = vpack.c.bf16 %v4863, %v4855
    %v5640 = vpack.c.bf16 %v4864, %v4856
    %v5641 = vpack.c.bf16 %v4865, %v4857
    %v5642 = vpack.c.bf16 %v4874, %v4866
    %v5643 = vpack.c.bf16 %v4875, %v4867
    %v5644 = vpack.c.bf16 %v4876, %v4868
    %v5645 = vpack.c.bf16 %v4877, %v4869
    %v5646 = vpack.c.bf16 %v4878, %v4870
    %v5647 = vpack.c.bf16 %v4879, %v4871
    %v5648 = vpack.c.bf16 %v4880, %v4872
    %v5649 = vpack.c.bf16 %v4881, %v4873
    %v5650 = vpack.c.bf16 %v4890, %v4882
    %v5651 = vpack.c.bf16 %v4891, %v4883
    %v5652 = vpack.c.bf16 %v4892, %v4884
    %v5653 = vpack.c.bf16 %v4893, %v4885
    %v5654 = vpack.c.bf16 %v4894, %v4886
    %v5655 = vpack.c.bf16 %v4895, %v4887
    %v5656 = vpack.c.bf16 %v4896, %v4888
    %v5657 = vpack.c.bf16 %v4897, %v4889
    %v5658 = vpack.c.bf16 %v4906, %v4898
    %v5659 = vpack.c.bf16 %v4907, %v4899
    %v5660 = vpack.c.bf16 %v4908, %v4900
    %v5661 = vpack.c.bf16 %v4909, %v4901
    %v5662 = vpack.c.bf16 %v4910, %v4902
    %v5663 = vpack.c.bf16 %v4911, %v4903
    %v5664 = vpack.c.bf16 %v4912, %v4904
    %v5665 = vpack.c.bf16 %v4913, %v4905
    %v5666 = vpack.c.bf16 %v4922, %v4914
    %v5667 = vpack.c.bf16 %v4923, %v4915
    %v5668 = vpack.c.bf16 %v4924, %v4916
    %v5669 = vpack.c.bf16 %v4925, %v4917
    %v5670 = vpack.c.bf16 %v4926, %v4918
    %v5671 = vpack.c.bf16 %v4927, %v4919
    %v5672 = vpack.c.bf16 %v4928, %v4920
    %v5673 = vpack.c.bf16 %v4929, %v4921
    %v5674 = vpack.c.bf16 %v4938, %v4930
    %v5675 = vpack.c.bf16 %v4939, %v4931
    %v5676 = vpack.c.bf16 %v4940, %v4932
    %v5677 = vpack.c.bf16 %v4941, %v4933
    %v5678 = vpack.c.bf16 %v4942, %v4934
    %v5679 = vpack.c.bf16 %v4943, %v4935
    %v5680 = vpack.c.bf16 %v4944, %v4936
    %v5681 = vpack.c.bf16 %v4945, %v4937
    %v5682 = vpack.c.bf16 %v4954, %v4946
    %v5683 = vpack.c.bf16 %v4955, %v4947
    %v5684 = vpack.c.bf16 %v4956, %v4948
    %v5685 = vpack.c.bf16 %v4957, %v4949
    %v5686 = vpack.c.bf16 %v4958, %v4950
    %v5687 = vpack.c.bf16 %v4959, %v4951
    %v5688 = vpack.c.bf16 %v4960, %v4952
    %v5689 = vpack.c.bf16 %v4961, %v4953
    %v5690 = vpack.c.bf16 %v4970, %v4962
    %v5691 = vpack.c.bf16 %v4971, %v4963
    %v5692 = vpack.c.bf16 %v4972, %v4964
    %v5693 = vpack.c.bf16 %v4973, %v4965
    %v5694 = vpack.c.bf16 %v4974, %v4966
    %v5695 = vpack.c.bf16 %v4975, %v4967
    %v5696 = vpack.c.bf16 %v4976, %v4968
    %v5697 = vpack.c.bf16 %v4977, %v4969
    %v5698 = vpack.c.bf16 %v4986, %v4978
    %v5699 = vpack.c.bf16 %v4987, %v4979
    %v5700 = vpack.c.bf16 %v4988, %v4980
    %v5701 = vpack.c.bf16 %v4989, %v4981
    %v5702 = vpack.c.bf16 %v4990, %v4982
    %v5703 = vpack.c.bf16 %v4991, %v4983
    %v5704 = vpack.c.bf16 %v4992, %v4984
    %v5705 = vpack.c.bf16 %v4993, %v4985
    %v5706 = vpack.c.bf16 %v5002, %v4994
    %v5707 = vpack.c.bf16 %v5003, %v4995
    %v5708 = vpack.c.bf16 %v5004, %v4996
    %v5709 = vpack.c.bf16 %v5005, %v4997
    %v5710 = vpack.c.bf16 %v5006, %v4998
    %v5711 = vpack.c.bf16 %v5007, %v4999
    %v5712 = vpack.c.bf16 %v5008, %v5000
    %v5713 = vpack.c.bf16 %v5009, %v5001
    %v5714 = vpack.c.bf16 %v5018, %v5010
    %v5715 = vpack.c.bf16 %v5019, %v5011
    %v5716 = vpack.c.bf16 %v5020, %v5012
    %v5717 = vpack.c.bf16 %v5021, %v5013
    %v5718 = vpack.c.bf16 %v5022, %v5014
    %v5719 = vpack.c.bf16 %v5023, %v5015
    %v5720 = vpack.c.bf16 %v5024, %v5016
    %v5721 = vpack.c.bf16 %v5025, %v5017
    %v5722 = vpack.c.bf16 %v5034, %v5026
    %v5723 = vpack.c.bf16 %v5035, %v5027
    %v5724 = vpack.c.bf16 %v5036, %v5028
    %v5725 = vpack.c.bf16 %v5037, %v5029
    %v5726 = vpack.c.bf16 %v5038, %v5030
    %v5727 = vpack.c.bf16 %v5039, %v5031
    %v5728 = vpack.c.bf16 %v5040, %v5032
    %v5729 = vpack.c.bf16 %v5041, %v5033
    %v5730 = vpack.c.bf16 %v5050, %v5042
    %v5731 = vpack.c.bf16 %v5051, %v5043
    %v5732 = vpack.c.bf16 %v5052, %v5044
    %v5733 = vpack.c.bf16 %v5053, %v5045
    %v5734 = vpack.c.bf16 %v5054, %v5046
    %v5735 = vpack.c.bf16 %v5055, %v5047
    %v5736 = vpack.c.bf16 %v5056, %v5048
    %v5737 = vpack.c.bf16 %v5057, %v5049
    %v5738 = vpack.c.bf16 %v5066, %v5058
    %v5739 = vpack.c.bf16 %v5067, %v5059
    %v5740 = vpack.c.bf16 %v5068, %v5060
    %v5741 = vpack.c.bf16 %v5069, %v5061
    %v5742 = vpack.c.bf16 %v5070, %v5062
    %v5743 = vpack.c.bf16 %v5071, %v5063
    %v5744 = vpack.c.bf16 %v5072, %v5064
    %v5745 = vpack.c.bf16 %v5073, %v5065
    %v5746 = vpack.c.bf16 %v5082, %v5074
    %v5747 = vpack.c.bf16 %v5083, %v5075
    %v5748 = vpack.c.bf16 %v5084, %v5076
    %v5749 = vpack.c.bf16 %v5085, %v5077
    %v5750 = vpack.c.bf16 %v5086, %v5078
    %v5751 = vpack.c.bf16 %v5087, %v5079
    %v5752 = vpack.c.bf16 %v5088, %v5080
    %v5753 = vpack.c.bf16 %v5089, %v5081
    %v5754 = vpack.c.bf16 %v5098, %v5090
    %v5755 = vpack.c.bf16 %v5099, %v5091
    %v5756 = vpack.c.bf16 %v5100, %v5092
    %v5757 = vpack.c.bf16 %v5101, %v5093
    %v5758 = vpack.c.bf16 %v5102, %v5094
    %v5759 = vpack.c.bf16 %v5103, %v5095
    %v5760 = vpack.c.bf16 %v5104, %v5096
    %v5761 = vpack.c.bf16 %v5105, %v5097
    %v5762 = vpack.c.bf16 %v5114, %v5106
    %v5763 = vpack.c.bf16 %v5115, %v5107
    %v5764 = vpack.c.bf16 %v5116, %v5108
    %v5765 = vpack.c.bf16 %v5117, %v5109
    %v5766 = vpack.c.bf16 %v5118, %v5110
    %v5767 = vpack.c.bf16 %v5119, %v5111
    %v5768 = vpack.c.bf16 %v5120, %v5112
    %v5769 = vpack.c.bf16 %v5121, %v5113
    %v5770 = vpack.c.bf16 %v5130, %v5122
    %v5771 = vpack.c.bf16 %v5131, %v5123
    %v5772 = vpack.c.bf16 %v5132, %v5124
    %v5773 = vpack.c.bf16 %v5133, %v5125
    %v5774 = vpack.c.bf16 %v5134, %v5126
    %v5775 = vpack.c.bf16 %v5135, %v5127
    %v5776 = vpack.c.bf16 %v5136, %v5128
    %v5777 = vpack.c.bf16 %v5137, %v5129
    %v5778 = vpack.c.bf16 %v5146, %v5138
    %v5779 = vpack.c.bf16 %v5147, %v5139
    %v5780 = vpack.c.bf16 %v5148, %v5140
    %v5781 = vpack.c.bf16 %v5149, %v5141
    %v5782 = vpack.c.bf16 %v5150, %v5142
    %v5783 = vpack.c.bf16 %v5151, %v5143
    %v5784 = vpack.c.bf16 %v5152, %v5144
    %v5785 = vpack.c.bf16 %v5153, %v5145
    %v5786 = vpack.c.bf16 %v5162, %v5154
    %v5787 = vpack.c.bf16 %v5163, %v5155
    %v5788 = vpack.c.bf16 %v5164, %v5156
    %v5789 = vpack.c.bf16 %v5165, %v5157
    %v5790 = vpack.c.bf16 %v5166, %v5158
    %v5791 = vpack.c.bf16 %v5167, %v5159
    %v5792 = vpack.c.bf16 %v5168, %v5160
    %v5793 = vpack.c.bf16 %v5169, %v5161
    %v5794 = vpack.c.bf16 %v5178, %v5170
    %v5795 = vpack.c.bf16 %v5179, %v5171
    %v5796 = vpack.c.bf16 %v5180, %v5172
    %v5797 = vpack.c.bf16 %v5181, %v5173
    %v5798 = vpack.c.bf16 %v5182, %v5174
    %v5799 = vpack.c.bf16 %v5183, %v5175
    %v5800 = vpack.c.bf16 %v5184, %v5176
    %v5801 = vpack.c.bf16 %v5185, %v5177
    %v5802 = vpack.c.bf16 %v5194, %v5186
    %v5803 = vpack.c.bf16 %v5195, %v5187
    %v5804 = vpack.c.bf16 %v5196, %v5188
    %v5805 = vpack.c.bf16 %v5197, %v5189
    %v5806 = vpack.c.bf16 %v5198, %v5190
    %v5807 = vpack.c.bf16 %v5199, %v5191
    %v5808 = vpack.c.bf16 %v5200, %v5192
    %v5809 = vpack.c.bf16 %v5201, %v5193
    %v5810 = vpack.c.bf16 %v5210, %v5202
    %v5811 = vpack.c.bf16 %v5211, %v5203
    %v5812 = vpack.c.bf16 %v5212, %v5204
    %v5813 = vpack.c.bf16 %v5213, %v5205
    %v5814 = vpack.c.bf16 %v5214, %v5206
    %v5815 = vpack.c.bf16 %v5215, %v5207
    %v5816 = vpack.c.bf16 %v5216, %v5208
    %v5817 = vpack.c.bf16 %v5217, %v5209
    %v5818 = vpack.c.bf16 %v5226, %v5218
    %v5819 = vpack.c.bf16 %v5227, %v5219
    %v5820 = vpack.c.bf16 %v5228, %v5220
    %v5821 = vpack.c.bf16 %v5229, %v5221
    %v5822 = vpack.c.bf16 %v5230, %v5222
    %v5823 = vpack.c.bf16 %v5231, %v5223
    %v5824 = vpack.c.bf16 %v5232, %v5224
    %v5825 = vpack.c.bf16 %v5233, %v5225
    %v5826 = vpack.c.bf16 %v5242, %v5234
    %v5827 = vpack.c.bf16 %v5243, %v5235
    %v5828 = vpack.c.bf16 %v5244, %v5236
    %v5829 = vpack.c.bf16 %v5245, %v5237
    %v5830 = vpack.c.bf16 %v5246, %v5238
    %v5831 = vpack.c.bf16 %v5247, %v5239
    %v5832 = vpack.c.bf16 %v5248, %v5240
    %v5833 = vpack.c.bf16 %v5249, %v5241
    %v5834 = vpack.c.bf16 %v5258, %v5250
    %v5835 = vpack.c.bf16 %v5259, %v5251
    %v5836 = vpack.c.bf16 %v5260, %v5252
    %v5837 = vpack.c.bf16 %v5261, %v5253
    %v5838 = vpack.c.bf16 %v5262, %v5254
    %v5839 = vpack.c.bf16 %v5263, %v5255
    %v5840 = vpack.c.bf16 %v5264, %v5256
    %v5841 = vpack.c.bf16 %v5265, %v5257
    %v5842 = vpack.c.bf16 %v5274, %v5266
    %v5843 = vpack.c.bf16 %v5275, %v5267
    %v5844 = vpack.c.bf16 %v5276, %v5268
    %v5845 = vpack.c.bf16 %v5277, %v5269
    %v5846 = vpack.c.bf16 %v5278, %v5270
    %v5847 = vpack.c.bf16 %v5279, %v5271
    %v5848 = vpack.c.bf16 %v5280, %v5272
    %v5849 = vpack.c.bf16 %v5281, %v5273
    %v5850 = vpack.c.bf16 %v5290, %v5282
    %v5851 = vpack.c.bf16 %v5291, %v5283
    %v5852 = vpack.c.bf16 %v5292, %v5284
    %v5853 = vpack.c.bf16 %v5293, %v5285
    %v5854 = vpack.c.bf16 %v5294, %v5286
    %v5855 = vpack.c.bf16 %v5295, %v5287
    %v5856 = vpack.c.bf16 %v5296, %v5288
    %v5857 = vpack.c.bf16 %v5297, %v5289
    %v5858 = vpack.c.bf16 %v5306, %v5298
    %v5859 = vpack.c.bf16 %v5307, %v5299
    %v5860 = vpack.c.bf16 %v5308, %v5300
    %v5861 = vpack.c.bf16 %v5309, %v5301
    %v5862 = vpack.c.bf16 %v5310, %v5302
    %v5863 = vpack.c.bf16 %v5311, %v5303
    %v5864 = vpack.c.bf16 %v5312, %v5304
    %v5865 = vpack.c.bf16 %v5313, %v5305
    %v5866 = vpack.c.bf16 %v5322, %v5314
    %v5867 = vpack.c.bf16 %v5323, %v5315
    %v5868 = vpack.c.bf16 %v5324, %v5316
    %v5869 = vpack.c.bf16 %v5325, %v5317
    %v5870 = vpack.c.bf16 %v5326, %v5318
    %v5871 = vpack.c.bf16 %v5327, %v5319
    %v5872 = vpack.c.bf16 %v5328, %v5320
    %v5873 = vpack.c.bf16 %v5329, %v5321
    %v5874 = vpack.c.bf16 %v5338, %v5330
    %v5875 = vpack.c.bf16 %v5339, %v5331
    %v5876 = vpack.c.bf16 %v5340, %v5332
    %v5877 = vpack.c.bf16 %v5341, %v5333
    %v5878 = vpack.c.bf16 %v5342, %v5334
    %v5879 = vpack.c.bf16 %v5343, %v5335
    %v5880 = vpack.c.bf16 %v5344, %v5336
    %v5881 = vpack.c.bf16 %v5345, %v5337
    %v5882 = vpack.c.bf16 %v5354, %v5346
    %v5883 = vpack.c.bf16 %v5355, %v5347
    %v5884 = vpack.c.bf16 %v5356, %v5348
    %v5885 = vpack.c.bf16 %v5357, %v5349
    %v5886 = vpack.c.bf16 %v5358, %v5350
    %v5887 = vpack.c.bf16 %v5359, %v5351
    %v5888 = vpack.c.bf16 %v5360, %v5352
    %v5889 = vpack.c.bf16 %v5361, %v5353
    %v5890 = vpack.c.bf16 %v5370, %v5362
    %v5891 = vpack.c.bf16 %v5371, %v5363
    %v5892 = vpack.c.bf16 %v5372, %v5364
    %v5893 = vpack.c.bf16 %v5373, %v5365
    %v5894 = vpack.c.bf16 %v5374, %v5366
    %v5895 = vpack.c.bf16 %v5375, %v5367
    %v5896 = vpack.c.bf16 %v5376, %v5368
    %v5897 = vpack.c.bf16 %v5377, %v5369
    %v5898 = vpack.c.bf16 %v5386, %v5378
    %v5899 = vpack.c.bf16 %v5387, %v5379
    %v5900 = vpack.c.bf16 %v5388, %v5380
    %v5901 = vpack.c.bf16 %v5389, %v5381
    %v5902 = vpack.c.bf16 %v5390, %v5382
    %v5903 = vpack.c.bf16 %v5391, %v5383
    %v5904 = vpack.c.bf16 %v5392, %v5384
    %v5905 = vpack.c.bf16 %v5393, %v5385
    %v5906 = vld [vmem:[%s5] sm:$0xff]
    %v5907 = vld [vmem:[%s6] sm:$0xff]
    %5908 = vmatpush.bf16.msra.mxu0 %v5450
    %5909 = vmatpush.bf16.msra.mxu0 %v5442
    %5910 = vmatpush.bf16.msra.mxu0 %v5434
    %5911 = vmatpush.bf16.msra.mxu0 %v5426
    %5912 = vmatpush.bf16.msra.mxu0 %v5418
    %5913 = vmatpush.bf16.msra.mxu0 %v5410
    %5914 = vmatpush.bf16.msra.mxu0 %v5402
    %5915 = vmatpush.bf16.msra.mxu0 %v5394
    %5916 = vmatmul.bf16.gmra.mxu0 %v3082
    %v5917 = vpop.f32.mrf.mxu0
    %v5918 = vadd.f32 0.0, %v5917
    %v5919 = vpop.f32.mrf.mxu0
    %5920 = vdwg.mxu0
    %5921 = vmatpush.bf16.msra.mxu0 %v5514
    %5922 = vmatpush.bf16.msra.mxu0 %v5506
    %5923 = vmatpush.bf16.msra.mxu0 %v5498
    %5924 = vmatpush.bf16.msra.mxu0 %v5490
    %5925 = vmatpush.bf16.msra.mxu0 %v5482
    %5926 = vmatpush.bf16.msra.mxu0 %v5474
    %5927 = vmatpush.bf16.msra.mxu0 %v5466
    %5928 = vmatpush.bf16.msra.mxu0 %v5458
    %5929 = vmatmul.bf16.gmra.mxu0 %v3083
    %v5930 = vpop.f32.mrf.mxu0
    %v5931 = vadd.f32 %v5918, %v5930
    %v5932 = vpop.f32.mrf.mxu0
    %5933 = vdwg.mxu0
    %5934 = vmatpush.bf16.msra.mxu0 %v5578
    %5935 = vmatpush.bf16.msra.mxu0 %v5570
    %5936 = vmatpush.bf16.msra.mxu0 %v5562
    %5937 = vmatpush.bf16.msra.mxu0 %v5554
    %5938 = vmatpush.bf16.msra.mxu0 %v5546
    %5939 = vmatpush.bf16.msra.mxu0 %v5538
    %5940 = vmatpush.bf16.msra.mxu0 %v5530
    %5941 = vmatpush.bf16.msra.mxu0 %v5522
    %5942 = vmatmul.bf16.gmra.mxu0 %v3084
    %v5943 = vpop.f32.mrf.mxu0
    %v5944 = vadd.f32 %v5931, %v5943
    %v5945 = vpop.f32.mrf.mxu0
    %5946 = vdwg.mxu0
    %5947 = vmatpush.bf16.msra.mxu0 %v5642
    %5948 = vmatpush.bf16.msra.mxu0 %v5634
    %5949 = vmatpush.bf16.msra.mxu0 %v5626
    %5950 = vmatpush.bf16.msra.mxu0 %v5618
    %5951 = vmatpush.bf16.msra.mxu0 %v5610
    %5952 = vmatpush.bf16.msra.mxu0 %v5602
    %5953 = vmatpush.bf16.msra.mxu0 %v5594
    %5954 = vmatpush.bf16.msra.mxu0 %v5586
    %5955 = vmatmul.bf16.gmra.mxu0 %v3085
    %v5956 = vpop.f32.mrf.mxu0
    %v5957 = vadd.f32 %v5944, %v5956
    %v5958 = vpop.f32.mrf.mxu0
    %5959 = vdwg.mxu0
    %5960 = vmatpush.bf16.msra.mxu0 %v5706
    %5961 = vmatpush.bf16.msra.mxu0 %v5698
    %5962 = vmatpush.bf16.msra.mxu0 %v5690
    %5963 = vmatpush.bf16.msra.mxu0 %v5682
    %5964 = vmatpush.bf16.msra.mxu0 %v5674
    %5965 = vmatpush.bf16.msra.mxu0 %v5666
    %5966 = vmatpush.bf16.msra.mxu0 %v5658
    %5967 = vmatpush.bf16.msra.mxu0 %v5650
    %5968 = vmatmul.bf16.gmra.mxu0 %v3086
    %v5969 = vpop.f32.mrf.mxu0
    %v5970 = vadd.f32 %v5957, %v5969
    %v5971 = vpop.f32.mrf.mxu0
    %5972 = vdwg.mxu0
    %5973 = vmatpush.bf16.msra.mxu0 %v5770
    %5974 = vmatpush.bf16.msra.mxu0 %v5762
    %5975 = vmatpush.bf16.msra.mxu0 %v5754
    %5976 = vmatpush.bf16.msra.mxu0 %v5746
    %5977 = vmatpush.bf16.msra.mxu0 %v5738
    %5978 = vmatpush.bf16.msra.mxu0 %v5730
    %5979 = vmatpush.bf16.msra.mxu0 %v5722
    %5980 = vmatpush.bf16.msra.mxu0 %v5714
    %5981 = vmatmul.bf16.gmra.mxu0 %v3087
    %v5982 = vpop.f32.mrf.mxu0
    %v5983 = vadd.f32 %v5970, %v5982
    %v5984 = vpop.f32.mrf.mxu0
    %5985 = vdwg.mxu0
    %5986 = vmatpush.bf16.msra.mxu0 %v5834
    %5987 = vmatpush.bf16.msra.mxu0 %v5826
    %5988 = vmatpush.bf16.msra.mxu0 %v5818
    %5989 = vmatpush.bf16.msra.mxu0 %v5810
    %5990 = vmatpush.bf16.msra.mxu0 %v5802
    %5991 = vmatpush.bf16.msra.mxu0 %v5794
    %5992 = vmatpush.bf16.msra.mxu0 %v5786
    %5993 = vmatpush.bf16.msra.mxu0 %v5778
    %5994 = vmatmul.bf16.gmra.mxu0 %v3088
    %v5995 = vpop.f32.mrf.mxu0
    %v5996 = vadd.f32 %v5983, %v5995
    %v5997 = vpop.f32.mrf.mxu0
    %5998 = vdwg.mxu0
    %5999 = vmatpush.bf16.msra.mxu0 %v5898
    %6000 = vmatpush.bf16.msra.mxu0 %v5890
    %6001 = vmatpush.bf16.msra.mxu0 %v5882
    %6002 = vmatpush.bf16.msra.mxu0 %v5874
    %6003 = vmatpush.bf16.msra.mxu0 %v5866
    %6004 = vmatpush.bf16.msra.mxu0 %v5858
    %6005 = vmatpush.bf16.msra.mxu0 %v5850
    %6006 = vmatpush.bf16.msra.mxu0 %v5842
    %6007 = vmatmul.bf16.gmra.mxu0 %v3089
    %v6008 = vpop.f32.mrf.mxu0
    %v6009 = vadd.f32 %v5996, %v6008
    %v6010 = vpop.f32.mrf.mxu0
    %6011 = vdwg.mxu0
    %6012 = vmatpush.bf16.msra.mxu0 %v5451
    %6013 = vmatpush.bf16.msra.mxu0 %v5443
    %6014 = vmatpush.bf16.msra.mxu0 %v5435
    %6015 = vmatpush.bf16.msra.mxu0 %v5427
    %6016 = vmatpush.bf16.msra.mxu0 %v5419
    %6017 = vmatpush.bf16.msra.mxu0 %v5411
    %6018 = vmatpush.bf16.msra.mxu0 %v5403
    %6019 = vmatpush.bf16.msra.mxu0 %v5395
    %6020 = vmatmul.bf16.gmra.mxu0 %v3082
    %v6021 = vpop.f32.mrf.mxu0
    %v6022 = vadd.f32 0.0, %v6021
    %v6023 = vpop.f32.mrf.mxu0
    %6024 = vdwg.mxu0
    %6025 = vmatpush.bf16.msra.mxu0 %v5515
    %6026 = vmatpush.bf16.msra.mxu0 %v5507
    %6027 = vmatpush.bf16.msra.mxu0 %v5499
    %6028 = vmatpush.bf16.msra.mxu0 %v5491
    %6029 = vmatpush.bf16.msra.mxu0 %v5483
    %6030 = vmatpush.bf16.msra.mxu0 %v5475
    %6031 = vmatpush.bf16.msra.mxu0 %v5467
    %6032 = vmatpush.bf16.msra.mxu0 %v5459
    %6033 = vmatmul.bf16.gmra.mxu0 %v3083
    %v6034 = vpop.f32.mrf.mxu0
    %v6035 = vadd.f32 %v6022, %v6034
    %v6036 = vpop.f32.mrf.mxu0
    %6037 = vdwg.mxu0
    %6038 = vmatpush.bf16.msra.mxu0 %v5579
    %6039 = vmatpush.bf16.msra.mxu0 %v5571
    %6040 = vmatpush.bf16.msra.mxu0 %v5563
    %6041 = vmatpush.bf16.msra.mxu0 %v5555
    %6042 = vmatpush.bf16.msra.mxu0 %v5547
    %6043 = vmatpush.bf16.msra.mxu0 %v5539
    %6044 = vmatpush.bf16.msra.mxu0 %v5531
    %6045 = vmatpush.bf16.msra.mxu0 %v5523
    %6046 = vmatmul.bf16.gmra.mxu0 %v3084
    %v6047 = vpop.f32.mrf.mxu0
    %v6048 = vadd.f32 %v6035, %v6047
    %v6049 = vpop.f32.mrf.mxu0
    %6050 = vdwg.mxu0
    %6051 = vmatpush.bf16.msra.mxu0 %v5643
    %6052 = vmatpush.bf16.msra.mxu0 %v5635
    %6053 = vmatpush.bf16.msra.mxu0 %v5627
    %6054 = vmatpush.bf16.msra.mxu0 %v5619
    %6055 = vmatpush.bf16.msra.mxu0 %v5611
    %6056 = vmatpush.bf16.msra.mxu0 %v5603
    %6057 = vmatpush.bf16.msra.mxu0 %v5595
    %6058 = vmatpush.bf16.msra.mxu0 %v5587
    %6059 = vmatmul.bf16.gmra.mxu0 %v3085
    %v6060 = vpop.f32.mrf.mxu0
    %v6061 = vadd.f32 %v6048, %v6060
    %v6062 = vpop.f32.mrf.mxu0
    %6063 = vdwg.mxu0
    %6064 = vmatpush.bf16.msra.mxu0 %v5707
    %6065 = vmatpush.bf16.msra.mxu0 %v5699
    %6066 = vmatpush.bf16.msra.mxu0 %v5691
    %6067 = vmatpush.bf16.msra.mxu0 %v5683
    %6068 = vmatpush.bf16.msra.mxu0 %v5675
    %6069 = vmatpush.bf16.msra.mxu0 %v5667
    %6070 = vmatpush.bf16.msra.mxu0 %v5659
    %6071 = vmatpush.bf16.msra.mxu0 %v5651
    %6072 = vmatmul.bf16.gmra.mxu0 %v3086
    %v6073 = vpop.f32.mrf.mxu0
    %v6074 = vadd.f32 %v6061, %v6073
    %v6075 = vpop.f32.mrf.mxu0
    %6076 = vdwg.mxu0
    %6077 = vmatpush.bf16.msra.mxu0 %v5771
    %6078 = vmatpush.bf16.msra.mxu0 %v5763
    %6079 = vmatpush.bf16.msra.mxu0 %v5755
    %6080 = vmatpush.bf16.msra.mxu0 %v5747
    %6081 = vmatpush.bf16.msra.mxu0 %v5739
    %6082 = vmatpush.bf16.msra.mxu0 %v5731
    %6083 = vmatpush.bf16.msra.mxu0 %v5723
    %6084 = vmatpush.bf16.msra.mxu0 %v5715
    %6085 = vmatmul.bf16.gmra.mxu0 %v3087
    %v6086 = vpop.f32.mrf.mxu0
    %v6087 = vadd.f32 %v6074, %v6086
    %v6088 = vpop.f32.mrf.mxu0
    %6089 = vdwg.mxu0
    %6090 = vmatpush.bf16.msra.mxu0 %v5835
    %6091 = vmatpush.bf16.msra.mxu0 %v5827
    %6092 = vmatpush.bf16.msra.mxu0 %v5819
    %6093 = vmatpush.bf16.msra.mxu0 %v5811
    %6094 = vmatpush.bf16.msra.mxu0 %v5803
    %6095 = vmatpush.bf16.msra.mxu0 %v5795
    %6096 = vmatpush.bf16.msra.mxu0 %v5787
    %6097 = vmatpush.bf16.msra.mxu0 %v5779
    %6098 = vmatmul.bf16.gmra.mxu0 %v3088
    %v6099 = vpop.f32.mrf.mxu0
    %v6100 = vadd.f32 %v6087, %v6099
    %v6101 = vpop.f32.mrf.mxu0
    %6102 = vdwg.mxu0
    %6103 = vmatpush.bf16.msra.mxu0 %v5899
    %6104 = vmatpush.bf16.msra.mxu0 %v5891
    %6105 = vmatpush.bf16.msra.mxu0 %v5883
    %6106 = vmatpush.bf16.msra.mxu0 %v5875
    %6107 = vmatpush.bf16.msra.mxu0 %v5867
    %6108 = vmatpush.bf16.msra.mxu0 %v5859
    %6109 = vmatpush.bf16.msra.mxu0 %v5851
    %6110 = vmatpush.bf16.msra.mxu0 %v5843
    %6111 = vmatmul.bf16.gmra.mxu0 %v3089
    %v6112 = vpop.f32.mrf.mxu0
    %v6113 = vadd.f32 %v6100, %v6112
    %v6114 = vpop.f32.mrf.mxu0
    %6115 = vdwg.mxu0
    %6116 = vmatpush.bf16.msra.mxu0 %v5452
    %6117 = vmatpush.bf16.msra.mxu0 %v5444
    %6118 = vmatpush.bf16.msra.mxu0 %v5436
    %6119 = vmatpush.bf16.msra.mxu0 %v5428
    %6120 = vmatpush.bf16.msra.mxu0 %v5420
    %6121 = vmatpush.bf16.msra.mxu0 %v5412
    %6122 = vmatpush.bf16.msra.mxu0 %v5404
    %6123 = vmatpush.bf16.msra.mxu0 %v5396
    %6124 = vmatmul.bf16.gmra.mxu0 %v3082
    %v6125 = vpop.f32.mrf.mxu0
    %v6126 = vadd.f32 0.0, %v6125
    %v6127 = vpop.f32.mrf.mxu0
    %6128 = vdwg.mxu0
    %6129 = vmatpush.bf16.msra.mxu0 %v5516
    %6130 = vmatpush.bf16.msra.mxu0 %v5508
    %6131 = vmatpush.bf16.msra.mxu0 %v5500
    %6132 = vmatpush.bf16.msra.mxu0 %v5492
    %6133 = vmatpush.bf16.msra.mxu0 %v5484
    %6134 = vmatpush.bf16.msra.mxu0 %v5476
    %6135 = vmatpush.bf16.msra.mxu0 %v5468
    %6136 = vmatpush.bf16.msra.mxu0 %v5460
    %6137 = vmatmul.bf16.gmra.mxu0 %v3083
    %v6138 = vpop.f32.mrf.mxu0
    %v6139 = vadd.f32 %v6126, %v6138
    %v6140 = vpop.f32.mrf.mxu0
    %6141 = vdwg.mxu0
    %6142 = vmatpush.bf16.msra.mxu0 %v5580
    %6143 = vmatpush.bf16.msra.mxu0 %v5572
    %6144 = vmatpush.bf16.msra.mxu0 %v5564
    %6145 = vmatpush.bf16.msra.mxu0 %v5556
    %6146 = vmatpush.bf16.msra.mxu0 %v5548
    %6147 = vmatpush.bf16.msra.mxu0 %v5540
    %6148 = vmatpush.bf16.msra.mxu0 %v5532
    %6149 = vmatpush.bf16.msra.mxu0 %v5524
    %6150 = vmatmul.bf16.gmra.mxu0 %v3084
    %v6151 = vpop.f32.mrf.mxu0
    %v6152 = vadd.f32 %v6139, %v6151
    %v6153 = vpop.f32.mrf.mxu0
    %6154 = vdwg.mxu0
    %6155 = vmatpush.bf16.msra.mxu0 %v5644
    %6156 = vmatpush.bf16.msra.mxu0 %v5636
    %6157 = vmatpush.bf16.msra.mxu0 %v5628
    %6158 = vmatpush.bf16.msra.mxu0 %v5620
    %6159 = vmatpush.bf16.msra.mxu0 %v5612
    %6160 = vmatpush.bf16.msra.mxu0 %v5604
    %6161 = vmatpush.bf16.msra.mxu0 %v5596
    %6162 = vmatpush.bf16.msra.mxu0 %v5588
    %6163 = vmatmul.bf16.gmra.mxu0 %v3085
    %v6164 = vpop.f32.mrf.mxu0
    %v6165 = vadd.f32 %v6152, %v6164
    %v6166 = vpop.f32.mrf.mxu0
    %6167 = vdwg.mxu0
    %6168 = vmatpush.bf16.msra.mxu0 %v5708
    %6169 = vmatpush.bf16.msra.mxu0 %v5700
    %6170 = vmatpush.bf16.msra.mxu0 %v5692
    %6171 = vmatpush.bf16.msra.mxu0 %v5684
    %6172 = vmatpush.bf16.msra.mxu0 %v5676
    %6173 = vmatpush.bf16.msra.mxu0 %v5668
    %6174 = vmatpush.bf16.msra.mxu0 %v5660
    %6175 = vmatpush.bf16.msra.mxu0 %v5652
    %6176 = vmatmul.bf16.gmra.mxu0 %v3086
    %v6177 = vpop.f32.mrf.mxu0
    %v6178 = vadd.f32 %v6165, %v6177
    %v6179 = vpop.f32.mrf.mxu0
    %6180 = vdwg.mxu0
    %6181 = vmatpush.bf16.msra.mxu0 %v5772
    %6182 = vmatpush.bf16.msra.mxu0 %v5764
    %6183 = vmatpush.bf16.msra.mxu0 %v5756
    %6184 = vmatpush.bf16.msra.mxu0 %v5748
    %6185 = vmatpush.bf16.msra.mxu0 %v5740
    %6186 = vmatpush.bf16.msra.mxu0 %v5732
    %6187 = vmatpush.bf16.msra.mxu0 %v5724
    %6188 = vmatpush.bf16.msra.mxu0 %v5716
    %6189 = vmatmul.bf16.gmra.mxu0 %v3087
    %v6190 = vpop.f32.mrf.mxu0
    %v6191 = vadd.f32 %v6178, %v6190
    %v6192 = vpop.f32.mrf.mxu0
    %6193 = vdwg.mxu0
    %6194 = vmatpush.bf16.msra.mxu0 %v5836
    %6195 = vmatpush.bf16.msra.mxu0 %v5828
    %6196 = vmatpush.bf16.msra.mxu0 %v5820
    %6197 = vmatpush.bf16.msra.mxu0 %v5812
    %6198 = vmatpush.bf16.msra.mxu0 %v5804
    %6199 = vmatpush.bf16.msra.mxu0 %v5796
    %6200 = vmatpush.bf16.msra.mxu0 %v5788
    %6201 = vmatpush.bf16.msra.mxu0 %v5780
    %6202 = vmatmul.bf16.gmra.mxu0 %v3088
    %v6203 = vpop.f32.mrf.mxu0
    %v6204 = vadd.f32 %v6191, %v6203
    %v6205 = vpop.f32.mrf.mxu0
    %6206 = vdwg.mxu0
    %6207 = vmatpush.bf16.msra.mxu0 %v5900
    %6208 = vmatpush.bf16.msra.mxu0 %v5892
    %6209 = vmatpush.bf16.msra.mxu0 %v5884
    %6210 = vmatpush.bf16.msra.mxu0 %v5876
    %6211 = vmatpush.bf16.msra.mxu0 %v5868
    %6212 = vmatpush.bf16.msra.mxu0 %v5860
    %6213 = vmatpush.bf16.msra.mxu0 %v5852
    %6214 = vmatpush.bf16.msra.mxu0 %v5844
    %6215 = vmatmul.bf16.gmra.mxu0 %v3089
    %v6216 = vpop.f32.mrf.mxu0
    %v6217 = vadd.f32 %v6204, %v6216
    %v6218 = vpop.f32.mrf.mxu0
    %6219 = vdwg.mxu0
    %6220 = vmatpush.bf16.msra.mxu0 %v5453
    %6221 = vmatpush.bf16.msra.mxu0 %v5445
    %6222 = vmatpush.bf16.msra.mxu0 %v5437
    %6223 = vmatpush.bf16.msra.mxu0 %v5429
    %6224 = vmatpush.bf16.msra.mxu0 %v5421
    %6225 = vmatpush.bf16.msra.mxu0 %v5413
    %6226 = vmatpush.bf16.msra.mxu0 %v5405
    %6227 = vmatpush.bf16.msra.mxu0 %v5397
    %6228 = vmatmul.bf16.gmra.mxu0 %v3082
    %v6229 = vpop.f32.mrf.mxu0
    %v6230 = vadd.f32 0.0, %v6229
    %v6231 = vpop.f32.mrf.mxu0
    %6232 = vdwg.mxu0
    %6233 = vmatpush.bf16.msra.mxu0 %v5517
    %6234 = vmatpush.bf16.msra.mxu0 %v5509
    %6235 = vmatpush.bf16.msra.mxu0 %v5501
    %6236 = vmatpush.bf16.msra.mxu0 %v5493
    %6237 = vmatpush.bf16.msra.mxu0 %v5485
    %6238 = vmatpush.bf16.msra.mxu0 %v5477
    %6239 = vmatpush.bf16.msra.mxu0 %v5469
    %6240 = vmatpush.bf16.msra.mxu0 %v5461
    %6241 = vmatmul.bf16.gmra.mxu0 %v3083
    %v6242 = vpop.f32.mrf.mxu0
    %v6243 = vadd.f32 %v6230, %v6242
    %v6244 = vpop.f32.mrf.mxu0
    %6245 = vdwg.mxu0
    %6246 = vmatpush.bf16.msra.mxu0 %v5581
    %6247 = vmatpush.bf16.msra.mxu0 %v5573
    %6248 = vmatpush.bf16.msra.mxu0 %v5565
    %6249 = vmatpush.bf16.msra.mxu0 %v5557
    %6250 = vmatpush.bf16.msra.mxu0 %v5549
    %6251 = vmatpush.bf16.msra.mxu0 %v5541
    %6252 = vmatpush.bf16.msra.mxu0 %v5533
    %6253 = vmatpush.bf16.msra.mxu0 %v5525
    %6254 = vmatmul.bf16.gmra.mxu0 %v3084
    %v6255 = vpop.f32.mrf.mxu0
    %v6256 = vadd.f32 %v6243, %v6255
    %v6257 = vpop.f32.mrf.mxu0
    %6258 = vdwg.mxu0
    %6259 = vmatpush.bf16.msra.mxu0 %v5645
    %6260 = vmatpush.bf16.msra.mxu0 %v5637
    %6261 = vmatpush.bf16.msra.mxu0 %v5629
    %6262 = vmatpush.bf16.msra.mxu0 %v5621
    %6263 = vmatpush.bf16.msra.mxu0 %v5613
    %6264 = vmatpush.bf16.msra.mxu0 %v5605
    %6265 = vmatpush.bf16.msra.mxu0 %v5597
    %6266 = vmatpush.bf16.msra.mxu0 %v5589
    %6267 = vmatmul.bf16.gmra.mxu0 %v3085
    %v6268 = vpop.f32.mrf.mxu0
    %v6269 = vadd.f32 %v6256, %v6268
    %v6270 = vpop.f32.mrf.mxu0
    %6271 = vdwg.mxu0
    %6272 = vmatpush.bf16.msra.mxu0 %v5709
    %6273 = vmatpush.bf16.msra.mxu0 %v5701
    %6274 = vmatpush.bf16.msra.mxu0 %v5693
    %6275 = vmatpush.bf16.msra.mxu0 %v5685
    %6276 = vmatpush.bf16.msra.mxu0 %v5677
    %6277 = vmatpush.bf16.msra.mxu0 %v5669
    %6278 = vmatpush.bf16.msra.mxu0 %v5661
    %6279 = vmatpush.bf16.msra.mxu0 %v5653
    %6280 = vmatmul.bf16.gmra.mxu0 %v3086
    %v6281 = vpop.f32.mrf.mxu0
    %v6282 = vadd.f32 %v6269, %v6281
    %v6283 = vpop.f32.mrf.mxu0
    %6284 = vdwg.mxu0
    %6285 = vmatpush.bf16.msra.mxu0 %v5773
    %6286 = vmatpush.bf16.msra.mxu0 %v5765
    %6287 = vmatpush.bf16.msra.mxu0 %v5757
    %6288 = vmatpush.bf16.msra.mxu0 %v5749
    %6289 = vmatpush.bf16.msra.mxu0 %v5741
    %6290 = vmatpush.bf16.msra.mxu0 %v5733
    %6291 = vmatpush.bf16.msra.mxu0 %v5725
    %6292 = vmatpush.bf16.msra.mxu0 %v5717
    %6293 = vmatmul.bf16.gmra.mxu0 %v3087
    %v6294 = vpop.f32.mrf.mxu0
    %v6295 = vadd.f32 %v6282, %v6294
    %v6296 = vpop.f32.mrf.mxu0
    %6297 = vdwg.mxu0
    %6298 = vmatpush.bf16.msra.mxu0 %v5837
    %6299 = vmatpush.bf16.msra.mxu0 %v5829
    %6300 = vmatpush.bf16.msra.mxu0 %v5821
    %6301 = vmatpush.bf16.msra.mxu0 %v5813
    %6302 = vmatpush.bf16.msra.mxu0 %v5805
    %6303 = vmatpush.bf16.msra.mxu0 %v5797
    %6304 = vmatpush.bf16.msra.mxu0 %v5789
    %6305 = vmatpush.bf16.msra.mxu0 %v5781
    %6306 = vmatmul.bf16.gmra.mxu0 %v3088
    %v6307 = vpop.f32.mrf.mxu0
    %v6308 = vadd.f32 %v6295, %v6307
    %v6309 = vpop.f32.mrf.mxu0
    %6310 = vdwg.mxu0
    %6311 = vmatpush.bf16.msra.mxu0 %v5901
    %6312 = vmatpush.bf16.msra.mxu0 %v5893
    %6313 = vmatpush.bf16.msra.mxu0 %v5885
    %6314 = vmatpush.bf16.msra.mxu0 %v5877
    %6315 = vmatpush.bf16.msra.mxu0 %v5869
    %6316 = vmatpush.bf16.msra.mxu0 %v5861
    %6317 = vmatpush.bf16.msra.mxu0 %v5853
    %6318 = vmatpush.bf16.msra.mxu0 %v5845
    %6319 = vmatmul.bf16.gmra.mxu0 %v3089
    %v6320 = vpop.f32.mrf.mxu0
    %v6321 = vadd.f32 %v6308, %v6320
    %v6322 = vpop.f32.mrf.mxu0
    %6323 = vdwg.mxu0
    %6324 = vmatpush.bf16.msra.mxu0 %v5454
    %6325 = vmatpush.bf16.msra.mxu0 %v5446
    %6326 = vmatpush.bf16.msra.mxu0 %v5438
    %6327 = vmatpush.bf16.msra.mxu0 %v5430
    %6328 = vmatpush.bf16.msra.mxu0 %v5422
    %6329 = vmatpush.bf16.msra.mxu0 %v5414
    %6330 = vmatpush.bf16.msra.mxu0 %v5406
    %6331 = vmatpush.bf16.msra.mxu0 %v5398
    %6332 = vmatmul.bf16.gmra.mxu0 %v3082
    %v6333 = vpop.f32.mrf.mxu0
    %v6334 = vadd.f32 0.0, %v6333
    %v6335 = vpop.f32.mrf.mxu0
    %6336 = vdwg.mxu0
    %6337 = vmatpush.bf16.msra.mxu0 %v5518
    %6338 = vmatpush.bf16.msra.mxu0 %v5510
    %6339 = vmatpush.bf16.msra.mxu0 %v5502
    %6340 = vmatpush.bf16.msra.mxu0 %v5494
    %6341 = vmatpush.bf16.msra.mxu0 %v5486
    %6342 = vmatpush.bf16.msra.mxu0 %v5478
    %6343 = vmatpush.bf16.msra.mxu0 %v5470
    %6344 = vmatpush.bf16.msra.mxu0 %v5462
    %6345 = vmatmul.bf16.gmra.mxu0 %v3083
    %v6346 = vpop.f32.mrf.mxu0
    %v6347 = vadd.f32 %v6334, %v6346
    %v6348 = vpop.f32.mrf.mxu0
    %6349 = vdwg.mxu0
    %6350 = vmatpush.bf16.msra.mxu0 %v5582
    %6351 = vmatpush.bf16.msra.mxu0 %v5574
    %6352 = vmatpush.bf16.msra.mxu0 %v5566
    %6353 = vmatpush.bf16.msra.mxu0 %v5558
    %6354 = vmatpush.bf16.msra.mxu0 %v5550
    %6355 = vmatpush.bf16.msra.mxu0 %v5542
    %6356 = vmatpush.bf16.msra.mxu0 %v5534
    %6357 = vmatpush.bf16.msra.mxu0 %v5526
    %6358 = vmatmul.bf16.gmra.mxu0 %v3084
    %v6359 = vpop.f32.mrf.mxu0
    %v6360 = vadd.f32 %v6347, %v6359
    %v6361 = vpop.f32.mrf.mxu0
    %6362 = vdwg.mxu0
    %6363 = vmatpush.bf16.msra.mxu0 %v5646
    %6364 = vmatpush.bf16.msra.mxu0 %v5638
    %6365 = vmatpush.bf16.msra.mxu0 %v5630
    %6366 = vmatpush.bf16.msra.mxu0 %v5622
    %6367 = vmatpush.bf16.msra.mxu0 %v5614
    %6368 = vmatpush.bf16.msra.mxu0 %v5606
    %6369 = vmatpush.bf16.msra.mxu0 %v5598
    %6370 = vmatpush.bf16.msra.mxu0 %v5590
    %6371 = vmatmul.bf16.gmra.mxu0 %v3085
    %v6372 = vpop.f32.mrf.mxu0
    %v6373 = vadd.f32 %v6360, %v6372
    %v6374 = vpop.f32.mrf.mxu0
    %6375 = vdwg.mxu0
    %6376 = vmatpush.bf16.msra.mxu0 %v5710
    %6377 = vmatpush.bf16.msra.mxu0 %v5702
    %6378 = vmatpush.bf16.msra.mxu0 %v5694
    %6379 = vmatpush.bf16.msra.mxu0 %v5686
    %6380 = vmatpush.bf16.msra.mxu0 %v5678
    %6381 = vmatpush.bf16.msra.mxu0 %v5670
    %6382 = vmatpush.bf16.msra.mxu0 %v5662
    %6383 = vmatpush.bf16.msra.mxu0 %v5654
    %6384 = vmatmul.bf16.gmra.mxu0 %v3086
    %v6385 = vpop.f32.mrf.mxu0
    %v6386 = vadd.f32 %v6373, %v6385
    %v6387 = vpop.f32.mrf.mxu0
    %6388 = vdwg.mxu0
    %6389 = vmatpush.bf16.msra.mxu0 %v5774
    %6390 = vmatpush.bf16.msra.mxu0 %v5766
    %6391 = vmatpush.bf16.msra.mxu0 %v5758
    %6392 = vmatpush.bf16.msra.mxu0 %v5750
    %6393 = vmatpush.bf16.msra.mxu0 %v5742
    %6394 = vmatpush.bf16.msra.mxu0 %v5734
    %6395 = vmatpush.bf16.msra.mxu0 %v5726
    %6396 = vmatpush.bf16.msra.mxu0 %v5718
    %6397 = vmatmul.bf16.gmra.mxu0 %v3087
    %v6398 = vpop.f32.mrf.mxu0
    %v6399 = vadd.f32 %v6386, %v6398
    %v6400 = vpop.f32.mrf.mxu0
    %6401 = vdwg.mxu0
    %6402 = vmatpush.bf16.msra.mxu0 %v5838
    %6403 = vmatpush.bf16.msra.mxu0 %v5830
    %6404 = vmatpush.bf16.msra.mxu0 %v5822
    %6405 = vmatpush.bf16.msra.mxu0 %v5814
    %6406 = vmatpush.bf16.msra.mxu0 %v5806
    %6407 = vmatpush.bf16.msra.mxu0 %v5798
    %6408 = vmatpush.bf16.msra.mxu0 %v5790
    %6409 = vmatpush.bf16.msra.mxu0 %v5782
    %6410 = vmatmul.bf16.gmra.mxu0 %v3088
    %v6411 = vpop.f32.mrf.mxu0
    %v6412 = vadd.f32 %v6399, %v6411
    %v6413 = vpop.f32.mrf.mxu0
    %6414 = vdwg.mxu0
    %6415 = vmatpush.bf16.msra.mxu0 %v5902
    %6416 = vmatpush.bf16.msra.mxu0 %v5894
    %6417 = vmatpush.bf16.msra.mxu0 %v5886
    %6418 = vmatpush.bf16.msra.mxu0 %v5878
    %6419 = vmatpush.bf16.msra.mxu0 %v5870
    %6420 = vmatpush.bf16.msra.mxu0 %v5862
    %6421 = vmatpush.bf16.msra.mxu0 %v5854
    %6422 = vmatpush.bf16.msra.mxu0 %v5846
    %6423 = vmatmul.bf16.gmra.mxu0 %v3089
    %v6424 = vpop.f32.mrf.mxu0
    %v6425 = vadd.f32 %v6412, %v6424
    %v6426 = vpop.f32.mrf.mxu0
    %6427 = vdwg.mxu0
    %6428 = vmatpush.bf16.msra.mxu0 %v5455
    %6429 = vmatpush.bf16.msra.mxu0 %v5447
    %6430 = vmatpush.bf16.msra.mxu0 %v5439
    %6431 = vmatpush.bf16.msra.mxu0 %v5431
    %6432 = vmatpush.bf16.msra.mxu0 %v5423
    %6433 = vmatpush.bf16.msra.mxu0 %v5415
    %6434 = vmatpush.bf16.msra.mxu0 %v5407
    %6435 = vmatpush.bf16.msra.mxu0 %v5399
    %6436 = vmatmul.bf16.gmra.mxu0 %v3082
    %v6437 = vpop.f32.mrf.mxu0
    %v6438 = vadd.f32 0.0, %v6437
    %v6439 = vpop.f32.mrf.mxu0
    %6440 = vdwg.mxu0
    %6441 = vmatpush.bf16.msra.mxu0 %v5519
    %6442 = vmatpush.bf16.msra.mxu0 %v5511
    %6443 = vmatpush.bf16.msra.mxu0 %v5503
    %6444 = vmatpush.bf16.msra.mxu0 %v5495
    %6445 = vmatpush.bf16.msra.mxu0 %v5487
    %6446 = vmatpush.bf16.msra.mxu0 %v5479
    %6447 = vmatpush.bf16.msra.mxu0 %v5471
    %6448 = vmatpush.bf16.msra.mxu0 %v5463
    %6449 = vmatmul.bf16.gmra.mxu0 %v3083
    %v6450 = vpop.f32.mrf.mxu0
    %v6451 = vadd.f32 %v6438, %v6450
    %v6452 = vpop.f32.mrf.mxu0
    %6453 = vdwg.mxu0
    %6454 = vmatpush.bf16.msra.mxu0 %v5583
    %6455 = vmatpush.bf16.msra.mxu0 %v5575
    %6456 = vmatpush.bf16.msra.mxu0 %v5567
    %6457 = vmatpush.bf16.msra.mxu0 %v5559
    %6458 = vmatpush.bf16.msra.mxu0 %v5551
    %6459 = vmatpush.bf16.msra.mxu0 %v5543
    %6460 = vmatpush.bf16.msra.mxu0 %v5535
    %6461 = vmatpush.bf16.msra.mxu0 %v5527
    %6462 = vmatmul.bf16.gmra.mxu0 %v3084
    %v6463 = vpop.f32.mrf.mxu0
    %v6464 = vadd.f32 %v6451, %v6463
    %v6465 = vpop.f32.mrf.mxu0
    %6466 = vdwg.mxu0
    %6467 = vmatpush.bf16.msra.mxu0 %v5647
    %6468 = vmatpush.bf16.msra.mxu0 %v5639
    %6469 = vmatpush.bf16.msra.mxu0 %v5631
    %6470 = vmatpush.bf16.msra.mxu0 %v5623
    %6471 = vmatpush.bf16.msra.mxu0 %v5615
    %6472 = vmatpush.bf16.msra.mxu0 %v5607
    %6473 = vmatpush.bf16.msra.mxu0 %v5599
    %6474 = vmatpush.bf16.msra.mxu0 %v5591
    %6475 = vmatmul.bf16.gmra.mxu0 %v3085
    %v6476 = vpop.f32.mrf.mxu0
    %v6477 = vadd.f32 %v6464, %v6476
    %v6478 = vpop.f32.mrf.mxu0
    %6479 = vdwg.mxu0
    %6480 = vmatpush.bf16.msra.mxu0 %v5711
    %6481 = vmatpush.bf16.msra.mxu0 %v5703
    %6482 = vmatpush.bf16.msra.mxu0 %v5695
    %6483 = vmatpush.bf16.msra.mxu0 %v5687
    %6484 = vmatpush.bf16.msra.mxu0 %v5679
    %6485 = vmatpush.bf16.msra.mxu0 %v5671
    %6486 = vmatpush.bf16.msra.mxu0 %v5663
    %6487 = vmatpush.bf16.msra.mxu0 %v5655
    %6488 = vmatmul.bf16.gmra.mxu0 %v3086
    %v6489 = vpop.f32.mrf.mxu0
    %v6490 = vadd.f32 %v6477, %v6489
    %v6491 = vpop.f32.mrf.mxu0
    %6492 = vdwg.mxu0
    %6493 = vmatpush.bf16.msra.mxu0 %v5775
    %6494 = vmatpush.bf16.msra.mxu0 %v5767
    %6495 = vmatpush.bf16.msra.mxu0 %v5759
    %6496 = vmatpush.bf16.msra.mxu0 %v5751
    %6497 = vmatpush.bf16.msra.mxu0 %v5743
    %6498 = vmatpush.bf16.msra.mxu0 %v5735
    %6499 = vmatpush.bf16.msra.mxu0 %v5727
    %6500 = vmatpush.bf16.msra.mxu0 %v5719
    %6501 = vmatmul.bf16.gmra.mxu0 %v3087
    %v6502 = vpop.f32.mrf.mxu0
    %v6503 = vadd.f32 %v6490, %v6502
    %v6504 = vpop.f32.mrf.mxu0
    %6505 = vdwg.mxu0
    %6506 = vmatpush.bf16.msra.mxu0 %v5839
    %6507 = vmatpush.bf16.msra.mxu0 %v5831
    %6508 = vmatpush.bf16.msra.mxu0 %v5823
    %6509 = vmatpush.bf16.msra.mxu0 %v5815
    %6510 = vmatpush.bf16.msra.mxu0 %v5807
    %6511 = vmatpush.bf16.msra.mxu0 %v5799
    %6512 = vmatpush.bf16.msra.mxu0 %v5791
    %6513 = vmatpush.bf16.msra.mxu0 %v5783
    %6514 = vmatmul.bf16.gmra.mxu0 %v3088
    %v6515 = vpop.f32.mrf.mxu0
    %v6516 = vadd.f32 %v6503, %v6515
    %v6517 = vpop.f32.mrf.mxu0
    %6518 = vdwg.mxu0
    %6519 = vmatpush.bf16.msra.mxu0 %v5903
    %6520 = vmatpush.bf16.msra.mxu0 %v5895
    %6521 = vmatpush.bf16.msra.mxu0 %v5887
    %6522 = vmatpush.bf16.msra.mxu0 %v5879
    %6523 = vmatpush.bf16.msra.mxu0 %v5871
    %6524 = vmatpush.bf16.msra.mxu0 %v5863
    %6525 = vmatpush.bf16.msra.mxu0 %v5855
    %6526 = vmatpush.bf16.msra.mxu0 %v5847
    %6527 = vmatmul.bf16.gmra.mxu0 %v3089
    %v6528 = vpop.f32.mrf.mxu0
    %v6529 = vadd.f32 %v6516, %v6528
    %v6530 = vpop.f32.mrf.mxu0
    %6531 = vdwg.mxu0
    %6532 = vmatpush.bf16.msra.mxu0 %v5456
    %6533 = vmatpush.bf16.msra.mxu0 %v5448
    %6534 = vmatpush.bf16.msra.mxu0 %v5440
    %6535 = vmatpush.bf16.msra.mxu0 %v5432
    %6536 = vmatpush.bf16.msra.mxu0 %v5424
    %6537 = vmatpush.bf16.msra.mxu0 %v5416
    %6538 = vmatpush.bf16.msra.mxu0 %v5408
    %6539 = vmatpush.bf16.msra.mxu0 %v5400
    %6540 = vmatmul.bf16.gmra.mxu0 %v3082
    %v6541 = vpop.f32.mrf.mxu0
    %v6542 = vadd.f32 0.0, %v6541
    %v6543 = vpop.f32.mrf.mxu0
    %6544 = vdwg.mxu0
    %6545 = vmatpush.bf16.msra.mxu0 %v5520
    %6546 = vmatpush.bf16.msra.mxu0 %v5512
    %6547 = vmatpush.bf16.msra.mxu0 %v5504
    %6548 = vmatpush.bf16.msra.mxu0 %v5496
    %6549 = vmatpush.bf16.msra.mxu0 %v5488
    %6550 = vmatpush.bf16.msra.mxu0 %v5480
    %6551 = vmatpush.bf16.msra.mxu0 %v5472
    %6552 = vmatpush.bf16.msra.mxu0 %v5464
    %6553 = vmatmul.bf16.gmra.mxu0 %v3083
    %v6554 = vpop.f32.mrf.mxu0
    %v6555 = vadd.f32 %v6542, %v6554
    %v6556 = vpop.f32.mrf.mxu0
    %6557 = vdwg.mxu0
    %6558 = vmatpush.bf16.msra.mxu0 %v5584
    %6559 = vmatpush.bf16.msra.mxu0 %v5576
    %6560 = vmatpush.bf16.msra.mxu0 %v5568
    %6561 = vmatpush.bf16.msra.mxu0 %v5560
    %6562 = vmatpush.bf16.msra.mxu0 %v5552
    %6563 = vmatpush.bf16.msra.mxu0 %v5544
    %6564 = vmatpush.bf16.msra.mxu0 %v5536
    %6565 = vmatpush.bf16.msra.mxu0 %v5528
    %6566 = vmatmul.bf16.gmra.mxu0 %v3084
    %v6567 = vpop.f32.mrf.mxu0
    %v6568 = vadd.f32 %v6555, %v6567
    %v6569 = vpop.f32.mrf.mxu0
    %6570 = vdwg.mxu0
    %6571 = vmatpush.bf16.msra.mxu0 %v5648
    %6572 = vmatpush.bf16.msra.mxu0 %v5640
    %6573 = vmatpush.bf16.msra.mxu0 %v5632
    %6574 = vmatpush.bf16.msra.mxu0 %v5624
    %6575 = vmatpush.bf16.msra.mxu0 %v5616
    %6576 = vmatpush.bf16.msra.mxu0 %v5608
    %6577 = vmatpush.bf16.msra.mxu0 %v5600
    %6578 = vmatpush.bf16.msra.mxu0 %v5592
    %6579 = vmatmul.bf16.gmra.mxu0 %v3085
    %v6580 = vpop.f32.mrf.mxu0
    %v6581 = vadd.f32 %v6568, %v6580
    %v6582 = vpop.f32.mrf.mxu0
    %6583 = vdwg.mxu0
    %6584 = vmatpush.bf16.msra.mxu0 %v5712
    %6585 = vmatpush.bf16.msra.mxu0 %v5704
    %6586 = vmatpush.bf16.msra.mxu0 %v5696
    %6587 = vmatpush.bf16.msra.mxu0 %v5688
    %6588 = vmatpush.bf16.msra.mxu0 %v5680
    %6589 = vmatpush.bf16.msra.mxu0 %v5672
    %6590 = vmatpush.bf16.msra.mxu0 %v5664
    %6591 = vmatpush.bf16.msra.mxu0 %v5656
    %6592 = vmatmul.bf16.gmra.mxu0 %v3086
    %v6593 = vpop.f32.mrf.mxu0
    %v6594 = vadd.f32 %v6581, %v6593
    %v6595 = vpop.f32.mrf.mxu0
    %6596 = vdwg.mxu0
    %6597 = vmatpush.bf16.msra.mxu0 %v5776
    %6598 = vmatpush.bf16.msra.mxu0 %v5768
    %6599 = vmatpush.bf16.msra.mxu0 %v5760
    %6600 = vmatpush.bf16.msra.mxu0 %v5752
    %6601 = vmatpush.bf16.msra.mxu0 %v5744
    %6602 = vmatpush.bf16.msra.mxu0 %v5736
    %6603 = vmatpush.bf16.msra.mxu0 %v5728
    %6604 = vmatpush.bf16.msra.mxu0 %v5720
    %6605 = vmatmul.bf16.gmra.mxu0 %v3087
    %v6606 = vpop.f32.mrf.mxu0
    %v6607 = vadd.f32 %v6594, %v6606
    %v6608 = vpop.f32.mrf.mxu0
    %6609 = vdwg.mxu0
    %6610 = vmatpush.bf16.msra.mxu0 %v5840
    %6611 = vmatpush.bf16.msra.mxu0 %v5832
    %6612 = vmatpush.bf16.msra.mxu0 %v5824
    %6613 = vmatpush.bf16.msra.mxu0 %v5816
    %6614 = vmatpush.bf16.msra.mxu0 %v5808
    %6615 = vmatpush.bf16.msra.mxu0 %v5800
    %6616 = vmatpush.bf16.msra.mxu0 %v5792
    %6617 = vmatpush.bf16.msra.mxu0 %v5784
    %6618 = vmatmul.bf16.gmra.mxu0 %v3088
    %v6619 = vpop.f32.mrf.mxu0
    %v6620 = vadd.f32 %v6607, %v6619
    %v6621 = vpop.f32.mrf.mxu0
    %6622 = vdwg.mxu0
    %6623 = vmatpush.bf16.msra.mxu0 %v5904
    %6624 = vmatpush.bf16.msra.mxu0 %v5896
    %6625 = vmatpush.bf16.msra.mxu0 %v5888
    %6626 = vmatpush.bf16.msra.mxu0 %v5880
    %6627 = vmatpush.bf16.msra.mxu0 %v5872
    %6628 = vmatpush.bf16.msra.mxu0 %v5864
    %6629 = vmatpush.bf16.msra.mxu0 %v5856
    %6630 = vmatpush.bf16.msra.mxu0 %v5848
    %6631 = vmatmul.bf16.gmra.mxu0 %v3089
    %v6632 = vpop.f32.mrf.mxu0
    %v6633 = vadd.f32 %v6620, %v6632
    %v6634 = vpop.f32.mrf.mxu0
    %6635 = vdwg.mxu0
    %6636 = vmatpush.bf16.msra.mxu0 %v5457
    %6637 = vmatpush.bf16.msra.mxu0 %v5449
    %6638 = vmatpush.bf16.msra.mxu0 %v5441
    %6639 = vmatpush.bf16.msra.mxu0 %v5433
    %6640 = vmatpush.bf16.msra.mxu0 %v5425
    %6641 = vmatpush.bf16.msra.mxu0 %v5417
    %6642 = vmatpush.bf16.msra.mxu0 %v5409
    %6643 = vmatpush.bf16.msra.mxu0 %v5401
    %6644 = vmatmul.bf16.gmra.mxu0 %v3082
    %v6645 = vpop.f32.mrf.mxu0
    %v6646 = vadd.f32 0.0, %v6645
    %v6647 = vpop.f32.mrf.mxu0
    %6648 = vdwg.mxu0
    %6649 = vmatpush.bf16.msra.mxu0 %v5521
    %6650 = vmatpush.bf16.msra.mxu0 %v5513
    %6651 = vmatpush.bf16.msra.mxu0 %v5505
    %6652 = vmatpush.bf16.msra.mxu0 %v5497
    %6653 = vmatpush.bf16.msra.mxu0 %v5489
    %6654 = vmatpush.bf16.msra.mxu0 %v5481
    %6655 = vmatpush.bf16.msra.mxu0 %v5473
    %6656 = vmatpush.bf16.msra.mxu0 %v5465
    %6657 = vmatmul.bf16.gmra.mxu0 %v3083
    %v6658 = vpop.f32.mrf.mxu0
    %v6659 = vadd.f32 %v6646, %v6658
    %v6660 = vpop.f32.mrf.mxu0
    %6661 = vdwg.mxu0
    %6662 = vmatpush.bf16.msra.mxu0 %v5585
    %6663 = vmatpush.bf16.msra.mxu0 %v5577
    %6664 = vmatpush.bf16.msra.mxu0 %v5569
    %6665 = vmatpush.bf16.msra.mxu0 %v5561
    %6666 = vmatpush.bf16.msra.mxu0 %v5553
    %6667 = vmatpush.bf16.msra.mxu0 %v5545
    %6668 = vmatpush.bf16.msra.mxu0 %v5537
    %6669 = vmatpush.bf16.msra.mxu0 %v5529
    %6670 = vmatmul.bf16.gmra.mxu0 %v3084
    %v6671 = vpop.f32.mrf.mxu0
    %v6672 = vadd.f32 %v6659, %v6671
    %v6673 = vpop.f32.mrf.mxu0
    %6674 = vdwg.mxu0
    %6675 = vmatpush.bf16.msra.mxu0 %v5649
    %6676 = vmatpush.bf16.msra.mxu0 %v5641
    %6677 = vmatpush.bf16.msra.mxu0 %v5633
    %6678 = vmatpush.bf16.msra.mxu0 %v5625
    %6679 = vmatpush.bf16.msra.mxu0 %v5617
    %6680 = vmatpush.bf16.msra.mxu0 %v5609
    %6681 = vmatpush.bf16.msra.mxu0 %v5601
    %6682 = vmatpush.bf16.msra.mxu0 %v5593
    %6683 = vmatmul.bf16.gmra.mxu0 %v3085
    %v6684 = vpop.f32.mrf.mxu0
    %v6685 = vadd.f32 %v6672, %v6684
    %v6686 = vpop.f32.mrf.mxu0
    %6687 = vdwg.mxu0
    %6688 = vmatpush.bf16.msra.mxu0 %v5713
    %6689 = vmatpush.bf16.msra.mxu0 %v5705
    %6690 = vmatpush.bf16.msra.mxu0 %v5697
    %6691 = vmatpush.bf16.msra.mxu0 %v5689
    %6692 = vmatpush.bf16.msra.mxu0 %v5681
    %6693 = vmatpush.bf16.msra.mxu0 %v5673
    %6694 = vmatpush.bf16.msra.mxu0 %v5665
    %6695 = vmatpush.bf16.msra.mxu0 %v5657
    %6696 = vmatmul.bf16.gmra.mxu0 %v3086
    %v6697 = vpop.f32.mrf.mxu0
    %v6698 = vadd.f32 %v6685, %v6697
    %v6699 = vpop.f32.mrf.mxu0
    %6700 = vdwg.mxu0
    %6701 = vmatpush.bf16.msra.mxu0 %v5777
    %6702 = vmatpush.bf16.msra.mxu0 %v5769
    %6703 = vmatpush.bf16.msra.mxu0 %v5761
    %6704 = vmatpush.bf16.msra.mxu0 %v5753
    %6705 = vmatpush.bf16.msra.mxu0 %v5745
    %6706 = vmatpush.bf16.msra.mxu0 %v5737
    %6707 = vmatpush.bf16.msra.mxu0 %v5729
    %6708 = vmatpush.bf16.msra.mxu0 %v5721
    %6709 = vmatmul.bf16.gmra.mxu0 %v3087
    %v6710 = vpop.f32.mrf.mxu0
    %v6711 = vadd.f32 %v6698, %v6710
    %v6712 = vpop.f32.mrf.mxu0
    %6713 = vdwg.mxu0
    %6714 = vmatpush.bf16.msra.mxu0 %v5841
    %6715 = vmatpush.bf16.msra.mxu0 %v5833
    %6716 = vmatpush.bf16.msra.mxu0 %v5825
    %6717 = vmatpush.bf16.msra.mxu0 %v5817
    %6718 = vmatpush.bf16.msra.mxu0 %v5809
    %6719 = vmatpush.bf16.msra.mxu0 %v5801
    %6720 = vmatpush.bf16.msra.mxu0 %v5793
    %6721 = vmatpush.bf16.msra.mxu0 %v5785
    %6722 = vmatmul.bf16.gmra.mxu0 %v3088
    %v6723 = vpop.f32.mrf.mxu0
    %v6724 = vadd.f32 %v6711, %v6723
    %v6725 = vpop.f32.mrf.mxu0
    %6726 = vdwg.mxu0
    %6727 = vmatpush.bf16.msra.mxu0 %v5905
    %6728 = vmatpush.bf16.msra.mxu0 %v5897
    %6729 = vmatpush.bf16.msra.mxu0 %v5889
    %6730 = vmatpush.bf16.msra.mxu0 %v5881
    %6731 = vmatpush.bf16.msra.mxu0 %v5873
    %6732 = vmatpush.bf16.msra.mxu0 %v5865
    %6733 = vmatpush.bf16.msra.mxu0 %v5857
    %6734 = vmatpush.bf16.msra.mxu0 %v5849
    %6735 = vmatmul.bf16.gmra.mxu0 %v3089
    %v6736 = vpop.f32.mrf.mxu0
    %v6737 = vadd.f32 %v6724, %v6736
    %v6738 = vpop.f32.mrf.mxu0
    %6739 = vdwg.mxu0
    %v6741 = vperm.slane %v5906, 0
    %v6742 = vperm.slane %v5906, 1
    %v6743 = vperm.slane %v5906, 2
    %v6744 = vperm.slane %v5906, 3
    %v6745 = vperm.slane %v5906, 4
    %v6746 = vperm.slane %v5906, 5
    %v6747 = vperm.slane %v5906, 6
    %v6748 = vperm.slane %v5906, 7
    %v6757 = vmul.f32 %v6009, %v6741
    %v6758 = vmul.f32 %v6113, %v6742
    %v6759 = vmul.f32 %v6217, %v6743
    %v6760 = vmul.f32 %v6321, %v6744
    %v6761 = vmul.f32 %v6425, %v6745
    %v6762 = vmul.f32 %v6529, %v6746
    %v6763 = vmul.f32 %v6633, %v6747
    %v6764 = vmul.f32 %v6737, %v6748
    %v6766 = vperm.slane %v5907, 0
    %v6767 = vperm.slane %v5907, 1
    %v6768 = vperm.slane %v5907, 2
    %v6769 = vperm.slane %v5907, 3
    %v6770 = vperm.slane %v5907, 4
    %v6771 = vperm.slane %v5907, 5
    %v6772 = vperm.slane %v5907, 6
    %v6773 = vperm.slane %v5907, 7
    %v6782 = vadd.f32 %v6757, %v6766
    %v6783 = vadd.f32 %v6758, %v6767
    %v6784 = vadd.f32 %v6759, %v6768
    %v6785 = vadd.f32 %v6760, %v6769
    %v6786 = vadd.f32 %v6761, %v6770
    %v6787 = vadd.f32 %v6762, %v6771
    %v6788 = vadd.f32 %v6763, %v6772
    %v6789 = vadd.f32 %v6764, %v6773
    %v6790 = vmax.f32 %v6782, 0.0
    %v6791 = vmax.f32 %v6783, 0.0
    %v6792 = vmax.f32 %v6784, 0.0
    %v6793 = vmax.f32 %v6785, 0.0
    %v6794 = vmax.f32 %v6786, 0.0
    %v6795 = vmax.f32 %v6787, 0.0
    %v6796 = vmax.f32 %v6788, 0.0
    %v6797 = vmax.f32 %v6789, 0.0
    %v6798 = vpack.c.bf16 %v6790, %v6790
    %v6799 = vpack.c.bf16 %v6791, %v6791
    %v6800 = vpack.c.bf16 %v6792, %v6792
    %v6801 = vpack.c.bf16 %v6793, %v6793
    %v6802 = vpack.c.bf16 %v6794, %v6794
    %v6803 = vpack.c.bf16 %v6795, %v6795
    %v6804 = vpack.c.bf16 %v6796, %v6796
    %v6805 = vpack.c.bf16 %v6797, %v6797
    %6806 = vmatpush.bf16.msra.mxu0 %v5450
    %6807 = vmatpush.bf16.msra.mxu0 %v5442
    %6808 = vmatpush.bf16.msra.mxu0 %v5434
    %6809 = vmatpush.bf16.msra.mxu0 %v5426
    %6810 = vmatpush.bf16.msra.mxu0 %v5418
    %6811 = vmatpush.bf16.msra.mxu0 %v5410
    %6812 = vmatpush.bf16.msra.mxu0 %v5402
    %6813 = vmatpush.bf16.msra.mxu0 %v5394
    %6814 = vmatmul.bf16.gmra.mxu0 %v6798
    %v6815 = vpop.f32.mrf.mxu0
    %v6816 = vadd.f32 0.0, %v6815
    %v6817 = vpop.f32.mrf.mxu0
    %6818 = vdwg.mxu0
    %6819 = vmatpush.bf16.msra.mxu0 %v5514
    %6820 = vmatpush.bf16.msra.mxu0 %v5506
    %6821 = vmatpush.bf16.msra.mxu0 %v5498
    %6822 = vmatpush.bf16.msra.mxu0 %v5490
    %6823 = vmatpush.bf16.msra.mxu0 %v5482
    %6824 = vmatpush.bf16.msra.mxu0 %v5474
    %6825 = vmatpush.bf16.msra.mxu0 %v5466
    %6826 = vmatpush.bf16.msra.mxu0 %v5458
    %6827 = vmatmul.bf16.gmra.mxu0 %v6799
    %v6828 = vpop.f32.mrf.mxu0
    %v6829 = vadd.f32 %v6816, %v6828
    %v6830 = vpop.f32.mrf.mxu0
    %6831 = vdwg.mxu0
    %6832 = vmatpush.bf16.msra.mxu0 %v5578
    %6833 = vmatpush.bf16.msra.mxu0 %v5570
    %6834 = vmatpush.bf16.msra.mxu0 %v5562
    %6835 = vmatpush.bf16.msra.mxu0 %v5554
    %6836 = vmatpush.bf16.msra.mxu0 %v5546
    %6837 = vmatpush.bf16.msra.mxu0 %v5538
    %6838 = vmatpush.bf16.msra.mxu0 %v5530
    %6839 = vmatpush.bf16.msra.mxu0 %v5522
    %6840 = vmatmul.bf16.gmra.mxu0 %v6800
    %v6841 = vpop.f32.mrf.mxu0
    %v6842 = vadd.f32 %v6829, %v6841
    %v6843 = vpop.f32.mrf.mxu0
    %6844 = vdwg.mxu0
    %6845 = vmatpush.bf16.msra.mxu0 %v5642
    %6846 = vmatpush.bf16.msra.mxu0 %v5634
    %6847 = vmatpush.bf16.msra.mxu0 %v5626
    %6848 = vmatpush.bf16.msra.mxu0 %v5618
    %6849 = vmatpush.bf16.msra.mxu0 %v5610
    %6850 = vmatpush.bf16.msra.mxu0 %v5602
    %6851 = vmatpush.bf16.msra.mxu0 %v5594
    %6852 = vmatpush.bf16.msra.mxu0 %v5586
    %6853 = vmatmul.bf16.gmra.mxu0 %v6801
    %v6854 = vpop.f32.mrf.mxu0
    %v6855 = vadd.f32 %v6842, %v6854
    %v6856 = vpop.f32.mrf.mxu0
    %6857 = vdwg.mxu0
    %6858 = vmatpush.bf16.msra.mxu0 %v5706
    %6859 = vmatpush.bf16.msra.mxu0 %v5698
    %6860 = vmatpush.bf16.msra.mxu0 %v5690
    %6861 = vmatpush.bf16.msra.mxu0 %v5682
    %6862 = vmatpush.bf16.msra.mxu0 %v5674
    %6863 = vmatpush.bf16.msra.mxu0 %v5666
    %6864 = vmatpush.bf16.msra.mxu0 %v5658
    %6865 = vmatpush.bf16.msra.mxu0 %v5650
    %6866 = vmatmul.bf16.gmra.mxu0 %v6802
    %v6867 = vpop.f32.mrf.mxu0
    %v6868 = vadd.f32 %v6855, %v6867
    %v6869 = vpop.f32.mrf.mxu0
    %6870 = vdwg.mxu0
    %6871 = vmatpush.bf16.msra.mxu0 %v5770
    %6872 = vmatpush.bf16.msra.mxu0 %v5762
    %6873 = vmatpush.bf16.msra.mxu0 %v5754
    %6874 = vmatpush.bf16.msra.mxu0 %v5746
    %6875 = vmatpush.bf16.msra.mxu0 %v5738
    %6876 = vmatpush.bf16.msra.mxu0 %v5730
    %6877 = vmatpush.bf16.msra.mxu0 %v5722
    %6878 = vmatpush.bf16.msra.mxu0 %v5714
    %6879 = vmatmul.bf16.gmra.mxu0 %v6803
    %v6880 = vpop.f32.mrf.mxu0
    %v6881 = vadd.f32 %v6868, %v6880
    %v6882 = vpop.f32.mrf.mxu0
    %6883 = vdwg.mxu0
    %6884 = vmatpush.bf16.msra.mxu0 %v5834
    %6885 = vmatpush.bf16.msra.mxu0 %v5826
    %6886 = vmatpush.bf16.msra.mxu0 %v5818
    %6887 = vmatpush.bf16.msra.mxu0 %v5810
    %6888 = vmatpush.bf16.msra.mxu0 %v5802
    %6889 = vmatpush.bf16.msra.mxu0 %v5794
    %6890 = vmatpush.bf16.msra.mxu0 %v5786
    %6891 = vmatpush.bf16.msra.mxu0 %v5778
    %6892 = vmatmul.bf16.gmra.mxu0 %v6804
    %v6893 = vpop.f32.mrf.mxu0
    %v6894 = vadd.f32 %v6881, %v6893
    %v6895 = vpop.f32.mrf.mxu0
    %6896 = vdwg.mxu0
    %6897 = vmatpush.bf16.msra.mxu0 %v5898
    %6898 = vmatpush.bf16.msra.mxu0 %v5890
    %6899 = vmatpush.bf16.msra.mxu0 %v5882
    %6900 = vmatpush.bf16.msra.mxu0 %v5874
    %6901 = vmatpush.bf16.msra.mxu0 %v5866
    %6902 = vmatpush.bf16.msra.mxu0 %v5858
    %6903 = vmatpush.bf16.msra.mxu0 %v5850
    %6904 = vmatpush.bf16.msra.mxu0 %v5842
    %6905 = vmatmul.bf16.gmra.mxu0 %v6805
    %v6906 = vpop.f32.mrf.mxu0
    %v6907 = vadd.f32 %v6894, %v6906
    %v6908 = vpop.f32.mrf.mxu0
    %6909 = vdwg.mxu0
    %6910 = vmatpush.bf16.msra.mxu0 %v5451
    %6911 = vmatpush.bf16.msra.mxu0 %v5443
    %6912 = vmatpush.bf16.msra.mxu0 %v5435
    %6913 = vmatpush.bf16.msra.mxu0 %v5427
    %6914 = vmatpush.bf16.msra.mxu0 %v5419
    %6915 = vmatpush.bf16.msra.mxu0 %v5411
    %6916 = vmatpush.bf16.msra.mxu0 %v5403
    %6917 = vmatpush.bf16.msra.mxu0 %v5395
    %6918 = vmatmul.bf16.gmra.mxu0 %v6798
    %v6919 = vpop.f32.mrf.mxu0
    %v6920 = vadd.f32 0.0, %v6919
    %v6921 = vpop.f32.mrf.mxu0
    %6922 = vdwg.mxu0
    %6923 = vmatpush.bf16.msra.mxu0 %v5515
    %6924 = vmatpush.bf16.msra.mxu0 %v5507
    %6925 = vmatpush.bf16.msra.mxu0 %v5499
    %6926 = vmatpush.bf16.msra.mxu0 %v5491
    %6927 = vmatpush.bf16.msra.mxu0 %v5483
    %6928 = vmatpush.bf16.msra.mxu0 %v5475
    %6929 = vmatpush.bf16.msra.mxu0 %v5467
    %6930 = vmatpush.bf16.msra.mxu0 %v5459
    %6931 = vmatmul.bf16.gmra.mxu0 %v6799
    %v6932 = vpop.f32.mrf.mxu0
    %v6933 = vadd.f32 %v6920, %v6932
    %v6934 = vpop.f32.mrf.mxu0
    %6935 = vdwg.mxu0
    %6936 = vmatpush.bf16.msra.mxu0 %v5579
    %6937 = vmatpush.bf16.msra.mxu0 %v5571
    %6938 = vmatpush.bf16.msra.mxu0 %v5563
    %6939 = vmatpush.bf16.msra.mxu0 %v5555
    %6940 = vmatpush.bf16.msra.mxu0 %v5547
    %6941 = vmatpush.bf16.msra.mxu0 %v5539
    %6942 = vmatpush.bf16.msra.mxu0 %v5531
    %6943 = vmatpush.bf16.msra.mxu0 %v5523
    %6944 = vmatmul.bf16.gmra.mxu0 %v6800
    %v6945 = vpop.f32.mrf.mxu0
    %v6946 = vadd.f32 %v6933, %v6945
    %v6947 = vpop.f32.mrf.mxu0
    %6948 = vdwg.mxu0
    %6949 = vmatpush.bf16.msra.mxu0 %v5643
    %6950 = vmatpush.bf16.msra.mxu0 %v5635
    %6951 = vmatpush.bf16.msra.mxu0 %v5627
    %6952 = vmatpush.bf16.msra.mxu0 %v5619
    %6953 = vmatpush.bf16.msra.mxu0 %v5611
    %6954 = vmatpush.bf16.msra.mxu0 %v5603
    %6955 = vmatpush.bf16.msra.mxu0 %v5595
    %6956 = vmatpush.bf16.msra.mxu0 %v5587
    %6957 = vmatmul.bf16.gmra.mxu0 %v6801
    %v6958 = vpop.f32.mrf.mxu0
    %v6959 = vadd.f32 %v6946, %v6958
    %v6960 = vpop.f32.mrf.mxu0
    %6961 = vdwg.mxu0
    %6962 = vmatpush.bf16.msra.mxu0 %v5707
    %6963 = vmatpush.bf16.msra.mxu0 %v5699
    %6964 = vmatpush.bf16.msra.mxu0 %v5691
    %6965 = vmatpush.bf16.msra.mxu0 %v5683
    %6966 = vmatpush.bf16.msra.mxu0 %v5675
    %6967 = vmatpush.bf16.msra.mxu0 %v5667
    %6968 = vmatpush.bf16.msra.mxu0 %v5659
    %6969 = vmatpush.bf16.msra.mxu0 %v5651
    %6970 = vmatmul.bf16.gmra.mxu0 %v6802
    %v6971 = vpop.f32.mrf.mxu0
    %v6972 = vadd.f32 %v6959, %v6971
    %v6973 = vpop.f32.mrf.mxu0
    %6974 = vdwg.mxu0
    %6975 = vmatpush.bf16.msra.mxu0 %v5771
    %6976 = vmatpush.bf16.msra.mxu0 %v5763
    %6977 = vmatpush.bf16.msra.mxu0 %v5755
    %6978 = vmatpush.bf16.msra.mxu0 %v5747
    %6979 = vmatpush.bf16.msra.mxu0 %v5739
    %6980 = vmatpush.bf16.msra.mxu0 %v5731
    %6981 = vmatpush.bf16.msra.mxu0 %v5723
    %6982 = vmatpush.bf16.msra.mxu0 %v5715
    %6983 = vmatmul.bf16.gmra.mxu0 %v6803
    %v6984 = vpop.f32.mrf.mxu0
    %v6985 = vadd.f32 %v6972, %v6984
    %v6986 = vpop.f32.mrf.mxu0
    %6987 = vdwg.mxu0
    %6988 = vmatpush.bf16.msra.mxu0 %v5835
    %6989 = vmatpush.bf16.msra.mxu0 %v5827
    %6990 = vmatpush.bf16.msra.mxu0 %v5819
    %6991 = vmatpush.bf16.msra.mxu0 %v5811
    %6992 = vmatpush.bf16.msra.mxu0 %v5803
    %6993 = vmatpush.bf16.msra.mxu0 %v5795
    %6994 = vmatpush.bf16.msra.mxu0 %v5787
    %6995 = vmatpush.bf16.msra.mxu0 %v5779
    %6996 = vmatmul.bf16.gmra.mxu0 %v6804
    %v6997 = vpop.f32.mrf.mxu0
    %v6998 = vadd.f32 %v6985, %v6997
    %v6999 = vpop.f32.mrf.mxu0
    %7000 = vdwg.mxu0
    %7001 = vmatpush.bf16.msra.mxu0 %v5899
    %7002 = vmatpush.bf16.msra.mxu0 %v5891
    %7003 = vmatpush.bf16.msra.mxu0 %v5883
    %7004 = vmatpush.bf16.msra.mxu0 %v5875
    %7005 = vmatpush.bf16.msra.mxu0 %v5867
    %7006 = vmatpush.bf16.msra.mxu0 %v5859
    %7007 = vmatpush.bf16.msra.mxu0 %v5851
    %7008 = vmatpush.bf16.msra.mxu0 %v5843
    %7009 = vmatmul.bf16.gmra.mxu0 %v6805
    %v7010 = vpop.f32.mrf.mxu0
    %v7011 = vadd.f32 %v6998, %v7010
    %v7012 = vpop.f32.mrf.mxu0
    %7013 = vdwg.mxu0
    %7014 = vmatpush.bf16.msra.mxu0 %v5452
    %7015 = vmatpush.bf16.msra.mxu0 %v5444
    %7016 = vmatpush.bf16.msra.mxu0 %v5436
    %7017 = vmatpush.bf16.msra.mxu0 %v5428
    %7018 = vmatpush.bf16.msra.mxu0 %v5420
    %7019 = vmatpush.bf16.msra.mxu0 %v5412
    %7020 = vmatpush.bf16.msra.mxu0 %v5404
    %7021 = vmatpush.bf16.msra.mxu0 %v5396
    %7022 = vmatmul.bf16.gmra.mxu0 %v6798
    %v7023 = vpop.f32.mrf.mxu0
    %v7024 = vadd.f32 0.0, %v7023
    %v7025 = vpop.f32.mrf.mxu0
    %7026 = vdwg.mxu0
    %7027 = vmatpush.bf16.msra.mxu0 %v5516
    %7028 = vmatpush.bf16.msra.mxu0 %v5508
    %7029 = vmatpush.bf16.msra.mxu0 %v5500
    %7030 = vmatpush.bf16.msra.mxu0 %v5492
    %7031 = vmatpush.bf16.msra.mxu0 %v5484
    %7032 = vmatpush.bf16.msra.mxu0 %v5476
    %7033 = vmatpush.bf16.msra.mxu0 %v5468
    %7034 = vmatpush.bf16.msra.mxu0 %v5460
    %7035 = vmatmul.bf16.gmra.mxu0 %v6799
    %v7036 = vpop.f32.mrf.mxu0
    %v7037 = vadd.f32 %v7024, %v7036
    %v7038 = vpop.f32.mrf.mxu0
    %7039 = vdwg.mxu0
    %7040 = vmatpush.bf16.msra.mxu0 %v5580
    %7041 = vmatpush.bf16.msra.mxu0 %v5572
    %7042 = vmatpush.bf16.msra.mxu0 %v5564
    %7043 = vmatpush.bf16.msra.mxu0 %v5556
    %7044 = vmatpush.bf16.msra.mxu0 %v5548
    %7045 = vmatpush.bf16.msra.mxu0 %v5540
    %7046 = vmatpush.bf16.msra.mxu0 %v5532
    %7047 = vmatpush.bf16.msra.mxu0 %v5524
    %7048 = vmatmul.bf16.gmra.mxu0 %v6800
    %v7049 = vpop.f32.mrf.mxu0
    %v7050 = vadd.f32 %v7037, %v7049
    %v7051 = vpop.f32.mrf.mxu0
    %7052 = vdwg.mxu0
    %7053 = vmatpush.bf16.msra.mxu0 %v5644
    %7054 = vmatpush.bf16.msra.mxu0 %v5636
    %7055 = vmatpush.bf16.msra.mxu0 %v5628
    %7056 = vmatpush.bf16.msra.mxu0 %v5620
    %7057 = vmatpush.bf16.msra.mxu0 %v5612
    %7058 = vmatpush.bf16.msra.mxu0 %v5604
    %7059 = vmatpush.bf16.msra.mxu0 %v5596
    %7060 = vmatpush.bf16.msra.mxu0 %v5588
    %7061 = vmatmul.bf16.gmra.mxu0 %v6801
    %v7062 = vpop.f32.mrf.mxu0
    %v7063 = vadd.f32 %v7050, %v7062
    %v7064 = vpop.f32.mrf.mxu0
    %7065 = vdwg.mxu0
    %7066 = vmatpush.bf16.msra.mxu0 %v5708
    %7067 = vmatpush.bf16.msra.mxu0 %v5700
    %7068 = vmatpush.bf16.msra.mxu0 %v5692
    %7069 = vmatpush.bf16.msra.mxu0 %v5684
    %7070 = vmatpush.bf16.msra.mxu0 %v5676
    %7071 = vmatpush.bf16.msra.mxu0 %v5668
    %7072 = vmatpush.bf16.msra.mxu0 %v5660
    %7073 = vmatpush.bf16.msra.mxu0 %v5652
    %7074 = vmatmul.bf16.gmra.mxu0 %v6802
    %v7075 = vpop.f32.mrf.mxu0
    %v7076 = vadd.f32 %v7063, %v7075
    %v7077 = vpop.f32.mrf.mxu0
    %7078 = vdwg.mxu0
    %7079 = vmatpush.bf16.msra.mxu0 %v5772
    %7080 = vmatpush.bf16.msra.mxu0 %v5764
    %7081 = vmatpush.bf16.msra.mxu0 %v5756
    %7082 = vmatpush.bf16.msra.mxu0 %v5748
    %7083 = vmatpush.bf16.msra.mxu0 %v5740
    %7084 = vmatpush.bf16.msra.mxu0 %v5732
    %7085 = vmatpush.bf16.msra.mxu0 %v5724
    %7086 = vmatpush.bf16.msra.mxu0 %v5716
    %7087 = vmatmul.bf16.gmra.mxu0 %v6803
    %v7088 = vpop.f32.mrf.mxu0
    %v7089 = vadd.f32 %v7076, %v7088
    %v7090 = vpop.f32.mrf.mxu0
    %7091 = vdwg.mxu0
    %7092 = vmatpush.bf16.msra.mxu0 %v5836
    %7093 = vmatpush.bf16.msra.mxu0 %v5828
    %7094 = vmatpush.bf16.msra.mxu0 %v5820
    %7095 = vmatpush.bf16.msra.mxu0 %v5812
    %7096 = vmatpush.bf16.msra.mxu0 %v5804
    %7097 = vmatpush.bf16.msra.mxu0 %v5796
    %7098 = vmatpush.bf16.msra.mxu0 %v5788
    %7099 = vmatpush.bf16.msra.mxu0 %v5780
    %7100 = vmatmul.bf16.gmra.mxu0 %v6804
    %v7101 = vpop.f32.mrf.mxu0
    %v7102 = vadd.f32 %v7089, %v7101
    %v7103 = vpop.f32.mrf.mxu0
    %7104 = vdwg.mxu0
    %7105 = vmatpush.bf16.msra.mxu0 %v5900
    %7106 = vmatpush.bf16.msra.mxu0 %v5892
    %7107 = vmatpush.bf16.msra.mxu0 %v5884
    %7108 = vmatpush.bf16.msra.mxu0 %v5876
    %7109 = vmatpush.bf16.msra.mxu0 %v5868
    %7110 = vmatpush.bf16.msra.mxu0 %v5860
    %7111 = vmatpush.bf16.msra.mxu0 %v5852
    %7112 = vmatpush.bf16.msra.mxu0 %v5844
    %7113 = vmatmul.bf16.gmra.mxu0 %v6805
    %v7114 = vpop.f32.mrf.mxu0
    %v7115 = vadd.f32 %v7102, %v7114
    %v7116 = vpop.f32.mrf.mxu0
    %7117 = vdwg.mxu0
    %7118 = vmatpush.bf16.msra.mxu0 %v5453
    %7119 = vmatpush.bf16.msra.mxu0 %v5445
    %7120 = vmatpush.bf16.msra.mxu0 %v5437
    %7121 = vmatpush.bf16.msra.mxu0 %v5429
    %7122 = vmatpush.bf16.msra.mxu0 %v5421
    %7123 = vmatpush.bf16.msra.mxu0 %v5413
    %7124 = vmatpush.bf16.msra.mxu0 %v5405
    %7125 = vmatpush.bf16.msra.mxu0 %v5397
    %7126 = vmatmul.bf16.gmra.mxu0 %v6798
    %v7127 = vpop.f32.mrf.mxu0
    %v7128 = vadd.f32 0.0, %v7127
    %v7129 = vpop.f32.mrf.mxu0
    %7130 = vdwg.mxu0
    %7131 = vmatpush.bf16.msra.mxu0 %v5517
    %7132 = vmatpush.bf16.msra.mxu0 %v5509
    %7133 = vmatpush.bf16.msra.mxu0 %v5501
    %7134 = vmatpush.bf16.msra.mxu0 %v5493
    %7135 = vmatpush.bf16.msra.mxu0 %v5485
    %7136 = vmatpush.bf16.msra.mxu0 %v5477
    %7137 = vmatpush.bf16.msra.mxu0 %v5469
    %7138 = vmatpush.bf16.msra.mxu0 %v5461
    %7139 = vmatmul.bf16.gmra.mxu0 %v6799
    %v7140 = vpop.f32.mrf.mxu0
    %v7141 = vadd.f32 %v7128, %v7140
    %v7142 = vpop.f32.mrf.mxu0
    %7143 = vdwg.mxu0
    %7144 = vmatpush.bf16.msra.mxu0 %v5581
    %7145 = vmatpush.bf16.msra.mxu0 %v5573
    %7146 = vmatpush.bf16.msra.mxu0 %v5565
    %7147 = vmatpush.bf16.msra.mxu0 %v5557
    %7148 = vmatpush.bf16.msra.mxu0 %v5549
    %7149 = vmatpush.bf16.msra.mxu0 %v5541
    %7150 = vmatpush.bf16.msra.mxu0 %v5533
    %7151 = vmatpush.bf16.msra.mxu0 %v5525
    %7152 = vmatmul.bf16.gmra.mxu0 %v6800
    %v7153 = vpop.f32.mrf.mxu0
    %v7154 = vadd.f32 %v7141, %v7153
    %v7155 = vpop.f32.mrf.mxu0
    %7156 = vdwg.mxu0
    %7157 = vmatpush.bf16.msra.mxu0 %v5645
    %7158 = vmatpush.bf16.msra.mxu0 %v5637
    %7159 = vmatpush.bf16.msra.mxu0 %v5629
    %7160 = vmatpush.bf16.msra.mxu0 %v5621
    %7161 = vmatpush.bf16.msra.mxu0 %v5613
    %7162 = vmatpush.bf16.msra.mxu0 %v5605
    %7163 = vmatpush.bf16.msra.mxu0 %v5597
    %7164 = vmatpush.bf16.msra.mxu0 %v5589
    %7165 = vmatmul.bf16.gmra.mxu0 %v6801
    %v7166 = vpop.f32.mrf.mxu0
    %v7167 = vadd.f32 %v7154, %v7166
    %v7168 = vpop.f32.mrf.mxu0
    %7169 = vdwg.mxu0
    %7170 = vmatpush.bf16.msra.mxu0 %v5709
    %7171 = vmatpush.bf16.msra.mxu0 %v5701
    %7172 = vmatpush.bf16.msra.mxu0 %v5693
    %7173 = vmatpush.bf16.msra.mxu0 %v5685
    %7174 = vmatpush.bf16.msra.mxu0 %v5677
    %7175 = vmatpush.bf16.msra.mxu0 %v5669
    %7176 = vmatpush.bf16.msra.mxu0 %v5661
    %7177 = vmatpush.bf16.msra.mxu0 %v5653
    %7178 = vmatmul.bf16.gmra.mxu0 %v6802
    %v7179 = vpop.f32.mrf.mxu0
    %v7180 = vadd.f32 %v7167, %v7179
    %v7181 = vpop.f32.mrf.mxu0
    %7182 = vdwg.mxu0
    %7183 = vmatpush.bf16.msra.mxu0 %v5773
    %7184 = vmatpush.bf16.msra.mxu0 %v5765
    %7185 = vmatpush.bf16.msra.mxu0 %v5757
    %7186 = vmatpush.bf16.msra.mxu0 %v5749
    %7187 = vmatpush.bf16.msra.mxu0 %v5741
    %7188 = vmatpush.bf16.msra.mxu0 %v5733
    %7189 = vmatpush.bf16.msra.mxu0 %v5725
    %7190 = vmatpush.bf16.msra.mxu0 %v5717
    %7191 = vmatmul.bf16.gmra.mxu0 %v6803
    %v7192 = vpop.f32.mrf.mxu0
    %v7193 = vadd.f32 %v7180, %v7192
    %v7194 = vpop.f32.mrf.mxu0
    %7195 = vdwg.mxu0
    %7196 = vmatpush.bf16.msra.mxu0 %v5837
    %7197 = vmatpush.bf16.msra.mxu0 %v5829
    %7198 = vmatpush.bf16.msra.mxu0 %v5821
    %7199 = vmatpush.bf16.msra.mxu0 %v5813
    %7200 = vmatpush.bf16.msra.mxu0 %v5805
    %7201 = vmatpush.bf16.msra.mxu0 %v5797
    %7202 = vmatpush.bf16.msra.mxu0 %v5789
    %7203 = vmatpush.bf16.msra.mxu0 %v5781
    %7204 = vmatmul.bf16.gmra.mxu0 %v6804
    %v7205 = vpop.f32.mrf.mxu0
    %v7206 = vadd.f32 %v7193, %v7205
    %v7207 = vpop.f32.mrf.mxu0
    %7208 = vdwg.mxu0
    %7209 = vmatpush.bf16.msra.mxu0 %v5901
    %7210 = vmatpush.bf16.msra.mxu0 %v5893
    %7211 = vmatpush.bf16.msra.mxu0 %v5885
    %7212 = vmatpush.bf16.msra.mxu0 %v5877
    %7213 = vmatpush.bf16.msra.mxu0 %v5869
    %7214 = vmatpush.bf16.msra.mxu0 %v5861
    %7215 = vmatpush.bf16.msra.mxu0 %v5853
    %7216 = vmatpush.bf16.msra.mxu0 %v5845
    %7217 = vmatmul.bf16.gmra.mxu0 %v6805
    %v7218 = vpop.f32.mrf.mxu0
    %v7219 = vadd.f32 %v7206, %v7218
    %v7220 = vpop.f32.mrf.mxu0
    %7221 = vdwg.mxu0
    %7222 = vmatpush.bf16.msra.mxu0 %v5454
    %7223 = vmatpush.bf16.msra.mxu0 %v5446
    %7224 = vmatpush.bf16.msra.mxu0 %v5438
    %7225 = vmatpush.bf16.msra.mxu0 %v5430
    %7226 = vmatpush.bf16.msra.mxu0 %v5422
    %7227 = vmatpush.bf16.msra.mxu0 %v5414
    %7228 = vmatpush.bf16.msra.mxu0 %v5406
    %7229 = vmatpush.bf16.msra.mxu0 %v5398
    %7230 = vmatmul.bf16.gmra.mxu0 %v6798
    %v7231 = vpop.f32.mrf.mxu0
    %v7232 = vadd.f32 0.0, %v7231
    %v7233 = vpop.f32.mrf.mxu0
    %7234 = vdwg.mxu0
    %7235 = vmatpush.bf16.msra.mxu0 %v5518
    %7236 = vmatpush.bf16.msra.mxu0 %v5510
    %7237 = vmatpush.bf16.msra.mxu0 %v5502
    %7238 = vmatpush.bf16.msra.mxu0 %v5494
    %7239 = vmatpush.bf16.msra.mxu0 %v5486
    %7240 = vmatpush.bf16.msra.mxu0 %v5478
    %7241 = vmatpush.bf16.msra.mxu0 %v5470
    %7242 = vmatpush.bf16.msra.mxu0 %v5462
    %7243 = vmatmul.bf16.gmra.mxu0 %v6799
    %v7244 = vpop.f32.mrf.mxu0
    %v7245 = vadd.f32 %v7232, %v7244
    %v7246 = vpop.f32.mrf.mxu0
    %7247 = vdwg.mxu0
    %7248 = vmatpush.bf16.msra.mxu0 %v5582
    %7249 = vmatpush.bf16.msra.mxu0 %v5574
    %7250 = vmatpush.bf16.msra.mxu0 %v5566
    %7251 = vmatpush.bf16.msra.mxu0 %v5558
    %7252 = vmatpush.bf16.msra.mxu0 %v5550
    %7253 = vmatpush.bf16.msra.mxu0 %v5542
    %7254 = vmatpush.bf16.msra.mxu0 %v5534
    %7255 = vmatpush.bf16.msra.mxu0 %v5526
    %7256 = vmatmul.bf16.gmra.mxu0 %v6800
    %v7257 = vpop.f32.mrf.mxu0
    %v7258 = vadd.f32 %v7245, %v7257
    %v7259 = vpop.f32.mrf.mxu0
    %7260 = vdwg.mxu0
    %7261 = vmatpush.bf16.msra.mxu0 %v5646
    %7262 = vmatpush.bf16.msra.mxu0 %v5638
    %7263 = vmatpush.bf16.msra.mxu0 %v5630
    %7264 = vmatpush.bf16.msra.mxu0 %v5622
    %7265 = vmatpush.bf16.msra.mxu0 %v5614
    %7266 = vmatpush.bf16.msra.mxu0 %v5606
    %7267 = vmatpush.bf16.msra.mxu0 %v5598
    %7268 = vmatpush.bf16.msra.mxu0 %v5590
    %7269 = vmatmul.bf16.gmra.mxu0 %v6801
    %v7270 = vpop.f32.mrf.mxu0
    %v7271 = vadd.f32 %v7258, %v7270
    %v7272 = vpop.f32.mrf.mxu0
    %7273 = vdwg.mxu0
    %7274 = vmatpush.bf16.msra.mxu0 %v5710
    %7275 = vmatpush.bf16.msra.mxu0 %v5702
    %7276 = vmatpush.bf16.msra.mxu0 %v5694
    %7277 = vmatpush.bf16.msra.mxu0 %v5686
    %7278 = vmatpush.bf16.msra.mxu0 %v5678
    %7279 = vmatpush.bf16.msra.mxu0 %v5670
    %7280 = vmatpush.bf16.msra.mxu0 %v5662
    %7281 = vmatpush.bf16.msra.mxu0 %v5654
    %7282 = vmatmul.bf16.gmra.mxu0 %v6802
    %v7283 = vpop.f32.mrf.mxu0
    %v7284 = vadd.f32 %v7271, %v7283
    %v7285 = vpop.f32.mrf.mxu0
    %7286 = vdwg.mxu0
    %7287 = vmatpush.bf16.msra.mxu0 %v5774
    %7288 = vmatpush.bf16.msra.mxu0 %v5766
    %7289 = vmatpush.bf16.msra.mxu0 %v5758
    %7290 = vmatpush.bf16.msra.mxu0 %v5750
    %7291 = vmatpush.bf16.msra.mxu0 %v5742
    %7292 = vmatpush.bf16.msra.mxu0 %v5734
    %7293 = vmatpush.bf16.msra.mxu0 %v5726
    %7294 = vmatpush.bf16.msra.mxu0 %v5718
    %7295 = vmatmul.bf16.gmra.mxu0 %v6803
    %v7296 = vpop.f32.mrf.mxu0
    %v7297 = vadd.f32 %v7284, %v7296
    %v7298 = vpop.f32.mrf.mxu0
    %7299 = vdwg.mxu0
    %7300 = vmatpush.bf16.msra.mxu0 %v5838
    %7301 = vmatpush.bf16.msra.mxu0 %v5830
    %7302 = vmatpush.bf16.msra.mxu0 %v5822
    %7303 = vmatpush.bf16.msra.mxu0 %v5814
    %7304 = vmatpush.bf16.msra.mxu0 %v5806
    %7305 = vmatpush.bf16.msra.mxu0 %v5798
    %7306 = vmatpush.bf16.msra.mxu0 %v5790
    %7307 = vmatpush.bf16.msra.mxu0 %v5782
    %7308 = vmatmul.bf16.gmra.mxu0 %v6804
    %v7309 = vpop.f32.mrf.mxu0
    %v7310 = vadd.f32 %v7297, %v7309
    %v7311 = vpop.f32.mrf.mxu0
    %7312 = vdwg.mxu0
    %7313 = vmatpush.bf16.msra.mxu0 %v5902
    %7314 = vmatpush.bf16.msra.mxu0 %v5894
    %7315 = vmatpush.bf16.msra.mxu0 %v5886
    %7316 = vmatpush.bf16.msra.mxu0 %v5878
    %7317 = vmatpush.bf16.msra.mxu0 %v5870
    %7318 = vmatpush.bf16.msra.mxu0 %v5862
    %7319 = vmatpush.bf16.msra.mxu0 %v5854
    %7320 = vmatpush.bf16.msra.mxu0 %v5846
    %7321 = vmatmul.bf16.gmra.mxu0 %v6805
    %v7322 = vpop.f32.mrf.mxu0
    %v7323 = vadd.f32 %v7310, %v7322
    %v7324 = vpop.f32.mrf.mxu0
    %7325 = vdwg.mxu0
    %7326 = vmatpush.bf16.msra.mxu0 %v5455
    %7327 = vmatpush.bf16.msra.mxu0 %v5447
    %7328 = vmatpush.bf16.msra.mxu0 %v5439
    %7329 = vmatpush.bf16.msra.mxu0 %v5431
    %7330 = vmatpush.bf16.msra.mxu0 %v5423
    %7331 = vmatpush.bf16.msra.mxu0 %v5415
    %7332 = vmatpush.bf16.msra.mxu0 %v5407
    %7333 = vmatpush.bf16.msra.mxu0 %v5399
    %7334 = vmatmul.bf16.gmra.mxu0 %v6798
    %v7335 = vpop.f32.mrf.mxu0
    %v7336 = vadd.f32 0.0, %v7335
    %v7337 = vpop.f32.mrf.mxu0
    %7338 = vdwg.mxu0
    %7339 = vmatpush.bf16.msra.mxu0 %v5519
    %7340 = vmatpush.bf16.msra.mxu0 %v5511
    %7341 = vmatpush.bf16.msra.mxu0 %v5503
    %7342 = vmatpush.bf16.msra.mxu0 %v5495
    %7343 = vmatpush.bf16.msra.mxu0 %v5487
    %7344 = vmatpush.bf16.msra.mxu0 %v5479
    %7345 = vmatpush.bf16.msra.mxu0 %v5471
    %7346 = vmatpush.bf16.msra.mxu0 %v5463
    %7347 = vmatmul.bf16.gmra.mxu0 %v6799
    %v7348 = vpop.f32.mrf.mxu0
    %v7349 = vadd.f32 %v7336, %v7348
    %v7350 = vpop.f32.mrf.mxu0
    %7351 = vdwg.mxu0
    %7352 = vmatpush.bf16.msra.mxu0 %v5583
    %7353 = vmatpush.bf16.msra.mxu0 %v5575
    %7354 = vmatpush.bf16.msra.mxu0 %v5567
    %7355 = vmatpush.bf16.msra.mxu0 %v5559
    %7356 = vmatpush.bf16.msra.mxu0 %v5551
    %7357 = vmatpush.bf16.msra.mxu0 %v5543
    %7358 = vmatpush.bf16.msra.mxu0 %v5535
    %7359 = vmatpush.bf16.msra.mxu0 %v5527
    %7360 = vmatmul.bf16.gmra.mxu0 %v6800
    %v7361 = vpop.f32.mrf.mxu0
    %v7362 = vadd.f32 %v7349, %v7361
    %v7363 = vpop.f32.mrf.mxu0
    %7364 = vdwg.mxu0
    %7365 = vmatpush.bf16.msra.mxu0 %v5647
    %7366 = vmatpush.bf16.msra.mxu0 %v5639
    %7367 = vmatpush.bf16.msra.mxu0 %v5631
    %7368 = vmatpush.bf16.msra.mxu0 %v5623
    %7369 = vmatpush.bf16.msra.mxu0 %v5615
    %7370 = vmatpush.bf16.msra.mxu0 %v5607
    %7371 = vmatpush.bf16.msra.mxu0 %v5599
    %7372 = vmatpush.bf16.msra.mxu0 %v5591
    %7373 = vmatmul.bf16.gmra.mxu0 %v6801
    %v7374 = vpop.f32.mrf.mxu0
    %v7375 = vadd.f32 %v7362, %v7374
    %v7376 = vpop.f32.mrf.mxu0
    %7377 = vdwg.mxu0
    %7378 = vmatpush.bf16.msra.mxu0 %v5711
    %7379 = vmatpush.bf16.msra.mxu0 %v5703
    %7380 = vmatpush.bf16.msra.mxu0 %v5695
    %7381 = vmatpush.bf16.msra.mxu0 %v5687
    %7382 = vmatpush.bf16.msra.mxu0 %v5679
    %7383 = vmatpush.bf16.msra.mxu0 %v5671
    %7384 = vmatpush.bf16.msra.mxu0 %v5663
    %7385 = vmatpush.bf16.msra.mxu0 %v5655
    %7386 = vmatmul.bf16.gmra.mxu0 %v6802
    %v7387 = vpop.f32.mrf.mxu0
    %v7388 = vadd.f32 %v7375, %v7387
    %v7389 = vpop.f32.mrf.mxu0
    %7390 = vdwg.mxu0
    %7391 = vmatpush.bf16.msra.mxu0 %v5775
    %7392 = vmatpush.bf16.msra.mxu0 %v5767
    %7393 = vmatpush.bf16.msra.mxu0 %v5759
    %7394 = vmatpush.bf16.msra.mxu0 %v5751
    %7395 = vmatpush.bf16.msra.mxu0 %v5743
    %7396 = vmatpush.bf16.msra.mxu0 %v5735
    %7397 = vmatpush.bf16.msra.mxu0 %v5727
    %7398 = vmatpush.bf16.msra.mxu0 %v5719
    %7399 = vmatmul.bf16.gmra.mxu0 %v6803
    %v7400 = vpop.f32.mrf.mxu0
    %v7401 = vadd.f32 %v7388, %v7400
    %v7402 = vpop.f32.mrf.mxu0
    %7403 = vdwg.mxu0
    %7404 = vmatpush.bf16.msra.mxu0 %v5839
    %7405 = vmatpush.bf16.msra.mxu0 %v5831
    %7406 = vmatpush.bf16.msra.mxu0 %v5823
    %7407 = vmatpush.bf16.msra.mxu0 %v5815
    %7408 = vmatpush.bf16.msra.mxu0 %v5807
    %7409 = vmatpush.bf16.msra.mxu0 %v5799
    %7410 = vmatpush.bf16.msra.mxu0 %v5791
    %7411 = vmatpush.bf16.msra.mxu0 %v5783
    %7412 = vmatmul.bf16.gmra.mxu0 %v6804
    %v7413 = vpop.f32.mrf.mxu0
    %v7414 = vadd.f32 %v7401, %v7413
    %v7415 = vpop.f32.mrf.mxu0
    %7416 = vdwg.mxu0
    %7417 = vmatpush.bf16.msra.mxu0 %v5903
    %7418 = vmatpush.bf16.msra.mxu0 %v5895
    %7419 = vmatpush.bf16.msra.mxu0 %v5887
    %7420 = vmatpush.bf16.msra.mxu0 %v5879
    %7421 = vmatpush.bf16.msra.mxu0 %v5871
    %7422 = vmatpush.bf16.msra.mxu0 %v5863
    %7423 = vmatpush.bf16.msra.mxu0 %v5855
    %7424 = vmatpush.bf16.msra.mxu0 %v5847
    %7425 = vmatmul.bf16.gmra.mxu0 %v6805
    %v7426 = vpop.f32.mrf.mxu0
    %v7427 = vadd.f32 %v7414, %v7426
    %v7428 = vpop.f32.mrf.mxu0
    %7429 = vdwg.mxu0
    %7430 = vmatpush.bf16.msra.mxu0 %v5456
    %7431 = vmatpush.bf16.msra.mxu0 %v5448
    %7432 = vmatpush.bf16.msra.mxu0 %v5440
    %7433 = vmatpush.bf16.msra.mxu0 %v5432
    %7434 = vmatpush.bf16.msra.mxu0 %v5424
    %7435 = vmatpush.bf16.msra.mxu0 %v5416
    %7436 = vmatpush.bf16.msra.mxu0 %v5408
    %7437 = vmatpush.bf16.msra.mxu0 %v5400
    %7438 = vmatmul.bf16.gmra.mxu0 %v6798
    %v7439 = vpop.f32.mrf.mxu0
    %v7440 = vadd.f32 0.0, %v7439
    %v7441 = vpop.f32.mrf.mxu0
    %7442 = vdwg.mxu0
    %7443 = vmatpush.bf16.msra.mxu0 %v5520
    %7444 = vmatpush.bf16.msra.mxu0 %v5512
    %7445 = vmatpush.bf16.msra.mxu0 %v5504
    %7446 = vmatpush.bf16.msra.mxu0 %v5496
    %7447 = vmatpush.bf16.msra.mxu0 %v5488
    %7448 = vmatpush.bf16.msra.mxu0 %v5480
    %7449 = vmatpush.bf16.msra.mxu0 %v5472
    %7450 = vmatpush.bf16.msra.mxu0 %v5464
    %7451 = vmatmul.bf16.gmra.mxu0 %v6799
    %v7452 = vpop.f32.mrf.mxu0
    %v7453 = vadd.f32 %v7440, %v7452
    %v7454 = vpop.f32.mrf.mxu0
    %7455 = vdwg.mxu0
    %7456 = vmatpush.bf16.msra.mxu0 %v5584
    %7457 = vmatpush.bf16.msra.mxu0 %v5576
    %7458 = vmatpush.bf16.msra.mxu0 %v5568
    %7459 = vmatpush.bf16.msra.mxu0 %v5560
    %7460 = vmatpush.bf16.msra.mxu0 %v5552
    %7461 = vmatpush.bf16.msra.mxu0 %v5544
    %7462 = vmatpush.bf16.msra.mxu0 %v5536
    %7463 = vmatpush.bf16.msra.mxu0 %v5528
    %7464 = vmatmul.bf16.gmra.mxu0 %v6800
    %v7465 = vpop.f32.mrf.mxu0
    %v7466 = vadd.f32 %v7453, %v7465
    %v7467 = vpop.f32.mrf.mxu0
    %7468 = vdwg.mxu0
    %7469 = vmatpush.bf16.msra.mxu0 %v5648
    %7470 = vmatpush.bf16.msra.mxu0 %v5640
    %7471 = vmatpush.bf16.msra.mxu0 %v5632
    %7472 = vmatpush.bf16.msra.mxu0 %v5624
    %7473 = vmatpush.bf16.msra.mxu0 %v5616
    %7474 = vmatpush.bf16.msra.mxu0 %v5608
    %7475 = vmatpush.bf16.msra.mxu0 %v5600
    %7476 = vmatpush.bf16.msra.mxu0 %v5592
    %7477 = vmatmul.bf16.gmra.mxu0 %v6801
    %v7478 = vpop.f32.mrf.mxu0
    %v7479 = vadd.f32 %v7466, %v7478
    %v7480 = vpop.f32.mrf.mxu0
    %7481 = vdwg.mxu0
    %7482 = vmatpush.bf16.msra.mxu0 %v5712
    %7483 = vmatpush.bf16.msra.mxu0 %v5704
    %7484 = vmatpush.bf16.msra.mxu0 %v5696
    %7485 = vmatpush.bf16.msra.mxu0 %v5688
    %7486 = vmatpush.bf16.msra.mxu0 %v5680
    %7487 = vmatpush.bf16.msra.mxu0 %v5672
    %7488 = vmatpush.bf16.msra.mxu0 %v5664
    %7489 = vmatpush.bf16.msra.mxu0 %v5656
    %7490 = vmatmul.bf16.gmra.mxu0 %v6802
    %v7491 = vpop.f32.mrf.mxu0
    %v7492 = vadd.f32 %v7479, %v7491
    %v7493 = vpop.f32.mrf.mxu0
    %7494 = vdwg.mxu0
    %7495 = vmatpush.bf16.msra.mxu0 %v5776
    %7496 = vmatpush.bf16.msra.mxu0 %v5768
    %7497 = vmatpush.bf16.msra.mxu0 %v5760
    %7498 = vmatpush.bf16.msra.mxu0 %v5752
    %7499 = vmatpush.bf16.msra.mxu0 %v5744
    %7500 = vmatpush.bf16.msra.mxu0 %v5736
    %7501 = vmatpush.bf16.msra.mxu0 %v5728
    %7502 = vmatpush.bf16.msra.mxu0 %v5720
    %7503 = vmatmul.bf16.gmra.mxu0 %v6803
    %v7504 = vpop.f32.mrf.mxu0
    %v7505 = vadd.f32 %v7492, %v7504
    %v7506 = vpop.f32.mrf.mxu0
    %7507 = vdwg.mxu0
    %7508 = vmatpush.bf16.msra.mxu0 %v5840
    %7509 = vmatpush.bf16.msra.mxu0 %v5832
    %7510 = vmatpush.bf16.msra.mxu0 %v5824
    %7511 = vmatpush.bf16.msra.mxu0 %v5816
    %7512 = vmatpush.bf16.msra.mxu0 %v5808
    %7513 = vmatpush.bf16.msra.mxu0 %v5800
    %7514 = vmatpush.bf16.msra.mxu0 %v5792
    %7515 = vmatpush.bf16.msra.mxu0 %v5784
    %7516 = vmatmul.bf16.gmra.mxu0 %v6804
    %v7517 = vpop.f32.mrf.mxu0
    %v7518 = vadd.f32 %v7505, %v7517
    %v7519 = vpop.f32.mrf.mxu0
    %7520 = vdwg.mxu0
    %7521 = vmatpush.bf16.msra.mxu0 %v5904
    %7522 = vmatpush.bf16.msra.mxu0 %v5896
    %7523 = vmatpush.bf16.msra.mxu0 %v5888
    %7524 = vmatpush.bf16.msra.mxu0 %v5880
    %7525 = vmatpush.bf16.msra.mxu0 %v5872
    %7526 = vmatpush.bf16.msra.mxu0 %v5864
    %7527 = vmatpush.bf16.msra.mxu0 %v5856
    %7528 = vmatpush.bf16.msra.mxu0 %v5848
    %7529 = vmatmul.bf16.gmra.mxu0 %v6805
    %v7530 = vpop.f32.mrf.mxu0
    %v7531 = vadd.f32 %v7518, %v7530
    %v7532 = vpop.f32.mrf.mxu0
    %7533 = vdwg.mxu0
    %7534 = vmatpush.bf16.msra.mxu0 %v5457
    %7535 = vmatpush.bf16.msra.mxu0 %v5449
    %7536 = vmatpush.bf16.msra.mxu0 %v5441
    %7537 = vmatpush.bf16.msra.mxu0 %v5433
    %7538 = vmatpush.bf16.msra.mxu0 %v5425
    %7539 = vmatpush.bf16.msra.mxu0 %v5417
    %7540 = vmatpush.bf16.msra.mxu0 %v5409
    %7541 = vmatpush.bf16.msra.mxu0 %v5401
    %7542 = vmatmul.bf16.gmra.mxu0 %v6798
    %v7543 = vpop.f32.mrf.mxu0
    %v7544 = vadd.f32 0.0, %v7543
    %v7545 = vpop.f32.mrf.mxu0
    %7546 = vdwg.mxu0
    %7547 = vmatpush.bf16.msra.mxu0 %v5521
    %7548 = vmatpush.bf16.msra.mxu0 %v5513
    %7549 = vmatpush.bf16.msra.mxu0 %v5505
    %7550 = vmatpush.bf16.msra.mxu0 %v5497
    %7551 = vmatpush.bf16.msra.mxu0 %v5489
    %7552 = vmatpush.bf16.msra.mxu0 %v5481
    %7553 = vmatpush.bf16.msra.mxu0 %v5473
    %7554 = vmatpush.bf16.msra.mxu0 %v5465
    %7555 = vmatmul.bf16.gmra.mxu0 %v6799
    %v7556 = vpop.f32.mrf.mxu0
    %v7557 = vadd.f32 %v7544, %v7556
    %v7558 = vpop.f32.mrf.mxu0
    %7559 = vdwg.mxu0
    %7560 = vmatpush.bf16.msra.mxu0 %v5585
    %7561 = vmatpush.bf16.msra.mxu0 %v5577
    %7562 = vmatpush.bf16.msra.mxu0 %v5569
    %7563 = vmatpush.bf16.msra.mxu0 %v5561
    %7564 = vmatpush.bf16.msra.mxu0 %v5553
    %7565 = vmatpush.bf16.msra.mxu0 %v5545
    %7566 = vmatpush.bf16.msra.mxu0 %v5537
    %7567 = vmatpush.bf16.msra.mxu0 %v5529
    %7568 = vmatmul.bf16.gmra.mxu0 %v6800
    %v7569 = vpop.f32.mrf.mxu0
    %v7570 = vadd.f32 %v7557, %v7569
    %v7571 = vpop.f32.mrf.mxu0
    %7572 = vdwg.mxu0
    %7573 = vmatpush.bf16.msra.mxu0 %v5649
    %7574 = vmatpush.bf16.msra.mxu0 %v5641
    %7575 = vmatpush.bf16.msra.mxu0 %v5633
    %7576 = vmatpush.bf16.msra.mxu0 %v5625
    %7577 = vmatpush.bf16.msra.mxu0 %v5617
    %7578 = vmatpush.bf16.msra.mxu0 %v5609
    %7579 = vmatpush.bf16.msra.mxu0 %v5601
    %7580 = vmatpush.bf16.msra.mxu0 %v5593
    %7581 = vmatmul.bf16.gmra.mxu0 %v6801
    %v7582 = vpop.f32.mrf.mxu0
    %v7583 = vadd.f32 %v7570, %v7582
    %v7584 = vpop.f32.mrf.mxu0
    %7585 = vdwg.mxu0
    %7586 = vmatpush.bf16.msra.mxu0 %v5713
    %7587 = vmatpush.bf16.msra.mxu0 %v5705
    %7588 = vmatpush.bf16.msra.mxu0 %v5697
    %7589 = vmatpush.bf16.msra.mxu0 %v5689
    %7590 = vmatpush.bf16.msra.mxu0 %v5681
    %7591 = vmatpush.bf16.msra.mxu0 %v5673
    %7592 = vmatpush.bf16.msra.mxu0 %v5665
    %7593 = vmatpush.bf16.msra.mxu0 %v5657
    %7594 = vmatmul.bf16.gmra.mxu0 %v6802
    %v7595 = vpop.f32.mrf.mxu0
    %v7596 = vadd.f32 %v7583, %v7595
    %v7597 = vpop.f32.mrf.mxu0
    %7598 = vdwg.mxu0
    %7599 = vmatpush.bf16.msra.mxu0 %v5777
    %7600 = vmatpush.bf16.msra.mxu0 %v5769
    %7601 = vmatpush.bf16.msra.mxu0 %v5761
    %7602 = vmatpush.bf16.msra.mxu0 %v5753
    %7603 = vmatpush.bf16.msra.mxu0 %v5745
    %7604 = vmatpush.bf16.msra.mxu0 %v5737
    %7605 = vmatpush.bf16.msra.mxu0 %v5729
    %7606 = vmatpush.bf16.msra.mxu0 %v5721
    %7607 = vmatmul.bf16.gmra.mxu0 %v6803
    %v7608 = vpop.f32.mrf.mxu0
    %v7609 = vadd.f32 %v7596, %v7608
    %v7610 = vpop.f32.mrf.mxu0
    %7611 = vdwg.mxu0
    %7612 = vmatpush.bf16.msra.mxu0 %v5841
    %7613 = vmatpush.bf16.msra.mxu0 %v5833
    %7614 = vmatpush.bf16.msra.mxu0 %v5825
    %7615 = vmatpush.bf16.msra.mxu0 %v5817
    %7616 = vmatpush.bf16.msra.mxu0 %v5809
    %7617 = vmatpush.bf16.msra.mxu0 %v5801
    %7618 = vmatpush.bf16.msra.mxu0 %v5793
    %7619 = vmatpush.bf16.msra.mxu0 %v5785
    %7620 = vmatmul.bf16.gmra.mxu0 %v6804
    %v7621 = vpop.f32.mrf.mxu0
    %v7622 = vadd.f32 %v7609, %v7621
    %v7623 = vpop.f32.mrf.mxu0
    %7624 = vdwg.mxu0
    %7625 = vmatpush.bf16.msra.mxu0 %v5905
    %7626 = vmatpush.bf16.msra.mxu0 %v5897
    %7627 = vmatpush.bf16.msra.mxu0 %v5889
    %7628 = vmatpush.bf16.msra.mxu0 %v5881
    %7629 = vmatpush.bf16.msra.mxu0 %v5873
    %7630 = vmatpush.bf16.msra.mxu0 %v5865
    %7631 = vmatpush.bf16.msra.mxu0 %v5857
    %7632 = vmatpush.bf16.msra.mxu0 %v5849
    %7633 = vmatmul.bf16.gmra.mxu0 %v6805
    %v7634 = vpop.f32.mrf.mxu0
    %v7635 = vadd.f32 %v7622, %v7634
    %v7636 = vpop.f32.mrf.mxu0
    %7637 = vdwg.mxu0
    %v7638 = vmul.f32 %v6907, %v6741
    %v7639 = vmul.f32 %v7011, %v6742
    %v7640 = vmul.f32 %v7115, %v6743
    %v7641 = vmul.f32 %v7219, %v6744
    %v7642 = vmul.f32 %v7323, %v6745
    %v7643 = vmul.f32 %v7427, %v6746
    %v7644 = vmul.f32 %v7531, %v6747
    %v7645 = vmul.f32 %v7635, %v6748
    %v7646 = vadd.f32 %v7638, %v6766
    %v7647 = vadd.f32 %v7639, %v6767
    %v7648 = vadd.f32 %v7640, %v6768
    %v7649 = vadd.f32 %v7641, %v6769
    %v7650 = vadd.f32 %v7642, %v6770
    %v7651 = vadd.f32 %v7643, %v6771
    %v7652 = vadd.f32 %v7644, %v6772
    %v7653 = vadd.f32 %v7645, %v6773
    %v7654 = vmax.f32 %v7646, 0.0
    %v7655 = vmax.f32 %v7647, 0.0
    %v7656 = vmax.f32 %v7648, 0.0
    %v7657 = vmax.f32 %v7649, 0.0
    %v7658 = vmax.f32 %v7650, 0.0
    %v7659 = vmax.f32 %v7651, 0.0
    %v7660 = vmax.f32 %v7652, 0.0
    %v7661 = vmax.f32 %v7653, 0.0
    %v7662 = vpack.c.bf16 %v7654, %v7654
    %v7663 = vpack.c.bf16 %v7655, %v7655
    %v7664 = vpack.c.bf16 %v7656, %v7656
    %v7665 = vpack.c.bf16 %v7657, %v7657
    %v7666 = vpack.c.bf16 %v7658, %v7658
    %v7667 = vpack.c.bf16 %v7659, %v7659
    %v7668 = vpack.c.bf16 %v7660, %v7660
    %v7669 = vpack.c.bf16 %v7661, %v7661
    %v7670 = vld [vmem:[#allocation7] sm:$0xff]
    %v7671 = vld [vmem:[#allocation7 + $0x8] sm:$0xff]
    %v7672 = vld [vmem:[#allocation7 + $0x10] sm:$0xff]
    %v7673 = vld [vmem:[#allocation7 + $0x18] sm:$0xff]
    %v7674 = vld [vmem:[#allocation7 + $0x20] sm:$0xff]
    %v7675 = vld [vmem:[#allocation7 + $0x28] sm:$0xff]
    %v7676 = vld [vmem:[#allocation7 + $0x30] sm:$0xff]
    %v7677 = vld [vmem:[#allocation7 + $0x38] sm:$0xff]
    %v7678 = vld [vmem:[#allocation7 + $0x40] sm:$0xff]
    %v7679 = vld [vmem:[#allocation7 + $0x48] sm:$0xff]
    %v7680 = vld [vmem:[#allocation7 + $0x50] sm:$0xff]
    %v7681 = vld [vmem:[#allocation7 + $0x58] sm:$0xff]
    %v7682 = vld [vmem:[#allocation7 + $0x60] sm:$0xff]
    %v7683 = vld [vmem:[#allocation7 + $0x68] sm:$0xff]
    %v7684 = vld [vmem:[#allocation7 + $0x70] sm:$0xff]
    %v7685 = vld [vmem:[#allocation7 + $0x78] sm:$0xff]
    %v7686 = vld [vmem:[#allocation7 + $0x80] sm:$0xff]
    %v7687 = vld [vmem:[#allocation7 + $0x88] sm:$0xff]
    %v7688 = vld [vmem:[#allocation7 + $0x90] sm:$0xff]
    %v7689 = vld [vmem:[#allocation7 + $0x98] sm:$0xff]
    %v7690 = vld [vmem:[#allocation7 + $0xa0] sm:$0xff]
    %v7691 = vld [vmem:[#allocation7 + $0xa8] sm:$0xff]
    %v7692 = vld [vmem:[#allocation7 + $0xb0] sm:$0xff]
    %v7693 = vld [vmem:[#allocation7 + $0xb8] sm:$0xff]
    %v7694 = vld [vmem:[#allocation7 + $0xc0] sm:$0xff]
    %v7695 = vld [vmem:[#allocation7 + $0xc8] sm:$0xff]
    %v7696 = vld [vmem:[#allocation7 + $0xd0] sm:$0xff]
    %v7697 = vld [vmem:[#allocation7 + $0xd8] sm:$0xff]
    %v7698 = vld [vmem:[#allocation7 + $0xe0] sm:$0xff]
    %v7699 = vld [vmem:[#allocation7 + $0xe8] sm:$0xff]
    %v7700 = vld [vmem:[#allocation7 + $0xf0] sm:$0xff]
    %v7701 = vld [vmem:[#allocation7 + $0xf8] sm:$0xff]
    %v7702 = vld [vmem:[#allocation7 + $0x100] sm:$0xff]
    %v7703 = vld [vmem:[#allocation7 + $0x108] sm:$0xff]
    %v7704 = vld [vmem:[#allocation7 + $0x110] sm:$0xff]
    %v7705 = vld [vmem:[#allocation7 + $0x118] sm:$0xff]
    %v7706 = vld [vmem:[#allocation7 + $0x120] sm:$0xff]
    %v7707 = vld [vmem:[#allocation7 + $0x128] sm:$0xff]
    %v7708 = vld [vmem:[#allocation7 + $0x130] sm:$0xff]
    %v7709 = vld [vmem:[#allocation7 + $0x138] sm:$0xff]
    %v7710 = vld [vmem:[#allocation7 + $0x140] sm:$0xff]
    %v7711 = vld [vmem:[#allocation7 + $0x148] sm:$0xff]
    %v7712 = vld [vmem:[#allocation7 + $0x150] sm:$0xff]
    %v7713 = vld [vmem:[#allocation7 + $0x158] sm:$0xff]
    %v7714 = vld [vmem:[#allocation7 + $0x160] sm:$0xff]
    %v7715 = vld [vmem:[#allocation7 + $0x168] sm:$0xff]
    %v7716 = vld [vmem:[#allocation7 + $0x170] sm:$0xff]
    %v7717 = vld [vmem:[#allocation7 + $0x178] sm:$0xff]
    %v7718 = vld [vmem:[#allocation7 + $0x180] sm:$0xff]
    %v7719 = vld [vmem:[#allocation7 + $0x188] sm:$0xff]
    %v7720 = vld [vmem:[#allocation7 + $0x190] sm:$0xff]
    %v7721 = vld [vmem:[#allocation7 + $0x198] sm:$0xff]
    %v7722 = vld [vmem:[#allocation7 + $0x1a0] sm:$0xff]
    %v7723 = vld [vmem:[#allocation7 + $0x1a8] sm:$0xff]
    %v7724 = vld [vmem:[#allocation7 + $0x1b0] sm:$0xff]
    %v7725 = vld [vmem:[#allocation7 + $0x1b8] sm:$0xff]
    %v7726 = vld [vmem:[#allocation7 + $0x1c0] sm:$0xff]
    %v7727 = vld [vmem:[#allocation7 + $0x1c8] sm:$0xff]
    %v7728 = vld [vmem:[#allocation7 + $0x1d0] sm:$0xff]
    %v7729 = vld [vmem:[#allocation7 + $0x1d8] sm:$0xff]
    %v7730 = vld [vmem:[#allocation7 + $0x1e0] sm:$0xff]
    %v7731 = vld [vmem:[#allocation7 + $0x1e8] sm:$0xff]
    %v7732 = vld [vmem:[#allocation7 + $0x1f0] sm:$0xff]
    %v7733 = vld [vmem:[#allocation7 + $0x1f8] sm:$0xff]
    %v7734 = vld [vmem:[#allocation7 + $0x200] sm:$0xff]
    %v7735 = vld [vmem:[#allocation7 + $0x208] sm:$0xff]
    %v7736 = vld [vmem:[#allocation7 + $0x210] sm:$0xff]
    %v7737 = vld [vmem:[#allocation7 + $0x218] sm:$0xff]
    %v7738 = vld [vmem:[#allocation7 + $0x220] sm:$0xff]
    %v7739 = vld [vmem:[#allocation7 + $0x228] sm:$0xff]
    %v7740 = vld [vmem:[#allocation7 + $0x230] sm:$0xff]
    %v7741 = vld [vmem:[#allocation7 + $0x238] sm:$0xff]
    %v7742 = vld [vmem:[#allocation7 + $0x240] sm:$0xff]
    %v7743 = vld [vmem:[#allocation7 + $0x248] sm:$0xff]
    %v7744 = vld [vmem:[#allocation7 + $0x250] sm:$0xff]
    %v7745 = vld [vmem:[#allocation7 + $0x258] sm:$0xff]
    %v7746 = vld [vmem:[#allocation7 + $0x260] sm:$0xff]
    %v7747 = vld [vmem:[#allocation7 + $0x268] sm:$0xff]
    %v7748 = vld [vmem:[#allocation7 + $0x270] sm:$0xff]
    %v7749 = vld [vmem:[#allocation7 + $0x278] sm:$0xff]
    %v7750 = vld [vmem:[#allocation7 + $0x280] sm:$0xff]
    %v7751 = vld [vmem:[#allocation7 + $0x288] sm:$0xff]
    %v7752 = vld [vmem:[#allocation7 + $0x290] sm:$0xff]
    %v7753 = vld [vmem:[#allocation7 + $0x298] sm:$0xff]
    %v7754 = vld [vmem:[#allocation7 + $0x2a0] sm:$0xff]
    %v7755 = vld [vmem:[#allocation7 + $0x2a8] sm:$0xff]
    %v7756 = vld [vmem:[#allocation7 + $0x2b0] sm:$0xff]
    %v7757 = vld [vmem:[#allocation7 + $0x2b8] sm:$0xff]
    %v7758 = vld [vmem:[#allocation7 + $0x2c0] sm:$0xff]
    %v7759 = vld [vmem:[#allocation7 + $0x2c8] sm:$0xff]
    %v7760 = vld [vmem:[#allocation7 + $0x2d0] sm:$0xff]
    %v7761 = vld [vmem:[#allocation7 + $0x2d8] sm:$0xff]
    %v7762 = vld [vmem:[#allocation7 + $0x2e0] sm:$0xff]
    %v7763 = vld [vmem:[#allocation7 + $0x2e8] sm:$0xff]
    %v7764 = vld [vmem:[#allocation7 + $0x2f0] sm:$0xff]
    %v7765 = vld [vmem:[#allocation7 + $0x2f8] sm:$0xff]
    %v7766 = vld [vmem:[#allocation7 + $0x300] sm:$0xff]
    %v7767 = vld [vmem:[#allocation7 + $0x308] sm:$0xff]
    %v7768 = vld [vmem:[#allocation7 + $0x310] sm:$0xff]
    %v7769 = vld [vmem:[#allocation7 + $0x318] sm:$0xff]
    %v7770 = vld [vmem:[#allocation7 + $0x320] sm:$0xff]
    %v7771 = vld [vmem:[#allocation7 + $0x328] sm:$0xff]
    %v7772 = vld [vmem:[#allocation7 + $0x330] sm:$0xff]
    %v7773 = vld [vmem:[#allocation7 + $0x338] sm:$0xff]
    %v7774 = vld [vmem:[#allocation7 + $0x340] sm:$0xff]
    %v7775 = vld [vmem:[#allocation7 + $0x348] sm:$0xff]
    %v7776 = vld [vmem:[#allocation7 + $0x350] sm:$0xff]
    %v7777 = vld [vmem:[#allocation7 + $0x358] sm:$0xff]
    %v7778 = vld [vmem:[#allocation7 + $0x360] sm:$0xff]
    %v7779 = vld [vmem:[#allocation7 + $0x368] sm:$0xff]
    %v7780 = vld [vmem:[#allocation7 + $0x370] sm:$0xff]
    %v7781 = vld [vmem:[#allocation7 + $0x378] sm:$0xff]
    %v7782 = vld [vmem:[#allocation7 + $0x380] sm:$0xff]
    %v7783 = vld [vmem:[#allocation7 + $0x388] sm:$0xff]
    %v7784 = vld [vmem:[#allocation7 + $0x390] sm:$0xff]
    %v7785 = vld [vmem:[#allocation7 + $0x398] sm:$0xff]
    %v7786 = vld [vmem:[#allocation7 + $0x3a0] sm:$0xff]
    %v7787 = vld [vmem:[#allocation7 + $0x3a8] sm:$0xff]
    %v7788 = vld [vmem:[#allocation7 + $0x3b0] sm:$0xff]
    %v7789 = vld [vmem:[#allocation7 + $0x3b8] sm:$0xff]
    %v7790 = vld [vmem:[#allocation7 + $0x3c0] sm:$0xff]
    %v7791 = vld [vmem:[#allocation7 + $0x3c8] sm:$0xff]
    %v7792 = vld [vmem:[#allocation7 + $0x3d0] sm:$0xff]
    %v7793 = vld [vmem:[#allocation7 + $0x3d8] sm:$0xff]
    %v7794 = vld [vmem:[#allocation7 + $0x3e0] sm:$0xff]
    %v7795 = vld [vmem:[#allocation7 + $0x3e8] sm:$0xff]
    %v7796 = vld [vmem:[#allocation7 + $0x3f0] sm:$0xff]
    %v7797 = vld [vmem:[#allocation7 + $0x3f8] sm:$0xff]
    %v7798 = vunpack.c.0.s8 %v7670
    %v7799 = vunpack.c.0.s8 %v7671
    %v7800 = vunpack.c.0.s8 %v7672
    %v7801 = vunpack.c.0.s8 %v7673
    %v7802 = vunpack.c.1.s8 %v7670
    %v7803 = vunpack.c.1.s8 %v7671
    %v7804 = vunpack.c.1.s8 %v7672
    %v7805 = vunpack.c.1.s8 %v7673
    %v7806 = vunpack.c.2.s8 %v7670
    %v7807 = vunpack.c.2.s8 %v7671
    %v7808 = vunpack.c.2.s8 %v7672
    %v7809 = vunpack.c.2.s8 %v7673
    %v7810 = vunpack.c.3.s8 %v7670
    %v7811 = vunpack.c.3.s8 %v7671
    %v7812 = vunpack.c.3.s8 %v7672
    %v7813 = vunpack.c.3.s8 %v7673
    %v7814 = vunpack.c.0.s8 %v7674
    %v7815 = vunpack.c.0.s8 %v7675
    %v7816 = vunpack.c.0.s8 %v7676
    %v7817 = vunpack.c.0.s8 %v7677
    %v7818 = vunpack.c.1.s8 %v7674
    %v7819 = vunpack.c.1.s8 %v7675
    %v7820 = vunpack.c.1.s8 %v7676
    %v7821 = vunpack.c.1.s8 %v7677
    %v7822 = vunpack.c.2.s8 %v7674
    %v7823 = vunpack.c.2.s8 %v7675
    %v7824 = vunpack.c.2.s8 %v7676
    %v7825 = vunpack.c.2.s8 %v7677
    %v7826 = vunpack.c.3.s8 %v7674
    %v7827 = vunpack.c.3.s8 %v7675
    %v7828 = vunpack.c.3.s8 %v7676
    %v7829 = vunpack.c.3.s8 %v7677
    %v7830 = vunpack.c.0.s8 %v7678
    %v7831 = vunpack.c.0.s8 %v7679
    %v7832 = vunpack.c.0.s8 %v7680
    %v7833 = vunpack.c.0.s8 %v7681
    %v7834 = vunpack.c.1.s8 %v7678
    %v7835 = vunpack.c.1.s8 %v7679
    %v7836 = vunpack.c.1.s8 %v7680
    %v7837 = vunpack.c.1.s8 %v7681
    %v7838 = vunpack.c.2.s8 %v7678
    %v7839 = vunpack.c.2.s8 %v7679
    %v7840 = vunpack.c.2.s8 %v7680
    %v7841 = vunpack.c.2.s8 %v7681
    %v7842 = vunpack.c.3.s8 %v7678
    %v7843 = vunpack.c.3.s8 %v7679
    %v7844 = vunpack.c.3.s8 %v7680
    %v7845 = vunpack.c.3.s8 %v7681
    %v7846 = vunpack.c.0.s8 %v7682
    %v7847 = vunpack.c.0.s8 %v7683
    %v7848 = vunpack.c.0.s8 %v7684
    %v7849 = vunpack.c.0.s8 %v7685
    %v7850 = vunpack.c.1.s8 %v7682
    %v7851 = vunpack.c.1.s8 %v7683
    %v7852 = vunpack.c.1.s8 %v7684
    %v7853 = vunpack.c.1.s8 %v7685
    %v7854 = vunpack.c.2.s8 %v7682
    %v7855 = vunpack.c.2.s8 %v7683
    %v7856 = vunpack.c.2.s8 %v7684
    %v7857 = vunpack.c.2.s8 %v7685
    %v7858 = vunpack.c.3.s8 %v7682
    %v7859 = vunpack.c.3.s8 %v7683
    %v7860 = vunpack.c.3.s8 %v7684
    %v7861 = vunpack.c.3.s8 %v7685
    %v7862 = vunpack.c.0.s8 %v7686
    %v7863 = vunpack.c.0.s8 %v7687
    %v7864 = vunpack.c.0.s8 %v7688
    %v7865 = vunpack.c.0.s8 %v7689
    %v7866 = vunpack.c.1.s8 %v7686
    %v7867 = vunpack.c.1.s8 %v7687
    %v7868 = vunpack.c.1.s8 %v7688
    %v7869 = vunpack.c.1.s8 %v7689
    %v7870 = vunpack.c.2.s8 %v7686
    %v7871 = vunpack.c.2.s8 %v7687
    %v7872 = vunpack.c.2.s8 %v7688
    %v7873 = vunpack.c.2.s8 %v7689
    %v7874 = vunpack.c.3.s8 %v7686
    %v7875 = vunpack.c.3.s8 %v7687
    %v7876 = vunpack.c.3.s8 %v7688
    %v7877 = vunpack.c.3.s8 %v7689
    %v7878 = vunpack.c.0.s8 %v7690
    %v7879 = vunpack.c.0.s8 %v7691
    %v7880 = vunpack.c.0.s8 %v7692
    %v7881 = vunpack.c.0.s8 %v7693
    %v7882 = vunpack.c.1.s8 %v7690
    %v7883 = vunpack.c.1.s8 %v7691
    %v7884 = vunpack.c.1.s8 %v7692
    %v7885 = vunpack.c.1.s8 %v7693
    %v7886 = vunpack.c.2.s8 %v7690
    %v7887 = vunpack.c.2.s8 %v7691
    %v7888 = vunpack.c.2.s8 %v7692
    %v7889 = vunpack.c.2.s8 %v7693
    %v7890 = vunpack.c.3.s8 %v7690
    %v7891 = vunpack.c.3.s8 %v7691
    %v7892 = vunpack.c.3.s8 %v7692
    %v7893 = vunpack.c.3.s8 %v7693
    %v7894 = vunpack.c.0.s8 %v7694
    %v7895 = vunpack.c.0.s8 %v7695
    %v7896 = vunpack.c.0.s8 %v7696
    %v7897 = vunpack.c.0.s8 %v7697
    %v7898 = vunpack.c.1.s8 %v7694
    %v7899 = vunpack.c.1.s8 %v7695
    %v7900 = vunpack.c.1.s8 %v7696
    %v7901 = vunpack.c.1.s8 %v7697
    %v7902 = vunpack.c.2.s8 %v7694
    %v7903 = vunpack.c.2.s8 %v7695
    %v7904 = vunpack.c.2.s8 %v7696
    %v7905 = vunpack.c.2.s8 %v7697
    %v7906 = vunpack.c.3.s8 %v7694
    %v7907 = vunpack.c.3.s8 %v7695
    %v7908 = vunpack.c.3.s8 %v7696
    %v7909 = vunpack.c.3.s8 %v7697
    %v7910 = vunpack.c.0.s8 %v7698
    %v7911 = vunpack.c.0.s8 %v7699
    %v7912 = vunpack.c.0.s8 %v7700
    %v7913 = vunpack.c.0.s8 %v7701
    %v7914 = vunpack.c.1.s8 %v7698
    %v7915 = vunpack.c.1.s8 %v7699
    %v7916 = vunpack.c.1.s8 %v7700
    %v7917 = vunpack.c.1.s8 %v7701
    %v7918 = vunpack.c.2.s8 %v7698
    %v7919 = vunpack.c.2.s8 %v7699
    %v7920 = vunpack.c.2.s8 %v7700
    %v7921 = vunpack.c.2.s8 %v7701
    %v7922 = vunpack.c.3.s8 %v7698
    %v7923 = vunpack.c.3.s8 %v7699
    %v7924 = vunpack.c.3.s8 %v7700
    %v7925 = vunpack.c.3.s8 %v7701
    %v7926 = vunpack.c.0.s8 %v7702
    %v7927 = vunpack.c.0.s8 %v7703
    %v7928 = vunpack.c.0.s8 %v7704
    %v7929 = vunpack.c.0.s8 %v7705
    %v7930 = vunpack.c.1.s8 %v7702
    %v7931 = vunpack.c.1.s8 %v7703
    %v7932 = vunpack.c.1.s8 %v7704
    %v7933 = vunpack.c.1.s8 %v7705
    %v7934 = vunpack.c.2.s8 %v7702
    %v7935 = vunpack.c.2.s8 %v7703
    %v7936 = vunpack.c.2.s8 %v7704
    %v7937 = vunpack.c.2.s8 %v7705
    %v7938 = vunpack.c.3.s8 %v7702
    %v7939 = vunpack.c.3.s8 %v7703
    %v7940 = vunpack.c.3.s8 %v7704
    %v7941 = vunpack.c.3.s8 %v7705
    %v7942 = vunpack.c.0.s8 %v7706
    %v7943 = vunpack.c.0.s8 %v7707
    %v7944 = vunpack.c.0.s8 %v7708
    %v7945 = vunpack.c.0.s8 %v7709
    %v7946 = vunpack.c.1.s8 %v7706
    %v7947 = vunpack.c.1.s8 %v7707
    %v7948 = vunpack.c.1.s8 %v7708
    %v7949 = vunpack.c.1.s8 %v7709
    %v7950 = vunpack.c.2.s8 %v7706
    %v7951 = vunpack.c.2.s8 %v7707
    %v7952 = vunpack.c.2.s8 %v7708
    %v7953 = vunpack.c.2.s8 %v7709
    %v7954 = vunpack.c.3.s8 %v7706
    %v7955 = vunpack.c.3.s8 %v7707
    %v7956 = vunpack.c.3.s8 %v7708
    %v7957 = vunpack.c.3.s8 %v7709
    %v7958 = vunpack.c.0.s8 %v7710
    %v7959 = vunpack.c.0.s8 %v7711
    %v7960 = vunpack.c.0.s8 %v7712
    %v7961 = vunpack.c.0.s8 %v7713
    %v7962 = vunpack.c.1.s8 %v7710
    %v7963 = vunpack.c.1.s8 %v7711
    %v7964 = vunpack.c.1.s8 %v7712
    %v7965 = vunpack.c.1.s8 %v7713
    %v7966 = vunpack.c.2.s8 %v7710
    %v7967 = vunpack.c.2.s8 %v7711
    %v7968 = vunpack.c.2.s8 %v7712
    %v7969 = vunpack.c.2.s8 %v7713
    %v7970 = vunpack.c.3.s8 %v7710
    %v7971 = vunpack.c.3.s8 %v7711
    %v7972 = vunpack.c.3.s8 %v7712
    %v7973 = vunpack.c.3.s8 %v7713
    %v7974 = vunpack.c.0.s8 %v7714
    %v7975 = vunpack.c.0.s8 %v7715
    %v7976 = vunpack.c.0.s8 %v7716
    %v7977 = vunpack.c.0.s8 %v7717
    %v7978 = vunpack.c.1.s8 %v7714
    %v7979 = vunpack.c.1.s8 %v7715
    %v7980 = vunpack.c.1.s8 %v7716
    %v7981 = vunpack.c.1.s8 %v7717
    %v7982 = vunpack.c.2.s8 %v7714
    %v7983 = vunpack.c.2.s8 %v7715
    %v7984 = vunpack.c.2.s8 %v7716
    %v7985 = vunpack.c.2.s8 %v7717
    %v7986 = vunpack.c.3.s8 %v7714
    %v7987 = vunpack.c.3.s8 %v7715
    %v7988 = vunpack.c.3.s8 %v7716
    %v7989 = vunpack.c.3.s8 %v7717
    %v7990 = vunpack.c.0.s8 %v7718
    %v7991 = vunpack.c.0.s8 %v7719
    %v7992 = vunpack.c.0.s8 %v7720
    %v7993 = vunpack.c.0.s8 %v7721
    %v7994 = vunpack.c.1.s8 %v7718
    %v7995 = vunpack.c.1.s8 %v7719
    %v7996 = vunpack.c.1.s8 %v7720
    %v7997 = vunpack.c.1.s8 %v7721
    %v7998 = vunpack.c.2.s8 %v7718
    %v7999 = vunpack.c.2.s8 %v7719
    %v8000 = vunpack.c.2.s8 %v7720
    %v8001 = vunpack.c.2.s8 %v7721
    %v8002 = vunpack.c.3.s8 %v7718
    %v8003 = vunpack.c.3.s8 %v7719
    %v8004 = vunpack.c.3.s8 %v7720
    %v8005 = vunpack.c.3.s8 %v7721
    %v8006 = vunpack.c.0.s8 %v7722
    %v8007 = vunpack.c.0.s8 %v7723
    %v8008 = vunpack.c.0.s8 %v7724
    %v8009 = vunpack.c.0.s8 %v7725
    %v8010 = vunpack.c.1.s8 %v7722
    %v8011 = vunpack.c.1.s8 %v7723
    %v8012 = vunpack.c.1.s8 %v7724
    %v8013 = vunpack.c.1.s8 %v7725
    %v8014 = vunpack.c.2.s8 %v7722
    %v8015 = vunpack.c.2.s8 %v7723
    %v8016 = vunpack.c.2.s8 %v7724
    %v8017 = vunpack.c.2.s8 %v7725
    %v8018 = vunpack.c.3.s8 %v7722
    %v8019 = vunpack.c.3.s8 %v7723
    %v8020 = vunpack.c.3.s8 %v7724
    %v8021 = vunpack.c.3.s8 %v7725
    %v8022 = vunpack.c.0.s8 %v7726
    %v8023 = vunpack.c.0.s8 %v7727
    %v8024 = vunpack.c.0.s8 %v7728
    %v8025 = vunpack.c.0.s8 %v7729
    %v8026 = vunpack.c.1.s8 %v7726
    %v8027 = vunpack.c.1.s8 %v7727
    %v8028 = vunpack.c.1.s8 %v7728
    %v8029 = vunpack.c.1.s8 %v7729
    %v8030 = vunpack.c.2.s8 %v7726
    %v8031 = vunpack.c.2.s8 %v7727
    %v8032 = vunpack.c.2.s8 %v7728
    %v8033 = vunpack.c.2.s8 %v7729
    %v8034 = vunpack.c.3.s8 %v7726
    %v8035 = vunpack.c.3.s8 %v7727
    %v8036 = vunpack.c.3.s8 %v7728
    %v8037 = vunpack.c.3.s8 %v7729
    %v8038 = vunpack.c.0.s8 %v7730
    %v8039 = vunpack.c.0.s8 %v7731
    %v8040 = vunpack.c.0.s8 %v7732
    %v8041 = vunpack.c.0.s8 %v7733
    %v8042 = vunpack.c.1.s8 %v7730
    %v8043 = vunpack.c.1.s8 %v7731
    %v8044 = vunpack.c.1.s8 %v7732
    %v8045 = vunpack.c.1.s8 %v7733
    %v8046 = vunpack.c.2.s8 %v7730
    %v8047 = vunpack.c.2.s8 %v7731
    %v8048 = vunpack.c.2.s8 %v7732
    %v8049 = vunpack.c.2.s8 %v7733
    %v8050 = vunpack.c.3.s8 %v7730
    %v8051 = vunpack.c.3.s8 %v7731
    %v8052 = vunpack.c.3.s8 %v7732
    %v8053 = vunpack.c.3.s8 %v7733
    %v8054 = vunpack.c.0.s8 %v7734
    %v8055 = vunpack.c.0.s8 %v7735
    %v8056 = vunpack.c.0.s8 %v7736
    %v8057 = vunpack.c.0.s8 %v7737
    %v8058 = vunpack.c.1.s8 %v7734
    %v8059 = vunpack.c.1.s8 %v7735
    %v8060 = vunpack.c.1.s8 %v7736
    %v8061 = vunpack.c.1.s8 %v7737
    %v8062 = vunpack.c.2.s8 %v7734
    %v8063 = vunpack.c.2.s8 %v7735
    %v8064 = vunpack.c.2.s8 %v7736
    %v8065 = vunpack.c.2.s8 %v7737
    %v8066 = vunpack.c.3.s8 %v7734
    %v8067 = vunpack.c.3.s8 %v7735
    %v8068 = vunpack.c.3.s8 %v7736
    %v8069 = vunpack.c.3.s8 %v7737
    %v8070 = vunpack.c.0.s8 %v7738
    %v8071 = vunpack.c.0.s8 %v7739
    %v8072 = vunpack.c.0.s8 %v7740
    %v8073 = vunpack.c.0.s8 %v7741
    %v8074 = vunpack.c.1.s8 %v7738
    %v8075 = vunpack.c.1.s8 %v7739
    %v8076 = vunpack.c.1.s8 %v7740
    %v8077 = vunpack.c.1.s8 %v7741
    %v8078 = vunpack.c.2.s8 %v7738
    %v8079 = vunpack.c.2.s8 %v7739
    %v8080 = vunpack.c.2.s8 %v7740
    %v8081 = vunpack.c.2.s8 %v7741
    %v8082 = vunpack.c.3.s8 %v7738
    %v8083 = vunpack.c.3.s8 %v7739
    %v8084 = vunpack.c.3.s8 %v7740
    %v8085 = vunpack.c.3.s8 %v7741
    %v8086 = vunpack.c.0.s8 %v7742
    %v8087 = vunpack.c.0.s8 %v7743
    %v8088 = vunpack.c.0.s8 %v7744
    %v8089 = vunpack.c.0.s8 %v7745
    %v8090 = vunpack.c.1.s8 %v7742
    %v8091 = vunpack.c.1.s8 %v7743
    %v8092 = vunpack.c.1.s8 %v7744
    %v8093 = vunpack.c.1.s8 %v7745
    %v8094 = vunpack.c.2.s8 %v7742
    %v8095 = vunpack.c.2.s8 %v7743
    %v8096 = vunpack.c.2.s8 %v7744
    %v8097 = vunpack.c.2.s8 %v7745
    %v8098 = vunpack.c.3.s8 %v7742
    %v8099 = vunpack.c.3.s8 %v7743
    %v8100 = vunpack.c.3.s8 %v7744
    %v8101 = vunpack.c.3.s8 %v7745
    %v8102 = vunpack.c.0.s8 %v7746
    %v8103 = vunpack.c.0.s8 %v7747
    %v8104 = vunpack.c.0.s8 %v7748
    %v8105 = vunpack.c.0.s8 %v7749
    %v8106 = vunpack.c.1.s8 %v7746
    %v8107 = vunpack.c.1.s8 %v7747
    %v8108 = vunpack.c.1.s8 %v7748
    %v8109 = vunpack.c.1.s8 %v7749
    %v8110 = vunpack.c.2.s8 %v7746
    %v8111 = vunpack.c.2.s8 %v7747
    %v8112 = vunpack.c.2.s8 %v7748
    %v8113 = vunpack.c.2.s8 %v7749
    %v8114 = vunpack.c.3.s8 %v7746
    %v8115 = vunpack.c.3.s8 %v7747
    %v8116 = vunpack.c.3.s8 %v7748
    %v8117 = vunpack.c.3.s8 %v7749
    %v8118 = vunpack.c.0.s8 %v7750
    %v8119 = vunpack.c.0.s8 %v7751
    %v8120 = vunpack.c.0.s8 %v7752
    %v8121 = vunpack.c.0.s8 %v7753
    %v8122 = vunpack.c.1.s8 %v7750
    %v8123 = vunpack.c.1.s8 %v7751
    %v8124 = vunpack.c.1.s8 %v7752
    %v8125 = vunpack.c.1.s8 %v7753
    %v8126 = vunpack.c.2.s8 %v7750
    %v8127 = vunpack.c.2.s8 %v7751
    %v8128 = vunpack.c.2.s8 %v7752
    %v8129 = vunpack.c.2.s8 %v7753
    %v8130 = vunpack.c.3.s8 %v7750
    %v8131 = vunpack.c.3.s8 %v7751
    %v8132 = vunpack.c.3.s8 %v7752
    %v8133 = vunpack.c.3.s8 %v7753
    %v8134 = vunpack.c.0.s8 %v7754
    %v8135 = vunpack.c.0.s8 %v7755
    %v8136 = vunpack.c.0.s8 %v7756
    %v8137 = vunpack.c.0.s8 %v7757
    %v8138 = vunpack.c.1.s8 %v7754
    %v8139 = vunpack.c.1.s8 %v7755
    %v8140 = vunpack.c.1.s8 %v7756
    %v8141 = vunpack.c.1.s8 %v7757
    %v8142 = vunpack.c.2.s8 %v7754
    %v8143 = vunpack.c.2.s8 %v7755
    %v8144 = vunpack.c.2.s8 %v7756
    %v8145 = vunpack.c.2.s8 %v7757
    %v8146 = vunpack.c.3.s8 %v7754
    %v8147 = vunpack.c.3.s8 %v7755
    %v8148 = vunpack.c.3.s8 %v7756
    %v8149 = vunpack.c.3.s8 %v7757
    %v8150 = vunpack.c.0.s8 %v7758
    %v8151 = vunpack.c.0.s8 %v7759
    %v8152 = vunpack.c.0.s8 %v7760
    %v8153 = vunpack.c.0.s8 %v7761
    %v8154 = vunpack.c.1.s8 %v7758
    %v8155 = vunpack.c.1.s8 %v7759
    %v8156 = vunpack.c.1.s8 %v7760
    %v8157 = vunpack.c.1.s8 %v7761
    %v8158 = vunpack.c.2.s8 %v7758
    %v8159 = vunpack.c.2.s8 %v7759
    %v8160 = vunpack.c.2.s8 %v7760
    %v8161 = vunpack.c.2.s8 %v7761
    %v8162 = vunpack.c.3.s8 %v7758
    %v8163 = vunpack.c.3.s8 %v7759
    %v8164 = vunpack.c.3.s8 %v7760
    %v8165 = vunpack.c.3.s8 %v7761
    %v8166 = vunpack.c.0.s8 %v7762
    %v8167 = vunpack.c.0.s8 %v7763
    %v8168 = vunpack.c.0.s8 %v7764
    %v8169 = vunpack.c.0.s8 %v7765
    %v8170 = vunpack.c.1.s8 %v7762
    %v8171 = vunpack.c.1.s8 %v7763
    %v8172 = vunpack.c.1.s8 %v7764
    %v8173 = vunpack.c.1.s8 %v7765
    %v8174 = vunpack.c.2.s8 %v7762
    %v8175 = vunpack.c.2.s8 %v7763
    %v8176 = vunpack.c.2.s8 %v7764
    %v8177 = vunpack.c.2.s8 %v7765
    %v8178 = vunpack.c.3.s8 %v7762
    %v8179 = vunpack.c.3.s8 %v7763
    %v8180 = vunpack.c.3.s8 %v7764
    %v8181 = vunpack.c.3.s8 %v7765
    %v8182 = vunpack.c.0.s8 %v7766
    %v8183 = vunpack.c.0.s8 %v7767
    %v8184 = vunpack.c.0.s8 %v7768
    %v8185 = vunpack.c.0.s8 %v7769
    %v8186 = vunpack.c.1.s8 %v7766
    %v8187 = vunpack.c.1.s8 %v7767
    %v8188 = vunpack.c.1.s8 %v7768
    %v8189 = vunpack.c.1.s8 %v7769
    %v8190 = vunpack.c.2.s8 %v7766
    %v8191 = vunpack.c.2.s8 %v7767
    %v8192 = vunpack.c.2.s8 %v7768
    %v8193 = vunpack.c.2.s8 %v7769
    %v8194 = vunpack.c.3.s8 %v7766
    %v8195 = vunpack.c.3.s8 %v7767
    %v8196 = vunpack.c.3.s8 %v7768
    %v8197 = vunpack.c.3.s8 %v7769
    %v8198 = vunpack.c.0.s8 %v7770
    %v8199 = vunpack.c.0.s8 %v7771
    %v8200 = vunpack.c.0.s8 %v7772
    %v8201 = vunpack.c.0.s8 %v7773
    %v8202 = vunpack.c.1.s8 %v7770
    %v8203 = vunpack.c.1.s8 %v7771
    %v8204 = vunpack.c.1.s8 %v7772
    %v8205 = vunpack.c.1.s8 %v7773
    %v8206 = vunpack.c.2.s8 %v7770
    %v8207 = vunpack.c.2.s8 %v7771
    %v8208 = vunpack.c.2.s8 %v7772
    %v8209 = vunpack.c.2.s8 %v7773
    %v8210 = vunpack.c.3.s8 %v7770
    %v8211 = vunpack.c.3.s8 %v7771
    %v8212 = vunpack.c.3.s8 %v7772
    %v8213 = vunpack.c.3.s8 %v7773
    %v8214 = vunpack.c.0.s8 %v7774
    %v8215 = vunpack.c.0.s8 %v7775
    %v8216 = vunpack.c.0.s8 %v7776
    %v8217 = vunpack.c.0.s8 %v7777
    %v8218 = vunpack.c.1.s8 %v7774
    %v8219 = vunpack.c.1.s8 %v7775
    %v8220 = vunpack.c.1.s8 %v7776
    %v8221 = vunpack.c.1.s8 %v7777
    %v8222 = vunpack.c.2.s8 %v7774
    %v8223 = vunpack.c.2.s8 %v7775
    %v8224 = vunpack.c.2.s8 %v7776
    %v8225 = vunpack.c.2.s8 %v7777
    %v8226 = vunpack.c.3.s8 %v7774
    %v8227 = vunpack.c.3.s8 %v7775
    %v8228 = vunpack.c.3.s8 %v7776
    %v8229 = vunpack.c.3.s8 %v7777
    %v8230 = vunpack.c.0.s8 %v7778
    %v8231 = vunpack.c.0.s8 %v7779
    %v8232 = vunpack.c.0.s8 %v7780
    %v8233 = vunpack.c.0.s8 %v7781
    %v8234 = vunpack.c.1.s8 %v7778
    %v8235 = vunpack.c.1.s8 %v7779
    %v8236 = vunpack.c.1.s8 %v7780
    %v8237 = vunpack.c.1.s8 %v7781
    %v8238 = vunpack.c.2.s8 %v7778
    %v8239 = vunpack.c.2.s8 %v7779
    %v8240 = vunpack.c.2.s8 %v7780
    %v8241 = vunpack.c.2.s8 %v7781
    %v8242 = vunpack.c.3.s8 %v7778
    %v8243 = vunpack.c.3.s8 %v7779
    %v8244 = vunpack.c.3.s8 %v7780
    %v8245 = vunpack.c.3.s8 %v7781
    %v8246 = vunpack.c.0.s8 %v7782
    %v8247 = vunpack.c.0.s8 %v7783
    %v8248 = vunpack.c.0.s8 %v7784
    %v8249 = vunpack.c.0.s8 %v7785
    %v8250 = vunpack.c.1.s8 %v7782
    %v8251 = vunpack.c.1.s8 %v7783
    %v8252 = vunpack.c.1.s8 %v7784
    %v8253 = vunpack.c.1.s8 %v7785
    %v8254 = vunpack.c.2.s8 %v7782
    %v8255 = vunpack.c.2.s8 %v7783
    %v8256 = vunpack.c.2.s8 %v7784
    %v8257 = vunpack.c.2.s8 %v7785
    %v8258 = vunpack.c.3.s8 %v7782
    %v8259 = vunpack.c.3.s8 %v7783
    %v8260 = vunpack.c.3.s8 %v7784
    %v8261 = vunpack.c.3.s8 %v7785
    %v8262 = vunpack.c.0.s8 %v7786
    %v8263 = vunpack.c.0.s8 %v7787
    %v8264 = vunpack.c.0.s8 %v7788
    %v8265 = vunpack.c.0.s8 %v7789
    %v8266 = vunpack.c.1.s8 %v7786
    %v8267 = vunpack.c.1.s8 %v7787
    %v8268 = vunpack.c.1.s8 %v7788
    %v8269 = vunpack.c.1.s8 %v7789
    %v8270 = vunpack.c.2.s8 %v7786
    %v8271 = vunpack.c.2.s8 %v7787
    %v8272 = vunpack.c.2.s8 %v7788
    %v8273 = vunpack.c.2.s8 %v7789
    %v8274 = vunpack.c.3.s8 %v7786
    %v8275 = vunpack.c.3.s8 %v7787
    %v8276 = vunpack.c.3.s8 %v7788
    %v8277 = vunpack.c.3.s8 %v7789
    %v8278 = vunpack.c.0.s8 %v7790
    %v8279 = vunpack.c.0.s8 %v7791
    %v8280 = vunpack.c.0.s8 %v7792
    %v8281 = vunpack.c.0.s8 %v7793
    %v8282 = vunpack.c.1.s8 %v7790
    %v8283 = vunpack.c.1.s8 %v7791
    %v8284 = vunpack.c.1.s8 %v7792
    %v8285 = vunpack.c.1.s8 %v7793
    %v8286 = vunpack.c.2.s8 %v7790
    %v8287 = vunpack.c.2.s8 %v7791
    %v8288 = vunpack.c.2.s8 %v7792
    %v8289 = vunpack.c.2.s8 %v7793
    %v8290 = vunpack.c.3.s8 %v7790
    %v8291 = vunpack.c.3.s8 %v7791
    %v8292 = vunpack.c.3.s8 %v7792
    %v8293 = vunpack.c.3.s8 %v7793
    %v8294 = vunpack.c.0.s8 %v7794
    %v8295 = vunpack.c.0.s8 %v7795
    %v8296 = vunpack.c.0.s8 %v7796
    %v8297 = vunpack.c.0.s8 %v7797
    %v8298 = vunpack.c.1.s8 %v7794
    %v8299 = vunpack.c.1.s8 %v7795
    %v8300 = vunpack.c.1.s8 %v7796
    %v8301 = vunpack.c.1.s8 %v7797
    %v8302 = vunpack.c.2.s8 %v7794
    %v8303 = vunpack.c.2.s8 %v7795
    %v8304 = vunpack.c.2.s8 %v7796
    %v8305 = vunpack.c.2.s8 %v7797
    %v8306 = vunpack.c.3.s8 %v7794
    %v8307 = vunpack.c.3.s8 %v7795
    %v8308 = vunpack.c.3.s8 %v7796
    %v8309 = vunpack.c.3.s8 %v7797
    %v8310 = vcvt.s32.f32 %v7798
    %v8311 = vcvt.s32.f32 %v7799
    %v8312 = vcvt.s32.f32 %v7800
    %v8313 = vcvt.s32.f32 %v7801
    %v8314 = vcvt.s32.f32 %v7802
    %v8315 = vcvt.s32.f32 %v7803
    %v8316 = vcvt.s32.f32 %v7804
    %v8317 = vcvt.s32.f32 %v7805
    %v8318 = vcvt.s32.f32 %v7806
    %v8319 = vcvt.s32.f32 %v7807
    %v8320 = vcvt.s32.f32 %v7808
    %v8321 = vcvt.s32.f32 %v7809
    %v8322 = vcvt.s32.f32 %v7810
    %v8323 = vcvt.s32.f32 %v7811
    %v8324 = vcvt.s32.f32 %v7812
    %v8325 = vcvt.s32.f32 %v7813
    %v8326 = vcvt.s32.f32 %v7814
    %v8327 = vcvt.s32.f32 %v7815
    %v8328 = vcvt.s32.f32 %v7816
    %v8329 = vcvt.s32.f32 %v7817
    %v8330 = vcvt.s32.f32 %v7818
    %v8331 = vcvt.s32.f32 %v7819
    %v8332 = vcvt.s32.f32 %v7820
    %v8333 = vcvt.s32.f32 %v7821
    %v8334 = vcvt.s32.f32 %v7822
    %v8335 = vcvt.s32.f32 %v7823
    %v8336 = vcvt.s32.f32 %v7824
    %v8337 = vcvt.s32.f32 %v7825
    %v8338 = vcvt.s32.f32 %v7826
    %v8339 = vcvt.s32.f32 %v7827
    %v8340 = vcvt.s32.f32 %v7828
    %v8341 = vcvt.s32.f32 %v7829
    %v8342 = vcvt.s32.f32 %v7830
    %v8343 = vcvt.s32.f32 %v7831
    %v8344 = vcvt.s32.f32 %v7832
    %v8345 = vcvt.s32.f32 %v7833
    %v8346 = vcvt.s32.f32 %v7834
    %v8347 = vcvt.s32.f32 %v7835
    %v8348 = vcvt.s32.f32 %v7836
    %v8349 = vcvt.s32.f32 %v7837
    %v8350 = vcvt.s32.f32 %v7838
    %v8351 = vcvt.s32.f32 %v7839
    %v8352 = vcvt.s32.f32 %v7840
    %v8353 = vcvt.s32.f32 %v7841
    %v8354 = vcvt.s32.f32 %v7842
    %v8355 = vcvt.s32.f32 %v7843
    %v8356 = vcvt.s32.f32 %v7844
    %v8357 = vcvt.s32.f32 %v7845
    %v8358 = vcvt.s32.f32 %v7846
    %v8359 = vcvt.s32.f32 %v7847
    %v8360 = vcvt.s32.f32 %v7848
    %v8361 = vcvt.s32.f32 %v7849
    %v8362 = vcvt.s32.f32 %v7850
    %v8363 = vcvt.s32.f32 %v7851
    %v8364 = vcvt.s32.f32 %v7852
    %v8365 = vcvt.s32.f32 %v7853
    %v8366 = vcvt.s32.f32 %v7854
    %v8367 = vcvt.s32.f32 %v7855
    %v8368 = vcvt.s32.f32 %v7856
    %v8369 = vcvt.s32.f32 %v7857
    %v8370 = vcvt.s32.f32 %v7858
    %v8371 = vcvt.s32.f32 %v7859
    %v8372 = vcvt.s32.f32 %v7860
    %v8373 = vcvt.s32.f32 %v7861
    %v8374 = vcvt.s32.f32 %v7862
    %v8375 = vcvt.s32.f32 %v7863
    %v8376 = vcvt.s32.f32 %v7864
    %v8377 = vcvt.s32.f32 %v7865
    %v8378 = vcvt.s32.f32 %v7866
    %v8379 = vcvt.s32.f32 %v7867
    %v8380 = vcvt.s32.f32 %v7868
    %v8381 = vcvt.s32.f32 %v7869
    %v8382 = vcvt.s32.f32 %v7870
    %v8383 = vcvt.s32.f32 %v7871
    %v8384 = vcvt.s32.f32 %v7872
    %v8385 = vcvt.s32.f32 %v7873
    %v8386 = vcvt.s32.f32 %v7874
    %v8387 = vcvt.s32.f32 %v7875
    %v8388 = vcvt.s32.f32 %v7876
    %v8389 = vcvt.s32.f32 %v7877
    %v8390 = vcvt.s32.f32 %v7878
    %v8391 = vcvt.s32.f32 %v7879
    %v8392 = vcvt.s32.f32 %v7880
    %v8393 = vcvt.s32.f32 %v7881
    %v8394 = vcvt.s32.f32 %v7882
    %v8395 = vcvt.s32.f32 %v7883
    %v8396 = vcvt.s32.f32 %v7884
    %v8397 = vcvt.s32.f32 %v7885
    %v8398 = vcvt.s32.f32 %v7886
    %v8399 = vcvt.s32.f32 %v7887
    %v8400 = vcvt.s32.f32 %v7888
    %v8401 = vcvt.s32.f32 %v7889
    %v8402 = vcvt.s32.f32 %v7890
    %v8403 = vcvt.s32.f32 %v7891
    %v8404 = vcvt.s32.f32 %v7892
    %v8405 = vcvt.s32.f32 %v7893
    %v8406 = vcvt.s32.f32 %v7894
    %v8407 = vcvt.s32.f32 %v7895
    %v8408 = vcvt.s32.f32 %v7896
    %v8409 = vcvt.s32.f32 %v7897
    %v8410 = vcvt.s32.f32 %v7898
    %v8411 = vcvt.s32.f32 %v7899
    %v8412 = vcvt.s32.f32 %v7900
    %v8413 = vcvt.s32.f32 %v7901
    %v8414 = vcvt.s32.f32 %v7902
    %v8415 = vcvt.s32.f32 %v7903
    %v8416 = vcvt.s32.f32 %v7904
    %v8417 = vcvt.s32.f32 %v7905
    %v8418 = vcvt.s32.f32 %v7906
    %v8419 = vcvt.s32.f32 %v7907
    %v8420 = vcvt.s32.f32 %v7908
    %v8421 = vcvt.s32.f32 %v7909
    %v8422 = vcvt.s32.f32 %v7910
    %v8423 = vcvt.s32.f32 %v7911
    %v8424 = vcvt.s32.f32 %v7912
    %v8425 = vcvt.s32.f32 %v7913
    %v8426 = vcvt.s32.f32 %v7914
    %v8427 = vcvt.s32.f32 %v7915
    %v8428 = vcvt.s32.f32 %v7916
    %v8429 = vcvt.s32.f32 %v7917
    %v8430 = vcvt.s32.f32 %v7918
    %v8431 = vcvt.s32.f32 %v7919
    %v8432 = vcvt.s32.f32 %v7920
    %v8433 = vcvt.s32.f32 %v7921
    %v8434 = vcvt.s32.f32 %v7922
    %v8435 = vcvt.s32.f32 %v7923
    %v8436 = vcvt.s32.f32 %v7924
    %v8437 = vcvt.s32.f32 %v7925
    %v8438 = vcvt.s32.f32 %v7926
    %v8439 = vcvt.s32.f32 %v7927
    %v8440 = vcvt.s32.f32 %v7928
    %v8441 = vcvt.s32.f32 %v7929
    %v8442 = vcvt.s32.f32 %v7930
    %v8443 = vcvt.s32.f32 %v7931
    %v8444 = vcvt.s32.f32 %v7932
    %v8445 = vcvt.s32.f32 %v7933
    %v8446 = vcvt.s32.f32 %v7934
    %v8447 = vcvt.s32.f32 %v7935
    %v8448 = vcvt.s32.f32 %v7936
    %v8449 = vcvt.s32.f32 %v7937
    %v8450 = vcvt.s32.f32 %v7938
    %v8451 = vcvt.s32.f32 %v7939
    %v8452 = vcvt.s32.f32 %v7940
    %v8453 = vcvt.s32.f32 %v7941
    %v8454 = vcvt.s32.f32 %v7942
    %v8455 = vcvt.s32.f32 %v7943
    %v8456 = vcvt.s32.f32 %v7944
    %v8457 = vcvt.s32.f32 %v7945
    %v8458 = vcvt.s32.f32 %v7946
    %v8459 = vcvt.s32.f32 %v7947
    %v8460 = vcvt.s32.f32 %v7948
    %v8461 = vcvt.s32.f32 %v7949
    %v8462 = vcvt.s32.f32 %v7950
    %v8463 = vcvt.s32.f32 %v7951
    %v8464 = vcvt.s32.f32 %v7952
    %v8465 = vcvt.s32.f32 %v7953
    %v8466 = vcvt.s32.f32 %v7954
    %v8467 = vcvt.s32.f32 %v7955
    %v8468 = vcvt.s32.f32 %v7956
    %v8469 = vcvt.s32.f32 %v7957
    %v8470 = vcvt.s32.f32 %v7958
    %v8471 = vcvt.s32.f32 %v7959
    %v8472 = vcvt.s32.f32 %v7960
    %v8473 = vcvt.s32.f32 %v7961
    %v8474 = vcvt.s32.f32 %v7962
    %v8475 = vcvt.s32.f32 %v7963
    %v8476 = vcvt.s32.f32 %v7964
    %v8477 = vcvt.s32.f32 %v7965
    %v8478 = vcvt.s32.f32 %v7966
    %v8479 = vcvt.s32.f32 %v7967
    %v8480 = vcvt.s32.f32 %v7968
    %v8481 = vcvt.s32.f32 %v7969
    %v8482 = vcvt.s32.f32 %v7970
    %v8483 = vcvt.s32.f32 %v7971
    %v8484 = vcvt.s32.f32 %v7972
    %v8485 = vcvt.s32.f32 %v7973
    %v8486 = vcvt.s32.f32 %v7974
    %v8487 = vcvt.s32.f32 %v7975
    %v8488 = vcvt.s32.f32 %v7976
    %v8489 = vcvt.s32.f32 %v7977
    %v8490 = vcvt.s32.f32 %v7978
    %v8491 = vcvt.s32.f32 %v7979
    %v8492 = vcvt.s32.f32 %v7980
    %v8493 = vcvt.s32.f32 %v7981
    %v8494 = vcvt.s32.f32 %v7982
    %v8495 = vcvt.s32.f32 %v7983
    %v8496 = vcvt.s32.f32 %v7984
    %v8497 = vcvt.s32.f32 %v7985
    %v8498 = vcvt.s32.f32 %v7986
    %v8499 = vcvt.s32.f32 %v7987
    %v8500 = vcvt.s32.f32 %v7988
    %v8501 = vcvt.s32.f32 %v7989
    %v8502 = vcvt.s32.f32 %v7990
    %v8503 = vcvt.s32.f32 %v7991
    %v8504 = vcvt.s32.f32 %v7992
    %v8505 = vcvt.s32.f32 %v7993
    %v8506 = vcvt.s32.f32 %v7994
    %v8507 = vcvt.s32.f32 %v7995
    %v8508 = vcvt.s32.f32 %v7996
    %v8509 = vcvt.s32.f32 %v7997
    %v8510 = vcvt.s32.f32 %v7998
    %v8511 = vcvt.s32.f32 %v7999
    %v8512 = vcvt.s32.f32 %v8000
    %v8513 = vcvt.s32.f32 %v8001
    %v8514 = vcvt.s32.f32 %v8002
    %v8515 = vcvt.s32.f32 %v8003
    %v8516 = vcvt.s32.f32 %v8004
    %v8517 = vcvt.s32.f32 %v8005
    %v8518 = vcvt.s32.f32 %v8006
    %v8519 = vcvt.s32.f32 %v8007
    %v8520 = vcvt.s32.f32 %v8008
    %v8521 = vcvt.s32.f32 %v8009
    %v8522 = vcvt.s32.f32 %v8010
    %v8523 = vcvt.s32.f32 %v8011
    %v8524 = vcvt.s32.f32 %v8012
    %v8525 = vcvt.s32.f32 %v8013
    %v8526 = vcvt.s32.f32 %v8014
    %v8527 = vcvt.s32.f32 %v8015
    %v8528 = vcvt.s32.f32 %v8016
    %v8529 = vcvt.s32.f32 %v8017
    %v8530 = vcvt.s32.f32 %v8018
    %v8531 = vcvt.s32.f32 %v8019
    %v8532 = vcvt.s32.f32 %v8020
    %v8533 = vcvt.s32.f32 %v8021
    %v8534 = vcvt.s32.f32 %v8022
    %v8535 = vcvt.s32.f32 %v8023
    %v8536 = vcvt.s32.f32 %v8024
    %v8537 = vcvt.s32.f32 %v8025
    %v8538 = vcvt.s32.f32 %v8026
    %v8539 = vcvt.s32.f32 %v8027
    %v8540 = vcvt.s32.f32 %v8028
    %v8541 = vcvt.s32.f32 %v8029
    %v8542 = vcvt.s32.f32 %v8030
    %v8543 = vcvt.s32.f32 %v8031
    %v8544 = vcvt.s32.f32 %v8032
    %v8545 = vcvt.s32.f32 %v8033
    %v8546 = vcvt.s32.f32 %v8034
    %v8547 = vcvt.s32.f32 %v8035
    %v8548 = vcvt.s32.f32 %v8036
    %v8549 = vcvt.s32.f32 %v8037
    %v8550 = vcvt.s32.f32 %v8038
    %v8551 = vcvt.s32.f32 %v8039
    %v8552 = vcvt.s32.f32 %v8040
    %v8553 = vcvt.s32.f32 %v8041
    %v8554 = vcvt.s32.f32 %v8042
    %v8555 = vcvt.s32.f32 %v8043
    %v8556 = vcvt.s32.f32 %v8044
    %v8557 = vcvt.s32.f32 %v8045
    %v8558 = vcvt.s32.f32 %v8046
    %v8559 = vcvt.s32.f32 %v8047
    %v8560 = vcvt.s32.f32 %v8048
    %v8561 = vcvt.s32.f32 %v8049
    %v8562 = vcvt.s32.f32 %v8050
    %v8563 = vcvt.s32.f32 %v8051
    %v8564 = vcvt.s32.f32 %v8052
    %v8565 = vcvt.s32.f32 %v8053
    %v8566 = vcvt.s32.f32 %v8054
    %v8567 = vcvt.s32.f32 %v8055
    %v8568 = vcvt.s32.f32 %v8056
    %v8569 = vcvt.s32.f32 %v8057
    %v8570 = vcvt.s32.f32 %v8058
    %v8571 = vcvt.s32.f32 %v8059
    %v8572 = vcvt.s32.f32 %v8060
    %v8573 = vcvt.s32.f32 %v8061
    %v8574 = vcvt.s32.f32 %v8062
    %v8575 = vcvt.s32.f32 %v8063
    %v8576 = vcvt.s32.f32 %v8064
    %v8577 = vcvt.s32.f32 %v8065
    %v8578 = vcvt.s32.f32 %v8066
    %v8579 = vcvt.s32.f32 %v8067
    %v8580 = vcvt.s32.f32 %v8068
    %v8581 = vcvt.s32.f32 %v8069
    %v8582 = vcvt.s32.f32 %v8070
    %v8583 = vcvt.s32.f32 %v8071
    %v8584 = vcvt.s32.f32 %v8072
    %v8585 = vcvt.s32.f32 %v8073
    %v8586 = vcvt.s32.f32 %v8074
    %v8587 = vcvt.s32.f32 %v8075
    %v8588 = vcvt.s32.f32 %v8076
    %v8589 = vcvt.s32.f32 %v8077
    %v8590 = vcvt.s32.f32 %v8078
    %v8591 = vcvt.s32.f32 %v8079
    %v8592 = vcvt.s32.f32 %v8080
    %v8593 = vcvt.s32.f32 %v8081
    %v8594 = vcvt.s32.f32 %v8082
    %v8595 = vcvt.s32.f32 %v8083
    %v8596 = vcvt.s32.f32 %v8084
    %v8597 = vcvt.s32.f32 %v8085
    %v8598 = vcvt.s32.f32 %v8086
    %v8599 = vcvt.s32.f32 %v8087
    %v8600 = vcvt.s32.f32 %v8088
    %v8601 = vcvt.s32.f32 %v8089
    %v8602 = vcvt.s32.f32 %v8090
    %v8603 = vcvt.s32.f32 %v8091
    %v8604 = vcvt.s32.f32 %v8092
    %v8605 = vcvt.s32.f32 %v8093
    %v8606 = vcvt.s32.f32 %v8094
    %v8607 = vcvt.s32.f32 %v8095
    %v8608 = vcvt.s32.f32 %v8096
    %v8609 = vcvt.s32.f32 %v8097
    %v8610 = vcvt.s32.f32 %v8098
    %v8611 = vcvt.s32.f32 %v8099
    %v8612 = vcvt.s32.f32 %v8100
    %v8613 = vcvt.s32.f32 %v8101
    %v8614 = vcvt.s32.f32 %v8102
    %v8615 = vcvt.s32.f32 %v8103
    %v8616 = vcvt.s32.f32 %v8104
    %v8617 = vcvt.s32.f32 %v8105
    %v8618 = vcvt.s32.f32 %v8106
    %v8619 = vcvt.s32.f32 %v8107
    %v8620 = vcvt.s32.f32 %v8108
    %v8621 = vcvt.s32.f32 %v8109
    %v8622 = vcvt.s32.f32 %v8110
    %v8623 = vcvt.s32.f32 %v8111
    %v8624 = vcvt.s32.f32 %v8112
    %v8625 = vcvt.s32.f32 %v8113
    %v8626 = vcvt.s32.f32 %v8114
    %v8627 = vcvt.s32.f32 %v8115
    %v8628 = vcvt.s32.f32 %v8116
    %v8629 = vcvt.s32.f32 %v8117
    %v8630 = vcvt.s32.f32 %v8118
    %v8631 = vcvt.s32.f32 %v8119
    %v8632 = vcvt.s32.f32 %v8120
    %v8633 = vcvt.s32.f32 %v8121
    %v8634 = vcvt.s32.f32 %v8122
    %v8635 = vcvt.s32.f32 %v8123
    %v8636 = vcvt.s32.f32 %v8124
    %v8637 = vcvt.s32.f32 %v8125
    %v8638 = vcvt.s32.f32 %v8126
    %v8639 = vcvt.s32.f32 %v8127
    %v8640 = vcvt.s32.f32 %v8128
    %v8641 = vcvt.s32.f32 %v8129
    %v8642 = vcvt.s32.f32 %v8130
    %v8643 = vcvt.s32.f32 %v8131
    %v8644 = vcvt.s32.f32 %v8132
    %v8645 = vcvt.s32.f32 %v8133
    %v8646 = vcvt.s32.f32 %v8134
    %v8647 = vcvt.s32.f32 %v8135
    %v8648 = vcvt.s32.f32 %v8136
    %v8649 = vcvt.s32.f32 %v8137
    %v8650 = vcvt.s32.f32 %v8138
    %v8651 = vcvt.s32.f32 %v8139
    %v8652 = vcvt.s32.f32 %v8140
    %v8653 = vcvt.s32.f32 %v8141
    %v8654 = vcvt.s32.f32 %v8142
    %v8655 = vcvt.s32.f32 %v8143
    %v8656 = vcvt.s32.f32 %v8144
    %v8657 = vcvt.s32.f32 %v8145
    %v8658 = vcvt.s32.f32 %v8146
    %v8659 = vcvt.s32.f32 %v8147
    %v8660 = vcvt.s32.f32 %v8148
    %v8661 = vcvt.s32.f32 %v8149
    %v8662 = vcvt.s32.f32 %v8150
    %v8663 = vcvt.s32.f32 %v8151
    %v8664 = vcvt.s32.f32 %v8152
    %v8665 = vcvt.s32.f32 %v8153
    %v8666 = vcvt.s32.f32 %v8154
    %v8667 = vcvt.s32.f32 %v8155
    %v8668 = vcvt.s32.f32 %v8156
    %v8669 = vcvt.s32.f32 %v8157
    %v8670 = vcvt.s32.f32 %v8158
    %v8671 = vcvt.s32.f32 %v8159
    %v8672 = vcvt.s32.f32 %v8160
    %v8673 = vcvt.s32.f32 %v8161
    %v8674 = vcvt.s32.f32 %v8162
    %v8675 = vcvt.s32.f32 %v8163
    %v8676 = vcvt.s32.f32 %v8164
    %v8677 = vcvt.s32.f32 %v8165
    %v8678 = vcvt.s32.f32 %v8166
    %v8679 = vcvt.s32.f32 %v8167
    %v8680 = vcvt.s32.f32 %v8168
    %v8681 = vcvt.s32.f32 %v8169
    %v8682 = vcvt.s32.f32 %v8170
    %v8683 = vcvt.s32.f32 %v8171
    %v8684 = vcvt.s32.f32 %v8172
    %v8685 = vcvt.s32.f32 %v8173
    %v8686 = vcvt.s32.f32 %v8174
    %v8687 = vcvt.s32.f32 %v8175
    %v8688 = vcvt.s32.f32 %v8176
    %v8689 = vcvt.s32.f32 %v8177
    %v8690 = vcvt.s32.f32 %v8178
    %v8691 = vcvt.s32.f32 %v8179
    %v8692 = vcvt.s32.f32 %v8180
    %v8693 = vcvt.s32.f32 %v8181
    %v8694 = vcvt.s32.f32 %v8182
    %v8695 = vcvt.s32.f32 %v8183
    %v8696 = vcvt.s32.f32 %v8184
    %v8697 = vcvt.s32.f32 %v8185
    %v8698 = vcvt.s32.f32 %v8186
    %v8699 = vcvt.s32.f32 %v8187
    %v8700 = vcvt.s32.f32 %v8188
    %v8701 = vcvt.s32.f32 %v8189
    %v8702 = vcvt.s32.f32 %v8190
    %v8703 = vcvt.s32.f32 %v8191
    %v8704 = vcvt.s32.f32 %v8192
    %v8705 = vcvt.s32.f32 %v8193
    %v8706 = vcvt.s32.f32 %v8194
    %v8707 = vcvt.s32.f32 %v8195
    %v8708 = vcvt.s32.f32 %v8196
    %v8709 = vcvt.s32.f32 %v8197
    %v8710 = vcvt.s32.f32 %v8198
    %v8711 = vcvt.s32.f32 %v8199
    %v8712 = vcvt.s32.f32 %v8200
    %v8713 = vcvt.s32.f32 %v8201
    %v8714 = vcvt.s32.f32 %v8202
    %v8715 = vcvt.s32.f32 %v8203
    %v8716 = vcvt.s32.f32 %v8204
    %v8717 = vcvt.s32.f32 %v8205
    %v8718 = vcvt.s32.f32 %v8206
    %v8719 = vcvt.s32.f32 %v8207
    %v8720 = vcvt.s32.f32 %v8208
    %v8721 = vcvt.s32.f32 %v8209
    %v8722 = vcvt.s32.f32 %v8210
    %v8723 = vcvt.s32.f32 %v8211
    %v8724 = vcvt.s32.f32 %v8212
    %v8725 = vcvt.s32.f32 %v8213
    %v8726 = vcvt.s32.f32 %v8214
    %v8727 = vcvt.s32.f32 %v8215
    %v8728 = vcvt.s32.f32 %v8216
    %v8729 = vcvt.s32.f32 %v8217
    %v8730 = vcvt.s32.f32 %v8218
    %v8731 = vcvt.s32.f32 %v8219
    %v8732 = vcvt.s32.f32 %v8220
    %v8733 = vcvt.s32.f32 %v8221
    %v8734 = vcvt.s32.f32 %v8222
    %v8735 = vcvt.s32.f32 %v8223
    %v8736 = vcvt.s32.f32 %v8224
    %v8737 = vcvt.s32.f32 %v8225
    %v8738 = vcvt.s32.f32 %v8226
    %v8739 = vcvt.s32.f32 %v8227
    %v8740 = vcvt.s32.f32 %v8228
    %v8741 = vcvt.s32.f32 %v8229
    %v8742 = vcvt.s32.f32 %v8230
    %v8743 = vcvt.s32.f32 %v8231
    %v8744 = vcvt.s32.f32 %v8232
    %v8745 = vcvt.s32.f32 %v8233
    %v8746 = vcvt.s32.f32 %v8234
    %v8747 = vcvt.s32.f32 %v8235
    %v8748 = vcvt.s32.f32 %v8236
    %v8749 = vcvt.s32.f32 %v8237
    %v8750 = vcvt.s32.f32 %v8238
    %v8751 = vcvt.s32.f32 %v8239
    %v8752 = vcvt.s32.f32 %v8240
    %v8753 = vcvt.s32.f32 %v8241
    %v8754 = vcvt.s32.f32 %v8242
    %v8755 = vcvt.s32.f32 %v8243
    %v8756 = vcvt.s32.f32 %v8244
    %v8757 = vcvt.s32.f32 %v8245
    %v8758 = vcvt.s32.f32 %v8246
    %v8759 = vcvt.s32.f32 %v8247
    %v8760 = vcvt.s32.f32 %v8248
    %v8761 = vcvt.s32.f32 %v8249
    %v8762 = vcvt.s32.f32 %v8250
    %v8763 = vcvt.s32.f32 %v8251
    %v8764 = vcvt.s32.f32 %v8252
    %v8765 = vcvt.s32.f32 %v8253
    %v8766 = vcvt.s32.f32 %v8254
    %v8767 = vcvt.s32.f32 %v8255
    %v8768 = vcvt.s32.f32 %v8256
    %v8769 = vcvt.s32.f32 %v8257
    %v8770 = vcvt.s32.f32 %v8258
    %v8771 = vcvt.s32.f32 %v8259
    %v8772 = vcvt.s32.f32 %v8260
    %v8773 = vcvt.s32.f32 %v8261
    %v8774 = vcvt.s32.f32 %v8262
    %v8775 = vcvt.s32.f32 %v8263
    %v8776 = vcvt.s32.f32 %v8264
    %v8777 = vcvt.s32.f32 %v8265
    %v8778 = vcvt.s32.f32 %v8266
    %v8779 = vcvt.s32.f32 %v8267
    %v8780 = vcvt.s32.f32 %v8268
    %v8781 = vcvt.s32.f32 %v8269
    %v8782 = vcvt.s32.f32 %v8270
    %v8783 = vcvt.s32.f32 %v8271
    %v8784 = vcvt.s32.f32 %v8272
    %v8785 = vcvt.s32.f32 %v8273
    %v8786 = vcvt.s32.f32 %v8274
    %v8787 = vcvt.s32.f32 %v8275
    %v8788 = vcvt.s32.f32 %v8276
    %v8789 = vcvt.s32.f32 %v8277
    %v8790 = vcvt.s32.f32 %v8278
    %v8791 = vcvt.s32.f32 %v8279
    %v8792 = vcvt.s32.f32 %v8280
    %v8793 = vcvt.s32.f32 %v8281
    %v8794 = vcvt.s32.f32 %v8282
    %v8795 = vcvt.s32.f32 %v8283
    %v8796 = vcvt.s32.f32 %v8284
    %v8797 = vcvt.s32.f32 %v8285
    %v8798 = vcvt.s32.f32 %v8286
    %v8799 = vcvt.s32.f32 %v8287
    %v8800 = vcvt.s32.f32 %v8288
    %v8801 = vcvt.s32.f32 %v8289
    %v8802 = vcvt.s32.f32 %v8290
    %v8803 = vcvt.s32.f32 %v8291
    %v8804 = vcvt.s32.f32 %v8292
    %v8805 = vcvt.s32.f32 %v8293
    %v8806 = vcvt.s32.f32 %v8294
    %v8807 = vcvt.s32.f32 %v8295
    %v8808 = vcvt.s32.f32 %v8296
    %v8809 = vcvt.s32.f32 %v8297
    %v8810 = vcvt.s32.f32 %v8298
    %v8811 = vcvt.s32.f32 %v8299
    %v8812 = vcvt.s32.f32 %v8300
    %v8813 = vcvt.s32.f32 %v8301
    %v8814 = vcvt.s32.f32 %v8302
    %v8815 = vcvt.s32.f32 %v8303
    %v8816 = vcvt.s32.f32 %v8304
    %v8817 = vcvt.s32.f32 %v8305
    %v8818 = vcvt.s32.f32 %v8306
    %v8819 = vcvt.s32.f32 %v8307
    %v8820 = vcvt.s32.f32 %v8308
    %v8821 = vcvt.s32.f32 %v8309
    %v8822 = vpack.c.bf16 %v8314, %v8310
    %v8823 = vpack.c.bf16 %v8315, %v8311
    %v8824 = vpack.c.bf16 %v8316, %v8312
    %v8825 = vpack.c.bf16 %v8317, %v8313
    %v8826 = vpack.c.bf16 %v8322, %v8318
    %v8827 = vpack.c.bf16 %v8323, %v8319
    %v8828 = vpack.c.bf16 %v8324, %v8320
    %v8829 = vpack.c.bf16 %v8325, %v8321
    %v8830 = vpack.c.bf16 %v8330, %v8326
    %v8831 = vpack.c.bf16 %v8331, %v8327
    %v8832 = vpack.c.bf16 %v8332, %v8328
    %v8833 = vpack.c.bf16 %v8333, %v8329
    %v8834 = vpack.c.bf16 %v8338, %v8334
    %v8835 = vpack.c.bf16 %v8339, %v8335
    %v8836 = vpack.c.bf16 %v8340, %v8336
    %v8837 = vpack.c.bf16 %v8341, %v8337
    %v8838 = vpack.c.bf16 %v8346, %v8342
    %v8839 = vpack.c.bf16 %v8347, %v8343
    %v8840 = vpack.c.bf16 %v8348, %v8344
    %v8841 = vpack.c.bf16 %v8349, %v8345
    %v8842 = vpack.c.bf16 %v8354, %v8350
    %v8843 = vpack.c.bf16 %v8355, %v8351
    %v8844 = vpack.c.bf16 %v8356, %v8352
    %v8845 = vpack.c.bf16 %v8357, %v8353
    %v8846 = vpack.c.bf16 %v8362, %v8358
    %v8847 = vpack.c.bf16 %v8363, %v8359
    %v8848 = vpack.c.bf16 %v8364, %v8360
    %v8849 = vpack.c.bf16 %v8365, %v8361
    %v8850 = vpack.c.bf16 %v8370, %v8366
    %v8851 = vpack.c.bf16 %v8371, %v8367
    %v8852 = vpack.c.bf16 %v8372, %v8368
    %v8853 = vpack.c.bf16 %v8373, %v8369
    %v8854 = vpack.c.bf16 %v8378, %v8374
    %v8855 = vpack.c.bf16 %v8379, %v8375
    %v8856 = vpack.c.bf16 %v8380, %v8376
    %v8857 = vpack.c.bf16 %v8381, %v8377
    %v8858 = vpack.c.bf16 %v8386, %v8382
    %v8859 = vpack.c.bf16 %v8387, %v8383
    %v8860 = vpack.c.bf16 %v8388, %v8384
    %v8861 = vpack.c.bf16 %v8389, %v8385
    %v8862 = vpack.c.bf16 %v8394, %v8390
    %v8863 = vpack.c.bf16 %v8395, %v8391
    %v8864 = vpack.c.bf16 %v8396, %v8392
    %v8865 = vpack.c.bf16 %v8397, %v8393
    %v8866 = vpack.c.bf16 %v8402, %v8398
    %v8867 = vpack.c.bf16 %v8403, %v8399
    %v8868 = vpack.c.bf16 %v8404, %v8400
    %v8869 = vpack.c.bf16 %v8405, %v8401
    %v8870 = vpack.c.bf16 %v8410, %v8406
    %v8871 = vpack.c.bf16 %v8411, %v8407
    %v8872 = vpack.c.bf16 %v8412, %v8408
    %v8873 = vpack.c.bf16 %v8413, %v8409
    %v8874 = vpack.c.bf16 %v8418, %v8414
    %v8875 = vpack.c.bf16 %v8419, %v8415
    %v8876 = vpack.c.bf16 %v8420, %v8416
    %v8877 = vpack.c.bf16 %v8421, %v8417
    %v8878 = vpack.c.bf16 %v8426, %v8422
    %v8879 = vpack.c.bf16 %v8427, %v8423
    %v8880 = vpack.c.bf16 %v8428, %v8424
    %v8881 = vpack.c.bf16 %v8429, %v8425
    %v8882 = vpack.c.bf16 %v8434, %v8430
    %v8883 = vpack.c.bf16 %v8435, %v8431
    %v8884 = vpack.c.bf16 %v8436, %v8432
    %v8885 = vpack.c.bf16 %v8437, %v8433
    %v8886 = vpack.c.bf16 %v8442, %v8438
    %v8887 = vpack.c.bf16 %v8443, %v8439
    %v8888 = vpack.c.bf16 %v8444, %v8440
    %v8889 = vpack.c.bf16 %v8445, %v8441
    %v8890 = vpack.c.bf16 %v8450, %v8446
    %v8891 = vpack.c.bf16 %v8451, %v8447
    %v8892 = vpack.c.bf16 %v8452, %v8448
    %v8893 = vpack.c.bf16 %v8453, %v8449
    %v8894 = vpack.c.bf16 %v8458, %v8454
    %v8895 = vpack.c.bf16 %v8459, %v8455
    %v8896 = vpack.c.bf16 %v8460, %v8456
    %v8897 = vpack.c.bf16 %v8461, %v8457
    %v8898 = vpack.c.bf16 %v8466, %v8462
    %v8899 = vpack.c.bf16 %v8467, %v8463
    %v8900 = vpack.c.bf16 %v8468, %v8464
    %v8901 = vpack.c.bf16 %v8469, %v8465
    %v8902 = vpack.c.bf16 %v8474, %v8470
    %v8903 = vpack.c.bf16 %v8475, %v8471
    %v8904 = vpack.c.bf16 %v8476, %v8472
    %v8905 = vpack.c.bf16 %v8477, %v8473
    %v8906 = vpack.c.bf16 %v8482, %v8478
    %v8907 = vpack.c.bf16 %v8483, %v8479
    %v8908 = vpack.c.bf16 %v8484, %v8480
    %v8909 = vpack.c.bf16 %v8485, %v8481
    %v8910 = vpack.c.bf16 %v8490, %v8486
    %v8911 = vpack.c.bf16 %v8491, %v8487
    %v8912 = vpack.c.bf16 %v8492, %v8488
    %v8913 = vpack.c.bf16 %v8493, %v8489
    %v8914 = vpack.c.bf16 %v8498, %v8494
    %v8915 = vpack.c.bf16 %v8499, %v8495
    %v8916 = vpack.c.bf16 %v8500, %v8496
    %v8917 = vpack.c.bf16 %v8501, %v8497
    %v8918 = vpack.c.bf16 %v8506, %v8502
    %v8919 = vpack.c.bf16 %v8507, %v8503
    %v8920 = vpack.c.bf16 %v8508, %v8504
    %v8921 = vpack.c.bf16 %v8509, %v8505
    %v8922 = vpack.c.bf16 %v8514, %v8510
    %v8923 = vpack.c.bf16 %v8515, %v8511
    %v8924 = vpack.c.bf16 %v8516, %v8512
    %v8925 = vpack.c.bf16 %v8517, %v8513
    %v8926 = vpack.c.bf16 %v8522, %v8518
    %v8927 = vpack.c.bf16 %v8523, %v8519
    %v8928 = vpack.c.bf16 %v8524, %v8520
    %v8929 = vpack.c.bf16 %v8525, %v8521
    %v8930 = vpack.c.bf16 %v8530, %v8526
    %v8931 = vpack.c.bf16 %v8531, %v8527
    %v8932 = vpack.c.bf16 %v8532, %v8528
    %v8933 = vpack.c.bf16 %v8533, %v8529
    %v8934 = vpack.c.bf16 %v8538, %v8534
    %v8935 = vpack.c.bf16 %v8539, %v8535
    %v8936 = vpack.c.bf16 %v8540, %v8536
    %v8937 = vpack.c.bf16 %v8541, %v8537
    %v8938 = vpack.c.bf16 %v8546, %v8542
    %v8939 = vpack.c.bf16 %v8547, %v8543
    %v8940 = vpack.c.bf16 %v8548, %v8544
    %v8941 = vpack.c.bf16 %v8549, %v8545
    %v8942 = vpack.c.bf16 %v8554, %v8550
    %v8943 = vpack.c.bf16 %v8555, %v8551
    %v8944 = vpack.c.bf16 %v8556, %v8552
    %v8945 = vpack.c.bf16 %v8557, %v8553
    %v8946 = vpack.c.bf16 %v8562, %v8558
    %v8947 = vpack.c.bf16 %v8563, %v8559
    %v8948 = vpack.c.bf16 %v8564, %v8560
    %v8949 = vpack.c.bf16 %v8565, %v8561
    %v8950 = vpack.c.bf16 %v8570, %v8566
    %v8951 = vpack.c.bf16 %v8571, %v8567
    %v8952 = vpack.c.bf16 %v8572, %v8568
    %v8953 = vpack.c.bf16 %v8573, %v8569
    %v8954 = vpack.c.bf16 %v8578, %v8574
    %v8955 = vpack.c.bf16 %v8579, %v8575
    %v8956 = vpack.c.bf16 %v8580, %v8576
    %v8957 = vpack.c.bf16 %v8581, %v8577
    %v8958 = vpack.c.bf16 %v8586, %v8582
    %v8959 = vpack.c.bf16 %v8587, %v8583
    %v8960 = vpack.c.bf16 %v8588, %v8584
    %v8961 = vpack.c.bf16 %v8589, %v8585
    %v8962 = vpack.c.bf16 %v8594, %v8590
    %v8963 = vpack.c.bf16 %v8595, %v8591
    %v8964 = vpack.c.bf16 %v8596, %v8592
    %v8965 = vpack.c.bf16 %v8597, %v8593
    %v8966 = vpack.c.bf16 %v8602, %v8598
    %v8967 = vpack.c.bf16 %v8603, %v8599
    %v8968 = vpack.c.bf16 %v8604, %v8600
    %v8969 = vpack.c.bf16 %v8605, %v8601
    %v8970 = vpack.c.bf16 %v8610, %v8606
    %v8971 = vpack.c.bf16 %v8611, %v8607
    %v8972 = vpack.c.bf16 %v8612, %v8608
    %v8973 = vpack.c.bf16 %v8613, %v8609
    %v8974 = vpack.c.bf16 %v8618, %v8614
    %v8975 = vpack.c.bf16 %v8619, %v8615
    %v8976 = vpack.c.bf16 %v8620, %v8616
    %v8977 = vpack.c.bf16 %v8621, %v8617
    %v8978 = vpack.c.bf16 %v8626, %v8622
    %v8979 = vpack.c.bf16 %v8627, %v8623
    %v8980 = vpack.c.bf16 %v8628, %v8624
    %v8981 = vpack.c.bf16 %v8629, %v8625
    %v8982 = vpack.c.bf16 %v8634, %v8630
    %v8983 = vpack.c.bf16 %v8635, %v8631
    %v8984 = vpack.c.bf16 %v8636, %v8632
    %v8985 = vpack.c.bf16 %v8637, %v8633
    %v8986 = vpack.c.bf16 %v8642, %v8638
    %v8987 = vpack.c.bf16 %v8643, %v8639
    %v8988 = vpack.c.bf16 %v8644, %v8640
    %v8989 = vpack.c.bf16 %v8645, %v8641
    %v8990 = vpack.c.bf16 %v8650, %v8646
    %v8991 = vpack.c.bf16 %v8651, %v8647
    %v8992 = vpack.c.bf16 %v8652, %v8648
    %v8993 = vpack.c.bf16 %v8653, %v8649
    %v8994 = vpack.c.bf16 %v8658, %v8654
    %v8995 = vpack.c.bf16 %v8659, %v8655
    %v8996 = vpack.c.bf16 %v8660, %v8656
    %v8997 = vpack.c.bf16 %v8661, %v8657
    %v8998 = vpack.c.bf16 %v8666, %v8662
    %v8999 = vpack.c.bf16 %v8667, %v8663
    %v9000 = vpack.c.bf16 %v8668, %v8664
    %v9001 = vpack.c.bf16 %v8669, %v8665
    %v9002 = vpack.c.bf16 %v8674, %v8670
    %v9003 = vpack.c.bf16 %v8675, %v8671
    %v9004 = vpack.c.bf16 %v8676, %v8672
    %v9005 = vpack.c.bf16 %v8677, %v8673
    %v9006 = vpack.c.bf16 %v8682, %v8678
    %v9007 = vpack.c.bf16 %v8683, %v8679
    %v9008 = vpack.c.bf16 %v8684, %v8680
    %v9009 = vpack.c.bf16 %v8685, %v8681
    %v9010 = vpack.c.bf16 %v8690, %v8686
    %v9011 = vpack.c.bf16 %v8691, %v8687
    %v9012 = vpack.c.bf16 %v8692, %v8688
    %v9013 = vpack.c.bf16 %v8693, %v8689
    %v9014 = vpack.c.bf16 %v8698, %v8694
    %v9015 = vpack.c.bf16 %v8699, %v8695
    %v9016 = vpack.c.bf16 %v8700, %v8696
    %v9017 = vpack.c.bf16 %v8701, %v8697
    %v9018 = vpack.c.bf16 %v8706, %v8702
    %v9019 = vpack.c.bf16 %v8707, %v8703
    %v9020 = vpack.c.bf16 %v8708, %v8704
    %v9021 = vpack.c.bf16 %v8709, %v8705
    %v9022 = vpack.c.bf16 %v8714, %v8710
    %v9023 = vpack.c.bf16 %v8715, %v8711
    %v9024 = vpack.c.bf16 %v8716, %v8712
    %v9025 = vpack.c.bf16 %v8717, %v8713
    %v9026 = vpack.c.bf16 %v8722, %v8718
    %v9027 = vpack.c.bf16 %v8723, %v8719
    %v9028 = vpack.c.bf16 %v8724, %v8720
    %v9029 = vpack.c.bf16 %v8725, %v8721
    %v9030 = vpack.c.bf16 %v8730, %v8726
    %v9031 = vpack.c.bf16 %v8731, %v8727
    %v9032 = vpack.c.bf16 %v8732, %v8728
    %v9033 = vpack.c.bf16 %v8733, %v8729
    %v9034 = vpack.c.bf16 %v8738, %v8734
    %v9035 = vpack.c.bf16 %v8739, %v8735
    %v9036 = vpack.c.bf16 %v8740, %v8736
    %v9037 = vpack.c.bf16 %v8741, %v8737
    %v9038 = vpack.c.bf16 %v8746, %v8742
    %v9039 = vpack.c.bf16 %v8747, %v8743
    %v9040 = vpack.c.bf16 %v8748, %v8744
    %v9041 = vpack.c.bf16 %v8749, %v8745
    %v9042 = vpack.c.bf16 %v8754, %v8750
    %v9043 = vpack.c.bf16 %v8755, %v8751
    %v9044 = vpack.c.bf16 %v8756, %v8752
    %v9045 = vpack.c.bf16 %v8757, %v8753
    %v9046 = vpack.c.bf16 %v8762, %v8758
    %v9047 = vpack.c.bf16 %v8763, %v8759
    %v9048 = vpack.c.bf16 %v8764, %v8760
    %v9049 = vpack.c.bf16 %v8765, %v8761
    %v9050 = vpack.c.bf16 %v8770, %v8766
    %v9051 = vpack.c.bf16 %v8771, %v8767
    %v9052 = vpack.c.bf16 %v8772, %v8768
    %v9053 = vpack.c.bf16 %v8773, %v8769
    %v9054 = vpack.c.bf16 %v8778, %v8774
    %v9055 = vpack.c.bf16 %v8779, %v8775
    %v9056 = vpack.c.bf16 %v8780, %v8776
    %v9057 = vpack.c.bf16 %v8781, %v8777
    %v9058 = vpack.c.bf16 %v8786, %v8782
    %v9059 = vpack.c.bf16 %v8787, %v8783
    %v9060 = vpack.c.bf16 %v8788, %v8784
    %v9061 = vpack.c.bf16 %v8789, %v8785
    %v9062 = vpack.c.bf16 %v8794, %v8790
    %v9063 = vpack.c.bf16 %v8795, %v8791
    %v9064 = vpack.c.bf16 %v8796, %v8792
    %v9065 = vpack.c.bf16 %v8797, %v8793
    %v9066 = vpack.c.bf16 %v8802, %v8798
    %v9067 = vpack.c.bf16 %v8803, %v8799
    %v9068 = vpack.c.bf16 %v8804, %v8800
    %v9069 = vpack.c.bf16 %v8805, %v8801
    %v9070 = vpack.c.bf16 %v8810, %v8806
    %v9071 = vpack.c.bf16 %v8811, %v8807
    %v9072 = vpack.c.bf16 %v8812, %v8808
    %v9073 = vpack.c.bf16 %v8813, %v8809
    %v9074 = vpack.c.bf16 %v8818, %v8814
    %v9075 = vpack.c.bf16 %v8819, %v8815
    %v9076 = vpack.c.bf16 %v8820, %v8816
    %v9077 = vpack.c.bf16 %v8821, %v8817
    %v9078 = vld [vmem:[%s8] sm:$0xf]
    %v9079 = vld [vmem:[%s9] sm:$0xf]
    %9080 = vmatpush.bf16.msra.mxu0 %v8850
    %9081 = vmatpush.bf16.msra.mxu0 %v8846
    %9082 = vmatpush.bf16.msra.mxu0 %v8842
    %9083 = vmatpush.bf16.msra.mxu0 %v8838
    %9084 = vmatpush.bf16.msra.mxu0 %v8834
    %9085 = vmatpush.bf16.msra.mxu0 %v8830
    %9086 = vmatpush.bf16.msra.mxu0 %v8826
    %9087 = vmatpush.bf16.msra.mxu0 %v8822
    %9088 = vmatmul.bf16.gmra.mxu0 %v7662
    %v9089 = vpop.f32.mrf.mxu0
    %v9090 = vadd.f32 0.0, %v9089
    %v9091 = vpop.f32.mrf.mxu0
    %9092 = vdwg.mxu0
    %9093 = vmatpush.bf16.msra.mxu0 %v8882
    %9094 = vmatpush.bf16.msra.mxu0 %v8878
    %9095 = vmatpush.bf16.msra.mxu0 %v8874
    %9096 = vmatpush.bf16.msra.mxu0 %v8870
    %9097 = vmatpush.bf16.msra.mxu0 %v8866
    %9098 = vmatpush.bf16.msra.mxu0 %v8862
    %9099 = vmatpush.bf16.msra.mxu0 %v8858
    %9100 = vmatpush.bf16.msra.mxu0 %v8854
    %9101 = vmatmul.bf16.gmra.mxu0 %v7663
    %v9102 = vpop.f32.mrf.mxu0
    %v9103 = vadd.f32 %v9090, %v9102
    %v9104 = vpop.f32.mrf.mxu0
    %9105 = vdwg.mxu0
    %9106 = vmatpush.bf16.msra.mxu0 %v8914
    %9107 = vmatpush.bf16.msra.mxu0 %v8910
    %9108 = vmatpush.bf16.msra.mxu0 %v8906
    %9109 = vmatpush.bf16.msra.mxu0 %v8902
    %9110 = vmatpush.bf16.msra.mxu0 %v8898
    %9111 = vmatpush.bf16.msra.mxu0 %v8894
    %9112 = vmatpush.bf16.msra.mxu0 %v8890
    %9113 = vmatpush.bf16.msra.mxu0 %v8886
    %9114 = vmatmul.bf16.gmra.mxu0 %v7664
    %v9115 = vpop.f32.mrf.mxu0
    %v9116 = vadd.f32 %v9103, %v9115
    %v9117 = vpop.f32.mrf.mxu0
    %9118 = vdwg.mxu0
    %9119 = vmatpush.bf16.msra.mxu0 %v8946
    %9120 = vmatpush.bf16.msra.mxu0 %v8942
    %9121 = vmatpush.bf16.msra.mxu0 %v8938
    %9122 = vmatpush.bf16.msra.mxu0 %v8934
    %9123 = vmatpush.bf16.msra.mxu0 %v8930
    %9124 = vmatpush.bf16.msra.mxu0 %v8926
    %9125 = vmatpush.bf16.msra.mxu0 %v8922
    %9126 = vmatpush.bf16.msra.mxu0 %v8918
    %9127 = vmatmul.bf16.gmra.mxu0 %v7665
    %v9128 = vpop.f32.mrf.mxu0
    %v9129 = vadd.f32 %v9116, %v9128
    %v9130 = vpop.f32.mrf.mxu0
    %9131 = vdwg.mxu0
    %9132 = vmatpush.bf16.msra.mxu0 %v8978
    %9133 = vmatpush.bf16.msra.mxu0 %v8974
    %9134 = vmatpush.bf16.msra.mxu0 %v8970
    %9135 = vmatpush.bf16.msra.mxu0 %v8966
    %9136 = vmatpush.bf16.msra.mxu0 %v8962
    %9137 = vmatpush.bf16.msra.mxu0 %v8958
    %9138 = vmatpush.bf16.msra.mxu0 %v8954
    %9139 = vmatpush.bf16.msra.mxu0 %v8950
    %9140 = vmatmul.bf16.gmra.mxu0 %v7666
    %v9141 = vpop.f32.mrf.mxu0
    %v9142 = vadd.f32 %v9129, %v9141
    %v9143 = vpop.f32.mrf.mxu0
    %9144 = vdwg.mxu0
    %9145 = vmatpush.bf16.msra.mxu0 %v9010
    %9146 = vmatpush.bf16.msra.mxu0 %v9006
    %9147 = vmatpush.bf16.msra.mxu0 %v9002
    %9148 = vmatpush.bf16.msra.mxu0 %v8998
    %9149 = vmatpush.bf16.msra.mxu0 %v8994
    %9150 = vmatpush.bf16.msra.mxu0 %v8990
    %9151 = vmatpush.bf16.msra.mxu0 %v8986
    %9152 = vmatpush.bf16.msra.mxu0 %v8982
    %9153 = vmatmul.bf16.gmra.mxu0 %v7667
    %v9154 = vpop.f32.mrf.mxu0
    %v9155 = vadd.f32 %v9142, %v9154
    %v9156 = vpop.f32.mrf.mxu0
    %9157 = vdwg.mxu0
    %9158 = vmatpush.bf16.msra.mxu0 %v9042
    %9159 = vmatpush.bf16.msra.mxu0 %v9038
    %9160 = vmatpush.bf16.msra.mxu0 %v9034
    %9161 = vmatpush.bf16.msra.mxu0 %v9030
    %9162 = vmatpush.bf16.msra.mxu0 %v9026
    %9163 = vmatpush.bf16.msra.mxu0 %v9022
    %9164 = vmatpush.bf16.msra.mxu0 %v9018
    %9165 = vmatpush.bf16.msra.mxu0 %v9014
    %9166 = vmatmul.bf16.gmra.mxu0 %v7668
    %v9167 = vpop.f32.mrf.mxu0
    %v9168 = vadd.f32 %v9155, %v9167
    %v9169 = vpop.f32.mrf.mxu0
    %9170 = vdwg.mxu0
    %9171 = vmatpush.bf16.msra.mxu0 %v9074
    %9172 = vmatpush.bf16.msra.mxu0 %v9070
    %9173 = vmatpush.bf16.msra.mxu0 %v9066
    %9174 = vmatpush.bf16.msra.mxu0 %v9062
    %9175 = vmatpush.bf16.msra.mxu0 %v9058
    %9176 = vmatpush.bf16.msra.mxu0 %v9054
    %9177 = vmatpush.bf16.msra.mxu0 %v9050
    %9178 = vmatpush.bf16.msra.mxu0 %v9046
    %9179 = vmatmul.bf16.gmra.mxu0 %v7669
    %v9180 = vpop.f32.mrf.mxu0
    %v9181 = vadd.f32 %v9168, %v9180
    %v9182 = vpop.f32.mrf.mxu0
    %9183 = vdwg.mxu0
    %9184 = vmatpush.bf16.msra.mxu0 %v8851
    %9185 = vmatpush.bf16.msra.mxu0 %v8847
    %9186 = vmatpush.bf16.msra.mxu0 %v8843
    %9187 = vmatpush.bf16.msra.mxu0 %v8839
    %9188 = vmatpush.bf16.msra.mxu0 %v8835
    %9189 = vmatpush.bf16.msra.mxu0 %v8831
    %9190 = vmatpush.bf16.msra.mxu0 %v8827
    %9191 = vmatpush.bf16.msra.mxu0 %v8823
    %9192 = vmatmul.bf16.gmra.mxu0 %v7662
    %v9193 = vpop.f32.mrf.mxu0
    %v9194 = vadd.f32 0.0, %v9193
    %v9195 = vpop.f32.mrf.mxu0
    %9196 = vdwg.mxu0
    %9197 = vmatpush.bf16.msra.mxu0 %v8883
    %9198 = vmatpush.bf16.msra.mxu0 %v8879
    %9199 = vmatpush.bf16.msra.mxu0 %v8875
    %9200 = vmatpush.bf16.msra.mxu0 %v8871
    %9201 = vmatpush.bf16.msra.mxu0 %v8867
    %9202 = vmatpush.bf16.msra.mxu0 %v8863
    %9203 = vmatpush.bf16.msra.mxu0 %v8859
    %9204 = vmatpush.bf16.msra.mxu0 %v8855
    %9205 = vmatmul.bf16.gmra.mxu0 %v7663
    %v9206 = vpop.f32.mrf.mxu0
    %v9207 = vadd.f32 %v9194, %v9206
    %v9208 = vpop.f32.mrf.mxu0
    %9209 = vdwg.mxu0
    %9210 = vmatpush.bf16.msra.mxu0 %v8915
    %9211 = vmatpush.bf16.msra.mxu0 %v8911
    %9212 = vmatpush.bf16.msra.mxu0 %v8907
    %9213 = vmatpush.bf16.msra.mxu0 %v8903
    %9214 = vmatpush.bf16.msra.mxu0 %v8899
    %9215 = vmatpush.bf16.msra.mxu0 %v8895
    %9216 = vmatpush.bf16.msra.mxu0 %v8891
    %9217 = vmatpush.bf16.msra.mxu0 %v8887
    %9218 = vmatmul.bf16.gmra.mxu0 %v7664
    %v9219 = vpop.f32.mrf.mxu0
    %v9220 = vadd.f32 %v9207, %v9219
    %v9221 = vpop.f32.mrf.mxu0
    %9222 = vdwg.mxu0
    %9223 = vmatpush.bf16.msra.mxu0 %v8947
    %9224 = vmatpush.bf16.msra.mxu0 %v8943
    %9225 = vmatpush.bf16.msra.mxu0 %v8939
    %9226 = vmatpush.bf16.msra.mxu0 %v8935
    %9227 = vmatpush.bf16.msra.mxu0 %v8931
    %9228 = vmatpush.bf16.msra.mxu0 %v8927
    %9229 = vmatpush.bf16.msra.mxu0 %v8923
    %9230 = vmatpush.bf16.msra.mxu0 %v8919
    %9231 = vmatmul.bf16.gmra.mxu0 %v7665
    %v9232 = vpop.f32.mrf.mxu0
    %v9233 = vadd.f32 %v9220, %v9232
    %v9234 = vpop.f32.mrf.mxu0
    %9235 = vdwg.mxu0
    %9236 = vmatpush.bf16.msra.mxu0 %v8979
    %9237 = vmatpush.bf16.msra.mxu0 %v8975
    %9238 = vmatpush.bf16.msra.mxu0 %v8971
    %9239 = vmatpush.bf16.msra.mxu0 %v8967
    %9240 = vmatpush.bf16.msra.mxu0 %v8963
    %9241 = vmatpush.bf16.msra.mxu0 %v8959
    %9242 = vmatpush.bf16.msra.mxu0 %v8955
    %9243 = vmatpush.bf16.msra.mxu0 %v8951
    %9244 = vmatmul.bf16.gmra.mxu0 %v7666
    %v9245 = vpop.f32.mrf.mxu0
    %v9246 = vadd.f32 %v9233, %v9245
    %v9247 = vpop.f32.mrf.mxu0
    %9248 = vdwg.mxu0
    %9249 = vmatpush.bf16.msra.mxu0 %v9011
    %9250 = vmatpush.bf16.msra.mxu0 %v9007
    %9251 = vmatpush.bf16.msra.mxu0 %v9003
    %9252 = vmatpush.bf16.msra.mxu0 %v8999
    %9253 = vmatpush.bf16.msra.mxu0 %v8995
    %9254 = vmatpush.bf16.msra.mxu0 %v8991
    %9255 = vmatpush.bf16.msra.mxu0 %v8987
    %9256 = vmatpush.bf16.msra.mxu0 %v8983
    %9257 = vmatmul.bf16.gmra.mxu0 %v7667
    %v9258 = vpop.f32.mrf.mxu0
    %v9259 = vadd.f32 %v9246, %v9258
    %v9260 = vpop.f32.mrf.mxu0
    %9261 = vdwg.mxu0
    %9262 = vmatpush.bf16.msra.mxu0 %v9043
    %9263 = vmatpush.bf16.msra.mxu0 %v9039
    %9264 = vmatpush.bf16.msra.mxu0 %v9035
    %9265 = vmatpush.bf16.msra.mxu0 %v9031
    %9266 = vmatpush.bf16.msra.mxu0 %v9027
    %9267 = vmatpush.bf16.msra.mxu0 %v9023
    %9268 = vmatpush.bf16.msra.mxu0 %v9019
    %9269 = vmatpush.bf16.msra.mxu0 %v9015
    %9270 = vmatmul.bf16.gmra.mxu0 %v7668
    %v9271 = vpop.f32.mrf.mxu0
    %v9272 = vadd.f32 %v9259, %v9271
    %v9273 = vpop.f32.mrf.mxu0
    %9274 = vdwg.mxu0
    %9275 = vmatpush.bf16.msra.mxu0 %v9075
    %9276 = vmatpush.bf16.msra.mxu0 %v9071
    %9277 = vmatpush.bf16.msra.mxu0 %v9067
    %9278 = vmatpush.bf16.msra.mxu0 %v9063
    %9279 = vmatpush.bf16.msra.mxu0 %v9059
    %9280 = vmatpush.bf16.msra.mxu0 %v9055
    %9281 = vmatpush.bf16.msra.mxu0 %v9051
    %9282 = vmatpush.bf16.msra.mxu0 %v9047
    %9283 = vmatmul.bf16.gmra.mxu0 %v7669
    %v9284 = vpop.f32.mrf.mxu0
    %v9285 = vadd.f32 %v9272, %v9284
    %v9286 = vpop.f32.mrf.mxu0
    %9287 = vdwg.mxu0
    %9288 = vmatpush.bf16.msra.mxu0 %v8852
    %9289 = vmatpush.bf16.msra.mxu0 %v8848
    %9290 = vmatpush.bf16.msra.mxu0 %v8844
    %9291 = vmatpush.bf16.msra.mxu0 %v8840
    %9292 = vmatpush.bf16.msra.mxu0 %v8836
    %9293 = vmatpush.bf16.msra.mxu0 %v8832
    %9294 = vmatpush.bf16.msra.mxu0 %v8828
    %9295 = vmatpush.bf16.msra.mxu0 %v8824
    %9296 = vmatmul.bf16.gmra.mxu0 %v7662
    %v9297 = vpop.f32.mrf.mxu0
    %v9298 = vadd.f32 0.0, %v9297
    %v9299 = vpop.f32.mrf.mxu0
    %9300 = vdwg.mxu0
    %9301 = vmatpush.bf16.msra.mxu0 %v8884
    %9302 = vmatpush.bf16.msra.mxu0 %v8880
    %9303 = vmatpush.bf16.msra.mxu0 %v8876
    %9304 = vmatpush.bf16.msra.mxu0 %v8872
    %9305 = vmatpush.bf16.msra.mxu0 %v8868
    %9306 = vmatpush.bf16.msra.mxu0 %v8864
    %9307 = vmatpush.bf16.msra.mxu0 %v8860
    %9308 = vmatpush.bf16.msra.mxu0 %v8856
    %9309 = vmatmul.bf16.gmra.mxu0 %v7663
    %v9310 = vpop.f32.mrf.mxu0
    %v9311 = vadd.f32 %v9298, %v9310
    %v9312 = vpop.f32.mrf.mxu0
    %9313 = vdwg.mxu0
    %9314 = vmatpush.bf16.msra.mxu0 %v8916
    %9315 = vmatpush.bf16.msra.mxu0 %v8912
    %9316 = vmatpush.bf16.msra.mxu0 %v8908
    %9317 = vmatpush.bf16.msra.mxu0 %v8904
    %9318 = vmatpush.bf16.msra.mxu0 %v8900
    %9319 = vmatpush.bf16.msra.mxu0 %v8896
    %9320 = vmatpush.bf16.msra.mxu0 %v8892
    %9321 = vmatpush.bf16.msra.mxu0 %v8888
    %9322 = vmatmul.bf16.gmra.mxu0 %v7664
    %v9323 = vpop.f32.mrf.mxu0
    %v9324 = vadd.f32 %v9311, %v9323
    %v9325 = vpop.f32.mrf.mxu0
    %9326 = vdwg.mxu0
    %9327 = vmatpush.bf16.msra.mxu0 %v8948
    %9328 = vmatpush.bf16.msra.mxu0 %v8944
    %9329 = vmatpush.bf16.msra.mxu0 %v8940
    %9330 = vmatpush.bf16.msra.mxu0 %v8936
    %9331 = vmatpush.bf16.msra.mxu0 %v8932
    %9332 = vmatpush.bf16.msra.mxu0 %v8928
    %9333 = vmatpush.bf16.msra.mxu0 %v8924
    %9334 = vmatpush.bf16.msra.mxu0 %v8920
    %9335 = vmatmul.bf16.gmra.mxu0 %v7665
    %v9336 = vpop.f32.mrf.mxu0
    %v9337 = vadd.f32 %v9324, %v9336
    %v9338 = vpop.f32.mrf.mxu0
    %9339 = vdwg.mxu0
    %9340 = vmatpush.bf16.msra.mxu0 %v8980
    %9341 = vmatpush.bf16.msra.mxu0 %v8976
    %9342 = vmatpush.bf16.msra.mxu0 %v8972
    %9343 = vmatpush.bf16.msra.mxu0 %v8968
    %9344 = vmatpush.bf16.msra.mxu0 %v8964
    %9345 = vmatpush.bf16.msra.mxu0 %v8960
    %9346 = vmatpush.bf16.msra.mxu0 %v8956
    %9347 = vmatpush.bf16.msra.mxu0 %v8952
    %9348 = vmatmul.bf16.gmra.mxu0 %v7666
    %v9349 = vpop.f32.mrf.mxu0
    %v9350 = vadd.f32 %v9337, %v9349
    %v9351 = vpop.f32.mrf.mxu0
    %9352 = vdwg.mxu0
    %9353 = vmatpush.bf16.msra.mxu0 %v9012
    %9354 = vmatpush.bf16.msra.mxu0 %v9008
    %9355 = vmatpush.bf16.msra.mxu0 %v9004
    %9356 = vmatpush.bf16.msra.mxu0 %v9000
    %9357 = vmatpush.bf16.msra.mxu0 %v8996
    %9358 = vmatpush.bf16.msra.mxu0 %v8992
    %9359 = vmatpush.bf16.msra.mxu0 %v8988
    %9360 = vmatpush.bf16.msra.mxu0 %v8984
    %9361 = vmatmul.bf16.gmra.mxu0 %v7667
    %v9362 = vpop.f32.mrf.mxu0
    %v9363 = vadd.f32 %v9350, %v9362
    %v9364 = vpop.f32.mrf.mxu0
    %9365 = vdwg.mxu0
    %9366 = vmatpush.bf16.msra.mxu0 %v9044
    %9367 = vmatpush.bf16.msra.mxu0 %v9040
    %9368 = vmatpush.bf16.msra.mxu0 %v9036
    %9369 = vmatpush.bf16.msra.mxu0 %v9032
    %9370 = vmatpush.bf16.msra.mxu0 %v9028
    %9371 = vmatpush.bf16.msra.mxu0 %v9024
    %9372 = vmatpush.bf16.msra.mxu0 %v9020
    %9373 = vmatpush.bf16.msra.mxu0 %v9016
    %9374 = vmatmul.bf16.gmra.mxu0 %v7668
    %v9375 = vpop.f32.mrf.mxu0
    %v9376 = vadd.f32 %v9363, %v9375
    %v9377 = vpop.f32.mrf.mxu0
    %9378 = vdwg.mxu0
    %9379 = vmatpush.bf16.msra.mxu0 %v9076
    %9380 = vmatpush.bf16.msra.mxu0 %v9072
    %9381 = vmatpush.bf16.msra.mxu0 %v9068
    %9382 = vmatpush.bf16.msra.mxu0 %v9064
    %9383 = vmatpush.bf16.msra.mxu0 %v9060
    %9384 = vmatpush.bf16.msra.mxu0 %v9056
    %9385 = vmatpush.bf16.msra.mxu0 %v9052
    %9386 = vmatpush.bf16.msra.mxu0 %v9048
    %9387 = vmatmul.bf16.gmra.mxu0 %v7669
    %v9388 = vpop.f32.mrf.mxu0
    %v9389 = vadd.f32 %v9376, %v9388
    %v9390 = vpop.f32.mrf.mxu0
    %9391 = vdwg.mxu0
    %9392 = vmatpush.bf16.msra.mxu0 %v8853
    %9393 = vmatpush.bf16.msra.mxu0 %v8849
    %9394 = vmatpush.bf16.msra.mxu0 %v8845
    %9395 = vmatpush.bf16.msra.mxu0 %v8841
    %9396 = vmatpush.bf16.msra.mxu0 %v8837
    %9397 = vmatpush.bf16.msra.mxu0 %v8833
    %9398 = vmatpush.bf16.msra.mxu0 %v8829
    %9399 = vmatpush.bf16.msra.mxu0 %v8825
    %9400 = vmatmul.bf16.gmra.mxu0 %v7662
    %v9401 = vpop.f32.mrf.mxu0
    %v9402 = vadd.f32 0.0, %v9401
    %v9403 = vpop.f32.mrf.mxu0
    %9404 = vdwg.mxu0
    %9405 = vmatpush.bf16.msra.mxu0 %v8885
    %9406 = vmatpush.bf16.msra.mxu0 %v8881
    %9407 = vmatpush.bf16.msra.mxu0 %v8877
    %9408 = vmatpush.bf16.msra.mxu0 %v8873
    %9409 = vmatpush.bf16.msra.mxu0 %v8869
    %9410 = vmatpush.bf16.msra.mxu0 %v8865
    %9411 = vmatpush.bf16.msra.mxu0 %v8861
    %9412 = vmatpush.bf16.msra.mxu0 %v8857
    %9413 = vmatmul.bf16.gmra.mxu0 %v7663
    %v9414 = vpop.f32.mrf.mxu0
    %v9415 = vadd.f32 %v9402, %v9414
    %v9416 = vpop.f32.mrf.mxu0
    %9417 = vdwg.mxu0
    %9418 = vmatpush.bf16.msra.mxu0 %v8917
    %9419 = vmatpush.bf16.msra.mxu0 %v8913
    %9420 = vmatpush.bf16.msra.mxu0 %v8909
    %9421 = vmatpush.bf16.msra.mxu0 %v8905
    %9422 = vmatpush.bf16.msra.mxu0 %v8901
    %9423 = vmatpush.bf16.msra.mxu0 %v8897
    %9424 = vmatpush.bf16.msra.mxu0 %v8893
    %9425 = vmatpush.bf16.msra.mxu0 %v8889
    %9426 = vmatmul.bf16.gmra.mxu0 %v7664
    %v9427 = vpop.f32.mrf.mxu0
    %v9428 = vadd.f32 %v9415, %v9427
    %v9429 = vpop.f32.mrf.mxu0
    %9430 = vdwg.mxu0
    %9431 = vmatpush.bf16.msra.mxu0 %v8949
    %9432 = vmatpush.bf16.msra.mxu0 %v8945
    %9433 = vmatpush.bf16.msra.mxu0 %v8941
    %9434 = vmatpush.bf16.msra.mxu0 %v8937
    %9435 = vmatpush.bf16.msra.mxu0 %v8933
    %9436 = vmatpush.bf16.msra.mxu0 %v8929
    %9437 = vmatpush.bf16.msra.mxu0 %v8925
    %9438 = vmatpush.bf16.msra.mxu0 %v8921
    %9439 = vmatmul.bf16.gmra.mxu0 %v7665
    %v9440 = vpop.f32.mrf.mxu0
    %v9441 = vadd.f32 %v9428, %v9440
    %v9442 = vpop.f32.mrf.mxu0
    %9443 = vdwg.mxu0
    %9444 = vmatpush.bf16.msra.mxu0 %v8981
    %9445 = vmatpush.bf16.msra.mxu0 %v8977
    %9446 = vmatpush.bf16.msra.mxu0 %v8973
    %9447 = vmatpush.bf16.msra.mxu0 %v8969
    %9448 = vmatpush.bf16.msra.mxu0 %v8965
    %9449 = vmatpush.bf16.msra.mxu0 %v8961
    %9450 = vmatpush.bf16.msra.mxu0 %v8957
    %9451 = vmatpush.bf16.msra.mxu0 %v8953
    %9452 = vmatmul.bf16.gmra.mxu0 %v7666
    %v9453 = vpop.f32.mrf.mxu0
    %v9454 = vadd.f32 %v9441, %v9453
    %v9455 = vpop.f32.mrf.mxu0
    %9456 = vdwg.mxu0
    %9457 = vmatpush.bf16.msra.mxu0 %v9013
    %9458 = vmatpush.bf16.msra.mxu0 %v9009
    %9459 = vmatpush.bf16.msra.mxu0 %v9005
    %9460 = vmatpush.bf16.msra.mxu0 %v9001
    %9461 = vmatpush.bf16.msra.mxu0 %v8997
    %9462 = vmatpush.bf16.msra.mxu0 %v8993
    %9463 = vmatpush.bf16.msra.mxu0 %v8989
    %9464 = vmatpush.bf16.msra.mxu0 %v8985
    %9465 = vmatmul.bf16.gmra.mxu0 %v7667
    %v9466 = vpop.f32.mrf.mxu0
    %v9467 = vadd.f32 %v9454, %v9466
    %v9468 = vpop.f32.mrf.mxu0
    %9469 = vdwg.mxu0
    %9470 = vmatpush.bf16.msra.mxu0 %v9045
    %9471 = vmatpush.bf16.msra.mxu0 %v9041
    %9472 = vmatpush.bf16.msra.mxu0 %v9037
    %9473 = vmatpush.bf16.msra.mxu0 %v9033
    %9474 = vmatpush.bf16.msra.mxu0 %v9029
    %9475 = vmatpush.bf16.msra.mxu0 %v9025
    %9476 = vmatpush.bf16.msra.mxu0 %v9021
    %9477 = vmatpush.bf16.msra.mxu0 %v9017
    %9478 = vmatmul.bf16.gmra.mxu0 %v7668
    %v9479 = vpop.f32.mrf.mxu0
    %v9480 = vadd.f32 %v9467, %v9479
    %v9481 = vpop.f32.mrf.mxu0
    %9482 = vdwg.mxu0
    %9483 = vmatpush.bf16.msra.mxu0 %v9077
    %9484 = vmatpush.bf16.msra.mxu0 %v9073
    %9485 = vmatpush.bf16.msra.mxu0 %v9069
    %9486 = vmatpush.bf16.msra.mxu0 %v9065
    %9487 = vmatpush.bf16.msra.mxu0 %v9061
    %9488 = vmatpush.bf16.msra.mxu0 %v9057
    %9489 = vmatpush.bf16.msra.mxu0 %v9053
    %9490 = vmatpush.bf16.msra.mxu0 %v9049
    %9491 = vmatmul.bf16.gmra.mxu0 %v7669
    %v9492 = vpop.f32.mrf.mxu0
    %v9493 = vadd.f32 %v9480, %v9492
    %v9494 = vpop.f32.mrf.mxu0
    %9495 = vdwg.mxu0
    %v9497 = vperm.slane %v9078, 0
    %v9498 = vperm.slane %v9078, 1
    %v9499 = vperm.slane %v9078, 2
    %v9500 = vperm.slane %v9078, 3
    %v9505 = vmul.f32 %v9181, %v9497
    %v9506 = vmul.f32 %v9285, %v9498
    %v9507 = vmul.f32 %v9389, %v9499
    %v9508 = vmul.f32 %v9493, %v9500
    %v9510 = vperm.slane %v9079, 0
    %v9511 = vperm.slane %v9079, 1
    %v9512 = vperm.slane %v9079, 2
    %v9513 = vperm.slane %v9079, 3
    %v9518 = vadd.f32 %v9505, %v9510
    %v9519 = vadd.f32 %v9506, %v9511
    %v9520 = vadd.f32 %v9507, %v9512
    %v9521 = vadd.f32 %v9508, %v9513
    %v9522 = vmax.f32 %v9518, 0.0
    %v9523 = vmax.f32 %v9519, 0.0
    %v9524 = vmax.f32 %v9520, 0.0
    %v9525 = vmax.f32 %v9521, 0.0
    %v9526 = vpack.c.bf16 %v9522, %v9522
    %v9527 = vpack.c.bf16 %v9523, %v9523
    %v9528 = vpack.c.bf16 %v9524, %v9524
    %v9529 = vpack.c.bf16 %v9525, %v9525
    %v9530 = vld [vmem:[#allocation8] sm:$0xf]
    %v9531 = vld [vmem:[#allocation8 + $0x4] sm:$0xf]
    %v9532 = vld [vmem:[#allocation8 + $0x8] sm:$0xf]
    %v9533 = vld [vmem:[#allocation8 + $0xc] sm:$0xf]
    %v9534 = vld [vmem:[#allocation8 + $0x10] sm:$0xf]
    %v9535 = vld [vmem:[#allocation8 + $0x14] sm:$0xf]
    %v9536 = vld [vmem:[#allocation8 + $0x18] sm:$0xf]
    %v9537 = vld [vmem:[#allocation8 + $0x1c] sm:$0xf]
    %v9538 = vld [vmem:[#allocation8 + $0x20] sm:$0xf]
    %v9539 = vld [vmem:[#allocation8 + $0x24] sm:$0xf]
    %v9540 = vld [vmem:[#allocation8 + $0x28] sm:$0xf]
    %v9541 = vld [vmem:[#allocation8 + $0x2c] sm:$0xf]
    %v9542 = vld [vmem:[#allocation8 + $0x30] sm:$0xf]
    %v9543 = vld [vmem:[#allocation8 + $0x34] sm:$0xf]
    %v9544 = vld [vmem:[#allocation8 + $0x38] sm:$0xf]
    %v9545 = vld [vmem:[#allocation8 + $0x3c] sm:$0xf]
    %v9546 = vld [vmem:[#allocation8 + $0x40] sm:$0xf]
    %v9547 = vld [vmem:[#allocation8 + $0x44] sm:$0xf]
    %v9548 = vld [vmem:[#allocation8 + $0x48] sm:$0xf]
    %v9549 = vld [vmem:[#allocation8 + $0x4c] sm:$0xf]
    %v9550 = vld [vmem:[#allocation8 + $0x50] sm:$0xf]
    %v9551 = vld [vmem:[#allocation8 + $0x54] sm:$0xf]
    %v9552 = vld [vmem:[#allocation8 + $0x58] sm:$0xf]
    %v9553 = vld [vmem:[#allocation8 + $0x5c] sm:$0xf]
    %v9554 = vld [vmem:[#allocation8 + $0x60] sm:$0xf]
    %v9555 = vld [vmem:[#allocation8 + $0x64] sm:$0xf]
    %v9556 = vld [vmem:[#allocation8 + $0x68] sm:$0xf]
    %v9557 = vld [vmem:[#allocation8 + $0x6c] sm:$0xf]
    %v9558 = vld [vmem:[#allocation8 + $0x70] sm:$0xf]
    %v9559 = vld [vmem:[#allocation8 + $0x74] sm:$0xf]
    %v9560 = vld [vmem:[#allocation8 + $0x78] sm:$0xf]
    %v9561 = vld [vmem:[#allocation8 + $0x7c] sm:$0xf]
    %v9562 = vld [vmem:[#allocation8 + $0x80] sm:$0xf]
    %v9563 = vld [vmem:[#allocation8 + $0x84] sm:$0xf]
    %v9564 = vld [vmem:[#allocation8 + $0x88] sm:$0xf]
    %v9565 = vld [vmem:[#allocation8 + $0x8c] sm:$0xf]
    %v9566 = vld [vmem:[#allocation8 + $0x90] sm:$0xf]
    %v9567 = vld [vmem:[#allocation8 + $0x94] sm:$0xf]
    %v9568 = vld [vmem:[#allocation8 + $0x98] sm:$0xf]
    %v9569 = vld [vmem:[#allocation8 + $0x9c] sm:$0xf]
    %v9570 = vld [vmem:[#allocation8 + $0xa0] sm:$0xf]
    %v9571 = vld [vmem:[#allocation8 + $0xa4] sm:$0xf]
    %v9572 = vld [vmem:[#allocation8 + $0xa8] sm:$0xf]
    %v9573 = vld [vmem:[#allocation8 + $0xac] sm:$0xf]
    %v9574 = vld [vmem:[#allocation8 + $0xb0] sm:$0xf]
    %v9575 = vld [vmem:[#allocation8 + $0xb4] sm:$0xf]
    %v9576 = vld [vmem:[#allocation8 + $0xb8] sm:$0xf]
    %v9577 = vld [vmem:[#allocation8 + $0xbc] sm:$0xf]
    %v9578 = vld [vmem:[#allocation8 + $0xc0] sm:$0xf]
    %v9579 = vld [vmem:[#allocation8 + $0xc4] sm:$0xf]
    %v9580 = vld [vmem:[#allocation8 + $0xc8] sm:$0xf]
    %v9581 = vld [vmem:[#allocation8 + $0xcc] sm:$0xf]
    %v9582 = vld [vmem:[#allocation8 + $0xd0] sm:$0xf]
    %v9583 = vld [vmem:[#allocation8 + $0xd4] sm:$0xf]
    %v9584 = vld [vmem:[#allocation8 + $0xd8] sm:$0xf]
    %v9585 = vld [vmem:[#allocation8 + $0xdc] sm:$0xf]
    %v9586 = vld [vmem:[#allocation8 + $0xe0] sm:$0xf]
    %v9587 = vld [vmem:[#allocation8 + $0xe4] sm:$0xf]
    %v9588 = vld [vmem:[#allocation8 + $0xe8] sm:$0xf]
    %v9589 = vld [vmem:[#allocation8 + $0xec] sm:$0xf]
    %v9590 = vld [vmem:[#allocation8 + $0xf0] sm:$0xf]
    %v9591 = vld [vmem:[#allocation8 + $0xf4] sm:$0xf]
    %v9592 = vld [vmem:[#allocation8 + $0xf8] sm:$0xf]
    %v9593 = vld [vmem:[#allocation8 + $0xfc] sm:$0xf]
    %v9594 = vld [vmem:[%s11] sm:$0x1]
    %v9596 = vperm.slane %v9594, 0
    %v9662 = vunpack.c.l.b16 %v9530
    %v9663 = vunpack.c.l.b16 %v9531
    %v9664 = vunpack.c.l.b16 %v9532
    %v9665 = vunpack.c.l.b16 %v9533
    %v9666 = vunpack.c.l.b16 %v9534
    %v9667 = vunpack.c.l.b16 %v9535
    %v9668 = vunpack.c.l.b16 %v9536
    %v9669 = vunpack.c.l.b16 %v9537
    %v9670 = vunpack.c.l.b16 %v9538
    %v9671 = vunpack.c.l.b16 %v9539
    %v9672 = vunpack.c.l.b16 %v9540
    %v9673 = vunpack.c.l.b16 %v9541
    %v9674 = vunpack.c.l.b16 %v9542
    %v9675 = vunpack.c.l.b16 %v9543
    %v9676 = vunpack.c.l.b16 %v9544
    %v9677 = vunpack.c.l.b16 %v9545
    %v9678 = vunpack.c.l.b16 %v9546
    %v9679 = vunpack.c.l.b16 %v9547
    %v9680 = vunpack.c.l.b16 %v9548
    %v9681 = vunpack.c.l.b16 %v9549
    %v9682 = vunpack.c.l.b16 %v9550
    %v9683 = vunpack.c.l.b16 %v9551
    %v9684 = vunpack.c.l.b16 %v9552
    %v9685 = vunpack.c.l.b16 %v9553
    %v9686 = vunpack.c.l.b16 %v9554
    %v9687 = vunpack.c.l.b16 %v9555
    %v9688 = vunpack.c.l.b16 %v9556
    %v9689 = vunpack.c.l.b16 %v9557
    %v9690 = vunpack.c.l.b16 %v9558
    %v9691 = vunpack.c.l.b16 %v9559
    %v9692 = vunpack.c.l.b16 %v9560
    %v9693 = vunpack.c.l.b16 %v9561
    %v9694 = vunpack.c.l.b16 %v9562
    %v9695 = vunpack.c.l.b16 %v9563
    %v9696 = vunpack.c.l.b16 %v9564
    %v9697 = vunpack.c.l.b16 %v9565
    %v9698 = vunpack.c.l.b16 %v9566
    %v9699 = vunpack.c.l.b16 %v9567
    %v9700 = vunpack.c.l.b16 %v9568
    %v9701 = vunpack.c.l.b16 %v9569
    %v9702 = vunpack.c.l.b16 %v9570
    %v9703 = vunpack.c.l.b16 %v9571
    %v9704 = vunpack.c.l.b16 %v9572
    %v9705 = vunpack.c.l.b16 %v9573
    %v9706 = vunpack.c.l.b16 %v9574
    %v9707 = vunpack.c.l.b16 %v9575
    %v9708 = vunpack.c.l.b16 %v9576
    %v9709 = vunpack.c.l.b16 %v9577
    %v9710 = vunpack.c.l.b16 %v9578
    %v9711 = vunpack.c.l.b16 %v9579
    %v9712 = vunpack.c.l.b16 %v9580
    %v9713 = vunpack.c.l.b16 %v9581
    %v9714 = vunpack.c.l.b16 %v9582
    %v9715 = vunpack.c.l.b16 %v9583
    %v9716 = vunpack.c.l.b16 %v9584
    %v9717 = vunpack.c.l.b16 %v9585
    %v9718 = vunpack.c.l.b16 %v9586
    %v9719 = vunpack.c.l.b16 %v9587
    %v9720 = vunpack.c.l.b16 %v9588
    %v9721 = vunpack.c.l.b16 %v9589
    %v9722 = vunpack.c.l.b16 %v9590
    %v9723 = vunpack.c.l.b16 %v9591
    %v9724 = vunpack.c.l.b16 %v9592
    %v9725 = vunpack.c.l.b16 %v9593
    %v9726 = vpack.c.b16 %v9663, %v9662
    %v9727 = vpack.c.b16 %v9665, %v9664
    %v9728 = vpack.c.b16 %v9667, %v9666
    %v9729 = vpack.c.b16 %v9669, %v9668
    %v9730 = vpack.c.b16 %v9671, %v9670
    %v9731 = vpack.c.b16 %v9673, %v9672
    %v9732 = vpack.c.b16 %v9675, %v9674
    %v9733 = vpack.c.b16 %v9677, %v9676
    %v9734 = vpack.c.b16 %v9679, %v9678
    %v9735 = vpack.c.b16 %v9681, %v9680
    %v9736 = vpack.c.b16 %v9683, %v9682
    %v9737 = vpack.c.b16 %v9685, %v9684
    %v9738 = vpack.c.b16 %v9687, %v9686
    %v9739 = vpack.c.b16 %v9689, %v9688
    %v9740 = vpack.c.b16 %v9691, %v9690
    %v9741 = vpack.c.b16 %v9693, %v9692
    %v9742 = vpack.c.b16 %v9695, %v9694
    %v9743 = vpack.c.b16 %v9697, %v9696
    %v9744 = vpack.c.b16 %v9699, %v9698
    %v9745 = vpack.c.b16 %v9701, %v9700
    %v9746 = vpack.c.b16 %v9703, %v9702
    %v9747 = vpack.c.b16 %v9705, %v9704
    %v9748 = vpack.c.b16 %v9707, %v9706
    %v9749 = vpack.c.b16 %v9709, %v9708
    %v9750 = vpack.c.b16 %v9711, %v9710
    %v9751 = vpack.c.b16 %v9713, %v9712
    %v9752 = vpack.c.b16 %v9715, %v9714
    %v9753 = vpack.c.b16 %v9717, %v9716
    %v9754 = vpack.c.b16 %v9719, %v9718
    %v9755 = vpack.c.b16 %v9721, %v9720
    %v9756 = vpack.c.b16 %v9723, %v9722
    %v9757 = vpack.c.b16 %v9725, %v9724
    %9790 = vmatpush.bf16.msra.mxu0 %v9733
    %9791 = vmatpush.bf16.msra.mxu0 %v9732
    %9792 = vmatpush.bf16.msra.mxu0 %v9731
    %9793 = vmatpush.bf16.msra.mxu0 %v9730
    %9794 = vmatpush.bf16.msra.mxu0 %v9729
    %9795 = vmatpush.bf16.msra.mxu0 %v9728
    %9796 = vmatpush.bf16.msra.mxu0 %v9727
    %9797 = vmatpush.bf16.msra.mxu0 %v9726
    %9798 = vmatmul.bf16.gmra.mxu0 %v9526
    %v9799 = vpop.f32.mrf.mxu0
    %v9800 = vadd.f32 %v9596, %v9799
    %v9801 = vpop.f32.mrf.mxu0
    %9802 = vdwg.mxu0
    %9803 = vmatpush.bf16.msra.mxu0 %v9741
    %9804 = vmatpush.bf16.msra.mxu0 %v9740
    %9805 = vmatpush.bf16.msra.mxu0 %v9739
    %9806 = vmatpush.bf16.msra.mxu0 %v9738
    %9807 = vmatpush.bf16.msra.mxu0 %v9737
    %9808 = vmatpush.bf16.msra.mxu0 %v9736
    %9809 = vmatpush.bf16.msra.mxu0 %v9735
    %9810 = vmatpush.bf16.msra.mxu0 %v9734
    %9811 = vmatmul.bf16.gmra.mxu0 %v9527
    %v9812 = vpop.f32.mrf.mxu0
    %v9813 = vadd.f32 %v9800, %v9812
    %v9814 = vpop.f32.mrf.mxu0
    %9815 = vdwg.mxu0
    %9816 = vmatpush.bf16.msra.mxu0 %v9749
    %9817 = vmatpush.bf16.msra.mxu0 %v9748
    %9818 = vmatpush.bf16.msra.mxu0 %v9747
    %9819 = vmatpush.bf16.msra.mxu0 %v9746
    %9820 = vmatpush.bf16.msra.mxu0 %v9745
    %9821 = vmatpush.bf16.msra.mxu0 %v9744
    %9822 = vmatpush.bf16.msra.mxu0 %v9743
    %9823 = vmatpush.bf16.msra.mxu0 %v9742
    %9824 = vmatmul.bf16.gmra.mxu0 %v9528
    %v9825 = vpop.f32.mrf.mxu0
    %v9826 = vadd.f32 %v9813, %v9825
    %v9827 = vpop.f32.mrf.mxu0
    %9828 = vdwg.mxu0
    %9829 = vmatpush.bf16.msra.mxu0 %v9757
    %9830 = vmatpush.bf16.msra.mxu0 %v9756
    %9831 = vmatpush.bf16.msra.mxu0 %v9755
    %9832 = vmatpush.bf16.msra.mxu0 %v9754
    %9833 = vmatpush.bf16.msra.mxu0 %v9753
    %9834 = vmatpush.bf16.msra.mxu0 %v9752
    %9835 = vmatpush.bf16.msra.mxu0 %v9751
    %9836 = vmatpush.bf16.msra.mxu0 %v9750
    %9837 = vmatmul.bf16.gmra.mxu0 %v9529
    %v9838 = vpop.f32.mrf.mxu0
    %v9839 = vadd.f32 %v9826, %v9838
    %v9840 = vpop.f32.mrf.mxu0
    %9841 = vdwg.mxu0
    %9842 = vst [vmem:[#allocation10] sm:$0xff] %v9839
    // Predicated region
    $region66: #{mlp_forward.1} parent=1 // pred_check
      _
    $region67: #{mlp_forward.1} parent=1 // pred_check_branch
      %9844 = sbr.rel (0) target = $region69
    $region68: #{mlp_forward.1} parent=1 // pred_region
      %9846 = vsyncadd [#allocation4], 0
      %s9848 = sshll.u32 [#allocation10], 4
      %s9849 = int_to_ptr.vmem [resolvable:$true] %s9848
      %s9850 = sshll.u32 %s12, 4
      %s9851 = int_to_ptr.hbm [resolvable:$true] %s9850
      %9853 = dma.vmem_to_hbm [thread:$0]  %s9849, 128, %s9851, [#allocation4]
    $region69: #{mlp_forward.1} parent=1 // pred_fallthru
      _
    // Predicated region
    $region70: #{mlp_forward.1} parent=1 // pred_check
      _
    $region71: #{mlp_forward.1} parent=1 // pred_check_branch
      %9855 = sbr.rel (0) target = $region73
    $region72: #{mlp_forward.1} parent=1 // pred_region
      %9857 = dma.done [#allocation4], 128
    $region73: #{mlp_forward.1} parent=1 // pred_fallthru
      _
    %9858 = vsyncpa [#allocation3], 1
    %9859 = vsyncpa [#allocation6], 1
    %9860 = vsyncpa [#allocation9], 1
    %9861 = vsyncpa [#allocation4], 1

</llo_original>
